<compile_context>
chip_gen: v7x
topology: tpu7x:2x2x1
jax: 0.10.0
libtpu: 0.0.40
codegen_flags: <defaults>
</compile_context>

<pallas_src>
import functools

import jax
import jax.numpy as jnp
from jax import lax
from jax.experimental import pallas as pl
from jax.experimental.pallas import tpu as pltpu

_INV_SQRT2 = 0.7071067811865476


def _pick_tile(m, cap=512):
    for t in (cap, 256, 128, 64, 32, 16, 8):
        if t <= m and m % t == 0:
            return t
    return m


# ----------------- fused attention block kernel (grid over batch) -----------------

def _attn_block_kernel(xs_ref, xt_ref, cor_ref,
                       g1_ref, b1_ref,
                       qw_ref, qb_ref,
                       kvw_ref, kvb_ref,
                       cw_ref, cb_ref,
                       pw_ref, pb_ref,
                       mw_ref, mb_ref,
                       feat_ref, mot_ref,
                       *, num_heads, scale, eps):
    xs = xs_ref[0].astype(jnp.float32)      # [N, C] raw tokens for feat_s
    xt = xt_ref[0].astype(jnp.float32)      # [N, C] raw tokens for feat_t (batch-swapped view)
    g1 = g1_ref[...].astype(jnp.float32)    # [1, C]
    b1 = b1_ref[...].astype(jnp.float32)

    def ln(x):
        mu = jnp.mean(x, axis=-1, keepdims=True)
        var = jnp.mean((x - mu) ** 2, axis=-1, keepdims=True)
        return (x - mu) * lax.rsqrt(var + eps) * g1 + b1

    ys = ln(xs)                             # post-norm feat_s (also the residual)
    yt = ln(xt)                             # post-norm feat_t

    q = jnp.dot(ys.astype(jnp.bfloat16), qw_ref[...],
                preferred_element_type=jnp.float32) + qb_ref[...]
    kv = jnp.dot(yt.astype(jnp.bfloat16), kvw_ref[...],
                 preferred_element_type=jnp.float32) + kvb_ref[...]
    C = q.shape[-1]
    k = kv[:, :C]
    v = kv[:, C:]

    # cor_embed: Din = 2 -> VPU broadcast-MACs instead of a 2-wide MXU contraction
    cor = cor_ref[...].astype(jnp.float32)  # [N, 2]
    cw = cw_ref[...].astype(jnp.float32)    # [2, Mo]
    ce = cor[:, 0:1] * cw[0:1, :] + cor[:, 1:2] * cw[1:2, :] + cb_ref[...]   # [N, Mo]

    q = q * scale                           # fold softmax scale into q (N*C, not N*N elems)
    Mo = ce.shape[-1]
    hd = C // num_heads
    mhd = Mo // num_heads

    x_parts = []
    c_parts = []
    for h in range(num_heads):
        qh = q[:, h * hd:(h + 1) * hd].astype(jnp.bfloat16)
        kh = k[:, h * hd:(h + 1) * hd].astype(jnp.bfloat16)
        # contract last dims of both operands: no explicit K transpose
        s = lax.dot_general(qh, kh, (((1,), (1,)), ((), ())),
                            preferred_element_type=jnp.float32)     # [N, N]
        m = jnp.max(s, axis=-1, keepdims=True)
        p = jnp.exp(s - m)
        denom = jnp.sum(p, axis=-1, keepdims=True)
        attn = p * pl.reciprocal(denom, approx=True)
        # single MXU pass of attn over BOTH v and cor_embed
        vc = jnp.concatenate([v[:, h * hd:(h + 1) * hd],
                              ce[:, h * mhd:(h + 1) * mhd]], axis=-1)
        o = jnp.dot(attn.astype(jnp.bfloat16), vc.astype(jnp.bfloat16),
                    preferred_element_type=jnp.float32)              # [N, hd+mhd]
        x_parts.append(o[:, :hd])
        c_parts.append(o[:, hd:])

    x_attn = jnp.concatenate(x_parts, axis=-1)   # [N, C]   lane-dense
    c_rev = jnp.concatenate(c_parts, axis=-1)    # [N, Mo]  lane-dense

    # proj + residual (residual is the post-norm feat_s, as in the reference)
    xo = jnp.dot(x_attn.astype(jnp.bfloat16), pw_ref[...],
                 preferred_element_type=jnp.float32) + pb_ref[...]
    feat_ref[0] = (xo + ys).astype(feat_ref.dtype)

    # motion head: motion_proj(c_reverse - cor_embed_)
    d = c_rev - ce
    mo = jnp.dot(d.astype(jnp.bfloat16), mw_ref[...],
                 preferred_element_type=jnp.float32) + mb_ref[...]
    mot_ref[0] = mo.astype(mot_ref.dtype)


def attention_block(x_tok, cor, p, *, num_heads, motion_dim, scale, half):
    # x_tok: [B, N, C] pre-LayerNorm tokens (feat_s order); feat_t is the same array
    # read with a batch offset of `half` through its index_map.
    # NOTE: full NxN scores per head fit easily in VMEM at these N; for N >= ~2K tokens a
    # flash-style KV-tiled variant would be needed (esp. for v7x's 64 MiB VMEM).
    B, N, C = x_tok.shape
    Mo = motion_dim
    c0 = lambda i: (0, 0)
    return pl.pallas_call(
        functools.partial(_attn_block_kernel, num_heads=num_heads, scale=scale, eps=1e-5),
        out_shape=(jax.ShapeDtypeStruct((B, N, C), jnp.float32),
                   jax.ShapeDtypeStruct((B, N, Mo), jnp.float32)),
        grid_spec=pltpu.PrefetchScalarGridSpec(
            num_scalar_prefetch=0,
            grid=(B,),
            in_specs=[
                pl.BlockSpec((1, N, C), lambda i: (i, 0, 0)),
                pl.BlockSpec((1, N, C), lambda i, half=half, B=B: ((i + half) % B, 0, 0)),
                pl.BlockSpec((N, 2), c0),
                pl.BlockSpec((1, C), c0),          # norm1 gamma
                pl.BlockSpec((1, C), c0),          # norm1 beta
                pl.BlockSpec((C, C), c0),          # q_w (bf16)
                pl.BlockSpec((1, C), c0),          # q_b
                pl.BlockSpec((C, 2 * C), c0),      # kv_w (bf16)
                pl.BlockSpec((1, 2 * C), c0),      # kv_b
                pl.BlockSpec((2, Mo), c0),         # cor_w
                pl.BlockSpec((1, Mo), c0),         # cor_b
                pl.BlockSpec((C, C), c0),          # proj_w (bf16)
                pl.BlockSpec((1, C), c0),          # proj_b
                pl.BlockSpec((Mo, Mo), c0),        # motion_w (bf16)
                pl.BlockSpec((1, Mo), c0),         # motion_b
            ],
            out_specs=(pl.BlockSpec((1, N, C), lambda i: (i, 0, 0)),
                       pl.BlockSpec((1, N, Mo), lambda i: (i, 0, 0))),
        ),
        compiler_params=pltpu.CompilerParams(dimension_semantics=("parallel",)),
    )(x_tok, x_tok, cor,
      p["norm1_g"].reshape(1, C), p["norm1_b"].reshape(1, C),
      p["q_w"].astype(jnp.bfloat16), p["q_b"].reshape(1, C),
      p["kv_w"].astype(jnp.bfloat16), p["kv_b"].reshape(1, 2 * C),
      p["cor_w"], p["cor_b"].reshape(1, Mo),
      p["proj_w"].astype(jnp.bfloat16), p["proj_b"].reshape(1, C),
      p["motion_w"].astype(jnp.bfloat16), p["motion_b"].reshape(1, Mo))


# ------------------------- fused LayerNorm2 + fc1 kernel -------------------------

def _ln_fc1_kernel(x_ref, g_ref, b_ref, w_ref, bias_ref, o_ref, *, eps):
    x = x_ref[...].astype(jnp.float32)
    mu = jnp.mean(x, axis=-1, keepdims=True)
    var = jnp.mean((x - mu) ** 2, axis=-1, keepdims=True)
    y = (x - mu) * lax.rsqrt(var + eps) * g_ref[...] + b_ref[...]
    h = jnp.dot(y.astype(jnp.bfloat16), w_ref[...],
                preferred_element_type=jnp.float32) + bias_ref[...]
    o_ref[...] = h.astype(o_ref.dtype)


def ln_fc1(x2d, g, b, w_bf16, bias, eps=1e-5):
    M, C = x2d.shape
    Dh = w_bf16.shape[1]
    tm = _pick_tile(M)
    return pl.pallas_call(
        functools.partial(_ln_fc1_kernel, eps=eps),
        out_shape=jax.ShapeDtypeStruct((M, Dh), jnp.float32),
        grid_spec=pltpu.PrefetchScalarGridSpec(
            num_scalar_prefetch=0,
            grid=(M // tm,),
            in_specs=[pl.BlockSpec((tm, C), lambda i: (i, 0)),
                      pl.BlockSpec((1, C), lambda i: (0, 0)),
                      pl.BlockSpec((1, C), lambda i: (0, 0)),
                      pl.BlockSpec((C, Dh), lambda i: (0, 0)),
                      pl.BlockSpec((1, Dh), lambda i: (0, 0))],
            out_specs=pl.BlockSpec((tm, Dh), lambda i: (i, 0)),
        ),
        compiler_params=pltpu.CompilerParams(dimension_semantics=("parallel",)),
    )(x2d, g.reshape(1, C), b.reshape(1, C), w_bf16, bias.reshape(1, Dh))


# ---------------- depthwise 3x3 conv + GELU + fc2 + residual kernel ----------------

def _dwconv_fc2_kernel(h_ref, res_ref, dww_ref, dwb_ref, w2_ref, b2_ref, o_ref, *, H, W):
    # Token-space 3x3 depthwise conv: token t = i*W + j, tap (a, c) reads token t + (a-1)*W + (c-1).
    # Row OOB is handled by zero fill of the shifted copies, column OOB by per-column masks.
    x = h_ref[0].astype(jnp.float32)          # [N, Cm]
    N = H * W
    Cm = x.shape[-1]
    wts = dww_ref[...].astype(jnp.float32)    # [9, Cm]
    col = lax.broadcasted_iota(jnp.int32, (N, 1), 0) % W

    def shift_tokens(s):
        if s == 0:
            return x
        if s > 0:
            return jnp.concatenate([x[s:], jnp.zeros((s, Cm), jnp.float32)], axis=0)
        return jnp.concatenate([jnp.zeros((-s, Cm), jnp.float32), x[:N + s]], axis=0)

    acc = jnp.zeros((N, Cm), jnp.float32)
    for a in range(3):
        for c in range(3):
            s = (a - 1) * W + (c - 1)
            xt = shift_tokens(s)
            if c == 0:
                xt = jnp.where(col == 0, 0.0, xt)
            elif c == 2:
                xt = jnp.where(col == W - 1, 0.0, xt)
            acc = acc + xt * wts[a * 3 + c:a * 3 + c + 1, :]
    acc = acc + dwb_ref[...]
    # exact (erf) GELU, matching torch nn.GELU default
    y = 0.5 * acc * (1.0 + lax.erf(acc * _INV_SQRT2))
    out = jnp.dot(y.astype(jnp.bfloat16), w2_ref[...],
                  preferred_element_type=jnp.float32) + b2_ref[...]
    o_ref[0] = (out + res_ref[0].astype(jnp.float32)).astype(o_ref.dtype)


def dwconv_fc2(hidden_tok, res_tok, dw_w9, dw_b, w2_bf16, b2, H, W):
    # hidden_tok: [B, N, Cm]; res_tok: [B, N, C] (attention output, residual).
    B, N, Cm = hidden_tok.shape
    C = w2_bf16.shape[1]
    return pl.pallas_call(
        functools.partial(_dwconv_fc2_kernel, H=H, W=W),
        out_shape=jax.ShapeDtypeStruct((B, N, C), jnp.float32),
        grid_spec=pltpu.PrefetchScalarGridSpec(
            num_scalar_prefetch=0,
            grid=(B,),
            in_specs=[pl.BlockSpec((1, N, Cm), lambda i: (i, 0, 0)),
                      pl.BlockSpec((1, N, C), lambda i: (i, 0, 0)),
                      pl.BlockSpec((9, Cm), lambda i: (0, 0)),
                      pl.BlockSpec((1, Cm), lambda i: (0, 0)),
                      pl.BlockSpec((Cm, C), lambda i: (0, 0)),
                      pl.BlockSpec((1, C), lambda i: (0, 0))],
            out_specs=pl.BlockSpec((1, N, C), lambda i: (i, 0, 0)),
        ),
        compiler_params=pltpu.CompilerParams(dimension_semantics=("parallel",)),
    )(hidden_tok, res_tok, dw_w9, dw_b.reshape(1, Cm), w2_bf16, b2.reshape(1, C))


# --------------------------------- parameter init ---------------------------------

def init_params(key, dim, motion_dim, mlp_ratio=4.0):
    hidden = int(dim * mlp_ratio)

    def lin(k, din, dout):
        k1, k2 = jax.random.split(k)
        return (jax.random.normal(k1, (din, dout), jnp.float32) * 0.02,
                jax.random.normal(k2, (dout,), jnp.float32) * 0.02)

    keys = jax.random.split(key, 8)
    p = {
        "norm1_g": jnp.ones((dim,), jnp.float32),
        "norm1_b": jnp.zeros((dim,), jnp.float32),
        "norm2_g": jnp.ones((dim,), jnp.float32),
        "norm2_b": jnp.zeros((dim,), jnp.float32),
    }
    p["q_w"], p["q_b"] = lin(keys[0], dim, dim)
    p["kv_w"], p["kv_b"] = lin(keys[1], dim, 2 * dim)
    p["cor_w"], p["cor_b"] = lin(keys[2], 2, motion_dim)
    p["motion_w"], p["motion_b"] = lin(keys[3], motion_dim, motion_dim)
    p["proj_w"], p["proj_b"] = lin(keys[4], dim, dim)
    p["fc1_w"], p["fc1_b"] = lin(keys[5], dim, hidden)
    p["fc2_w"], p["fc2_b"] = lin(keys[6], hidden, dim)
    kd1, kd2 = jax.random.split(keys[7])
    p["dw_w"] = jax.random.normal(kd1, (9, hidden), jnp.float32) * 0.02  # torch (hidden,1,3,3) -> (3*3, hidden)
    p["dw_b"] = jax.random.normal(kd2, (hidden,), jnp.float32) * 0.02
    return p


# --------------------------------- forward wrapper ---------------------------------

def inter_frame_attention(params, feat0, feat1, num_heads, motion_dim, qk_scale=None):
    # feat0, feat1: [b, C, H, W] (NCHW, as in the PyTorch module)
    b, C, H, W = feat0.shape
    N = H * W
    B = 2 * b
    head_dim = C // num_heads
    scale = qk_scale if qk_scale is not None else head_dim ** (-0.5)

    def tokens(x):  # 'b c h w -> b (h w) c'
        return x.reshape(x.shape[0], C, N).transpose(0, 2, 1)

    # pre-LayerNorm tokens in feat_s order; feat_t is the same array read with a batch offset
    x_tok = jnp.concatenate([tokens(feat0), tokens(feat1)], axis=0).astype(jnp.float32)

    # coords_grid (intended semantics of the reference; original code requires H == W)
    lx = jnp.linspace(-1.0, 1.0, W)
    ly = jnp.linspace(-1.0, 1.0, H)
    xx = jnp.broadcast_to(lx[None, :], (H, W))
    yy = jnp.broadcast_to(ly[:, None], (H, W))
    cor = jnp.stack([xx, yy], axis=-1).reshape(N, 2).astype(jnp.float32)

    feat_attn, motion_tok = attention_block(
        x_tok, cor, params, num_heads=num_heads, motion_dim=motion_dim, scale=scale, half=b)

    hidden = ln_fc1(feat_attn.reshape(B * N, C), params["norm2_g"], params["norm2_b"],
                    params["fc1_w"].astype(jnp.bfloat16), params["fc1_b"])
    Cm = hidden.shape[-1]
    out_tok = dwconv_fc2(hidden.reshape(B, N, Cm), feat_attn,
                         params["dw_w"], params["dw_b"],
                         params["fc2_w"].astype(jnp.bfloat16), params["fc2_b"], H, W)

    out = out_tok.transpose(0, 2, 1).reshape(B, C, H, W)
    motion = motion_tok.transpose(0, 2, 1).reshape(B, motion_dim, H, W)
    return out, motion


# -------------------------------------- main --------------------------------------

if __name__ == "__main__":
    # Small, module-consistent, lane-friendly shapes (dim and motion_dim divisible by num_heads).
    b, dim, H, W = 2, 128, 8, 8
    num_heads, motion_dim, mlp_ratio = 8, 128, 4.0

    key = jax.random.PRNGKey(0)
    k_params, k_f0, k_f1 = jax.random.split(key, 3)
    params = init_params(k_params, dim, motion_dim, mlp_ratio)

    feat0 = jax.random.normal(k_f0, (b, dim, H, W), jnp.float32)
    feat1 = jax.random.normal(k_f1, (b, dim, H, W), jnp.float32)

    fwd = jax.jit(functools.partial(inter_frame_attention,
                                    num_heads=num_heads, motion_dim=motion_dim))
    out, motion = fwd(params, feat0, feat1)
    jax.block_until_ready((out, motion))

    assert out.shape == (2 * b, dim, H, W), out.shape
    assert motion.shape == (2 * b, motion_dim, H, W), motion.shape
    assert bool(jnp.all(jnp.isfinite(out))) and bool(jnp.all(jnp.isfinite(motion)))
    print("KERNEL_OK")
</pallas_src>

<mosaic_0001>
module attributes {stable_mosaic.version = 11 : i64} {
  func.func @_dwconv_fc2_kernel(%arg0: i32, %arg1: memref<1x64x512xf32, #tpu.memory_space<vmem>>, %arg2: memref<1x64x128xf32, #tpu.memory_space<vmem>>, %arg3: memref<9x512xf32, #tpu.memory_space<vmem>>, %arg4: memref<1x512xf32, #tpu.memory_space<vmem>>, %arg5: memref<512x128xbf16, #tpu.memory_space<vmem>>, %arg6: memref<1x128xf32, #tpu.memory_space<vmem>>, %arg7: memref<1x64x128xf32, #tpu.memory_space<vmem>>) attributes {dimension_semantics = [#tpu.dimension_semantics<parallel>], iteration_bounds = array<i64: 4>, scalar_prefetch = 0 : i64, scratch_operands = 0 : i64, tpu.core_type = #tpu.core_type<tc>, window_params = [{transform_indices = @transform_0, window_bounds = array<i64: 1, 64, 512>}, {transform_indices = @transform_1, window_bounds = array<i64: 1, 64, 128>}, {pipeline_mode = #tpu.pipeline_mode<synchronous>, transform_indices = @transform_2, window_bounds = array<i64: 9, 512>}, {pipeline_mode = #tpu.pipeline_mode<synchronous>, transform_indices = @transform_3, window_bounds = array<i64: 1, 512>}, {pipeline_mode = #tpu.pipeline_mode<synchronous>, transform_indices = @transform_4, window_bounds = array<i64: 512, 128>}, {pipeline_mode = #tpu.pipeline_mode<synchronous>, transform_indices = @transform_5, window_bounds = array<i64: 1, 128>}, {transform_indices = @transform_6, window_bounds = array<i64: 1, 64, 128>}]} {
    %c0 = arith.constant 0 : index
    %c0_0 = arith.constant 0 : index
    %c0_1 = arith.constant 0 : index
    %0 = vector.load %arg1[%c0, %c0_0, %c0_1] : memref<1x64x512xf32, #tpu.memory_space<vmem>>, vector<1x64x512xf32>
    %1 = vector.shape_cast %0 : vector<1x64x512xf32> to vector<64x512xf32>
    %c0_2 = arith.constant 0 : index
    %c0_3 = arith.constant 0 : index
    %2 = vector.load %arg3[%c0_2, %c0_3] : memref<9x512xf32, #tpu.memory_space<vmem>>, vector<9x512xf32>
    %3 = tpu.iota {dimensions = array<i32: 0>} : vector<64x1xi32>
    %c8_i32 = arith.constant 8 : i32
    %c0_i32 = arith.constant 0 : i32
    %4 = arith.cmpi eq, %c8_i32, %c0_i32 : i32
    %c1_i32 = arith.constant 1 : i32
    %5 = arith.select %4, %c1_i32, %c8_i32 : i32
    %6 = vector.broadcast %5 : i32 to vector<64x1xi32>
    %7 = arith.remsi %3, %6 : vector<64x1xi32>
    %c0_i32_4 = arith.constant 0 : i32
    %8 = vector.broadcast %c0_i32_4 : i32 to vector<64x1xi32>
    %9 = arith.cmpi ne, %7, %8 : vector<64x1xi32>
    %c0_i32_5 = arith.constant 0 : i32
    %10 = vector.broadcast %c0_i32_5 : i32 to vector<64x1xi32>
    %11 = arith.cmpi slt, %7, %10 : vector<64x1xi32>
    %c0_i32_6 = arith.constant 0 : i32
    %12 = arith.cmpi slt, %5, %c0_i32_6 : i32
    %13 = vector.broadcast %12 : i1 to vector<64x1xi1>
    %14 = vector.broadcast %13 : vector<64x1xi1> to vector<64x1xi1>
    %15 = arith.xori %11, %14 : vector<64x1xi1>
    %16 = arith.andi %15, %9 : vector<64x1xi1>
    %17 = vector.broadcast %5 : i32 to vector<64x1xi32>
    %18 = arith.addi %7, %17 : vector<64x1xi32>
    %19 = arith.select %16, %18, %7 : vector<64x1xi1>, vector<64x1xi32>
    %cst = arith.constant 0.000000e+00 : f32
    %20 = vector.broadcast %cst : f32 to vector<64x512xf32>
    %cst_7 = arith.constant 0.000000e+00 : f32
    %21 = vector.broadcast %cst_7 : f32 to vector<9x512xf32>
    %22 = vector.extract_strided_slice %1 {offsets = [0, 0], sizes = [55, 512], strides = [1, 1]} : vector<64x512xf32> to vector<55x512xf32>
    %23 = tpu.concatenate %21, %22 in 0 : vector<9x512xf32>, vector<55x512xf32> -> vector<64x512xf32>
    %c0_i32_8 = arith.constant 0 : i32
    %24 = vector.broadcast %c0_i32_8 : i32 to vector<64x1xi32>
    %25 = arith.cmpi eq, %19, %24 : vector<64x1xi32>
    %cst_9 = arith.constant 0.000000e+00 : f32
    %26 = vector.shape_cast %25 : vector<64x1xi1> to vector<64x1xi1>
    %27 = vector.broadcast %26 : vector<64x1xi1> to vector<64x512xi1>
    %28 = vector.broadcast %cst_9 : f32 to vector<64x512xf32>
    %29 = arith.select %27, %28, %23 : vector<64x512xi1>, vector<64x512xf32>
    %30 = vector.extract_strided_slice %2 {offsets = [0, 0], sizes = [1, 512], strides = [1, 1]} : vector<9x512xf32> to vector<1x512xf32>
    %31 = vector.broadcast %30 : vector<1x512xf32> to vector<64x512xf32>
    %32 = arith.mulf %29, %31 : vector<64x512xf32>
    %33 = arith.addf %20, %32 : vector<64x512xf32>
    %cst_10 = arith.constant 0.000000e+00 : f32
    %34 = vector.broadcast %cst_10 : f32 to vector<8x512xf32>
    %35 = vector.extract_strided_slice %1 {offsets = [0, 0], sizes = [56, 512], strides = [1, 1]} : vector<64x512xf32> to vector<56x512xf32>
    %36 = tpu.concatenate %34, %35 in 0 : vector<8x512xf32>, vector<56x512xf32> -> vector<64x512xf32>
    %37 = vector.extract_strided_slice %2 {offsets = [1, 0], sizes = [1, 512], strides = [1, 1]} : vector<9x512xf32> to vector<1x512xf32>
    %38 = vector.broadcast %37 : vector<1x512xf32> to vector<64x512xf32>
    %39 = arith.mulf %36, %38 : vector<64x512xf32>
    %40 = arith.addf %33, %39 : vector<64x512xf32>
    %cst_11 = arith.constant 0.000000e+00 : f32
    %41 = vector.broadcast %cst_11 : f32 to vector<7x512xf32>
    %42 = vector.extract_strided_slice %1 {offsets = [0, 0], sizes = [57, 512], strides = [1, 1]} : vector<64x512xf32> to vector<57x512xf32>
    %43 = tpu.concatenate %41, %42 in 0 : vector<7x512xf32>, vector<57x512xf32> -> vector<64x512xf32>
    %c7_i32 = arith.constant 7 : i32
    %44 = vector.broadcast %c7_i32 : i32 to vector<64x1xi32>
    %45 = arith.cmpi eq, %19, %44 : vector<64x1xi32>
    %cst_12 = arith.constant 0.000000e+00 : f32
    %46 = vector.shape_cast %45 : vector<64x1xi1> to vector<64x1xi1>
    %47 = vector.broadcast %46 : vector<64x1xi1> to vector<64x512xi1>
    %48 = vector.broadcast %cst_12 : f32 to vector<64x512xf32>
    %49 = arith.select %47, %48, %43 : vector<64x512xi1>, vector<64x512xf32>
    %50 = vector.extract_strided_slice %2 {offsets = [2, 0], sizes = [1, 512], strides = [1, 1]} : vector<9x512xf32> to vector<1x512xf32>
    %51 = vector.broadcast %50 : vector<1x512xf32> to vector<64x512xf32>
    %52 = arith.mulf %49, %51 : vector<64x512xf32>
    %53 = arith.addf %40, %52 : vector<64x512xf32>
    %cst_13 = arith.constant 0.000000e+00 : f32
    %54 = vector.broadcast %cst_13 : f32 to vector<1x512xf32>
    %55 = vector.extract_strided_slice %1 {offsets = [0, 0], sizes = [63, 512], strides = [1, 1]} : vector<64x512xf32> to vector<63x512xf32>
    %56 = tpu.concatenate %54, %55 in 0 : vector<1x512xf32>, vector<63x512xf32> -> vector<64x512xf32>
    %c0_i32_14 = arith.constant 0 : i32
    %57 = vector.broadcast %c0_i32_14 : i32 to vector<64x1xi32>
    %58 = arith.cmpi eq, %19, %57 : vector<64x1xi32>
    %cst_15 = arith.constant 0.000000e+00 : f32
    %59 = vector.shape_cast %58 : vector<64x1xi1> to vector<64x1xi1>
    %60 = vector.broadcast %59 : vector<64x1xi1> to vector<64x512xi1>
    %61 = vector.broadcast %cst_15 : f32 to vector<64x512xf32>
    %62 = arith.select %60, %61, %56 : vector<64x512xi1>, vector<64x512xf32>
    %63 = vector.extract_strided_slice %2 {offsets = [3, 0], sizes = [1, 512], strides = [1, 1]} : vector<9x512xf32> to vector<1x512xf32>
    %64 = vector.broadcast %63 : vector<1x512xf32> to vector<64x512xf32>
    %65 = arith.mulf %62, %64 : vector<64x512xf32>
    %66 = arith.addf %53, %65 : vector<64x512xf32>
    %67 = vector.extract_strided_slice %2 {offsets = [4, 0], sizes = [1, 512], strides = [1, 1]} : vector<9x512xf32> to vector<1x512xf32>
    %68 = vector.broadcast %67 : vector<1x512xf32> to vector<64x512xf32>
    %69 = arith.mulf %1, %68 : vector<64x512xf32>
    %70 = arith.addf %66, %69 : vector<64x512xf32>
    %71 = vector.extract_strided_slice %1 {offsets = [1, 0], sizes = [63, 512], strides = [1, 1]} : vector<64x512xf32> to vector<63x512xf32>
    %cst_16 = arith.constant 0.000000e+00 : f32
    %72 = vector.broadcast %cst_16 : f32 to vector<1x512xf32>
    %73 = tpu.concatenate %71, %72 in 0 : vector<63x512xf32>, vector<1x512xf32> -> vector<64x512xf32>
    %c7_i32_17 = arith.constant 7 : i32
    %74 = vector.broadcast %c7_i32_17 : i32 to vector<64x1xi32>
    %75 = arith.cmpi eq, %19, %74 : vector<64x1xi32>
    %cst_18 = arith.constant 0.000000e+00 : f32
    %76 = vector.shape_cast %75 : vector<64x1xi1> to vector<64x1xi1>
    %77 = vector.broadcast %76 : vector<64x1xi1> to vector<64x512xi1>
    %78 = vector.broadcast %cst_18 : f32 to vector<64x512xf32>
    %79 = arith.select %77, %78, %73 : vector<64x512xi1>, vector<64x512xf32>
    %80 = vector.extract_strided_slice %2 {offsets = [5, 0], sizes = [1, 512], strides = [1, 1]} : vector<9x512xf32> to vector<1x512xf32>
    %81 = vector.broadcast %80 : vector<1x512xf32> to vector<64x512xf32>
    %82 = arith.mulf %79, %81 : vector<64x512xf32>
    %83 = arith.addf %70, %82 : vector<64x512xf32>
    %84 = vector.extract_strided_slice %1 {offsets = [7, 0], sizes = [57, 512], strides = [1, 1]} : vector<64x512xf32> to vector<57x512xf32>
    %cst_19 = arith.constant 0.000000e+00 : f32
    %85 = vector.broadcast %cst_19 : f32 to vector<7x512xf32>
    %86 = tpu.concatenate %84, %85 in 0 : vector<57x512xf32>, vector<7x512xf32> -> vector<64x512xf32>
    %c0_i32_20 = arith.constant 0 : i32
    %87 = vector.broadcast %c0_i32_20 : i32 to vector<64x1xi32>
    %88 = arith.cmpi eq, %19, %87 : vector<64x1xi32>
    %cst_21 = arith.constant 0.000000e+00 : f32
    %89 = vector.shape_cast %88 : vector<64x1xi1> to vector<64x1xi1>
    %90 = vector.broadcast %89 : vector<64x1xi1> to vector<64x512xi1>
    %91 = vector.broadcast %cst_21 : f32 to vector<64x512xf32>
    %92 = arith.select %90, %91, %86 : vector<64x512xi1>, vector<64x512xf32>
    %93 = vector.extract_strided_slice %2 {offsets = [6, 0], sizes = [1, 512], strides = [1, 1]} : vector<9x512xf32> to vector<1x512xf32>
    %94 = vector.broadcast %93 : vector<1x512xf32> to vector<64x512xf32>
    %95 = arith.mulf %92, %94 : vector<64x512xf32>
    %96 = arith.addf %83, %95 : vector<64x512xf32>
    %97 = vector.extract_strided_slice %1 {offsets = [8, 0], sizes = [56, 512], strides = [1, 1]} : vector<64x512xf32> to vector<56x512xf32>
    %cst_22 = arith.constant 0.000000e+00 : f32
    %98 = vector.broadcast %cst_22 : f32 to vector<8x512xf32>
    %99 = tpu.concatenate %97, %98 in 0 : vector<56x512xf32>, vector<8x512xf32> -> vector<64x512xf32>
    %100 = vector.extract_strided_slice %2 {offsets = [7, 0], sizes = [1, 512], strides = [1, 1]} : vector<9x512xf32> to vector<1x512xf32>
    %101 = vector.broadcast %100 : vector<1x512xf32> to vector<64x512xf32>
    %102 = arith.mulf %99, %101 : vector<64x512xf32>
    %103 = arith.addf %96, %102 : vector<64x512xf32>
    %104 = vector.extract_strided_slice %1 {offsets = [9, 0], sizes = [55, 512], strides = [1, 1]} : vector<64x512xf32> to vector<55x512xf32>
    %cst_23 = arith.constant 0.000000e+00 : f32
    %105 = vector.broadcast %cst_23 : f32 to vector<9x512xf32>
    %106 = tpu.concatenate %104, %105 in 0 : vector<55x512xf32>, vector<9x512xf32> -> vector<64x512xf32>
    %c7_i32_24 = arith.constant 7 : i32
    %107 = vector.broadcast %c7_i32_24 : i32 to vector<64x1xi32>
    %108 = arith.cmpi eq, %19, %107 : vector<64x1xi32>
    %cst_25 = arith.constant 0.000000e+00 : f32
    %109 = vector.shape_cast %108 : vector<64x1xi1> to vector<64x1xi1>
    %110 = vector.broadcast %109 : vector<64x1xi1> to vector<64x512xi1>
    %111 = vector.broadcast %cst_25 : f32 to vector<64x512xf32>
    %112 = arith.select %110, %111, %106 : vector<64x512xi1>, vector<64x512xf32>
    %113 = vector.extract_strided_slice %2 {offsets = [8, 0], sizes = [1, 512], strides = [1, 1]} : vector<9x512xf32> to vector<1x512xf32>
    %114 = vector.broadcast %113 : vector<1x512xf32> to vector<64x512xf32>
    %115 = arith.mulf %112, %114 : vector<64x512xf32>
    %116 = arith.addf %103, %115 : vector<64x512xf32>
    %c0_26 = arith.constant 0 : index
    %c0_27 = arith.constant 0 : index
    %117 = vector.load %arg4[%c0_26, %c0_27] : memref<1x512xf32, #tpu.memory_space<vmem>>, vector<1x512xf32>
    %118 = vector.broadcast %117 : vector<1x512xf32> to vector<64x512xf32>
    %119 = arith.addf %116, %118 : vector<64x512xf32>
    %cst_28 = arith.constant 5.000000e-01 : f32
    %120 = vector.broadcast %cst_28 : f32 to vector<64x512xf32>
    %121 = arith.mulf %120, %119 : vector<64x512xf32>
    %cst_29 = arith.constant 0.707106769 : f32
    %122 = vector.broadcast %cst_29 : f32 to vector<64x512xf32>
    %123 = arith.mulf %119, %122 : vector<64x512xf32>
    %124 = math.erf %123 : vector<64x512xf32>
    %cst_30 = arith.constant 1.000000e+00 : f32
    %125 = vector.broadcast %cst_30 : f32 to vector<64x512xf32>
    %126 = arith.addf %125, %124 : vector<64x512xf32>
    %127 = arith.mulf %121, %126 : vector<64x512xf32>
    %128 = arith.truncf %127 : vector<64x512xf32> to vector<64x512xbf16>
    %c0_31 = arith.constant 0 : index
    %c0_32 = arith.constant 0 : index
    %129 = vector.load %arg5[%c0_31, %c0_32] : memref<512x128xbf16, #tpu.memory_space<vmem>>, vector<512x128xbf16>
    %cst_33 = arith.constant dense<0.000000e+00> : vector<64x128xf32>
    %130 = tpu.matmul %128, %129, %cst_33 {dimension_numbers = #tpu.dot_dimension_numbers<[1], [0], [0], [1], [0, 0, 1, 1], [], []>} : vector<64x512xbf16>, vector<512x128xbf16>, vector<64x128xf32> -> vector<64x128xf32>
    %c0_34 = arith.constant 0 : index
    %c0_35 = arith.constant 0 : index
    %131 = vector.load %arg6[%c0_34, %c0_35] : memref<1x128xf32, #tpu.memory_space<vmem>>, vector<1x128xf32>
    %132 = vector.broadcast %131 : vector<1x128xf32> to vector<64x128xf32>
    %133 = arith.addf %130, %132 : vector<64x128xf32>
    %c0_36 = arith.constant 0 : index
    %c0_37 = arith.constant 0 : index
    %c0_38 = arith.constant 0 : index
    %134 = vector.load %arg2[%c0_36, %c0_37, %c0_38] : memref<1x64x128xf32, #tpu.memory_space<vmem>>, vector<1x64x128xf32>
    %135 = vector.shape_cast %134 : vector<1x64x128xf32> to vector<64x128xf32>
    %136 = arith.addf %133, %135 : vector<64x128xf32>
    %c0_39 = arith.constant 0 : index
    %c0_40 = arith.constant 0 : index
    %c0_41 = arith.constant 0 : index
    %137 = vector.load %arg7[%c0_39, %c0_40, %c0_41] : memref<1x64x128xf32, #tpu.memory_space<vmem>>, vector<1x64x128xf32>
    %138 = vector.shape_cast %137 : vector<1x64x128xf32> to vector<64x128xf32>
    %139 = vector.shape_cast %136 : vector<64x128xf32> to vector<1x64x128xf32>
    tpu.vector_store %arg7[%c0_39, %c0_40, %c0_41], %139 {strides = array<i32>} : memref<1x64x128xf32, #tpu.memory_space<vmem>>, vector<1x64x128xf32>,
    return
  }
  func.func @transform_0(%arg0: i32) -> (i32, i32, i32) {
    %c0_i32 = arith.constant 0 : i32
    %c0_i32_0 = arith.constant 0 : i32
    %c0_i32_1 = arith.constant 0 : i32
    return %arg0, %c0_i32, %c0_i32_0 : i32, i32, i32
  }
  func.func @transform_1(%arg0: i32) -> (i32, i32, i32) {
    %c0_i32 = arith.constant 0 : i32
    %c0_i32_0 = arith.constant 0 : i32
    %c0_i32_1 = arith.constant 0 : i32
    return %arg0, %c0_i32, %c0_i32_0 : i32, i32, i32
  }
  func.func @transform_2(%arg0: i32) -> (i32, i32) {
    %c0_i32 = arith.constant 0 : i32
    %c0_i32_0 = arith.constant 0 : i32
    %c0_i32_1 = arith.constant 0 : i32
    return %c0_i32, %c0_i32_0 : i32, i32
  }
  func.func @transform_3(%arg0: i32) -> (i32, i32) {
    %c0_i32 = arith.constant 0 : i32
    %c0_i32_0 = arith.constant 0 : i32
    %c0_i32_1 = arith.constant 0 : i32
    return %c0_i32, %c0_i32_0 : i32, i32
  }
  func.func @transform_4(%arg0: i32) -> (i32, i32) {
    %c0_i32 = arith.constant 0 : i32
    %c0_i32_0 = arith.constant 0 : i32
    %c0_i32_1 = arith.constant 0 : i32
    return %c0_i32, %c0_i32_0 : i32, i32
  }
  func.func @transform_5(%arg0: i32) -> (i32, i32) {
    %c0_i32 = arith.constant 0 : i32
    %c0_i32_0 = arith.constant 0 : i32
    %c0_i32_1 = arith.constant 0 : i32
    return %c0_i32, %c0_i32_0 : i32, i32
  }
  func.func @transform_6(%arg0: i32) -> (i32, i32, i32) {
    %c0_i32 = arith.constant 0 : i32
    %c0_i32_0 = arith.constant 0 : i32
    %c0_i32_1 = arith.constant 0 : i32
    return %arg0, %c0_i32, %c0_i32_0 : i32, i32, i32
  }
}

module attributes {stable_mosaic.version = 11 : i64} {
  func.func @_attn_block_kernel(%arg0: i32, %arg1: memref<1x64x128xf32, #tpu.memory_space<vmem>>, %arg2: memref<1x64x128xf32, #tpu.memory_space<vmem>>, %arg3: memref<64x2xf32, #tpu.memory_space<vmem>>, %arg4: memref<1x128xf32, #tpu.memory_space<vmem>>, %arg5: memref<1x128xf32, #tpu.memory_space<vmem>>, %arg6: memref<128x128xbf16, #tpu.memory_space<vmem>>, %arg7: memref<1x128xf32, #tpu.memory_space<vmem>>, %arg8: memref<128x256xbf16, #tpu.memory_space<vmem>>, %arg9: memref<1x256xf32, #tpu.memory_space<vmem>>, %arg10: memref<2x128xf32, #tpu.memory_space<vmem>>, %arg11: memref<1x128xf32, #tpu.memory_space<vmem>>, %arg12: memref<128x128xbf16, #tpu.memory_space<vmem>>, %arg13: memref<1x128xf32, #tpu.memory_space<vmem>>, %arg14: memref<128x128xbf16, #tpu.memory_space<vmem>>, %arg15: memref<1x128xf32, #tpu.memory_space<vmem>>, %arg16: memref<1x64x128xf32, #tpu.memory_space<vmem>>, %arg17: memref<1x64x128xf32, #tpu.memory_space<vmem>>) attributes {dimension_semantics = [#tpu.dimension_semantics<parallel>], iteration_bounds = array<i64: 4>, scalar_prefetch = 0 : i64, scratch_operands = 0 : i64, tpu.core_type = #tpu.core_type<tc>, window_params = [{transform_indices = @transform_0, window_bounds = array<i64: 1, 64, 128>}, {transform_indices = @transform_1, window_bounds = array<i64: 1, 64, 128>}, {pipeline_mode = #tpu.pipeline_mode<synchronous>, transform_indices = @transform_2, window_bounds = array<i64: 64, 2>}, {pipeline_mode = #tpu.pipeline_mode<synchronous>, transform_indices = @transform_3, window_bounds = array<i64: 1, 128>}, {pipeline_mode = #tpu.pipeline_mode<synchronous>, transform_indices = @transform_4, window_bounds = array<i64: 1, 128>}, {pipeline_mode = #tpu.pipeline_mode<synchronous>, transform_indices = @transform_5, window_bounds = array<i64: 128, 128>}, {pipeline_mode = #tpu.pipeline_mode<synchronous>, transform_indices = @transform_6, window_bounds = array<i64: 1, 128>}, {pipeline_mode = #tpu.pipeline_mode<synchronous>, transform_indices = @transform_7, window_bounds = array<i64: 128, 256>}, {pipeline_mode = #tpu.pipeline_mode<synchronous>, transform_indices = @transform_8, window_bounds = array<i64: 1, 256>}, {pipeline_mode = #tpu.pipeline_mode<synchronous>, transform_indices = @transform_9, window_bounds = array<i64: 2, 128>}, {pipeline_mode = #tpu.pipeline_mode<synchronous>, transform_indices = @transform_10, window_bounds = array<i64: 1, 128>}, {pipeline_mode = #tpu.pipeline_mode<synchronous>, transform_indices = @transform_11, window_bounds = array<i64: 128, 128>}, {pipeline_mode = #tpu.pipeline_mode<synchronous>, transform_indices = @transform_12, window_bounds = array<i64: 1, 128>}, {pipeline_mode = #tpu.pipeline_mode<synchronous>, transform_indices = @transform_13, window_bounds = array<i64: 128, 128>}, {pipeline_mode = #tpu.pipeline_mode<synchronous>, transform_indices = @transform_14, window_bounds = array<i64: 1, 128>}, {transform_indices = @transform_15, window_bounds = array<i64: 1, 64, 128>}, {transform_indices = @transform_16, window_bounds = array<i64: 1, 64, 128>}]} {
    %c0 = arith.constant 0 : index
    %c0_0 = arith.constant 0 : index
    %c0_1 = arith.constant 0 : index
    %0 = vector.load %arg1[%c0, %c0_0, %c0_1] : memref<1x64x128xf32, #tpu.memory_space<vmem>>, vector<1x64x128xf32>
    %1 = vector.shape_cast %0 : vector<1x64x128xf32> to vector<64x128xf32>
    %c0_2 = arith.constant 0 : index
    %c0_3 = arith.constant 0 : index
    %c0_4 = arith.constant 0 : index
    %2 = vector.load %arg2[%c0_2, %c0_3, %c0_4] : memref<1x64x128xf32, #tpu.memory_space<vmem>>, vector<1x64x128xf32>
    %3 = vector.shape_cast %2 : vector<1x64x128xf32> to vector<64x128xf32>
    %c0_5 = arith.constant 0 : index
    %c0_6 = arith.constant 0 : index
    %4 = vector.load %arg4[%c0_5, %c0_6] : memref<1x128xf32, #tpu.memory_space<vmem>>, vector<1x128xf32>
    %c0_7 = arith.constant 0 : index
    %c0_8 = arith.constant 0 : index
    %5 = vector.load %arg5[%c0_7, %c0_8] : memref<1x128xf32, #tpu.memory_space<vmem>>, vector<1x128xf32>
    %cst = arith.constant dense<0.000000e+00> : vector<64xf32>
    %6 = vector.multi_reduction <add>, %1, %cst [1] : vector<64x128xf32> to vector<64xf32>
    %7 = vector.shape_cast %6 : vector<64xf32> to vector<64x1xf32>
    %cst_9 = arith.constant 1.280000e+02 : f32
    %8 = vector.broadcast %cst_9 : f32 to vector<64x1xf32>
    %9 = arith.divf %7, %8 : vector<64x1xf32>
    %10 = vector.broadcast %9 : vector<64x1xf32> to vector<64x128xf32>
    %11 = arith.subf %1, %10 : vector<64x128xf32>
    %12 = arith.mulf %11, %11 : vector<64x128xf32>
    %cst_10 = arith.constant dense<0.000000e+00> : vector<64xf32>
    %13 = vector.multi_reduction <add>, %12, %cst_10 [1] : vector<64x128xf32> to vector<64xf32>
    %14 = vector.shape_cast %13 : vector<64xf32> to vector<64x1xf32>
    %cst_11 = arith.constant 1.280000e+02 : f32
    %15 = vector.broadcast %cst_11 : f32 to vector<64x1xf32>
    %16 = arith.divf %14, %15 : vector<64x1xf32>
    %17 = vector.broadcast %9 : vector<64x1xf32> to vector<64x128xf32>
    %18 = arith.subf %1, %17 : vector<64x128xf32>
    %cst_12 = arith.constant 9.99999974E-6 : f32
    %19 = vector.broadcast %cst_12 : f32 to vector<64x1xf32>
    %20 = arith.addf %16, %19 : vector<64x1xf32>
    %21 = math.rsqrt %20 : vector<64x1xf32>
    %22 = vector.broadcast %21 : vector<64x1xf32> to vector<64x128xf32>
    %23 = arith.mulf %18, %22 : vector<64x128xf32>
    %24 = vector.broadcast %4 : vector<1x128xf32> to vector<64x128xf32>
    %25 = arith.mulf %23, %24 : vector<64x128xf32>
    %26 = vector.broadcast %5 : vector<1x128xf32> to vector<64x128xf32>
    %27 = arith.addf %25, %26 : vector<64x128xf32>
    %cst_13 = arith.constant dense<0.000000e+00> : vector<64xf32>
    %28 = vector.multi_reduction <add>, %3, %cst_13 [1] : vector<64x128xf32> to vector<64xf32>
    %29 = vector.shape_cast %28 : vector<64xf32> to vector<64x1xf32>
    %cst_14 = arith.constant 1.280000e+02 : f32
    %30 = vector.broadcast %cst_14 : f32 to vector<64x1xf32>
    %31 = arith.divf %29, %30 : vector<64x1xf32>
    %32 = vector.broadcast %31 : vector<64x1xf32> to vector<64x128xf32>
    %33 = arith.subf %3, %32 : vector<64x128xf32>
    %34 = arith.mulf %33, %33 : vector<64x128xf32>
    %cst_15 = arith.constant dense<0.000000e+00> : vector<64xf32>
    %35 = vector.multi_reduction <add>, %34, %cst_15 [1] : vector<64x128xf32> to vector<64xf32>
    %36 = vector.shape_cast %35 : vector<64xf32> to vector<64x1xf32>
    %cst_16 = arith.constant 1.280000e+02 : f32
    %37 = vector.broadcast %cst_16 : f32 to vector<64x1xf32>
    %38 = arith.divf %36, %37 : vector<64x1xf32>
    %39 = vector.broadcast %31 : vector<64x1xf32> to vector<64x128xf32>
    %40 = arith.subf %3, %39 : vector<64x128xf32>
    %cst_17 = arith.constant 9.99999974E-6 : f32
    %41 = vector.broadcast %cst_17 : f32 to vector<64x1xf32>
    %42 = arith.addf %38, %41 : vector<64x1xf32>
    %43 = math.rsqrt %42 : vector<64x1xf32>
    %44 = vector.broadcast %43 : vector<64x1xf32> to vector<64x128xf32>
    %45 = arith.mulf %40, %44 : vector<64x128xf32>
    %46 = vector.broadcast %4 : vector<1x128xf32> to vector<64x128xf32>
    %47 = arith.mulf %45, %46 : vector<64x128xf32>
    %48 = vector.broadcast %5 : vector<1x128xf32> to vector<64x128xf32>
    %49 = arith.addf %47, %48 : vector<64x128xf32>
    %50 = arith.truncf %27 : vector<64x128xf32> to vector<64x128xbf16>
    %c0_18 = arith.constant 0 : index
    %c0_19 = arith.constant 0 : index
    %51 = vector.load %arg6[%c0_18, %c0_19] : memref<128x128xbf16, #tpu.memory_space<vmem>>, vector<128x128xbf16>
    %cst_20 = arith.constant dense<0.000000e+00> : vector<64x128xf32>
    %52 = tpu.matmul %50, %51, %cst_20 {dimension_numbers = #tpu.dot_dimension_numbers<[1], [0], [0], [1], [0, 0, 1, 1], [], []>} : vector<64x128xbf16>, vector<128x128xbf16>, vector<64x128xf32> -> vector<64x128xf32>
    %c0_21 = arith.constant 0 : index
    %c0_22 = arith.constant 0 : index
    %53 = vector.load %arg7[%c0_21, %c0_22] : memref<1x128xf32, #tpu.memory_space<vmem>>, vector<1x128xf32>
    %54 = vector.broadcast %53 : vector<1x128xf32> to vector<64x128xf32>
    %55 = arith.addf %52, %54 : vector<64x128xf32>
    %56 = arith.truncf %49 : vector<64x128xf32> to vector<64x128xbf16>
    %c0_23 = arith.constant 0 : index
    %c0_24 = arith.constant 0 : index
    %57 = vector.load %arg8[%c0_23, %c0_24] : memref<128x256xbf16, #tpu.memory_space<vmem>>, vector<128x256xbf16>
    %cst_25 = arith.constant dense<0.000000e+00> : vector<64x256xf32>
    %58 = tpu.matmul %56, %57, %cst_25 {dimension_numbers = #tpu.dot_dimension_numbers<[1], [0], [0], [1], [0, 0, 1, 1], [], []>} : vector<64x128xbf16>, vector<128x256xbf16>, vector<64x256xf32> -> vector<64x256xf32>
    %c0_26 = arith.constant 0 : index
    %c0_27 = arith.constant 0 : index
    %59 = vector.load %arg9[%c0_26, %c0_27] : memref<1x256xf32, #tpu.memory_space<vmem>>, vector<1x256xf32>
    %60 = vector.broadcast %59 : vector<1x256xf32> to vector<64x256xf32>
    %61 = arith.addf %58, %60 : vector<64x256xf32>
    %62 = vector.extract_strided_slice %61 {offsets = [0, 0], sizes = [64, 128], strides = [1, 1]} : vector<64x256xf32> to vector<64x128xf32>
    %63 = vector.extract_strided_slice %61 {offsets = [0, 128], sizes = [64, 128], strides = [1, 1]} : vector<64x256xf32> to vector<64x128xf32>
    %c0_28 = arith.constant 0 : index
    %c0_29 = arith.constant 0 : index
    %64 = vector.load %arg3[%c0_28, %c0_29] : memref<64x2xf32, #tpu.memory_space<vmem>>, vector<64x2xf32>
    %c0_30 = arith.constant 0 : index
    %c0_31 = arith.constant 0 : index
    %65 = vector.load %arg10[%c0_30, %c0_31] : memref<2x128xf32, #tpu.memory_space<vmem>>, vector<2x128xf32>
    %66 = vector.extract_strided_slice %64 {offsets = [0, 0], sizes = [64, 1], strides = [1, 1]} : vector<64x2xf32> to vector<64x1xf32>
    %67 = vector.extract_strided_slice %65 {offsets = [0, 0], sizes = [1, 128], strides = [1, 1]} : vector<2x128xf32> to vector<1x128xf32>
    %68 = vector.broadcast %66 : vector<64x1xf32> to vector<64x128xf32>
    %69 = vector.broadcast %67 : vector<1x128xf32> to vector<64x128xf32>
    %70 = arith.mulf %68, %69 : vector<64x128xf32>
    %71 = vector.extract_strided_slice %64 {offsets = [0, 1], sizes = [64, 1], strides = [1, 1]} : vector<64x2xf32> to vector<64x1xf32>
    %72 = vector.extract_strided_slice %65 {offsets = [1, 0], sizes = [1, 128], strides = [1, 1]} : vector<2x128xf32> to vector<1x128xf32>
    %73 = vector.broadcast %71 : vector<64x1xf32> to vector<64x128xf32>
    %74 = vector.broadcast %72 : vector<1x128xf32> to vector<64x128xf32>
    %75 = arith.mulf %73, %74 : vector<64x128xf32>
    %76 = arith.addf %70, %75 : vector<64x128xf32>
    %c0_32 = arith.constant 0 : index
    %c0_33 = arith.constant 0 : index
    %77 = vector.load %arg11[%c0_32, %c0_33] : memref<1x128xf32, #tpu.memory_space<vmem>>, vector<1x128xf32>
    %78 = vector.broadcast %77 : vector<1x128xf32> to vector<64x128xf32>
    %79 = arith.addf %76, %78 : vector<64x128xf32>
    %cst_34 = arith.constant 2.500000e-01 : f32
    %80 = vector.broadcast %cst_34 : f32 to vector<64x128xf32>
    %81 = arith.mulf %55, %80 : vector<64x128xf32>
    %82 = vector.extract_strided_slice %81 {offsets = [0, 0], sizes = [64, 16], strides = [1, 1]} : vector<64x128xf32> to vector<64x16xf32>
    %83 = arith.truncf %82 : vector<64x16xf32> to vector<64x16xbf16>
    %84 = vector.extract_strided_slice %62 {offsets = [0, 0], sizes = [64, 16], strides = [1, 1]} : vector<64x128xf32> to vector<64x16xf32>
    %85 = arith.truncf %84 : vector<64x16xf32> to vector<64x16xbf16>
    %cst_35 = arith.constant dense<0.000000e+00> : vector<64x64xf32>
    %86 = tpu.matmul %83, %85, %cst_35 {dimension_numbers = #tpu.dot_dimension_numbers<[1], [1], [0], [0], [0, 0, 1, 0], [], []>} : vector<64x16xbf16>, vector<64x16xbf16>, vector<64x64xf32> -> vector<64x64xf32>
    %cst_36 = arith.constant dense<0xFF800000> : vector<64xf32>
    %87 = vector.multi_reduction <maximumf>, %86, %cst_36 [1] : vector<64x64xf32> to vector<64xf32>
    %88 = vector.shape_cast %87 : vector<64xf32> to vector<64x1xf32>
    %89 = vector.broadcast %88 : vector<64x1xf32> to vector<64x64xf32>
    %90 = arith.subf %86, %89 : vector<64x64xf32>
    %91 = math.exp %90 : vector<64x64xf32>
    %cst_37 = arith.constant dense<0.000000e+00> : vector<64xf32>
    %92 = vector.multi_reduction <add>, %91, %cst_37 [1] : vector<64x64xf32> to vector<64xf32>
    %93 = vector.shape_cast %92 : vector<64xf32> to vector<64x1xf32>
    %94 = tpu.reciprocal %93 {approx = true} : vector<64x1xf32> -> vector<64x1xf32>
    %95 = vector.broadcast %94 : vector<64x1xf32> to vector<64x64xf32>
    %96 = arith.mulf %91, %95 : vector<64x64xf32>
    %97 = vector.extract_strided_slice %63 {offsets = [0, 0], sizes = [64, 16], strides = [1, 1]} : vector<64x128xf32> to vector<64x16xf32>
    %98 = vector.extract_strided_slice %79 {offsets = [0, 0], sizes = [64, 16], strides = [1, 1]} : vector<64x128xf32> to vector<64x16xf32>
    %99 = tpu.concatenate %97, %98 in 1 : vector<64x16xf32>, vector<64x16xf32> -> vector<64x32xf32>
    %100 = arith.truncf %96 : vector<64x64xf32> to vector<64x64xbf16>
    %101 = arith.truncf %99 : vector<64x32xf32> to vector<64x32xbf16>
    %cst_38 = arith.constant dense<0.000000e+00> : vector<64x32xf32>
    %102 = tpu.matmul %100, %101, %cst_38 {dimension_numbers = #tpu.dot_dimension_numbers<[1], [0], [0], [1], [0, 0, 1, 1], [], []>} : vector<64x64xbf16>, vector<64x32xbf16>, vector<64x32xf32> -> vector<64x32xf32>
    %103 = vector.extract_strided_slice %102 {offsets = [0, 0], sizes = [64, 16], strides = [1, 1]} : vector<64x32xf32> to vector<64x16xf32>
    %104 = vector.extract_strided_slice %102 {offsets = [0, 16], sizes = [64, 16], strides = [1, 1]} : vector<64x32xf32> to vector<64x16xf32>
    %105 = vector.extract_strided_slice %81 {offsets = [0, 16], sizes = [64, 16], strides = [1, 1]} : vector<64x128xf32> to vector<64x16xf32>
    %106 = arith.truncf %105 : vector<64x16xf32> to vector<64x16xbf16>
    %107 = vector.extract_strided_slice %62 {offsets = [0, 16], sizes = [64, 16], strides = [1, 1]} : vector<64x128xf32> to vector<64x16xf32>
    %108 = arith.truncf %107 : vector<64x16xf32> to vector<64x16xbf16>
    %cst_39 = arith.constant dense<0.000000e+00> : vector<64x64xf32>
    %109 = tpu.matmul %106, %108, %cst_39 {dimension_numbers = #tpu.dot_dimension_numbers<[1], [1], [0], [0], [0, 0, 1, 0], [], []>} : vector<64x16xbf16>, vector<64x16xbf16>, vector<64x64xf32> -> vector<64x64xf32>
    %cst_40 = arith.constant dense<0xFF800000> : vector<64xf32>
    %110 = vector.multi_reduction <maximumf>, %109, %cst_40 [1] : vector<64x64xf32> to vector<64xf32>
    %111 = vector.shape_cast %110 : vector<64xf32> to vector<64x1xf32>
    %112 = vector.broadcast %111 : vector<64x1xf32> to vector<64x64xf32>
    %113 = arith.subf %109, %112 : vector<64x64xf32>
    %114 = math.exp %113 : vector<64x64xf32>
    %cst_41 = arith.constant dense<0.000000e+00> : vector<64xf32>
    %115 = vector.multi_reduction <add>, %114, %cst_41 [1] : vector<64x64xf32> to vector<64xf32>
    %116 = vector.shape_cast %115 : vector<64xf32> to vector<64x1xf32>
    %117 = tpu.reciprocal %116 {approx = true} : vector<64x1xf32> -> vector<64x1xf32>
    %118 = vector.broadcast %117 : vector<64x1xf32> to vector<64x64xf32>
    %119 = arith.mulf %114, %118 : vector<64x64xf32>
    %120 = vector.extract_strided_slice %63 {offsets = [0, 16], sizes = [64, 16], strides = [1, 1]} : vector<64x128xf32> to vector<64x16xf32>
    %121 = vector.extract_strided_slice %79 {offsets = [0, 16], sizes = [64, 16], strides = [1, 1]} : vector<64x128xf32> to vector<64x16xf32>
    %122 = tpu.concatenate %120, %121 in 1 : vector<64x16xf32>, vector<64x16xf32> -> vector<64x32xf32>
    %123 = arith.truncf %119 : vector<64x64xf32> to vector<64x64xbf16>
    %124 = arith.truncf %122 : vector<64x32xf32> to vector<64x32xbf16>
    %cst_42 = arith.constant dense<0.000000e+00> : vector<64x32xf32>
    %125 = tpu.matmul %123, %124, %cst_42 {dimension_numbers = #tpu.dot_dimension_numbers<[1], [0], [0], [1], [0, 0, 1, 1], [], []>} : vector<64x64xbf16>, vector<64x32xbf16>, vector<64x32xf32> -> vector<64x32xf32>
    %126 = vector.extract_strided_slice %125 {offsets = [0, 0], sizes = [64, 16], strides = [1, 1]} : vector<64x32xf32> to vector<64x16xf32>
    %127 = vector.extract_strided_slice %125 {offsets = [0, 16], sizes = [64, 16], strides = [1, 1]} : vector<64x32xf32> to vector<64x16xf32>
    %128 = vector.extract_strided_slice %81 {offsets = [0, 32], sizes = [64, 16], strides = [1, 1]} : vector<64x128xf32> to vector<64x16xf32>
    %129 = arith.truncf %128 : vector<64x16xf32> to vector<64x16xbf16>
    %130 = vector.extract_strided_slice %62 {offsets = [0, 32], sizes = [64, 16], strides = [1, 1]} : vector<64x128xf32> to vector<64x16xf32>
    %131 = arith.truncf %130 : vector<64x16xf32> to vector<64x16xbf16>
    %cst_43 = arith.constant dense<0.000000e+00> : vector<64x64xf32>
    %132 = tpu.matmul %129, %131, %cst_43 {dimension_numbers = #tpu.dot_dimension_numbers<[1], [1], [0], [0], [0, 0, 1, 0], [], []>} : vector<64x16xbf16>, vector<64x16xbf16>, vector<64x64xf32> -> vector<64x64xf32>
    %cst_44 = arith.constant dense<0xFF800000> : vector<64xf32>
    %133 = vector.multi_reduction <maximumf>, %132, %cst_44 [1] : vector<64x64xf32> to vector<64xf32>
    %134 = vector.shape_cast %133 : vector<64xf32> to vector<64x1xf32>
    %135 = vector.broadcast %134 : vector<64x1xf32> to vector<64x64xf32>
    %136 = arith.subf %132, %135 : vector<64x64xf32>
    %137 = math.exp %136 : vector<64x64xf32>
    %cst_45 = arith.constant dense<0.000000e+00> : vector<64xf32>
    %138 = vector.multi_reduction <add>, %137, %cst_45 [1] : vector<64x64xf32> to vector<64xf32>
    %139 = vector.shape_cast %138 : vector<64xf32> to vector<64x1xf32>
    %140 = tpu.reciprocal %139 {approx = true} : vector<64x1xf32> -> vector<64x1xf32>
    %141 = vector.broadcast %140 : vector<64x1xf32> to vector<64x64xf32>
    %142 = arith.mulf %137, %141 : vector<64x64xf32>
    %143 = vector.extract_strided_slice %63 {offsets = [0, 32], sizes = [64, 16], strides = [1, 1]} : vector<64x128xf32> to vector<64x16xf32>
    %144 = vector.extract_strided_slice %79 {offsets = [0, 32], sizes = [64, 16], strides = [1, 1]} : vector<64x128xf32> to vector<64x16xf32>
    %145 = tpu.concatenate %143, %144 in 1 : vector<64x16xf32>, vector<64x16xf32> -> vector<64x32xf32>
    %146 = arith.truncf %142 : vector<64x64xf32> to vector<64x64xbf16>
    %147 = arith.truncf %145 : vector<64x32xf32> to vector<64x32xbf16>
    %cst_46 = arith.constant dense<0.000000e+00> : vector<64x32xf32>
    %148 = tpu.matmul %146, %147, %cst_46 {dimension_numbers = #tpu.dot_dimension_numbers<[1], [0], [0], [1], [0, 0, 1, 1], [], []>} : vector<64x64xbf16>, vector<64x32xbf16>, vector<64x32xf32> -> vector<64x32xf32>
    %149 = vector.extract_strided_slice %148 {offsets = [0, 0], sizes = [64, 16], strides = [1, 1]} : vector<64x32xf32> to vector<64x16xf32>
    %150 = vector.extract_strided_slice %148 {offsets = [0, 16], sizes = [64, 16], strides = [1, 1]} : vector<64x32xf32> to vector<64x16xf32>
    %151 = vector.extract_strided_slice %81 {offsets = [0, 48], sizes = [64, 16], strides = [1, 1]} : vector<64x128xf32> to vector<64x16xf32>
    %152 = arith.truncf %151 : vector<64x16xf32> to vector<64x16xbf16>
    %153 = vector.extract_strided_slice %62 {offsets = [0, 48], sizes = [64, 16], strides = [1, 1]} : vector<64x128xf32> to vector<64x16xf32>
    %154 = arith.truncf %153 : vector<64x16xf32> to vector<64x16xbf16>
    %cst_47 = arith.constant dense<0.000000e+00> : vector<64x64xf32>
    %155 = tpu.matmul %152, %154, %cst_47 {dimension_numbers = #tpu.dot_dimension_numbers<[1], [1], [0], [0], [0, 0, 1, 0], [], []>} : vector<64x16xbf16>, vector<64x16xbf16>, vector<64x64xf32> -> vector<64x64xf32>
    %cst_48 = arith.constant dense<0xFF800000> : vector<64xf32>
    %156 = vector.multi_reduction <maximumf>, %155, %cst_48 [1] : vector<64x64xf32> to vector<64xf32>
    %157 = vector.shape_cast %156 : vector<64xf32> to vector<64x1xf32>
    %158 = vector.broadcast %157 : vector<64x1xf32> to vector<64x64xf32>
    %159 = arith.subf %155, %158 : vector<64x64xf32>
    %160 = math.exp %159 : vector<64x64xf32>
    %cst_49 = arith.constant dense<0.000000e+00> : vector<64xf32>
    %161 = vector.multi_reduction <add>, %160, %cst_49 [1] : vector<64x64xf32> to vector<64xf32>
    %162 = vector.shape_cast %161 : vector<64xf32> to vector<64x1xf32>
    %163 = tpu.reciprocal %162 {approx = true} : vector<64x1xf32> -> vector<64x1xf32>
    %164 = vector.broadcast %163 : vector<64x1xf32> to vector<64x64xf32>
    %165 = arith.mulf %160, %164 : vector<64x64xf32>
    %166 = vector.extract_strided_slice %63 {offsets = [0, 48], sizes = [64, 16], strides = [1, 1]} : vector<64x128xf32> to vector<64x16xf32>
    %167 = vector.extract_strided_slice %79 {offsets = [0, 48], sizes = [64, 16], strides = [1, 1]} : vector<64x128xf32> to vector<64x16xf32>
    %168 = tpu.concatenate %166, %167 in 1 : vector<64x16xf32>, vector<64x16xf32> -> vector<64x32xf32>
    %169 = arith.truncf %165 : vector<64x64xf32> to vector<64x64xbf16>
    %170 = arith.truncf %168 : vector<64x32xf32> to vector<64x32xbf16>
    %cst_50 = arith.constant dense<0.000000e+00> : vector<64x32xf32>
    %171 = tpu.matmul %169, %170, %cst_50 {dimension_numbers = #tpu.dot_dimension_numbers<[1], [0], [0], [1], [0, 0, 1, 1], [], []>} : vector<64x64xbf16>, vector<64x32xbf16>, vector<64x32xf32> -> vector<64x32xf32>
    %172 = vector.extract_strided_slice %171 {offsets = [0, 0], sizes = [64, 16], strides = [1, 1]} : vector<64x32xf32> to vector<64x16xf32>
    %173 = vector.extract_strided_slice %171 {offsets = [0, 16], sizes = [64, 16], strides = [1, 1]} : vector<64x32xf32> to vector<64x16xf32>
    %174 = vector.extract_strided_slice %81 {offsets = [0, 64], sizes = [64, 16], strides = [1, 1]} : vector<64x128xf32> to vector<64x16xf32>
    %175 = arith.truncf %174 : vector<64x16xf32> to vector<64x16xbf16>
    %176 = vector.extract_strided_slice %62 {offsets = [0, 64], sizes = [64, 16], strides = [1, 1]} : vector<64x128xf32> to vector<64x16xf32>
    %177 = arith.truncf %176 : vector<64x16xf32> to vector<64x16xbf16>
    %cst_51 = arith.constant dense<0.000000e+00> : vector<64x64xf32>
    %178 = tpu.matmul %175, %177, %cst_51 {dimension_numbers = #tpu.dot_dimension_numbers<[1], [1], [0], [0], [0, 0, 1, 0], [], []>} : vector<64x16xbf16>, vector<64x16xbf16>, vector<64x64xf32> -> vector<64x64xf32>
    %cst_52 = arith.constant dense<0xFF800000> : vector<64xf32>
    %179 = vector.multi_reduction <maximumf>, %178, %cst_52 [1] : vector<64x64xf32> to vector<64xf32>
    %180 = vector.shape_cast %179 : vector<64xf32> to vector<64x1xf32>
    %181 = vector.broadcast %180 : vector<64x1xf32> to vector<64x64xf32>
    %182 = arith.subf %178, %181 : vector<64x64xf32>
    %183 = math.exp %182 : vector<64x64xf32>
    %cst_53 = arith.constant dense<0.000000e+00> : vector<64xf32>
    %184 = vector.multi_reduction <add>, %183, %cst_53 [1] : vector<64x64xf32> to vector<64xf32>
    %185 = vector.shape_cast %184 : vector<64xf32> to vector<64x1xf32>
    %186 = tpu.reciprocal %185 {approx = true} : vector<64x1xf32> -> vector<64x1xf32>
    %187 = vector.broadcast %186 : vector<64x1xf32> to vector<64x64xf32>
    %188 = arith.mulf %183, %187 : vector<64x64xf32>
    %189 = vector.extract_strided_slice %63 {offsets = [0, 64], sizes = [64, 16], strides = [1, 1]} : vector<64x128xf32> to vector<64x16xf32>
    %190 = vector.extract_strided_slice %79 {offsets = [0, 64], sizes = [64, 16], strides = [1, 1]} : vector<64x128xf32> to vector<64x16xf32>
    %191 = tpu.concatenate %189, %190 in 1 : vector<64x16xf32>, vector<64x16xf32> -> vector<64x32xf32>
    %192 = arith.truncf %188 : vector<64x64xf32> to vector<64x64xbf16>
    %193 = arith.truncf %191 : vector<64x32xf32> to vector<64x32xbf16>
    %cst_54 = arith.constant dense<0.000000e+00> : vector<64x32xf32>
    %194 = tpu.matmul %192, %193, %cst_54 {dimension_numbers = #tpu.dot_dimension_numbers<[1], [0], [0], [1], [0, 0, 1, 1], [], []>} : vector<64x64xbf16>, vector<64x32xbf16>, vector<64x32xf32> -> vector<64x32xf32>
    %195 = vector.extract_strided_slice %194 {offsets = [0, 0], sizes = [64, 16], strides = [1, 1]} : vector<64x32xf32> to vector<64x16xf32>
    %196 = vector.extract_strided_slice %194 {offsets = [0, 16], sizes = [64, 16], strides = [1, 1]} : vector<64x32xf32> to vector<64x16xf32>
    %197 = vector.extract_strided_slice %81 {offsets = [0, 80], sizes = [64, 16], strides = [1, 1]} : vector<64x128xf32> to vector<64x16xf32>
    %198 = arith.truncf %197 : vector<64x16xf32> to vector<64x16xbf16>
    %199 = vector.extract_strided_slice %62 {offsets = [0, 80], sizes = [64, 16], strides = [1, 1]} : vector<64x128xf32> to vector<64x16xf32>
    %200 = arith.truncf %199 : vector<64x16xf32> to vector<64x16xbf16>
    %cst_55 = arith.constant dense<0.000000e+00> : vector<64x64xf32>
    %201 = tpu.matmul %198, %200, %cst_55 {dimension_numbers = #tpu.dot_dimension_numbers<[1], [1], [0], [0], [0, 0, 1, 0], [], []>} : vector<64x16xbf16>, vector<64x16xbf16>, vector<64x64xf32> -> vector<64x64xf32>
    %cst_56 = arith.constant dense<0xFF800000> : vector<64xf32>
    %202 = vector.multi_reduction <maximumf>, %201, %cst_56 [1] : vector<64x64xf32> to vector<64xf32>
    %203 = vector.shape_cast %202 : vector<64xf32> to vector<64x1xf32>
    %204 = vector.broadcast %203 : vector<64x1xf32> to vector<64x64xf32>
    %205 = arith.subf %201, %204 : vector<64x64xf32>
    %206 = math.exp %205 : vector<64x64xf32>
    %cst_57 = arith.constant dense<0.000000e+00> : vector<64xf32>
    %207 = vector.multi_reduction <add>, %206, %cst_57 [1] : vector<64x64xf32> to vector<64xf32>
    %208 = vector.shape_cast %207 : vector<64xf32> to vector<64x1xf32>
    %209 = tpu.reciprocal %208 {approx = true} : vector<64x1xf32> -> vector<64x1xf32>
    %210 = vector.broadcast %209 : vector<64x1xf32> to vector<64x64xf32>
    %211 = arith.mulf %206, %210 : vector<64x64xf32>
    %212 = vector.extract_strided_slice %63 {offsets = [0, 80], sizes = [64, 16], strides = [1, 1]} : vector<64x128xf32> to vector<64x16xf32>
    %213 = vector.extract_strided_slice %79 {offsets = [0, 80], sizes = [64, 16], strides = [1, 1]} : vector<64x128xf32> to vector<64x16xf32>
    %214 = tpu.concatenate %212, %213 in 1 : vector<64x16xf32>, vector<64x16xf32> -> vector<64x32xf32>
    %215 = arith.truncf %211 : vector<64x64xf32> to vector<64x64xbf16>
    %216 = arith.truncf %214 : vector<64x32xf32> to vector<64x32xbf16>
    %cst_58 = arith.constant dense<0.000000e+00> : vector<64x32xf32>
    %217 = tpu.matmul %215, %216, %cst_58 {dimension_numbers = #tpu.dot_dimension_numbers<[1], [0], [0], [1], [0, 0, 1, 1], [], []>} : vector<64x64xbf16>, vector<64x32xbf16>, vector<64x32xf32> -> vector<64x32xf32>
    %218 = vector.extract_strided_slice %217 {offsets = [0, 0], sizes = [64, 16], strides = [1, 1]} : vector<64x32xf32> to vector<64x16xf32>
    %219 = vector.extract_strided_slice %217 {offsets = [0, 16], sizes = [64, 16], strides = [1, 1]} : vector<64x32xf32> to vector<64x16xf32>
    %220 = vector.extract_strided_slice %81 {offsets = [0, 96], sizes = [64, 16], strides = [1, 1]} : vector<64x128xf32> to vector<64x16xf32>
    %221 = arith.truncf %220 : vector<64x16xf32> to vector<64x16xbf16>
    %222 = vector.extract_strided_slice %62 {offsets = [0, 96], sizes = [64, 16], strides = [1, 1]} : vector<64x128xf32> to vector<64x16xf32>
    %223 = arith.truncf %222 : vector<64x16xf32> to vector<64x16xbf16>
    %cst_59 = arith.constant dense<0.000000e+00> : vector<64x64xf32>
    %224 = tpu.matmul %221, %223, %cst_59 {dimension_numbers = #tpu.dot_dimension_numbers<[1], [1], [0], [0], [0, 0, 1, 0], [], []>} : vector<64x16xbf16>, vector<64x16xbf16>, vector<64x64xf32> -> vector<64x64xf32>
    %cst_60 = arith.constant dense<0xFF800000> : vector<64xf32>
    %225 = vector.multi_reduction <maximumf>, %224, %cst_60 [1] : vector<64x64xf32> to vector<64xf32>
    %226 = vector.shape_cast %225 : vector<64xf32> to vector<64x1xf32>
    %227 = vector.broadcast %226 : vector<64x1xf32> to vector<64x64xf32>
    %228 = arith.subf %224, %227 : vector<64x64xf32>
    %229 = math.exp %228 : vector<64x64xf32>
    %cst_61 = arith.constant dense<0.000000e+00> : vector<64xf32>
    %230 = vector.multi_reduction <add>, %229, %cst_61 [1] : vector<64x64xf32> to vector<64xf32>
    %231 = vector.shape_cast %230 : vector<64xf32> to vector<64x1xf32>
    %232 = tpu.reciprocal %231 {approx = true} : vector<64x1xf32> -> vector<64x1xf32>
    %233 = vector.broadcast %232 : vector<64x1xf32> to vector<64x64xf32>
    %234 = arith.mulf %229, %233 : vector<64x64xf32>
    %235 = vector.extract_strided_slice %63 {offsets = [0, 96], sizes = [64, 16], strides = [1, 1]} : vector<64x128xf32> to vector<64x16xf32>
    %236 = vector.extract_strided_slice %79 {offsets = [0, 96], sizes = [64, 16], strides = [1, 1]} : vector<64x128xf32> to vector<64x16xf32>
    %237 = tpu.concatenate %235, %236 in 1 : vector<64x16xf32>, vector<64x16xf32> -> vector<64x32xf32>
    %238 = arith.truncf %234 : vector<64x64xf32> to vector<64x64xbf16>
    %239 = arith.truncf %237 : vector<64x32xf32> to vector<64x32xbf16>
    %cst_62 = arith.constant dense<0.000000e+00> : vector<64x32xf32>
    %240 = tpu.matmul %238, %239, %cst_62 {dimension_numbers = #tpu.dot_dimension_numbers<[1], [0], [0], [1], [0, 0, 1, 1], [], []>} : vector<64x64xbf16>, vector<64x32xbf16>, vector<64x32xf32> -> vector<64x32xf32>
    %241 = vector.extract_strided_slice %240 {offsets = [0, 0], sizes = [64, 16], strides = [1, 1]} : vector<64x32xf32> to vector<64x16xf32>
    %242 = vector.extract_strided_slice %240 {offsets = [0, 16], sizes = [64, 16], strides = [1, 1]} : vector<64x32xf32> to vector<64x16xf32>
    %243 = vector.extract_strided_slice %81 {offsets = [0, 112], sizes = [64, 16], strides = [1, 1]} : vector<64x128xf32> to vector<64x16xf32>
    %244 = arith.truncf %243 : vector<64x16xf32> to vector<64x16xbf16>
    %245 = vector.extract_strided_slice %62 {offsets = [0, 112], sizes = [64, 16], strides = [1, 1]} : vector<64x128xf32> to vector<64x16xf32>
    %246 = arith.truncf %245 : vector<64x16xf32> to vector<64x16xbf16>
    %cst_63 = arith.constant dense<0.000000e+00> : vector<64x64xf32>
    %247 = tpu.matmul %244, %246, %cst_63 {dimension_numbers = #tpu.dot_dimension_numbers<[1], [1], [0], [0], [0, 0, 1, 0], [], []>} : vector<64x16xbf16>, vector<64x16xbf16>, vector<64x64xf32> -> vector<64x64xf32>
    %cst_64 = arith.constant dense<0xFF800000> : vector<64xf32>
    %248 = vector.multi_reduction <maximumf>, %247, %cst_64 [1] : vector<64x64xf32> to vector<64xf32>
    %249 = vector.shape_cast %248 : vector<64xf32> to vector<64x1xf32>
    %250 = vector.broadcast %249 : vector<64x1xf32> to vector<64x64xf32>
    %251 = arith.subf %247, %250 : vector<64x64xf32>
    %252 = math.exp %251 : vector<64x64xf32>
    %cst_65 = arith.constant dense<0.000000e+00> : vector<64xf32>
    %253 = vector.multi_reduction <add>, %252, %cst_65 [1] : vector<64x64xf32> to vector<64xf32>
    %254 = vector.shape_cast %253 : vector<64xf32> to vector<64x1xf32>
    %255 = tpu.reciprocal %254 {approx = true} : vector<64x1xf32> -> vector<64x1xf32>
    %256 = vector.broadcast %255 : vector<64x1xf32> to vector<64x64xf32>
    %257 = arith.mulf %252, %256 : vector<64x64xf32>
    %258 = vector.extract_strided_slice %63 {offsets = [0, 112], sizes = [64, 16], strides = [1, 1]} : vector<64x128xf32> to vector<64x16xf32>
    %259 = vector.extract_strided_slice %79 {offsets = [0, 112], sizes = [64, 16], strides = [1, 1]} : vector<64x128xf32> to vector<64x16xf32>
    %260 = tpu.concatenate %258, %259 in 1 : vector<64x16xf32>, vector<64x16xf32> -> vector<64x32xf32>
    %261 = arith.truncf %257 : vector<64x64xf32> to vector<64x64xbf16>
    %262 = arith.truncf %260 : vector<64x32xf32> to vector<64x32xbf16>
    %cst_66 = arith.constant dense<0.000000e+00> : vector<64x32xf32>
    %263 = tpu.matmul %261, %262, %cst_66 {dimension_numbers = #tpu.dot_dimension_numbers<[1], [0], [0], [1], [0, 0, 1, 1], [], []>} : vector<64x64xbf16>, vector<64x32xbf16>, vector<64x32xf32> -> vector<64x32xf32>
    %264 = vector.extract_strided_slice %263 {offsets = [0, 0], sizes = [64, 16], strides = [1, 1]} : vector<64x32xf32> to vector<64x16xf32>
    %265 = vector.extract_strided_slice %263 {offsets = [0, 16], sizes = [64, 16], strides = [1, 1]} : vector<64x32xf32> to vector<64x16xf32>
    %266 = tpu.concatenate %103, %126, %149, %172, %195, %218, %241, %264 in 1 : vector<64x16xf32>, vector<64x16xf32>, vector<64x16xf32>, vector<64x16xf32>, vector<64x16xf32>, vector<64x16xf32>, vector<64x16xf32>, vector<64x16xf32> -> vector<64x128xf32>
    %267 = tpu.concatenate %104, %127, %150, %173, %196, %219, %242, %265 in 1 : vector<64x16xf32>, vector<64x16xf32>, vector<64x16xf32>, vector<64x16xf32>, vector<64x16xf32>, vector<64x16xf32>, vector<64x16xf32>, vector<64x16xf32> -> vector<64x128xf32>
    %268 = arith.truncf %266 : vector<64x128xf32> to vector<64x128xbf16>
    %c0_67 = arith.constant 0 : index
    %c0_68 = arith.constant 0 : index
    %269 = vector.load %arg12[%c0_67, %c0_68] : memref<128x128xbf16, #tpu.memory_space<vmem>>, vector<128x128xbf16>
    %cst_69 = arith.constant dense<0.000000e+00> : vector<64x128xf32>
    %270 = tpu.matmul %268, %269, %cst_69 {dimension_numbers = #tpu.dot_dimension_numbers<[1], [0], [0], [1], [0, 0, 1, 1], [], []>} : vector<64x128xbf16>, vector<128x128xbf16>, vector<64x128xf32> -> vector<64x128xf32>
    %c0_70 = arith.constant 0 : index
    %c0_71 = arith.constant 0 : index
    %271 = vector.load %arg13[%c0_70, %c0_71] : memref<1x128xf32, #tpu.memory_space<vmem>>, vector<1x128xf32>
    %272 = vector.broadcast %271 : vector<1x128xf32> to vector<64x128xf32>
    %273 = arith.addf %270, %272 : vector<64x128xf32>
    %274 = arith.addf %273, %27 : vector<64x128xf32>
    %c0_72 = arith.constant 0 : index
    %c0_73 = arith.constant 0 : index
    %c0_74 = arith.constant 0 : index
    %275 = vector.load %arg16[%c0_72, %c0_73, %c0_74] : memref<1x64x128xf32, #tpu.memory_space<vmem>>, vector<1x64x128xf32>
    %276 = vector.shape_cast %275 : vector<1x64x128xf32> to vector<64x128xf32>
    %277 = vector.shape_cast %274 : vector<64x128xf32> to vector<1x64x128xf32>
    tpu.vector_store %arg16[%c0_72, %c0_73, %c0_74], %277 {strides = array<i32>} : memref<1x64x128xf32, #tpu.memory_space<vmem>>, vector<1x64x128xf32>,
    %278 = arith.subf %267, %79 : vector<64x128xf32>
    %279 = arith.truncf %278 : vector<64x128xf32> to vector<64x128xbf16>
    %c0_75 = arith.constant 0 : index
    %c0_76 = arith.constant 0 : index
    %280 = vector.load %arg14[%c0_75, %c0_76] : memref<128x128xbf16, #tpu.memory_space<vmem>>, vector<128x128xbf16>
    %cst_77 = arith.constant dense<0.000000e+00> : vector<64x128xf32>
    %281 = tpu.matmul %279, %280, %cst_77 {dimension_numbers = #tpu.dot_dimension_numbers<[1], [0], [0], [1], [0, 0, 1, 1], [], []>} : vector<64x128xbf16>, vector<128x128xbf16>, vector<64x128xf32> -> vector<64x128xf32>
    %c0_78 = arith.constant 0 : index
    %c0_79 = arith.constant 0 : index
    %282 = vector.load %arg15[%c0_78, %c0_79] : memref<1x128xf32, #tpu.memory_space<vmem>>, vector<1x128xf32>
    %283 = vector.broadcast %282 : vector<1x128xf32> to vector<64x128xf32>
    %284 = arith.addf %281, %283 : vector<64x128xf32>
    %c0_80 = arith.constant 0 : index
    %c0_81 = arith.constant 0 : index
    %c0_82 = arith.constant 0 : index
    %285 = vector.load %arg17[%c0_80, %c0_81, %c0_82] : memref<1x64x128xf32, #tpu.memory_space<vmem>>, vector<1x64x128xf32>
    %286 = vector.shape_cast %285 : vector<1x64x128xf32> to vector<64x128xf32>
    %287 = vector.shape_cast %284 : vector<64x128xf32> to vector<1x64x128xf32>
    tpu.vector_store %arg17[%c0_80, %c0_81, %c0_82], %287 {strides = array<i32>} : memref<1x64x128xf32, #tpu.memory_space<vmem>>, vector<1x64x128xf32>,
    return
  }
  func.func @transform_0(%arg0: i32) -> (i32, i32, i32) {
    %c0_i32 = arith.constant 0 : i32
    %c0_i32_0 = arith.constant 0 : i32
    %c0_i32_1 = arith.constant 0 : i32
    return %arg0, %c0_i32, %c0_i32_0 : i32, i32, i32
  }
  func.func @transform_1(%arg0: i32) -> (i32, i32, i32) {
    %c2_i32 = arith.constant 2 : i32
    %0 = arith.addi %arg0, %c2_i32 : i32
    %c4_i32 = arith.constant 4 : i32
    %c0_i32 = arith.constant 0 : i32
    %1 = arith.cmpi eq, %c4_i32, %c0_i32 : i32
    %c1_i32 = arith.constant 1 : i32
    %2 = arith.select %1, %c1_i32, %c4_i32 : i32
    %3 = arith.remsi %0, %2 : i32
    %c0_i32_0 = arith.constant 0 : i32
    %4 = arith.cmpi ne, %3, %c0_i32_0 : i32
    %c0_i32_1 = arith.constant 0 : i32
    %5 = arith.cmpi slt, %3, %c0_i32_1 : i32
    %c0_i32_2 = arith.constant 0 : i32
    %6 = arith.cmpi slt, %2, %c0_i32_2 : i32
    %7 = arith.xori %5, %6 : i1
    %8 = arith.andi %7, %4 : i1
    %9 = arith.addi %3, %2 : i32
    %10 = arith.select %8, %9, %3 : i32
    %c0_i32_3 = arith.constant 0 : i32
    %c0_i32_4 = arith.constant 0 : i32
    %c0_i32_5 = arith.constant 0 : i32
    return %10, %c0_i32_3, %c0_i32_4 : i32, i32, i32
  }
  func.func @transform_2(%arg0: i32) -> (i32, i32) {
    %c0_i32 = arith.constant 0 : i32
    %c0_i32_0 = arith.constant 0 : i32
    %c0_i32_1 = arith.constant 0 : i32
    return %c0_i32, %c0_i32_0 : i32, i32
  }
  func.func @transform_3(%arg0: i32) -> (i32, i32) {
    %c0_i32 = arith.constant 0 : i32
    %c0_i32_0 = arith.constant 0 : i32
    %c0_i32_1 = arith.constant 0 : i32
    return %c0_i32, %c0_i32_0 : i32, i32
  }
  func.func @transform_4(%arg0: i32) -> (i32, i32) {
    %c0_i32 = arith.constant 0 : i32
    %c0_i32_0 = arith.constant 0 : i32
    %c0_i32_1 = arith.constant 0 : i32
    return %c0_i32, %c0_i32_0 : i32, i32
  }
  func.func @transform_5(%arg0: i32) -> (i32, i32) {
    %c0_i32 = arith.constant 0 : i32
    %c0_i32_0 = arith.constant 0 : i32
    %c0_i32_1 = arith.constant 0 : i32
    return %c0_i32, %c0_i32_0 : i32, i32
  }
  func.func @transform_6(%arg0: i32) -> (i32, i32) {
    %c0_i32 = arith.constant 0 : i32
    %c0_i32_0 = arith.constant 0 : i32
    %c0_i32_1 = arith.constant 0 : i32
    return %c0_i32, %c0_i32_0 : i32, i32
  }
  func.func @transform_7(%arg0: i32) -> (i32, i32) {
    %c0_i32 = arith.constant 0 : i32
    %c0_i32_0 = arith.constant 0 : i32
    %c0_i32_1 = arith.constant 0 : i32
    return %c0_i32, %c0_i32_0 : i32, i32
  }
  func.func @transform_8(%arg0: i32) -> (i32, i32) {
    %c0_i32 = arith.constant 0 : i32
    %c0_i32_0 = arith.constant 0 : i32
    %c0_i32_1 = arith.constant 0 : i32
    return %c0_i32, %c0_i32_0 : i32, i32
  }
  func.func @transform_9(%arg0: i32) -> (i32, i32) {
    %c0_i32 = arith.constant 0 : i32
    %c0_i32_0 = arith.constant 0 : i32
    %c0_i32_1 = arith.constant 0 : i32
    return %c0_i32, %c0_i32_0 : i32, i32
  }
  func.func @transform_10(%arg0: i32) -> (i32, i32) {
    %c0_i32 = arith.constant 0 : i32
    %c0_i32_0 = arith.constant 0 : i32
    %c0_i32_1 = arith.constant 0 : i32
    return %c0_i32, %c0_i32_0 : i32, i32
  }
  func.func @transform_11(%arg0: i32) -> (i32, i32) {
    %c0_i32 = arith.constant 0 : i32
    %c0_i32_0 = arith.constant 0 : i32
    %c0_i32_1 = arith.constant 0 : i32
    return %c0_i32, %c0_i32_0 : i32, i32
  }
  func.func @transform_12(%arg0: i32) -> (i32, i32) {
    %c0_i32 = arith.constant 0 : i32
    %c0_i32_0 = arith.constant 0 : i32
    %c0_i32_1 = arith.constant 0 : i32
    return %c0_i32, %c0_i32_0 : i32, i32
  }
  func.func @transform_13(%arg0: i32) -> (i32, i32) {
    %c0_i32 = arith.constant 0 : i32
    %c0_i32_0 = arith.constant 0 : i32
    %c0_i32_1 = arith.constant 0 : i32
    return %c0_i32, %c0_i32_0 : i32, i32
  }
  func.func @transform_14(%arg0: i32) -> (i32, i32) {
    %c0_i32 = arith.constant 0 : i32
    %c0_i32_0 = arith.constant 0 : i32
    %c0_i32_1 = arith.constant 0 : i32
    return %c0_i32, %c0_i32_0 : i32, i32
  }
  func.func @transform_15(%arg0: i32) -> (i32, i32, i32) {
    %c0_i32 = arith.constant 0 : i32
    %c0_i32_0 = arith.constant 0 : i32
    %c0_i32_1 = arith.constant 0 : i32
    return %arg0, %c0_i32, %c0_i32_0 : i32, i32, i32
  }
  func.func @transform_16(%arg0: i32) -> (i32, i32, i32) {
    %c0_i32 = arith.constant 0 : i32
    %c0_i32_0 = arith.constant 0 : i32
    %c0_i32_1 = arith.constant 0 : i32
    return %arg0, %c0_i32, %c0_i32_0 : i32, i32, i32
  }
}

module attributes {stable_mosaic.version = 11 : i64} {
  func.func @_ln_fc1_kernel(%arg0: i32, %arg1: memref<256x128xf32, #tpu.memory_space<vmem>>, %arg2: memref<1x128xf32, #tpu.memory_space<vmem>>, %arg3: memref<1x128xf32, #tpu.memory_space<vmem>>, %arg4: memref<128x512xbf16, #tpu.memory_space<vmem>>, %arg5: memref<1x512xf32, #tpu.memory_space<vmem>>, %arg6: memref<256x512xf32, #tpu.memory_space<vmem>>) attributes {dimension_semantics = [#tpu.dimension_semantics<parallel>], iteration_bounds = array<i64: 1>, scalar_prefetch = 0 : i64, scratch_operands = 0 : i64, tpu.core_type = #tpu.core_type<tc>, window_params = [{transform_indices = @transform_0, window_bounds = array<i64: 256, 128>}, {pipeline_mode = #tpu.pipeline_mode<synchronous>, transform_indices = @transform_1, window_bounds = array<i64: 1, 128>}, {pipeline_mode = #tpu.pipeline_mode<synchronous>, transform_indices = @transform_2, window_bounds = array<i64: 1, 128>}, {pipeline_mode = #tpu.pipeline_mode<synchronous>, transform_indices = @transform_3, window_bounds = array<i64: 128, 512>}, {pipeline_mode = #tpu.pipeline_mode<synchronous>, transform_indices = @transform_4, window_bounds = array<i64: 1, 512>}, {transform_indices = @transform_5, window_bounds = array<i64: 256, 512>}]} {
    %c0 = arith.constant 0 : index
    %c0_0 = arith.constant 0 : index
    %0 = vector.load %arg1[%c0, %c0_0] : memref<256x128xf32, #tpu.memory_space<vmem>>, vector<256x128xf32>
    %cst = arith.constant dense<0.000000e+00> : vector<256xf32>
    %1 = vector.multi_reduction <add>, %0, %cst [1] : vector<256x128xf32> to vector<256xf32>
    %2 = vector.shape_cast %1 : vector<256xf32> to vector<256x1xf32>
    %cst_1 = arith.constant 1.280000e+02 : f32
    %3 = vector.broadcast %cst_1 : f32 to vector<256x1xf32>
    %4 = arith.divf %2, %3 : vector<256x1xf32>
    %5 = vector.broadcast %4 : vector<256x1xf32> to vector<256x128xf32>
    %6 = arith.subf %0, %5 : vector<256x128xf32>
    %7 = arith.mulf %6, %6 : vector<256x128xf32>
    %cst_2 = arith.constant dense<0.000000e+00> : vector<256xf32>
    %8 = vector.multi_reduction <add>, %7, %cst_2 [1] : vector<256x128xf32> to vector<256xf32>
    %9 = vector.shape_cast %8 : vector<256xf32> to vector<256x1xf32>
    %cst_3 = arith.constant 1.280000e+02 : f32
    %10 = vector.broadcast %cst_3 : f32 to vector<256x1xf32>
    %11 = arith.divf %9, %10 : vector<256x1xf32>
    %12 = vector.broadcast %4 : vector<256x1xf32> to vector<256x128xf32>
    %13 = arith.subf %0, %12 : vector<256x128xf32>
    %cst_4 = arith.constant 9.99999974E-6 : f32
    %14 = vector.broadcast %cst_4 : f32 to vector<256x1xf32>
    %15 = arith.addf %11, %14 : vector<256x1xf32>
    %16 = math.rsqrt %15 : vector<256x1xf32>
    %17 = vector.broadcast %16 : vector<256x1xf32> to vector<256x128xf32>
    %18 = arith.mulf %13, %17 : vector<256x128xf32>
    %c0_5 = arith.constant 0 : index
    %c0_6 = arith.constant 0 : index
    %19 = vector.load %arg2[%c0_5, %c0_6] : memref<1x128xf32, #tpu.memory_space<vmem>>, vector<1x128xf32>
    %20 = vector.broadcast %19 : vector<1x128xf32> to vector<256x128xf32>
    %21 = arith.mulf %18, %20 : vector<256x128xf32>
    %c0_7 = arith.constant 0 : index
    %c0_8 = arith.constant 0 : index
    %22 = vector.load %arg3[%c0_7, %c0_8] : memref<1x128xf32, #tpu.memory_space<vmem>>, vector<1x128xf32>
    %23 = vector.broadcast %22 : vector<1x128xf32> to vector<256x128xf32>
    %24 = arith.addf %21, %23 : vector<256x128xf32>
    %25 = arith.truncf %24 : vector<256x128xf32> to vector<256x128xbf16>
    %c0_9 = arith.constant 0 : index
    %c0_10 = arith.constant 0 : index
    %26 = vector.load %arg4[%c0_9, %c0_10] : memref<128x512xbf16, #tpu.memory_space<vmem>>, vector<128x512xbf16>
    %cst_11 = arith.constant dense<0.000000e+00> : vector<256x512xf32>
    %27 = tpu.matmul %25, %26, %cst_11 {dimension_numbers = #tpu.dot_dimension_numbers<[1], [0], [0], [1], [0, 0, 1, 1], [], []>} : vector<256x128xbf16>, vector<128x512xbf16>, vector<256x512xf32> -> vector<256x512xf32>
    %c0_12 = arith.constant 0 : index
    %c0_13 = arith.constant 0 : index
    %28 = vector.load %arg5[%c0_12, %c0_13] : memref<1x512xf32, #tpu.memory_space<vmem>>, vector<1x512xf32>
    %29 = vector.broadcast %28 : vector<1x512xf32> to vector<256x512xf32>
    %30 = arith.addf %27, %29 : vector<256x512xf32>
    %c0_14 = arith.constant 0 : index
    %c0_15 = arith.constant 0 : index
    %31 = vector.load %arg6[%c0_14, %c0_15] : memref<256x512xf32, #tpu.memory_space<vmem>>, vector<256x512xf32>
    tpu.vector_store %arg6[%c0_14, %c0_15], %30 {strides = array<i32>} : memref<256x512xf32, #tpu.memory_space<vmem>>, vector<256x512xf32>,
    return
  }
  func.func @transform_0(%arg0: i32) -> (i32, i32) {
    %c0_i32 = arith.constant 0 : i32
    %c0_i32_0 = arith.constant 0 : i32
    return %arg0, %c0_i32 : i32, i32
  }
  func.func @transform_1(%arg0: i32) -> (i32, i32) {
    %c0_i32 = arith.constant 0 : i32
    %c0_i32_0 = arith.constant 0 : i32
    %c0_i32_1 = arith.constant 0 : i32
    return %c0_i32, %c0_i32_0 : i32, i32
  }
  func.func @transform_2(%arg0: i32) -> (i32, i32) {
    %c0_i32 = arith.constant 0 : i32
    %c0_i32_0 = arith.constant 0 : i32
    %c0_i32_1 = arith.constant 0 : i32
    return %c0_i32, %c0_i32_0 : i32, i32
  }
  func.func @transform_3(%arg0: i32) -> (i32, i32) {
    %c0_i32 = arith.constant 0 : i32
    %c0_i32_0 = arith.constant 0 : i32
    %c0_i32_1 = arith.constant 0 : i32
    return %c0_i32, %c0_i32_0 : i32, i32
  }
  func.func @transform_4(%arg0: i32) -> (i32, i32) {
    %c0_i32 = arith.constant 0 : i32
    %c0_i32_0 = arith.constant 0 : i32
    %c0_i32_1 = arith.constant 0 : i32
    return %c0_i32, %c0_i32_0 : i32, i32
  }
  func.func @transform_5(%arg0: i32) -> (i32, i32) {
    %c0_i32 = arith.constant 0 : i32
    %c0_i32_0 = arith.constant 0 : i32
    return %arg0, %c0_i32 : i32, i32
  }
}

</mosaic_0001>

<llo_original>
// kernel: inter_frame_attention.4
$region0: #{inter_frame_attention.4}
  #allocation0 [shape = 'u32[]', space=smem, size = 0x4, offset = 0x4, fixed_abs, tag = 'smem constant byte address 0x4 - core index']
  #allocation1 [shape = 'u32[144,128]{1,0:T(1,128)}', space=vmem, size = 0x12000, scoped, tag = 'internal scratch']
  %s0 = inlined_call_operand.vmem [shape: f32[256,128], index: 0, kind: input, shape index: {}]
  %s1 = inlined_call_operand.vmem [shape: f32[1,128], index: 1, kind: input, shape index: {}]
  %s2 = inlined_call_operand.vmem [shape: f32[1,128], index: 2, kind: input, shape index: {}]
  %s3 = inlined_call_operand.vmem [shape: bf16[128,512], index: 3, kind: input, shape index: {}]
  %s4 = inlined_call_operand.vmem [shape: f32[1,512], index: 4, kind: input, shape index: {}]
  %s5 = inlined_call_operand.vmem [shape: f32[256,512], index: 5, kind: output, shape index: {}]
  %s6 = sld [smem:[#allocation0]]
  $region30: #{inter_frame_attention.4} parent=0
    _
  %s8 = ssub.s32 1, %s6
  %s9 = scalar_select 0, %s8, %s6
  // Predicated region
  $region2: #{inter_frame_attention.4} parent=0 // pred_check
    _
  $region3: #{inter_frame_attention.4} parent=0 // pred_check_branch
    %11 = sbr.rel (0) target = $region5
  $region4: #{inter_frame_attention.4} parent=0 // pred_region
    _
  $region5: #{inter_frame_attention.4} parent=0 // pred_fallthru
    _
  // Predicated region
  $region6: #{inter_frame_attention.4} parent=0 // pred_check
    _
  $region7: #{inter_frame_attention.4} parent=0 // pred_check_branch
    %13 = sbr.rel (0) target = $region9
  $region8: #{inter_frame_attention.4} parent=0 // pred_region
    _
  $region9: #{inter_frame_attention.4} parent=0 // pred_fallthru
    _
  // Predicated region
  $region10: #{inter_frame_attention.4} parent=0 // pred_check
    _
  $region11: #{inter_frame_attention.4} parent=0 // pred_check_branch
    %15 = sbr.rel (0) target = $region13
  $region12: #{inter_frame_attention.4} parent=0 // pred_region
    _
  $region13: #{inter_frame_attention.4} parent=0 // pred_fallthru
    _
  // Predicated region
  $region14: #{inter_frame_attention.4} parent=0 // pred_check
    _
  $region15: #{inter_frame_attention.4} parent=0 // pred_check_branch
    %17 = sbr.rel (0) target = $region17
  $region16: #{inter_frame_attention.4} parent=0 // pred_region
    _
  $region17: #{inter_frame_attention.4} parent=0 // pred_fallthru
    _
  // Predicated region
  $region18: #{inter_frame_attention.4} parent=0 // pred_check
    _
  $region19: #{inter_frame_attention.4} parent=0 // pred_check_branch
    %19 = sbr.rel (0) target = $region21
  $region20: #{inter_frame_attention.4} parent=0 // pred_region
    _
  $region21: #{inter_frame_attention.4} parent=0 // pred_fallthru
    _
  %v21 = vld [vmem:[%s0] sm:$0xff]
  %v22 = vld [vmem:[%s0 + $0x8] sm:$0xff]
  %v23 = vld [vmem:[%s0 + $0x10] sm:$0xff]
  %v24 = vld [vmem:[%s0 + $0x18] sm:$0xff]
  %v25 = vld [vmem:[%s0 + $0x20] sm:$0xff]
  %v26 = vld [vmem:[%s0 + $0x28] sm:$0xff]
  %v27 = vld [vmem:[%s0 + $0x30] sm:$0xff]
  %v28 = vld [vmem:[%s0 + $0x38] sm:$0xff]
  %v29 = vld [vmem:[%s0 + $0x40] sm:$0xff]
  %v30 = vld [vmem:[%s0 + $0x48] sm:$0xff]
  %v31 = vld [vmem:[%s0 + $0x50] sm:$0xff]
  %v32 = vld [vmem:[%s0 + $0x58] sm:$0xff]
  %v33 = vld [vmem:[%s0 + $0x60] sm:$0xff]
  %v34 = vld [vmem:[%s0 + $0x68] sm:$0xff]
  %v35 = vld [vmem:[%s0 + $0x70] sm:$0xff]
  %v36 = vld [vmem:[%s0 + $0x78] sm:$0xff]
  %v37 = vld [vmem:[%s0 + $0x80] sm:$0xff]
  %v38 = vld [vmem:[%s0 + $0x88] sm:$0xff]
  %v39 = vld [vmem:[%s0 + $0x90] sm:$0xff]
  %v40 = vld [vmem:[%s0 + $0x98] sm:$0xff]
  %v41 = vld [vmem:[%s0 + $0xa0] sm:$0xff]
  %v42 = vld [vmem:[%s0 + $0xa8] sm:$0xff]
  %v43 = vld [vmem:[%s0 + $0xb0] sm:$0xff]
  %v44 = vld [vmem:[%s0 + $0xb8] sm:$0xff]
  %v45 = vld [vmem:[%s0 + $0xc0] sm:$0xff]
  %v46 = vld [vmem:[%s0 + $0xc8] sm:$0xff]
  %v47 = vld [vmem:[%s0 + $0xd0] sm:$0xff]
  %v48 = vld [vmem:[%s0 + $0xd8] sm:$0xff]
  %v49 = vld [vmem:[%s0 + $0xe0] sm:$0xff]
  %v50 = vld [vmem:[%s0 + $0xe8] sm:$0xff]
  %v51 = vld [vmem:[%s0 + $0xf0] sm:$0xff]
  %v52 = vld [vmem:[%s0 + $0xf8] sm:$0xff]
  %53 = vadd.xlane.f32.xlu0 %v21
  %v54 = vpop.xlane.xlu0 %53
  %55 = vadd.xlane.f32.xlu0 %v22
  %v56 = vpop.xlane.xlu0 %55
  %57 = vadd.xlane.f32.xlu0 %v23
  %v58 = vpop.xlane.xlu0 %57
  %59 = vadd.xlane.f32.xlu0 %v24
  %v60 = vpop.xlane.xlu0 %59
  %61 = vadd.xlane.f32.xlu0 %v25
  %v62 = vpop.xlane.xlu0 %61
  %63 = vadd.xlane.f32.xlu0 %v26
  %v64 = vpop.xlane.xlu0 %63
  %65 = vadd.xlane.f32.xlu0 %v27
  %v66 = vpop.xlane.xlu0 %65
  %67 = vadd.xlane.f32.xlu0 %v28
  %v68 = vpop.xlane.xlu0 %67
  %69 = vadd.xlane.f32.xlu0 %v29
  %v70 = vpop.xlane.xlu0 %69
  %71 = vadd.xlane.f32.xlu0 %v30
  %v72 = vpop.xlane.xlu0 %71
  %73 = vadd.xlane.f32.xlu0 %v31
  %v74 = vpop.xlane.xlu0 %73
  %75 = vadd.xlane.f32.xlu0 %v32
  %v76 = vpop.xlane.xlu0 %75
  %77 = vadd.xlane.f32.xlu0 %v33
  %v78 = vpop.xlane.xlu0 %77
  %79 = vadd.xlane.f32.xlu0 %v34
  %v80 = vpop.xlane.xlu0 %79
  %81 = vadd.xlane.f32.xlu0 %v35
  %v82 = vpop.xlane.xlu0 %81
  %83 = vadd.xlane.f32.xlu0 %v36
  %v84 = vpop.xlane.xlu0 %83
  %85 = vadd.xlane.f32.xlu0 %v37
  %v86 = vpop.xlane.xlu0 %85
  %87 = vadd.xlane.f32.xlu0 %v38
  %v88 = vpop.xlane.xlu0 %87
  %89 = vadd.xlane.f32.xlu0 %v39
  %v90 = vpop.xlane.xlu0 %89
  %91 = vadd.xlane.f32.xlu0 %v40
  %v92 = vpop.xlane.xlu0 %91
  %93 = vadd.xlane.f32.xlu0 %v41
  %v94 = vpop.xlane.xlu0 %93
  %95 = vadd.xlane.f32.xlu0 %v42
  %v96 = vpop.xlane.xlu0 %95
  %97 = vadd.xlane.f32.xlu0 %v43
  %v98 = vpop.xlane.xlu0 %97
  %99 = vadd.xlane.f32.xlu0 %v44
  %v100 = vpop.xlane.xlu0 %99
  %101 = vadd.xlane.f32.xlu0 %v45
  %v102 = vpop.xlane.xlu0 %101
  %103 = vadd.xlane.f32.xlu0 %v46
  %v104 = vpop.xlane.xlu0 %103
  %105 = vadd.xlane.f32.xlu0 %v47
  %v106 = vpop.xlane.xlu0 %105
  %107 = vadd.xlane.f32.xlu0 %v48
  %v108 = vpop.xlane.xlu0 %107
  %109 = vadd.xlane.f32.xlu0 %v49
  %v110 = vpop.xlane.xlu0 %109
  %111 = vadd.xlane.f32.xlu0 %v50
  %v112 = vpop.xlane.xlu0 %111
  %113 = vadd.xlane.f32.xlu0 %v51
  %v114 = vpop.xlane.xlu0 %113
  %115 = vadd.xlane.f32.xlu0 %v52
  %v116 = vpop.xlane.xlu0 %115
  %v117 = vrcp.pop 128.0
  %v118 = vmul.f32 %v54, %v117
  %v119 = vmul.f32 %v56, %v117
  %v120 = vmul.f32 %v58, %v117
  %v121 = vmul.f32 %v60, %v117
  %v122 = vmul.f32 %v62, %v117
  %v123 = vmul.f32 %v64, %v117
  %v124 = vmul.f32 %v66, %v117
  %v125 = vmul.f32 %v68, %v117
  %v126 = vmul.f32 %v70, %v117
  %v127 = vmul.f32 %v72, %v117
  %v128 = vmul.f32 %v74, %v117
  %v129 = vmul.f32 %v76, %v117
  %v130 = vmul.f32 %v78, %v117
  %v131 = vmul.f32 %v80, %v117
  %v132 = vmul.f32 %v82, %v117
  %v133 = vmul.f32 %v84, %v117
  %v134 = vmul.f32 %v86, %v117
  %v135 = vmul.f32 %v88, %v117
  %v136 = vmul.f32 %v90, %v117
  %v137 = vmul.f32 %v92, %v117
  %v138 = vmul.f32 %v94, %v117
  %v139 = vmul.f32 %v96, %v117
  %v140 = vmul.f32 %v98, %v117
  %v141 = vmul.f32 %v100, %v117
  %v142 = vmul.f32 %v102, %v117
  %v143 = vmul.f32 %v104, %v117
  %v144 = vmul.f32 %v106, %v117
  %v145 = vmul.f32 %v108, %v117
  %v146 = vmul.f32 %v110, %v117
  %v147 = vmul.f32 %v112, %v117
  %v148 = vmul.f32 %v114, %v117
  %v149 = vmul.f32 %v116, %v117
  %v150 = vsub.f32 %v21, %v118
  %v151 = vsub.f32 %v22, %v119
  %v152 = vsub.f32 %v23, %v120
  %v153 = vsub.f32 %v24, %v121
  %v154 = vsub.f32 %v25, %v122
  %v155 = vsub.f32 %v26, %v123
  %v156 = vsub.f32 %v27, %v124
  %v157 = vsub.f32 %v28, %v125
  %v158 = vsub.f32 %v29, %v126
  %v159 = vsub.f32 %v30, %v127
  %v160 = vsub.f32 %v31, %v128
  %v161 = vsub.f32 %v32, %v129
  %v162 = vsub.f32 %v33, %v130
  %v163 = vsub.f32 %v34, %v131
  %v164 = vsub.f32 %v35, %v132
  %v165 = vsub.f32 %v36, %v133
  %v166 = vsub.f32 %v37, %v134
  %v167 = vsub.f32 %v38, %v135
  %v168 = vsub.f32 %v39, %v136
  %v169 = vsub.f32 %v40, %v137
  %v170 = vsub.f32 %v41, %v138
  %v171 = vsub.f32 %v42, %v139
  %v172 = vsub.f32 %v43, %v140
  %v173 = vsub.f32 %v44, %v141
  %v174 = vsub.f32 %v45, %v142
  %v175 = vsub.f32 %v46, %v143
  %v176 = vsub.f32 %v47, %v144
  %v177 = vsub.f32 %v48, %v145
  %v178 = vsub.f32 %v49, %v146
  %v179 = vsub.f32 %v50, %v147
  %v180 = vsub.f32 %v51, %v148
  %v181 = vsub.f32 %v52, %v149
  %v182 = vmul.f32 %v150, %v150
  %v183 = vmul.f32 %v151, %v151
  %v184 = vmul.f32 %v152, %v152
  %v185 = vmul.f32 %v153, %v153
  %v186 = vmul.f32 %v154, %v154
  %v187 = vmul.f32 %v155, %v155
  %v188 = vmul.f32 %v156, %v156
  %v189 = vmul.f32 %v157, %v157
  %v190 = vmul.f32 %v158, %v158
  %v191 = vmul.f32 %v159, %v159
  %v192 = vmul.f32 %v160, %v160
  %v193 = vmul.f32 %v161, %v161
  %v194 = vmul.f32 %v162, %v162
  %v195 = vmul.f32 %v163, %v163
  %v196 = vmul.f32 %v164, %v164
  %v197 = vmul.f32 %v165, %v165
  %v198 = vmul.f32 %v166, %v166
  %v199 = vmul.f32 %v167, %v167
  %v200 = vmul.f32 %v168, %v168
  %v201 = vmul.f32 %v169, %v169
  %v202 = vmul.f32 %v170, %v170
  %v203 = vmul.f32 %v171, %v171
  %v204 = vmul.f32 %v172, %v172
  %v205 = vmul.f32 %v173, %v173
  %v206 = vmul.f32 %v174, %v174
  %v207 = vmul.f32 %v175, %v175
  %v208 = vmul.f32 %v176, %v176
  %v209 = vmul.f32 %v177, %v177
  %v210 = vmul.f32 %v178, %v178
  %v211 = vmul.f32 %v179, %v179
  %v212 = vmul.f32 %v180, %v180
  %v213 = vmul.f32 %v181, %v181
  %214 = vadd.xlane.f32.xlu0 %v182
  %v215 = vpop.xlane.xlu0 %214
  %216 = vadd.xlane.f32.xlu0 %v183
  %v217 = vpop.xlane.xlu0 %216
  %218 = vadd.xlane.f32.xlu0 %v184
  %v219 = vpop.xlane.xlu0 %218
  %220 = vadd.xlane.f32.xlu0 %v185
  %v221 = vpop.xlane.xlu0 %220
  %222 = vadd.xlane.f32.xlu0 %v186
  %v223 = vpop.xlane.xlu0 %222
  %224 = vadd.xlane.f32.xlu0 %v187
  %v225 = vpop.xlane.xlu0 %224
  %226 = vadd.xlane.f32.xlu0 %v188
  %v227 = vpop.xlane.xlu0 %226
  %228 = vadd.xlane.f32.xlu0 %v189
  %v229 = vpop.xlane.xlu0 %228
  %230 = vadd.xlane.f32.xlu0 %v190
  %v231 = vpop.xlane.xlu0 %230
  %232 = vadd.xlane.f32.xlu0 %v191
  %v233 = vpop.xlane.xlu0 %232
  %234 = vadd.xlane.f32.xlu0 %v192
  %v235 = vpop.xlane.xlu0 %234
  %236 = vadd.xlane.f32.xlu0 %v193
  %v237 = vpop.xlane.xlu0 %236
  %238 = vadd.xlane.f32.xlu0 %v194
  %v239 = vpop.xlane.xlu0 %238
  %240 = vadd.xlane.f32.xlu0 %v195
  %v241 = vpop.xlane.xlu0 %240
  %242 = vadd.xlane.f32.xlu0 %v196
  %v243 = vpop.xlane.xlu0 %242
  %244 = vadd.xlane.f32.xlu0 %v197
  %v245 = vpop.xlane.xlu0 %244
  %246 = vadd.xlane.f32.xlu0 %v198
  %v247 = vpop.xlane.xlu0 %246
  %248 = vadd.xlane.f32.xlu0 %v199
  %v249 = vpop.xlane.xlu0 %248
  %250 = vadd.xlane.f32.xlu0 %v200
  %v251 = vpop.xlane.xlu0 %250
  %252 = vadd.xlane.f32.xlu0 %v201
  %v253 = vpop.xlane.xlu0 %252
  %254 = vadd.xlane.f32.xlu0 %v202
  %v255 = vpop.xlane.xlu0 %254
  %256 = vadd.xlane.f32.xlu0 %v203
  %v257 = vpop.xlane.xlu0 %256
  %258 = vadd.xlane.f32.xlu0 %v204
  %v259 = vpop.xlane.xlu0 %258
  %260 = vadd.xlane.f32.xlu0 %v205
  %v261 = vpop.xlane.xlu0 %260
  %262 = vadd.xlane.f32.xlu0 %v206
  %v263 = vpop.xlane.xlu0 %262
  %264 = vadd.xlane.f32.xlu0 %v207
  %v265 = vpop.xlane.xlu0 %264
  %266 = vadd.xlane.f32.xlu0 %v208
  %v267 = vpop.xlane.xlu0 %266
  %268 = vadd.xlane.f32.xlu0 %v209
  %v269 = vpop.xlane.xlu0 %268
  %270 = vadd.xlane.f32.xlu0 %v210
  %v271 = vpop.xlane.xlu0 %270
  %272 = vadd.xlane.f32.xlu0 %v211
  %v273 = vpop.xlane.xlu0 %272
  %274 = vadd.xlane.f32.xlu0 %v212
  %v275 = vpop.xlane.xlu0 %274
  %276 = vadd.xlane.f32.xlu0 %v213
  %v277 = vpop.xlane.xlu0 %276
  %v278 = vmul.f32 %v215, %v117
  %v279 = vmul.f32 %v217, %v117
  %v280 = vmul.f32 %v219, %v117
  %v281 = vmul.f32 %v221, %v117
  %v282 = vmul.f32 %v223, %v117
  %v283 = vmul.f32 %v225, %v117
  %v284 = vmul.f32 %v227, %v117
  %v285 = vmul.f32 %v229, %v117
  %v286 = vmul.f32 %v231, %v117
  %v287 = vmul.f32 %v233, %v117
  %v288 = vmul.f32 %v235, %v117
  %v289 = vmul.f32 %v237, %v117
  %v290 = vmul.f32 %v239, %v117
  %v291 = vmul.f32 %v241, %v117
  %v292 = vmul.f32 %v243, %v117
  %v293 = vmul.f32 %v245, %v117
  %v294 = vmul.f32 %v247, %v117
  %v295 = vmul.f32 %v249, %v117
  %v296 = vmul.f32 %v251, %v117
  %v297 = vmul.f32 %v253, %v117
  %v298 = vmul.f32 %v255, %v117
  %v299 = vmul.f32 %v257, %v117
  %v300 = vmul.f32 %v259, %v117
  %v301 = vmul.f32 %v261, %v117
  %v302 = vmul.f32 %v263, %v117
  %v303 = vmul.f32 %v265, %v117
  %v304 = vmul.f32 %v267, %v117
  %v305 = vmul.f32 %v269, %v117
  %v306 = vmul.f32 %v271, %v117
  %v307 = vmul.f32 %v273, %v117
  %v308 = vmul.f32 %v275, %v117
  %v309 = vmul.f32 %v277, %v117
  %v310 = vadd.f32 %v278, 1e-05
  %v311 = vadd.f32 %v279, 1e-05
  %v312 = vadd.f32 %v280, 1e-05
  %v313 = vadd.f32 %v281, 1e-05
  %v314 = vadd.f32 %v282, 1e-05
  %v315 = vadd.f32 %v283, 1e-05
  %v316 = vadd.f32 %v284, 1e-05
  %v317 = vadd.f32 %v285, 1e-05
  %v318 = vadd.f32 %v286, 1e-05
  %v319 = vadd.f32 %v287, 1e-05
  %v320 = vadd.f32 %v288, 1e-05
  %v321 = vadd.f32 %v289, 1e-05
  %v322 = vadd.f32 %v290, 1e-05
  %v323 = vadd.f32 %v291, 1e-05
  %v324 = vadd.f32 %v292, 1e-05
  %v325 = vadd.f32 %v293, 1e-05
  %v326 = vadd.f32 %v294, 1e-05
  %v327 = vadd.f32 %v295, 1e-05
  %v328 = vadd.f32 %v296, 1e-05
  %v329 = vadd.f32 %v297, 1e-05
  %v330 = vadd.f32 %v298, 1e-05
  %v331 = vadd.f32 %v299, 1e-05
  %v332 = vadd.f32 %v300, 1e-05
  %v333 = vadd.f32 %v301, 1e-05
  %v334 = vadd.f32 %v302, 1e-05
  %v335 = vadd.f32 %v303, 1e-05
  %v336 = vadd.f32 %v304, 1e-05
  %v337 = vadd.f32 %v305, 1e-05
  %v338 = vadd.f32 %v306, 1e-05
  %v339 = vadd.f32 %v307, 1e-05
  %v340 = vadd.f32 %v308, 1e-05
  %v341 = vadd.f32 %v309, 1e-05
  %v342 = vrsqrt.pop %v310
  %v343 = vrsqrt.pop %v311
  %v344 = vrsqrt.pop %v312
  %v345 = vrsqrt.pop %v313
  %v346 = vrsqrt.pop %v314
  %v347 = vrsqrt.pop %v315
  %v348 = vrsqrt.pop %v316
  %v349 = vrsqrt.pop %v317
  %v350 = vrsqrt.pop %v318
  %v351 = vrsqrt.pop %v319
  %v352 = vrsqrt.pop %v320
  %v353 = vrsqrt.pop %v321
  %v354 = vrsqrt.pop %v322
  %v355 = vrsqrt.pop %v323
  %v356 = vrsqrt.pop %v324
  %v357 = vrsqrt.pop %v325
  %v358 = vrsqrt.pop %v326
  %v359 = vrsqrt.pop %v327
  %v360 = vrsqrt.pop %v328
  %v361 = vrsqrt.pop %v329
  %v362 = vrsqrt.pop %v330
  %v363 = vrsqrt.pop %v331
  %v364 = vrsqrt.pop %v332
  %v365 = vrsqrt.pop %v333
  %v366 = vrsqrt.pop %v334
  %v367 = vrsqrt.pop %v335
  %v368 = vrsqrt.pop %v336
  %v369 = vrsqrt.pop %v337
  %v370 = vrsqrt.pop %v338
  %v371 = vrsqrt.pop %v339
  %v372 = vrsqrt.pop %v340
  %v373 = vrsqrt.pop %v341
  %v374 = vmul.f32 %v150, %v342
  %v375 = vmul.f32 %v151, %v343
  %v376 = vmul.f32 %v152, %v344
  %v377 = vmul.f32 %v153, %v345
  %v378 = vmul.f32 %v154, %v346
  %v379 = vmul.f32 %v155, %v347
  %v380 = vmul.f32 %v156, %v348
  %v381 = vmul.f32 %v157, %v349
  %v382 = vmul.f32 %v158, %v350
  %v383 = vmul.f32 %v159, %v351
  %v384 = vmul.f32 %v160, %v352
  %v385 = vmul.f32 %v161, %v353
  %v386 = vmul.f32 %v162, %v354
  %v387 = vmul.f32 %v163, %v355
  %v388 = vmul.f32 %v164, %v356
  %v389 = vmul.f32 %v165, %v357
  %v390 = vmul.f32 %v166, %v358
  %v391 = vmul.f32 %v167, %v359
  %v392 = vmul.f32 %v168, %v360
  %v393 = vmul.f32 %v169, %v361
  %v394 = vmul.f32 %v170, %v362
  %v395 = vmul.f32 %v171, %v363
  %v396 = vmul.f32 %v172, %v364
  %v397 = vmul.f32 %v173, %v365
  %v398 = vmul.f32 %v174, %v366
  %v399 = vmul.f32 %v175, %v367
  %v400 = vmul.f32 %v176, %v368
  %v401 = vmul.f32 %v177, %v369
  %v402 = vmul.f32 %v178, %v370
  %v403 = vmul.f32 %v179, %v371
  %v404 = vmul.f32 %v180, %v372
  %v405 = vmul.f32 %v181, %v373
  %v406 = vld [vmem:[%s1] sm:$0x1]
  %v408 = vlaneseq
  %v409 = vshrl.u32 %v408, 7
  %v410 = vsub.s32 0, %v409
  %v411 = vrot.slane %v406, %v410
  %v413 = vmul.f32 %v374, %v411
  %v414 = vmul.f32 %v375, %v411
  %v415 = vmul.f32 %v376, %v411
  %v416 = vmul.f32 %v377, %v411
  %v417 = vmul.f32 %v378, %v411
  %v418 = vmul.f32 %v379, %v411
  %v419 = vmul.f32 %v380, %v411
  %v420 = vmul.f32 %v381, %v411
  %v421 = vmul.f32 %v382, %v411
  %v422 = vmul.f32 %v383, %v411
  %v423 = vmul.f32 %v384, %v411
  %v424 = vmul.f32 %v385, %v411
  %v425 = vmul.f32 %v386, %v411
  %v426 = vmul.f32 %v387, %v411
  %v427 = vmul.f32 %v388, %v411
  %v428 = vmul.f32 %v389, %v411
  %v429 = vmul.f32 %v390, %v411
  %v430 = vmul.f32 %v391, %v411
  %v431 = vmul.f32 %v392, %v411
  %v432 = vmul.f32 %v393, %v411
  %v433 = vmul.f32 %v394, %v411
  %v434 = vmul.f32 %v395, %v411
  %v435 = vmul.f32 %v396, %v411
  %v436 = vmul.f32 %v397, %v411
  %v437 = vmul.f32 %v398, %v411
  %v438 = vmul.f32 %v399, %v411
  %v439 = vmul.f32 %v400, %v411
  %v440 = vmul.f32 %v401, %v411
  %v441 = vmul.f32 %v402, %v411
  %v442 = vmul.f32 %v403, %v411
  %v443 = vmul.f32 %v404, %v411
  %v444 = vmul.f32 %v405, %v411
  %v445 = vld [vmem:[%s2] sm:$0x1]
  %v447 = vlaneseq
  %v448 = vshrl.u32 %v447, 7
  %v449 = vsub.s32 0, %v448
  %v450 = vrot.slane %v445, %v449
  %v452 = vadd.f32 %v413, %v450
  %v453 = vadd.f32 %v414, %v450
  %v454 = vadd.f32 %v415, %v450
  %v455 = vadd.f32 %v416, %v450
  %v456 = vadd.f32 %v417, %v450
  %v457 = vadd.f32 %v418, %v450
  %v458 = vadd.f32 %v419, %v450
  %v459 = vadd.f32 %v420, %v450
  %v460 = vadd.f32 %v421, %v450
  %v461 = vadd.f32 %v422, %v450
  %v462 = vadd.f32 %v423, %v450
  %v463 = vadd.f32 %v424, %v450
  %v464 = vadd.f32 %v425, %v450
  %v465 = vadd.f32 %v426, %v450
  %v466 = vadd.f32 %v427, %v450
  %v467 = vadd.f32 %v428, %v450
  %v468 = vadd.f32 %v429, %v450
  %v469 = vadd.f32 %v430, %v450
  %v470 = vadd.f32 %v431, %v450
  %v471 = vadd.f32 %v432, %v450
  %v472 = vadd.f32 %v433, %v450
  %v473 = vadd.f32 %v434, %v450
  %v474 = vadd.f32 %v435, %v450
  %v475 = vadd.f32 %v436, %v450
  %v476 = vadd.f32 %v437, %v450
  %v477 = vadd.f32 %v438, %v450
  %v478 = vadd.f32 %v439, %v450
  %v479 = vadd.f32 %v440, %v450
  %v480 = vadd.f32 %v441, %v450
  %v481 = vadd.f32 %v442, %v450
  %v482 = vadd.f32 %v443, %v450
  %v483 = vadd.f32 %v444, %v450
  %v484 = vpack.c.bf16 %v453, %v452
  %v485 = vpack.c.bf16 %v455, %v454
  %v486 = vpack.c.bf16 %v457, %v456
  %v487 = vpack.c.bf16 %v459, %v458
  %v488 = vpack.c.bf16 %v461, %v460
  %v489 = vpack.c.bf16 %v463, %v462
  %v490 = vpack.c.bf16 %v465, %v464
  %v491 = vpack.c.bf16 %v467, %v466
  %v492 = vpack.c.bf16 %v469, %v468
  %v493 = vpack.c.bf16 %v471, %v470
  %v494 = vpack.c.bf16 %v473, %v472
  %v495 = vpack.c.bf16 %v475, %v474
  %v496 = vpack.c.bf16 %v477, %v476
  %v497 = vpack.c.bf16 %v479, %v478
  %v498 = vpack.c.bf16 %v481, %v480
  %v499 = vpack.c.bf16 %v483, %v482
  %v500 = vld [vmem:[%s3] sm:$0xff]
  %v501 = vld [vmem:[%s3 + $0x8] sm:$0xff]
  %v502 = vld [vmem:[%s3 + $0x10] sm:$0xff]
  %v503 = vld [vmem:[%s3 + $0x18] sm:$0xff]
  %v504 = vld [vmem:[%s3 + $0x20] sm:$0xff]
  %v505 = vld [vmem:[%s3 + $0x28] sm:$0xff]
  %v506 = vld [vmem:[%s3 + $0x30] sm:$0xff]
  %v507 = vld [vmem:[%s3 + $0x38] sm:$0xff]
  %v508 = vld [vmem:[%s3 + $0x40] sm:$0xff]
  %v509 = vld [vmem:[%s3 + $0x48] sm:$0xff]
  %v510 = vld [vmem:[%s3 + $0x50] sm:$0xff]
  %v511 = vld [vmem:[%s3 + $0x58] sm:$0xff]
  %v512 = vld [vmem:[%s3 + $0x60] sm:$0xff]
  %v513 = vld [vmem:[%s3 + $0x68] sm:$0xff]
  %v514 = vld [vmem:[%s3 + $0x70] sm:$0xff]
  %v515 = vld [vmem:[%s3 + $0x78] sm:$0xff]
  %v516 = vld [vmem:[%s3 + $0x80] sm:$0xff]
  %v517 = vld [vmem:[%s3 + $0x88] sm:$0xff]
  %v518 = vld [vmem:[%s3 + $0x90] sm:$0xff]
  %v519 = vld [vmem:[%s3 + $0x98] sm:$0xff]
  %v520 = vld [vmem:[%s3 + $0xa0] sm:$0xff]
  %v521 = vld [vmem:[%s3 + $0xa8] sm:$0xff]
  %v522 = vld [vmem:[%s3 + $0xb0] sm:$0xff]
  %v523 = vld [vmem:[%s3 + $0xb8] sm:$0xff]
  %v524 = vld [vmem:[%s3 + $0xc0] sm:$0xff]
  %v525 = vld [vmem:[%s3 + $0xc8] sm:$0xff]
  %v526 = vld [vmem:[%s3 + $0xd0] sm:$0xff]
  %v527 = vld [vmem:[%s3 + $0xd8] sm:$0xff]
  %v528 = vld [vmem:[%s3 + $0xe0] sm:$0xff]
  %v529 = vld [vmem:[%s3 + $0xe8] sm:$0xff]
  %v530 = vld [vmem:[%s3 + $0xf0] sm:$0xff]
  %v531 = vld [vmem:[%s3 + $0xf8] sm:$0xff]
  %v532 = vld [vmem:[%s4] sm:$0xf]
  %v534 = vlaneseq
  %v535 = vshrl.u32 %v534, 7
  %v536 = vsub.s32 0, %v535
  %v537 = vrot.slane %v532, %v536
  %v538 = vlaneseq
  %v539 = vshrl.u32 %v538, 7
  %v540 = vsub.s32 1, %v539
  %v541 = vrot.slane %v532, %v540
  %v542 = vlaneseq
  %v543 = vshrl.u32 %v542, 7
  %v544 = vsub.s32 2, %v543
  %v545 = vrot.slane %v532, %v544
  %v546 = vlaneseq
  %v547 = vshrl.u32 %v546, 7
  %v548 = vsub.s32 3, %v547
  %v549 = vrot.slane %v532, %v548
  %v586 = vunpack.c.l.b16 %v500
  %v587 = vunpack.c.h.b16 %v500
  %v588 = vunpack.c.l.b16 %v501
  %v589 = vunpack.c.h.b16 %v501
  %v590 = vunpack.c.l.b16 %v502
  %v591 = vunpack.c.h.b16 %v502
  %v592 = vunpack.c.l.b16 %v503
  %v593 = vunpack.c.h.b16 %v503
  %v594 = vunpack.c.l.b16 %v504
  %v595 = vunpack.c.h.b16 %v504
  %v596 = vunpack.c.l.b16 %v505
  %v597 = vunpack.c.h.b16 %v505
  %v598 = vunpack.c.l.b16 %v506
  %v599 = vunpack.c.h.b16 %v506
  %v600 = vunpack.c.l.b16 %v507
  %v601 = vunpack.c.h.b16 %v507
  %v602 = vunpack.c.l.b16 %v508
  %v603 = vunpack.c.h.b16 %v508
  %v604 = vunpack.c.l.b16 %v509
  %v605 = vunpack.c.h.b16 %v509
  %v606 = vunpack.c.l.b16 %v510
  %v607 = vunpack.c.h.b16 %v510
  %v608 = vunpack.c.l.b16 %v511
  %v609 = vunpack.c.h.b16 %v511
  %v610 = vunpack.c.l.b16 %v512
  %v611 = vunpack.c.h.b16 %v512
  %v612 = vunpack.c.l.b16 %v513
  %v613 = vunpack.c.h.b16 %v513
  %v614 = vunpack.c.l.b16 %v514
  %v615 = vunpack.c.h.b16 %v514
  %v616 = vunpack.c.l.b16 %v515
  %v617 = vunpack.c.h.b16 %v515
  %v618 = vunpack.c.l.b16 %v516
  %v619 = vunpack.c.h.b16 %v516
  %v620 = vunpack.c.l.b16 %v517
  %v621 = vunpack.c.h.b16 %v517
  %v622 = vunpack.c.l.b16 %v518
  %v623 = vunpack.c.h.b16 %v518
  %v624 = vunpack.c.l.b16 %v519
  %v625 = vunpack.c.h.b16 %v519
  %v626 = vunpack.c.l.b16 %v520
  %v627 = vunpack.c.h.b16 %v520
  %v628 = vunpack.c.l.b16 %v521
  %v629 = vunpack.c.h.b16 %v521
  %v630 = vunpack.c.l.b16 %v522
  %v631 = vunpack.c.h.b16 %v522
  %v632 = vunpack.c.l.b16 %v523
  %v633 = vunpack.c.h.b16 %v523
  %v634 = vunpack.c.l.b16 %v524
  %v635 = vunpack.c.h.b16 %v524
  %v636 = vunpack.c.l.b16 %v525
  %v637 = vunpack.c.h.b16 %v525
  %v638 = vunpack.c.l.b16 %v526
  %v639 = vunpack.c.h.b16 %v526
  %v640 = vunpack.c.l.b16 %v527
  %v641 = vunpack.c.h.b16 %v527
  %v642 = vunpack.c.l.b16 %v528
  %v643 = vunpack.c.h.b16 %v528
  %v644 = vunpack.c.l.b16 %v529
  %v645 = vunpack.c.h.b16 %v529
  %v646 = vunpack.c.l.b16 %v530
  %v647 = vunpack.c.h.b16 %v530
  %v648 = vunpack.c.l.b16 %v531
  %v649 = vunpack.c.h.b16 %v531
  %v650 = vpack.c.b16 %v590, %v586
  %v651 = vpack.c.b16 %v591, %v587
  %v652 = vpack.c.b16 %v592, %v588
  %v653 = vpack.c.b16 %v593, %v589
  %v654 = vpack.c.b16 %v598, %v594
  %v655 = vpack.c.b16 %v599, %v595
  %v656 = vpack.c.b16 %v600, %v596
  %v657 = vpack.c.b16 %v601, %v597
  %v658 = vpack.c.b16 %v606, %v602
  %v659 = vpack.c.b16 %v607, %v603
  %v660 = vpack.c.b16 %v608, %v604
  %v661 = vpack.c.b16 %v609, %v605
  %v662 = vpack.c.b16 %v614, %v610
  %v663 = vpack.c.b16 %v615, %v611
  %v664 = vpack.c.b16 %v616, %v612
  %v665 = vpack.c.b16 %v617, %v613
  %v666 = vpack.c.b16 %v622, %v618
  %v667 = vpack.c.b16 %v623, %v619
  %v668 = vpack.c.b16 %v624, %v620
  %v669 = vpack.c.b16 %v625, %v621
  %v670 = vpack.c.b16 %v630, %v626
  %v671 = vpack.c.b16 %v631, %v627
  %v672 = vpack.c.b16 %v632, %v628
  %v673 = vpack.c.b16 %v633, %v629
  %v674 = vpack.c.b16 %v638, %v634
  %v675 = vpack.c.b16 %v639, %v635
  %v676 = vpack.c.b16 %v640, %v636
  %v677 = vpack.c.b16 %v641, %v637
  %v678 = vpack.c.b16 %v646, %v642
  %v679 = vpack.c.b16 %v647, %v643
  %v680 = vpack.c.b16 %v648, %v644
  %v681 = vpack.c.b16 %v649, %v645
  %714 = vmatprep.subr.bf16.mxu0 %v651
  %715 = vmatpush1.bf16.msra.mxu0 %v650
  %716 = vmatprep.subr.bf16.mxu0 %v655
  %717 = vmatpush1.bf16.msra.mxu0 %v654
  %718 = vmatprep.subr.bf16.mxu0 %v659
  %719 = vmatpush1.bf16.msra.mxu0 %v658
  %720 = vmatprep.subr.bf16.mxu0 %v663
  %721 = vmatpush1.bf16.msra.mxu0 %v662
  %722 = vmatprep.subr.bf16.mxu0 %v667
  %723 = vmatpush1.bf16.msra.mxu0 %v666
  %724 = vmatprep.subr.bf16.mxu0 %v671
  %725 = vmatpush1.bf16.msra.mxu0 %v670
  %726 = vmatprep.subr.bf16.mxu0 %v675
  %727 = vmatpush1.bf16.msra.mxu0 %v674
  %728 = vmatprep.subr.bf16.mxu0 %v679
  %729 = vmatpush1.bf16.msra.mxu0 %v678
  %730 = vmatprep.subr.bf16.mxu0 0
  %731 = vmatpush1.bf16.msra.mxu0 0
  %732 = vmatprep.subr.bf16.mxu0 0
  %733 = vmatpush1.bf16.msra.mxu0 0
  %734 = vmatprep.subr.bf16.mxu0 0
  %735 = vmatpush1.bf16.msra.mxu0 0
  %736 = vmatprep.subr.bf16.mxu0 0
  %737 = vmatpush1.bf16.msra.mxu0 0
  %738 = vmatprep.subr.bf16.mxu0 0
  %739 = vmatpush1.bf16.msra.mxu0 0
  %740 = vmatprep.subr.bf16.mxu0 0
  %741 = vmatpush1.bf16.msra.mxu0 0
  %742 = vmatprep.subr.bf16.mxu0 0
  %743 = vmatpush1.bf16.msra.mxu0 0
  %744 = vmatprep.subr.bf16.mxu0 0
  %745 = vmatpush1.bf16.msra.mxu0 0
  %746 = vmatprep.mubr.bf16.mxu0 0
  %747 = vmatmul.mubr.bf16.gmra.mrb[0].mxu0 %v484
  %v748 = vpop.f32.mrb[0].mxu0
  %v749 = vadd.f32 %v537, %v748
  %v750 = vpop.f32.mrb[0].mxu0
  %v751 = vadd.f32 %v541, %v750
  %v752 = vpop.f32.mrb[0].mxu0
  %v753 = vadd.f32 %v537, %v752
  %v754 = vpop.f32.mrb[0].mxu0
  %v755 = vadd.f32 %v541, %v754
  %756 = vmatprep.mubr.bf16.mxu0 0
  %757 = vmatmul.mubr.bf16.gmra.mrb[0].mxu0 %v485
  %v758 = vpop.f32.mrb[0].mxu0
  %v759 = vadd.f32 %v537, %v758
  %v760 = vpop.f32.mrb[0].mxu0
  %v761 = vadd.f32 %v541, %v760
  %v762 = vpop.f32.mrb[0].mxu0
  %v763 = vadd.f32 %v537, %v762
  %v764 = vpop.f32.mrb[0].mxu0
  %v765 = vadd.f32 %v541, %v764
  %766 = vmatprep.mubr.bf16.mxu0 0
  %767 = vmatmul.mubr.bf16.gmra.mrb[0].mxu0 %v486
  %v768 = vpop.f32.mrb[0].mxu0
  %v769 = vadd.f32 %v537, %v768
  %v770 = vpop.f32.mrb[0].mxu0
  %v771 = vadd.f32 %v541, %v770
  %v772 = vpop.f32.mrb[0].mxu0
  %v773 = vadd.f32 %v537, %v772
  %v774 = vpop.f32.mrb[0].mxu0
  %v775 = vadd.f32 %v541, %v774
  %776 = vmatprep.mubr.bf16.mxu0 0
  %777 = vmatmul.mubr.bf16.gmra.mrb[0].mxu0 %v487
  %v778 = vpop.f32.mrb[0].mxu0
  %v779 = vadd.f32 %v537, %v778
  %v780 = vpop.f32.mrb[0].mxu0
  %v781 = vadd.f32 %v541, %v780
  %v782 = vpop.f32.mrb[0].mxu0
  %v783 = vadd.f32 %v537, %v782
  %v784 = vpop.f32.mrb[0].mxu0
  %v785 = vadd.f32 %v541, %v784
  %786 = vmatprep.mubr.bf16.mxu0 0
  %787 = vmatmul.mubr.bf16.gmra.mrb[0].mxu0 %v488
  %v788 = vpop.f32.mrb[0].mxu0
  %v789 = vadd.f32 %v537, %v788
  %v790 = vpop.f32.mrb[0].mxu0
  %v791 = vadd.f32 %v541, %v790
  %v792 = vpop.f32.mrb[0].mxu0
  %v793 = vadd.f32 %v537, %v792
  %v794 = vpop.f32.mrb[0].mxu0
  %v795 = vadd.f32 %v541, %v794
  %796 = vmatprep.mubr.bf16.mxu0 0
  %797 = vmatmul.mubr.bf16.gmra.mrb[0].mxu0 %v489
  %v798 = vpop.f32.mrb[0].mxu0
  %v799 = vadd.f32 %v537, %v798
  %v800 = vpop.f32.mrb[0].mxu0
  %v801 = vadd.f32 %v541, %v800
  %v802 = vpop.f32.mrb[0].mxu0
  %v803 = vadd.f32 %v537, %v802
  %v804 = vpop.f32.mrb[0].mxu0
  %v805 = vadd.f32 %v541, %v804
  %806 = vmatprep.mubr.bf16.mxu0 0
  %807 = vmatmul.mubr.bf16.gmra.mrb[0].mxu0 %v490
  %v808 = vpop.f32.mrb[0].mxu0
  %v809 = vadd.f32 %v537, %v808
  %v810 = vpop.f32.mrb[0].mxu0
  %v811 = vadd.f32 %v541, %v810
  %v812 = vpop.f32.mrb[0].mxu0
  %v813 = vadd.f32 %v537, %v812
  %v814 = vpop.f32.mrb[0].mxu0
  %v815 = vadd.f32 %v541, %v814
  %816 = vmatprep.mubr.bf16.mxu0 0
  %817 = vmatmul.mubr.bf16.gmra.mrb[0].mxu0 %v491
  %v818 = vpop.f32.mrb[0].mxu0
  %v819 = vadd.f32 %v537, %v818
  %v820 = vpop.f32.mrb[0].mxu0
  %v821 = vadd.f32 %v541, %v820
  %v822 = vpop.f32.mrb[0].mxu0
  %v823 = vadd.f32 %v537, %v822
  %v824 = vpop.f32.mrb[0].mxu0
  %v825 = vadd.f32 %v541, %v824
  %826 = vmatprep.mubr.bf16.mxu0 0
  %827 = vmatmul.mubr.bf16.gmra.mrb[0].mxu0 %v492
  %v828 = vpop.f32.mrb[0].mxu0
  %v829 = vadd.f32 %v537, %v828
  %v830 = vpop.f32.mrb[0].mxu0
  %v831 = vadd.f32 %v541, %v830
  %v832 = vpop.f32.mrb[0].mxu0
  %v833 = vadd.f32 %v537, %v832
  %v834 = vpop.f32.mrb[0].mxu0
  %v835 = vadd.f32 %v541, %v834
  %836 = vmatprep.mubr.bf16.mxu0 0
  %837 = vmatmul.mubr.bf16.gmra.mrb[0].mxu0 %v493
  %v838 = vpop.f32.mrb[0].mxu0
  %v839 = vadd.f32 %v537, %v838
  %v840 = vpop.f32.mrb[0].mxu0
  %v841 = vadd.f32 %v541, %v840
  %v842 = vpop.f32.mrb[0].mxu0
  %v843 = vadd.f32 %v537, %v842
  %v844 = vpop.f32.mrb[0].mxu0
  %v845 = vadd.f32 %v541, %v844
  %846 = vmatprep.mubr.bf16.mxu0 0
  %847 = vmatmul.mubr.bf16.gmra.mrb[0].mxu0 %v494
  %v848 = vpop.f32.mrb[0].mxu0
  %v849 = vadd.f32 %v537, %v848
  %v850 = vpop.f32.mrb[0].mxu0
  %v851 = vadd.f32 %v541, %v850
  %v852 = vpop.f32.mrb[0].mxu0
  %v853 = vadd.f32 %v537, %v852
  %v854 = vpop.f32.mrb[0].mxu0
  %v855 = vadd.f32 %v541, %v854
  %856 = vmatprep.mubr.bf16.mxu0 0
  %857 = vmatmul.mubr.bf16.gmra.mrb[0].mxu0 %v495
  %v858 = vpop.f32.mrb[0].mxu0
  %v859 = vadd.f32 %v537, %v858
  %v860 = vpop.f32.mrb[0].mxu0
  %v861 = vadd.f32 %v541, %v860
  %v862 = vpop.f32.mrb[0].mxu0
  %v863 = vadd.f32 %v537, %v862
  %v864 = vpop.f32.mrb[0].mxu0
  %v865 = vadd.f32 %v541, %v864
  %866 = vmatprep.mubr.bf16.mxu0 0
  %867 = vmatmul.mubr.bf16.gmra.mrb[0].mxu0 %v496
  %v868 = vpop.f32.mrb[0].mxu0
  %v869 = vadd.f32 %v537, %v868
  %v870 = vpop.f32.mrb[0].mxu0
  %v871 = vadd.f32 %v541, %v870
  %v872 = vpop.f32.mrb[0].mxu0
  %v873 = vadd.f32 %v537, %v872
  %v874 = vpop.f32.mrb[0].mxu0
  %v875 = vadd.f32 %v541, %v874
  %876 = vmatprep.mubr.bf16.mxu0 0
  %877 = vmatmul.mubr.bf16.gmra.mrb[0].mxu0 %v497
  %v878 = vpop.f32.mrb[0].mxu0
  %v879 = vadd.f32 %v537, %v878
  %v880 = vpop.f32.mrb[0].mxu0
  %v881 = vadd.f32 %v541, %v880
  %v882 = vpop.f32.mrb[0].mxu0
  %v883 = vadd.f32 %v537, %v882
  %v884 = vpop.f32.mrb[0].mxu0
  %v885 = vadd.f32 %v541, %v884
  %886 = vmatprep.mubr.bf16.mxu0 0
  %887 = vmatmul.mubr.bf16.gmra.mrb[0].mxu0 %v498
  %v888 = vpop.f32.mrb[0].mxu0
  %v889 = vadd.f32 %v537, %v888
  %v890 = vpop.f32.mrb[0].mxu0
  %v891 = vadd.f32 %v541, %v890
  %v892 = vpop.f32.mrb[0].mxu0
  %v893 = vadd.f32 %v537, %v892
  %v894 = vpop.f32.mrb[0].mxu0
  %v895 = vadd.f32 %v541, %v894
  %896 = vmatprep.mubr.bf16.mxu0 0
  %897 = vmatmul.mubr.bf16.gmra.mrb[0].mxu0 %v499
  %v898 = vpop.f32.mrb[0].mxu0
  %v899 = vadd.f32 %v537, %v898
  %v900 = vpop.f32.mrb[0].mxu0
  %v901 = vadd.f32 %v541, %v900
  %v902 = vpop.f32.mrb[0].mxu0
  %v903 = vadd.f32 %v537, %v902
  %v904 = vpop.f32.mrb[0].mxu0
  %v905 = vadd.f32 %v541, %v904
  %906 = vdwg.mxu0
  %907 = vmatprep.subr.bf16.mxu0 %v653
  %908 = vmatpush1.bf16.msra.mxu0 %v652
  %909 = vmatprep.subr.bf16.mxu0 %v657
  %910 = vmatpush1.bf16.msra.mxu0 %v656
  %911 = vmatprep.subr.bf16.mxu0 %v661
  %912 = vmatpush1.bf16.msra.mxu0 %v660
  %913 = vmatprep.subr.bf16.mxu0 %v665
  %914 = vmatpush1.bf16.msra.mxu0 %v664
  %915 = vmatprep.subr.bf16.mxu0 %v669
  %916 = vmatpush1.bf16.msra.mxu0 %v668
  %917 = vmatprep.subr.bf16.mxu0 %v673
  %918 = vmatpush1.bf16.msra.mxu0 %v672
  %919 = vmatprep.subr.bf16.mxu0 %v677
  %920 = vmatpush1.bf16.msra.mxu0 %v676
  %921 = vmatprep.subr.bf16.mxu0 %v681
  %922 = vmatpush1.bf16.msra.mxu0 %v680
  %923 = vmatprep.subr.bf16.mxu0 0
  %924 = vmatpush1.bf16.msra.mxu0 0
  %925 = vmatprep.subr.bf16.mxu0 0
  %926 = vmatpush1.bf16.msra.mxu0 0
  %927 = vmatprep.subr.bf16.mxu0 0
  %928 = vmatpush1.bf16.msra.mxu0 0
  %929 = vmatprep.subr.bf16.mxu0 0
  %930 = vmatpush1.bf16.msra.mxu0 0
  %931 = vmatprep.subr.bf16.mxu0 0
  %932 = vmatpush1.bf16.msra.mxu0 0
  %933 = vmatprep.subr.bf16.mxu0 0
  %934 = vmatpush1.bf16.msra.mxu0 0
  %935 = vmatprep.subr.bf16.mxu0 0
  %936 = vmatpush1.bf16.msra.mxu0 0
  %937 = vmatprep.subr.bf16.mxu0 0
  %938 = vmatpush1.bf16.msra.mxu0 0
  %939 = vmatprep.mubr.bf16.mxu0 0
  %940 = vmatmul.mubr.bf16.gmra.mrb[0].mxu0 %v484
  %v941 = vpop.f32.mrb[0].mxu0
  %v942 = vadd.f32 %v545, %v941
  %v943 = vpop.f32.mrb[0].mxu0
  %v944 = vadd.f32 %v549, %v943
  %v945 = vpop.f32.mrb[0].mxu0
  %v946 = vadd.f32 %v545, %v945
  %v947 = vpop.f32.mrb[0].mxu0
  %v948 = vadd.f32 %v549, %v947
  %949 = vmatprep.mubr.bf16.mxu0 0
  %950 = vmatmul.mubr.bf16.gmra.mrb[0].mxu0 %v485
  %v951 = vpop.f32.mrb[0].mxu0
  %v952 = vadd.f32 %v545, %v951
  %v953 = vpop.f32.mrb[0].mxu0
  %v954 = vadd.f32 %v549, %v953
  %v955 = vpop.f32.mrb[0].mxu0
  %v956 = vadd.f32 %v545, %v955
  %v957 = vpop.f32.mrb[0].mxu0
  %v958 = vadd.f32 %v549, %v957
  %959 = vmatprep.mubr.bf16.mxu0 0
  %960 = vmatmul.mubr.bf16.gmra.mrb[0].mxu0 %v486
  %v961 = vpop.f32.mrb[0].mxu0
  %v962 = vadd.f32 %v545, %v961
  %v963 = vpop.f32.mrb[0].mxu0
  %v964 = vadd.f32 %v549, %v963
  %v965 = vpop.f32.mrb[0].mxu0
  %v966 = vadd.f32 %v545, %v965
  %v967 = vpop.f32.mrb[0].mxu0
  %v968 = vadd.f32 %v549, %v967
  %969 = vmatprep.mubr.bf16.mxu0 0
  %970 = vmatmul.mubr.bf16.gmra.mrb[0].mxu0 %v487
  %v971 = vpop.f32.mrb[0].mxu0
  %v972 = vadd.f32 %v545, %v971
  %v973 = vpop.f32.mrb[0].mxu0
  %v974 = vadd.f32 %v549, %v973
  %v975 = vpop.f32.mrb[0].mxu0
  %v976 = vadd.f32 %v545, %v975
  %v977 = vpop.f32.mrb[0].mxu0
  %v978 = vadd.f32 %v549, %v977
  %979 = vmatprep.mubr.bf16.mxu0 0
  %980 = vmatmul.mubr.bf16.gmra.mrb[0].mxu0 %v488
  %v981 = vpop.f32.mrb[0].mxu0
  %v982 = vadd.f32 %v545, %v981
  %v983 = vpop.f32.mrb[0].mxu0
  %v984 = vadd.f32 %v549, %v983
  %v985 = vpop.f32.mrb[0].mxu0
  %v986 = vadd.f32 %v545, %v985
  %v987 = vpop.f32.mrb[0].mxu0
  %v988 = vadd.f32 %v549, %v987
  %989 = vmatprep.mubr.bf16.mxu0 0
  %990 = vmatmul.mubr.bf16.gmra.mrb[0].mxu0 %v489
  %v991 = vpop.f32.mrb[0].mxu0
  %v992 = vadd.f32 %v545, %v991
  %v993 = vpop.f32.mrb[0].mxu0
  %v994 = vadd.f32 %v549, %v993
  %v995 = vpop.f32.mrb[0].mxu0
  %v996 = vadd.f32 %v545, %v995
  %v997 = vpop.f32.mrb[0].mxu0
  %v998 = vadd.f32 %v549, %v997
  %999 = vmatprep.mubr.bf16.mxu0 0
  %1000 = vmatmul.mubr.bf16.gmra.mrb[0].mxu0 %v490
  %v1001 = vpop.f32.mrb[0].mxu0
  %v1002 = vadd.f32 %v545, %v1001
  %v1003 = vpop.f32.mrb[0].mxu0
  %v1004 = vadd.f32 %v549, %v1003
  %v1005 = vpop.f32.mrb[0].mxu0
  %v1006 = vadd.f32 %v545, %v1005
  %v1007 = vpop.f32.mrb[0].mxu0
  %v1008 = vadd.f32 %v549, %v1007
  %1009 = vmatprep.mubr.bf16.mxu0 0
  %1010 = vmatmul.mubr.bf16.gmra.mrb[0].mxu0 %v491
  %v1011 = vpop.f32.mrb[0].mxu0
  %v1012 = vadd.f32 %v545, %v1011
  %v1013 = vpop.f32.mrb[0].mxu0
  %v1014 = vadd.f32 %v549, %v1013
  %v1015 = vpop.f32.mrb[0].mxu0
  %v1016 = vadd.f32 %v545, %v1015
  %v1017 = vpop.f32.mrb[0].mxu0
  %v1018 = vadd.f32 %v549, %v1017
  %1019 = vmatprep.mubr.bf16.mxu0 0
  %1020 = vmatmul.mubr.bf16.gmra.mrb[0].mxu0 %v492
  %v1021 = vpop.f32.mrb[0].mxu0
  %v1022 = vadd.f32 %v545, %v1021
  %v1023 = vpop.f32.mrb[0].mxu0
  %v1024 = vadd.f32 %v549, %v1023
  %v1025 = vpop.f32.mrb[0].mxu0
  %v1026 = vadd.f32 %v545, %v1025
  %v1027 = vpop.f32.mrb[0].mxu0
  %v1028 = vadd.f32 %v549, %v1027
  %1029 = vmatprep.mubr.bf16.mxu0 0
  %1030 = vmatmul.mubr.bf16.gmra.mrb[0].mxu0 %v493
  %v1031 = vpop.f32.mrb[0].mxu0
  %v1032 = vadd.f32 %v545, %v1031
  %v1033 = vpop.f32.mrb[0].mxu0
  %v1034 = vadd.f32 %v549, %v1033
  %v1035 = vpop.f32.mrb[0].mxu0
  %v1036 = vadd.f32 %v545, %v1035
  %v1037 = vpop.f32.mrb[0].mxu0
  %v1038 = vadd.f32 %v549, %v1037
  %1039 = vmatprep.mubr.bf16.mxu0 0
  %1040 = vmatmul.mubr.bf16.gmra.mrb[0].mxu0 %v494
  %v1041 = vpop.f32.mrb[0].mxu0
  %v1042 = vadd.f32 %v545, %v1041
  %v1043 = vpop.f32.mrb[0].mxu0
  %v1044 = vadd.f32 %v549, %v1043
  %v1045 = vpop.f32.mrb[0].mxu0
  %v1046 = vadd.f32 %v545, %v1045
  %v1047 = vpop.f32.mrb[0].mxu0
  %v1048 = vadd.f32 %v549, %v1047
  %1049 = vmatprep.mubr.bf16.mxu0 0
  %1050 = vmatmul.mubr.bf16.gmra.mrb[0].mxu0 %v495
  %v1051 = vpop.f32.mrb[0].mxu0
  %v1052 = vadd.f32 %v545, %v1051
  %v1053 = vpop.f32.mrb[0].mxu0
  %v1054 = vadd.f32 %v549, %v1053
  %v1055 = vpop.f32.mrb[0].mxu0
  %v1056 = vadd.f32 %v545, %v1055
  %v1057 = vpop.f32.mrb[0].mxu0
  %v1058 = vadd.f32 %v549, %v1057
  %1059 = vmatprep.mubr.bf16.mxu0 0
  %1060 = vmatmul.mubr.bf16.gmra.mrb[0].mxu0 %v496
  %v1061 = vpop.f32.mrb[0].mxu0
  %v1062 = vadd.f32 %v545, %v1061
  %v1063 = vpop.f32.mrb[0].mxu0
  %v1064 = vadd.f32 %v549, %v1063
  %v1065 = vpop.f32.mrb[0].mxu0
  %v1066 = vadd.f32 %v545, %v1065
  %v1067 = vpop.f32.mrb[0].mxu0
  %v1068 = vadd.f32 %v549, %v1067
  %1069 = vmatprep.mubr.bf16.mxu0 0
  %1070 = vmatmul.mubr.bf16.gmra.mrb[0].mxu0 %v497
  %v1071 = vpop.f32.mrb[0].mxu0
  %v1072 = vadd.f32 %v545, %v1071
  %v1073 = vpop.f32.mrb[0].mxu0
  %v1074 = vadd.f32 %v549, %v1073
  %v1075 = vpop.f32.mrb[0].mxu0
  %v1076 = vadd.f32 %v545, %v1075
  %v1077 = vpop.f32.mrb[0].mxu0
  %v1078 = vadd.f32 %v549, %v1077
  %1079 = vmatprep.mubr.bf16.mxu0 0
  %1080 = vmatmul.mubr.bf16.gmra.mrb[0].mxu0 %v498
  %v1081 = vpop.f32.mrb[0].mxu0
  %v1082 = vadd.f32 %v545, %v1081
  %v1083 = vpop.f32.mrb[0].mxu0
  %v1084 = vadd.f32 %v549, %v1083
  %v1085 = vpop.f32.mrb[0].mxu0
  %v1086 = vadd.f32 %v545, %v1085
  %v1087 = vpop.f32.mrb[0].mxu0
  %v1088 = vadd.f32 %v549, %v1087
  %1089 = vmatprep.mubr.bf16.mxu0 0
  %1090 = vmatmul.mubr.bf16.gmra.mrb[0].mxu0 %v499
  %v1091 = vpop.f32.mrb[0].mxu0
  %v1092 = vadd.f32 %v545, %v1091
  %v1093 = vpop.f32.mrb[0].mxu0
  %v1094 = vadd.f32 %v549, %v1093
  %v1095 = vpop.f32.mrb[0].mxu0
  %v1096 = vadd.f32 %v545, %v1095
  %v1097 = vpop.f32.mrb[0].mxu0
  %v1098 = vadd.f32 %v549, %v1097
  %1099 = vdwg.mxu0
  %1100 = vst [vmem:[%s5] sm:$0xff] %v749
  %1101 = vst [vmem:[%s5 + $0x8] sm:$0xff] %v751
  %1102 = vst [vmem:[%s5 + $0x10] sm:$0xff] %v942
  %1103 = vst [vmem:[%s5 + $0x18] sm:$0xff] %v944
  %1104 = vst [vmem:[%s5 + $0x20] sm:$0xff] %v753
  %1105 = vst [vmem:[%s5 + $0x28] sm:$0xff] %v755
  %1106 = vst [vmem:[%s5 + $0x30] sm:$0xff] %v946
  %1107 = vst [vmem:[%s5 + $0x38] sm:$0xff] %v948
  %1108 = vst [vmem:[%s5 + $0x40] sm:$0xff] %v759
  %1109 = vst [vmem:[%s5 + $0x48] sm:$0xff] %v761
  %1110 = vst [vmem:[%s5 + $0x50] sm:$0xff] %v952
  %1111 = vst [vmem:[%s5 + $0x58] sm:$0xff] %v954
  %1112 = vst [vmem:[%s5 + $0x60] sm:$0xff] %v763
  %1113 = vst [vmem:[%s5 + $0x68] sm:$0xff] %v765
  %1114 = vst [vmem:[%s5 + $0x70] sm:$0xff] %v956
  %1115 = vst [vmem:[%s5 + $0x78] sm:$0xff] %v958
  %1116 = vst [vmem:[%s5 + $0x80] sm:$0xff] %v769
  %1117 = vst [vmem:[%s5 + $0x88] sm:$0xff] %v771
  %1118 = vst [vmem:[%s5 + $0x90] sm:$0xff] %v962
  %1119 = vst [vmem:[%s5 + $0x98] sm:$0xff] %v964
  %1120 = vst [vmem:[%s5 + $0xa0] sm:$0xff] %v773
  %1121 = vst [vmem:[%s5 + $0xa8] sm:$0xff] %v775
  %1122 = vst [vmem:[%s5 + $0xb0] sm:$0xff] %v966
  %1123 = vst [vmem:[%s5 + $0xb8] sm:$0xff] %v968
  %1124 = vst [vmem:[%s5 + $0xc0] sm:$0xff] %v779
  %1125 = vst [vmem:[%s5 + $0xc8] sm:$0xff] %v781
  %1126 = vst [vmem:[%s5 + $0xd0] sm:$0xff] %v972
  %1127 = vst [vmem:[%s5 + $0xd8] sm:$0xff] %v974
  %1128 = vst [vmem:[%s5 + $0xe0] sm:$0xff] %v783
  %1129 = vst [vmem:[%s5 + $0xe8] sm:$0xff] %v785
  %1130 = vst [vmem:[%s5 + $0xf0] sm:$0xff] %v976
  %1131 = vst [vmem:[%s5 + $0xf8] sm:$0xff] %v978
  %1132 = vst [vmem:[%s5 + $0x100] sm:$0xff] %v789
  %1133 = vst [vmem:[%s5 + $0x108] sm:$0xff] %v791
  %1134 = vst [vmem:[%s5 + $0x110] sm:$0xff] %v982
  %1135 = vst [vmem:[%s5 + $0x118] sm:$0xff] %v984
  %1136 = vst [vmem:[%s5 + $0x120] sm:$0xff] %v793
  %1137 = vst [vmem:[%s5 + $0x128] sm:$0xff] %v795
  %1138 = vst [vmem:[%s5 + $0x130] sm:$0xff] %v986
  %1139 = vst [vmem:[%s5 + $0x138] sm:$0xff] %v988
  %1140 = vst [vmem:[%s5 + $0x140] sm:$0xff] %v799
  %1141 = vst [vmem:[%s5 + $0x148] sm:$0xff] %v801
  %1142 = vst [vmem:[%s5 + $0x150] sm:$0xff] %v992
  %1143 = vst [vmem:[%s5 + $0x158] sm:$0xff] %v994
  %1144 = vst [vmem:[%s5 + $0x160] sm:$0xff] %v803
  %1145 = vst [vmem:[%s5 + $0x168] sm:$0xff] %v805
  %1146 = vst [vmem:[%s5 + $0x170] sm:$0xff] %v996
  %1147 = vst [vmem:[%s5 + $0x178] sm:$0xff] %v998
  %1148 = vst [vmem:[%s5 + $0x180] sm:$0xff] %v809
  %1149 = vst [vmem:[%s5 + $0x188] sm:$0xff] %v811
  %1150 = vst [vmem:[%s5 + $0x190] sm:$0xff] %v1002
  %1151 = vst [vmem:[%s5 + $0x198] sm:$0xff] %v1004
  %1152 = vst [vmem:[%s5 + $0x1a0] sm:$0xff] %v813
  %1153 = vst [vmem:[%s5 + $0x1a8] sm:$0xff] %v815
  %1154 = vst [vmem:[%s5 + $0x1b0] sm:$0xff] %v1006
  %1155 = vst [vmem:[%s5 + $0x1b8] sm:$0xff] %v1008
  %1156 = vst [vmem:[%s5 + $0x1c0] sm:$0xff] %v819
  %1157 = vst [vmem:[%s5 + $0x1c8] sm:$0xff] %v821
  %1158 = vst [vmem:[%s5 + $0x1d0] sm:$0xff] %v1012
  %1159 = vst [vmem:[%s5 + $0x1d8] sm:$0xff] %v1014
  %1160 = vst [vmem:[%s5 + $0x1e0] sm:$0xff] %v823
  %1161 = vst [vmem:[%s5 + $0x1e8] sm:$0xff] %v825
  %1162 = vst [vmem:[%s5 + $0x1f0] sm:$0xff] %v1016
  %1163 = vst [vmem:[%s5 + $0x1f8] sm:$0xff] %v1018
  %1164 = vst [vmem:[%s5 + $0x200] sm:$0xff] %v829
  %1165 = vst [vmem:[%s5 + $0x208] sm:$0xff] %v831
  %1166 = vst [vmem:[%s5 + $0x210] sm:$0xff] %v1022
  %1167 = vst [vmem:[%s5 + $0x218] sm:$0xff] %v1024
  %1168 = vst [vmem:[%s5 + $0x220] sm:$0xff] %v833
  %1169 = vst [vmem:[%s5 + $0x228] sm:$0xff] %v835
  %1170 = vst [vmem:[%s5 + $0x230] sm:$0xff] %v1026
  %1171 = vst [vmem:[%s5 + $0x238] sm:$0xff] %v1028
  %1172 = vst [vmem:[%s5 + $0x240] sm:$0xff] %v839
  %1173 = vst [vmem:[%s5 + $0x248] sm:$0xff] %v841
  %1174 = vst [vmem:[%s5 + $0x250] sm:$0xff] %v1032
  %1175 = vst [vmem:[%s5 + $0x258] sm:$0xff] %v1034
  %1176 = vst [vmem:[%s5 + $0x260] sm:$0xff] %v843
  %1177 = vst [vmem:[%s5 + $0x268] sm:$0xff] %v845
  %1178 = vst [vmem:[%s5 + $0x270] sm:$0xff] %v1036
  %1179 = vst [vmem:[%s5 + $0x278] sm:$0xff] %v1038
  %1180 = vst [vmem:[%s5 + $0x280] sm:$0xff] %v849
  %1181 = vst [vmem:[%s5 + $0x288] sm:$0xff] %v851
  %1182 = vst [vmem:[%s5 + $0x290] sm:$0xff] %v1042
  %1183 = vst [vmem:[%s5 + $0x298] sm:$0xff] %v1044
  %1184 = vst [vmem:[%s5 + $0x2a0] sm:$0xff] %v853
  %1185 = vst [vmem:[%s5 + $0x2a8] sm:$0xff] %v855
  %1186 = vst [vmem:[%s5 + $0x2b0] sm:$0xff] %v1046
  %1187 = vst [vmem:[%s5 + $0x2b8] sm:$0xff] %v1048
  %1188 = vst [vmem:[%s5 + $0x2c0] sm:$0xff] %v859
  %1189 = vst [vmem:[%s5 + $0x2c8] sm:$0xff] %v861
  %1190 = vst [vmem:[%s5 + $0x2d0] sm:$0xff] %v1052
  %1191 = vst [vmem:[%s5 + $0x2d8] sm:$0xff] %v1054
  %1192 = vst [vmem:[%s5 + $0x2e0] sm:$0xff] %v863
  %1193 = vst [vmem:[%s5 + $0x2e8] sm:$0xff] %v865
  %1194 = vst [vmem:[%s5 + $0x2f0] sm:$0xff] %v1056
  %1195 = vst [vmem:[%s5 + $0x2f8] sm:$0xff] %v1058
  %1196 = vst [vmem:[%s5 + $0x300] sm:$0xff] %v869
  %1197 = vst [vmem:[%s5 + $0x308] sm:$0xff] %v871
  %1198 = vst [vmem:[%s5 + $0x310] sm:$0xff] %v1062
  %1199 = vst [vmem:[%s5 + $0x318] sm:$0xff] %v1064
  %1200 = vst [vmem:[%s5 + $0x320] sm:$0xff] %v873
  %1201 = vst [vmem:[%s5 + $0x328] sm:$0xff] %v875
  %1202 = vst [vmem:[%s5 + $0x330] sm:$0xff] %v1066
  %1203 = vst [vmem:[%s5 + $0x338] sm:$0xff] %v1068
  %1204 = vst [vmem:[%s5 + $0x340] sm:$0xff] %v879
  %1205 = vst [vmem:[%s5 + $0x348] sm:$0xff] %v881
  %1206 = vst [vmem:[%s5 + $0x350] sm:$0xff] %v1072
  %1207 = vst [vmem:[%s5 + $0x358] sm:$0xff] %v1074
  %1208 = vst [vmem:[%s5 + $0x360] sm:$0xff] %v883
  %1209 = vst [vmem:[%s5 + $0x368] sm:$0xff] %v885
  %1210 = vst [vmem:[%s5 + $0x370] sm:$0xff] %v1076
  %1211 = vst [vmem:[%s5 + $0x378] sm:$0xff] %v1078
  %1212 = vst [vmem:[%s5 + $0x380] sm:$0xff] %v889
  %1213 = vst [vmem:[%s5 + $0x388] sm:$0xff] %v891
  %1214 = vst [vmem:[%s5 + $0x390] sm:$0xff] %v1082
  %1215 = vst [vmem:[%s5 + $0x398] sm:$0xff] %v1084
  %1216 = vst [vmem:[%s5 + $0x3a0] sm:$0xff] %v893
  %1217 = vst [vmem:[%s5 + $0x3a8] sm:$0xff] %v895
  %1218 = vst [vmem:[%s5 + $0x3b0] sm:$0xff] %v1086
  %1219 = vst [vmem:[%s5 + $0x3b8] sm:$0xff] %v1088
  %1220 = vst [vmem:[%s5 + $0x3c0] sm:$0xff] %v899
  %1221 = vst [vmem:[%s5 + $0x3c8] sm:$0xff] %v901
  %1222 = vst [vmem:[%s5 + $0x3d0] sm:$0xff] %v1092
  %1223 = vst [vmem:[%s5 + $0x3d8] sm:$0xff] %v1094
  %1224 = vst [vmem:[%s5 + $0x3e0] sm:$0xff] %v903
  %1225 = vst [vmem:[%s5 + $0x3e8] sm:$0xff] %v905
  %1226 = vst [vmem:[%s5 + $0x3f0] sm:$0xff] %v1096
  %1227 = vst [vmem:[%s5 + $0x3f8] sm:$0xff] %v1098
  // Predicated region
  $region22: #{inter_frame_attention.4} parent=0 // pred_check
    _
  $region23: #{inter_frame_attention.4} parent=0 // pred_check_branch
    %1229 = sbr.rel (0) target = $region25
  $region24: #{inter_frame_attention.4} parent=0 // pred_region
    _
  $region25: #{inter_frame_attention.4} parent=0 // pred_fallthru
    _
  // Predicated region
  $region26: #{inter_frame_attention.4} parent=0 // pred_check
    _
  $region27: #{inter_frame_attention.4} parent=0 // pred_check_branch
    %1231 = sbr.rel (0) target = $region29
  $region28: #{inter_frame_attention.4} parent=0 // pred_region
    _
  $region29: #{inter_frame_attention.4} parent=0 // pred_fallthru
    _

// kernel: inter_frame_attention.5
$region0: #{inter_frame_attention.5}
  #allocation0 [shape = 'u32[]', space=smem, size = 0x4, offset = 0x4, fixed_abs, tag = 'smem constant byte address 0x4 - core index']
  #allocation1 [shape = 'u32[144,128]{1,0:T(1,128)}', space=vmem, size = 0x12000, scoped, tag = 'internal scratch']
  %s0 = inlined_call_operand.vmem [shape: f32[4,64,512], index: 0, kind: input, shape index: {}]
  %s1 = inlined_call_operand.vmem [shape: f32[4,64,128], index: 1, kind: input, shape index: {}]
  %s2 = inlined_call_operand.vmem [shape: f32[9,512], index: 2, kind: input, shape index: {}]
  %s3 = inlined_call_operand.vmem [shape: f32[1,512], index: 3, kind: input, shape index: {}]
  %s4 = inlined_call_operand.vmem [shape: bf16[512,128], index: 4, kind: input, shape index: {}]
  %s5 = inlined_call_operand.vmem [shape: f32[1,128], index: 5, kind: input, shape index: {}]
  %s6 = inlined_call_operand.hbm [shape: f32[4,64,128], index: 6, kind: output, shape index: {}]
  %s7 = sld [smem:[#allocation0]]
  $region57: #{inter_frame_attention.5} parent=0
    _
  %s9 = ssub.s32 1, %s7
  %s10 = scalar_select 0, %s9, %s7
  $region1: #{inter_frame_attention.5} parent=0
    #allocation2 [shape = 'u8[65536]{0}', space=vmem, size = 0x10000, scoped, tag = 'output window, operand 0']
    #allocation3 [shape = 's32[2]{0}', space=sflag, size = 0x8, scoped, tag = 'scoped memory for inter_frame_attention.5']
    %11 = vsyncpa [#allocation3], 0
    %s12 = scalar_lea.sflag [#allocation3], 1
    %13 = vsyncpa %s12, 0
    loop: start=0, step=1, limit=6
    $region2: #{inter_frame_attention.5} parent=1 // loop_pre_header
      _
    $region3: #{inter_frame_attention.5} parent=1 // loop_header
      %s15 = sphi 0, %s19
      %p16 = scmp.ge.s32.totalorder %s15, 6
      %s25 = sphi 0, %s27
      %s28 = sphi 0, %s25
      %s29 = sphi 0, %s28
      %s45 = sphi 0, %s29
      %s51 = sphi 0, %s53
      %s54 = sphi 0, %s51
      %s55 = sphi 0, %s54
      %s71 = sphi 0, %s55
      %s75 = sphi 0, %s75
      %s77 = sphi 0, %s75
      %s78 = sphi 0, %s77
      %s92 = sphi 0, %s78
      %s96 = sphi 0, %s96
      %s98 = sphi 0, %s96
      %s99 = sphi 0, %s98
      %s113 = sphi 0, %s99
      %s117 = sphi 0, %s117
      %s119 = sphi 0, %s117
      %s120 = sphi 0, %s119
      %s134 = sphi 0, %s120
      %s138 = sphi 0, %s138
      %s140 = sphi 0, %s138
      %s141 = sphi 0, %s140
      %s155 = sphi 0, %s141
      %s161 = sphi 0, %s163
      %s164 = sphi 0, %s161
      %s165 = sphi 0, %s164
      %s181 = sphi 0, %s165
    $region4: #{inter_frame_attention.5} parent=1 // loop_header_branch
      %18 = sbr.rel (%p16) target = $region8
    $region5: #{inter_frame_attention.5} parent=1 // loop_body
      %s20 = ssub.s32 %s15, 1
      %s21 = ssub.s32 %s15, 2
      %s22 = sadd.s32 %s15, 1
      %s23 = ssub.s32 %s15, %s22
      %p24 = scmp.eq.s32.totalorder %s23, 0
      %s26 = sadd.s32 %s25, 1
      %s27 = scalar_select %p24, %s25, %s26
      %p30 = pneg %p24
      %p31 = scmp.eq.s32.totalorder %s15, 3
      %p32 = por %p30, %p31
      %p33 = scmp.ne.s32.totalorder %s25, %s28
      %p34 = scmp.eq.s32.totalorder %s15, 0
      %p35 = por %p33, %p34
      %p36 = scmp.ne.s32.totalorder %s25, %s28
      %p37 = scmp.eq.s32.totalorder %s20, 3
      %p38 = por %p36, %p37
      %p39 = scmp.ne.s32.totalorder %s28, %s29
      %p40 = scmp.eq.s32.totalorder %s20, 0
      %p41 = por %p39, %p40
      %p42 = scmp.ne.s32.totalorder %s28, %s29
      %p43 = scmp.eq.s32.totalorder %s21, 3
      %p44 = por %p42, %p43
      %p46 = scmp.ne.s32.totalorder %s29, %s45
      %p47 = scmp.eq.s32.totalorder %s21, 0
      %p48 = por %p46, %p47
      %s49 = ssub.s32 %s15, %s22
      %p50 = scmp.eq.s32.totalorder %s49, 0
      %s52 = sadd.s32 %s51, 1
      %s53 = scalar_select %p50, %s51, %s52
      %p56 = pneg %p50
      %p57 = scmp.eq.s32.totalorder %s15, 3
      %p58 = por %p56, %p57
      %p59 = scmp.ne.s32.totalorder %s51, %s54
      %p60 = scmp.eq.s32.totalorder %s15, 0
      %p61 = por %p59, %p60
      %p62 = scmp.ne.s32.totalorder %s51, %s54
      %p63 = scmp.eq.s32.totalorder %s20, 3
      %p64 = por %p62, %p63
      %p65 = scmp.ne.s32.totalorder %s54, %s55
      %p66 = scmp.eq.s32.totalorder %s20, 0
      %p67 = por %p65, %p66
      %p68 = scmp.ne.s32.totalorder %s54, %s55
      %p69 = scmp.eq.s32.totalorder %s21, 3
      %p70 = por %p68, %p69
      %p72 = scmp.ne.s32.totalorder %s55, %s71
      %p73 = scmp.eq.s32.totalorder %s21, 0
      %p74 = por %p72, %p73
      %s76 = sadd.s32 %s75, 1
      %p79 = scmp.eq.s32.totalorder %s15, 3
      %p80 = scmp.ne.s32.totalorder %s75, %s77
      %p81 = scmp.eq.s32.totalorder %s15, 0
      %p82 = por %p80, %p81
      %p83 = scmp.ne.s32.totalorder %s75, %s77
      %p84 = scmp.eq.s32.totalorder %s20, 3
      %p85 = por %p83, %p84
      %p86 = scmp.ne.s32.totalorder %s77, %s78
      %p87 = scmp.eq.s32.totalorder %s20, 0
      %p88 = por %p86, %p87
      %p89 = scmp.ne.s32.totalorder %s77, %s78
      %p90 = scmp.eq.s32.totalorder %s21, 3
      %p91 = por %p89, %p90
      %p93 = scmp.ne.s32.totalorder %s78, %s92
      %p94 = scmp.eq.s32.totalorder %s21, 0
      %p95 = por %p93, %p94
      %s97 = sadd.s32 %s96, 1
      %p100 = scmp.eq.s32.totalorder %s15, 3
      %p101 = scmp.ne.s32.totalorder %s96, %s98
      %p102 = scmp.eq.s32.totalorder %s15, 0
      %p103 = por %p101, %p102
      %p104 = scmp.ne.s32.totalorder %s96, %s98
      %p105 = scmp.eq.s32.totalorder %s20, 3
      %p106 = por %p104, %p105
      %p107 = scmp.ne.s32.totalorder %s98, %s99
      %p108 = scmp.eq.s32.totalorder %s20, 0
      %p109 = por %p107, %p108
      %p110 = scmp.ne.s32.totalorder %s98, %s99
      %p111 = scmp.eq.s32.totalorder %s21, 3
      %p112 = por %p110, %p111
      %p114 = scmp.ne.s32.totalorder %s99, %s113
      %p115 = scmp.eq.s32.totalorder %s21, 0
      %p116 = por %p114, %p115
      %s118 = sadd.s32 %s117, 1
      %p121 = scmp.eq.s32.totalorder %s15, 3
      %p122 = scmp.ne.s32.totalorder %s117, %s119
      %p123 = scmp.eq.s32.totalorder %s15, 0
      %p124 = por %p122, %p123
      %p125 = scmp.ne.s32.totalorder %s117, %s119
      %p126 = scmp.eq.s32.totalorder %s20, 3
      %p127 = por %p125, %p126
      %p128 = scmp.ne.s32.totalorder %s119, %s120
      %p129 = scmp.eq.s32.totalorder %s20, 0
      %p130 = por %p128, %p129
      %p131 = scmp.ne.s32.totalorder %s119, %s120
      %p132 = scmp.eq.s32.totalorder %s21, 3
      %p133 = por %p131, %p132
      %p135 = scmp.ne.s32.totalorder %s120, %s134
      %p136 = scmp.eq.s32.totalorder %s21, 0
      %p137 = por %p135, %p136
      %s139 = sadd.s32 %s138, 1
      %p142 = scmp.eq.s32.totalorder %s15, 3
      %p143 = scmp.ne.s32.totalorder %s138, %s140
      %p144 = scmp.eq.s32.totalorder %s15, 0
      %p145 = por %p143, %p144
      %p146 = scmp.ne.s32.totalorder %s138, %s140
      %p147 = scmp.eq.s32.totalorder %s20, 3
      %p148 = por %p146, %p147
      %p149 = scmp.ne.s32.totalorder %s140, %s141
      %p150 = scmp.eq.s32.totalorder %s20, 0
      %p151 = por %p149, %p150
      %p152 = scmp.ne.s32.totalorder %s140, %s141
      %p153 = scmp.eq.s32.totalorder %s21, 3
      %p154 = por %p152, %p153
      %p156 = scmp.ne.s32.totalorder %s141, %s155
      %p157 = scmp.eq.s32.totalorder %s21, 0
      %p158 = por %p156, %p157
      %s159 = ssub.s32 %s15, %s22
      %p160 = scmp.eq.s32.totalorder %s159, 0
      %s162 = sadd.s32 %s161, 1
      %s163 = scalar_select %p160, %s161, %s162
      %p166 = pneg %p160
      %p167 = scmp.eq.s32.totalorder %s15, 3
      %p168 = por %p166, %p167
      %p169 = scmp.ne.s32.totalorder %s161, %s164
      %p170 = scmp.eq.s32.totalorder %s15, 0
      %p171 = por %p169, %p170
      %p172 = scmp.ne.s32.totalorder %s161, %s164
      %p173 = scmp.eq.s32.totalorder %s20, 3
      %p174 = por %p172, %p173
      %p175 = scmp.ne.s32.totalorder %s164, %s165
      %p176 = scmp.eq.s32.totalorder %s20, 0
      %p177 = por %p175, %p176
      %p178 = scmp.ne.s32.totalorder %s164, %s165
      %p179 = scmp.eq.s32.totalorder %s21, 3
      %p180 = por %p178, %p179
      %p182 = scmp.ne.s32.totalorder %s165, %s181
      %p183 = scmp.eq.s32.totalorder %s21, 0
      %p184 = por %p182, %p183
      %p185 = scmp.le.s32.totalorder 1, %s15
      %p186 = scmp.lt.s32.totalorder %s15, 5
      %p187 = pnand %p185, %p186
      %p188 = pneg %p187
      // Predicated region
      $region9: #{inter_frame_attention.5} parent=5 // pred_check
        _
      $region10: #{inter_frame_attention.5} parent=5 // pred_check_branch
        %190 = sbr.rel (%p187) target = $region12
      $region11: #{inter_frame_attention.5} parent=5 // pred_region
        %s191 = ssub.s32 %s15, 1
        // Predicated region
        $region13: #{inter_frame_attention.5} parent=11 // pred_check
          %p192 = pneg %p88
        $region14: #{inter_frame_attention.5} parent=11 // pred_check_branch
          %194 = sbr.rel (%p192) target = $region16
        $region15: #{inter_frame_attention.5} parent=11 // pred_region
          _
        $region16: #{inter_frame_attention.5} parent=11 // pred_fallthru
          _
        // Predicated region
        $region17: #{inter_frame_attention.5} parent=11 // pred_check
          %p195 = pneg %p109
        $region18: #{inter_frame_attention.5} parent=11 // pred_check_branch
          %197 = sbr.rel (%p195) target = $region20
        $region19: #{inter_frame_attention.5} parent=11 // pred_region
          _
        $region20: #{inter_frame_attention.5} parent=11 // pred_fallthru
          _
        // Predicated region
        $region21: #{inter_frame_attention.5} parent=11 // pred_check
          %p198 = pneg %p130
        $region22: #{inter_frame_attention.5} parent=11 // pred_check_branch
          %200 = sbr.rel (%p198) target = $region24
        $region23: #{inter_frame_attention.5} parent=11 // pred_region
          _
        $region24: #{inter_frame_attention.5} parent=11 // pred_fallthru
          _
        // Predicated region
        $region25: #{inter_frame_attention.5} parent=11 // pred_check
          %p201 = pneg %p151
        $region26: #{inter_frame_attention.5} parent=11 // pred_check_branch
          %203 = sbr.rel (%p201) target = $region28
        $region27: #{inter_frame_attention.5} parent=11 // pred_region
          _
        $region28: #{inter_frame_attention.5} parent=11 // pred_fallthru
          _
      $region12: #{inter_frame_attention.5} parent=5 // pred_fallthru
        _
      %p204 = scmp.lt.s32.totalorder %s15, 4
      // Predicated region
      $region29: #{inter_frame_attention.5} parent=5 // pred_check
        %p205 = pneg %p204
      $region30: #{inter_frame_attention.5} parent=5 // pred_check_branch
        %207 = sbr.rel (%p205) target = $region32
      $region31: #{inter_frame_attention.5} parent=5 // pred_region
        // Predicated region
        $region33: #{inter_frame_attention.5} parent=31 // pred_check
          %p208 = pneg %p35
        $region34: #{inter_frame_attention.5} parent=31 // pred_check_branch
          %210 = sbr.rel (%p208) target = $region36
        $region35: #{inter_frame_attention.5} parent=31 // pred_region
          %p211 = scmp.lt.s32.totalorder %s15, 3
          %s212 = scalar_select %p211, %s15, 3
          %s213 = smul.addr %s212, 32
          %s214 = smul.addr %s213, 8
          %s215 = scalar_lea.vmem %s0, %s214
        $region36: #{inter_frame_attention.5} parent=31 // pred_fallthru
          _
        // Predicated region
        $region37: #{inter_frame_attention.5} parent=31 // pred_check
          %p216 = pneg %p61
        $region38: #{inter_frame_attention.5} parent=31 // pred_check_branch
          %218 = sbr.rel (%p216) target = $region40
        $region39: #{inter_frame_attention.5} parent=31 // pred_region
          %p219 = scmp.lt.s32.totalorder %s15, 3
          %s220 = scalar_select %p219, %s15, 3
          %s221 = smul.addr %s220, 8
          %s222 = smul.addr %s221, 8
          %s223 = scalar_lea.vmem %s1, %s222
        $region40: #{inter_frame_attention.5} parent=31 // pred_fallthru
          _
      $region32: #{inter_frame_attention.5} parent=5 // pred_fallthru
        _
      %p224 = scmp.le.s32.totalorder 1, %s15
      %p225 = scmp.lt.s32.totalorder %s15, 5
      %p226 = pnand %p224, %p225
      %p227 = pneg %p226
      // Predicated region
      $region41: #{inter_frame_attention.5} parent=5 // pred_check
        _
      $region42: #{inter_frame_attention.5} parent=5 // pred_check_branch
        %229 = sbr.rel (%p226) target = $region44
      $region43: #{inter_frame_attention.5} parent=5 // pred_region
        %s230 = ssub.s32 %s15, 1
        %p231 = scmp.lt.s32.totalorder %s20, 3
        %s232 = scalar_select %p231, %s20, 3
        %s233 = smul.addr %s232, 32
        %s234 = smul.addr %s233, 8
        %s235 = scalar_lea.vmem %s0, %s234
        %p236 = pneg %p41
        %p237 = pneg %p38
        %p238 = scmp.lt.s32.totalorder %s20, 3
        %s239 = scalar_select %p238, %s20, 3
        %s240 = smul.addr %s239, 8
        %s241 = smul.addr %s240, 8
        %s242 = scalar_lea.vmem %s1, %s241
        %p243 = pneg %p67
        %p244 = pneg %p64
        %p245 = pneg %p88
        %p246 = pneg %p85
        %p247 = pneg %p109
        %p248 = pneg %p106
        %p249 = pneg %p130
        %p250 = pneg %p127
        %p251 = pneg %p151
        %p252 = pneg %p148
        %p253 = pneg %p177
        %p254 = pneg %p174
        %s255 = sand.u32 %s164, 1
        %s256 = scalar_lea.sflag [#allocation3], %s255
        %s257 = sand.u32 %s164, 1
        %s258 = smul.addr %s257, 64
        %s259 = scalar_lea.vmem [#allocation2], %s258
        %p260 = scmp.lt.s32.totalorder %s20, 3
        %s261 = scalar_select %p260, %s20, 3
        %s262 = smul.addr %s261, 32
        %s263 = smul.addr %s262, 8
        %s264 = scalar_lea.vmem %s0, %s263
        %p265 = scmp.lt.s32.totalorder %s20, 3
        %s266 = scalar_select %p265, %s20, 3
        %s267 = smul.addr %s266, 8
        %s268 = smul.addr %s267, 8
        %s269 = scalar_lea.vmem %s1, %s268
        %v271 = vld [vmem:[%s264] sm:$0xff]
        %v272 = vld [vmem:[%s264 + $0x8] sm:$0xff]
        %v273 = vld [vmem:[%s264 + $0x10] sm:$0xff]
        %v274 = vld [vmem:[%s264 + $0x18] sm:$0xff]
        %v275 = vld [vmem:[%s264 + $0x20] sm:$0xff]
        %v276 = vld [vmem:[%s264 + $0x28] sm:$0xff]
        %v277 = vld [vmem:[%s264 + $0x30] sm:$0xff]
        %v278 = vld [vmem:[%s264 + $0x38] sm:$0xff]
        %v279 = vld [vmem:[%s264 + $0x40] sm:$0xff]
        %v280 = vld [vmem:[%s264 + $0x48] sm:$0xff]
        %v281 = vld [vmem:[%s264 + $0x50] sm:$0xff]
        %v282 = vld [vmem:[%s264 + $0x58] sm:$0xff]
        %v283 = vld [vmem:[%s264 + $0x60] sm:$0xff]
        %v284 = vld [vmem:[%s264 + $0x68] sm:$0xff]
        %v285 = vld [vmem:[%s264 + $0x70] sm:$0xff]
        %v286 = vld [vmem:[%s264 + $0x78] sm:$0xff]
        %v287 = vld [vmem:[%s264 + $0x80] sm:$0xff]
        %v288 = vld [vmem:[%s264 + $0x88] sm:$0xff]
        %v289 = vld [vmem:[%s264 + $0x90] sm:$0xff]
        %v290 = vld [vmem:[%s264 + $0x98] sm:$0xff]
        %v291 = vld [vmem:[%s264 + $0xa0] sm:$0xff]
        %v292 = vld [vmem:[%s264 + $0xa8] sm:$0xff]
        %v293 = vld [vmem:[%s264 + $0xb0] sm:$0xff]
        %v294 = vld [vmem:[%s264 + $0xb8] sm:$0xff]
        %v295 = vld [vmem:[%s264 + $0xc0] sm:$0xff]
        %v296 = vld [vmem:[%s264 + $0xc8] sm:$0xff]
        %v297 = vld [vmem:[%s264 + $0xd0] sm:$0xff]
        %v298 = vld [vmem:[%s264 + $0xd8] sm:$0xff]
        %v299 = vld [vmem:[%s264 + $0xe0] sm:$0xff]
        %v300 = vld [vmem:[%s264 + $0xe8] sm:$0xff]
        %v301 = vld [vmem:[%s264 + $0xf0] sm:$0xff]
        %v302 = vld [vmem:[%s264 + $0xf8] sm:$0xff]
        %v303 = vld [vmem:[%s2] sm:$0xff]
        %v304 = vld [vmem:[%s2 + $0x8] sm:$0xff]
        %v305 = vld [vmem:[%s2 + $0x10] sm:$0xff]
        %v306 = vld [vmem:[%s2 + $0x18] sm:$0xff]
        %v307 = vld [vmem:[%s2 + $0x20] sm:$0x1]
        %v308 = vld [vmem:[%s2 + $0x28] sm:$0x1]
        %v309 = vld [vmem:[%s2 + $0x30] sm:$0x1]
        %v310 = vld [vmem:[%s2 + $0x38] sm:$0x1]
        %v311 = vlaneseq
        %v312 = vshrl.u32 %v311, 7
        %v313 = vadd.s32 %v312, 8
        %v314 = vadd.s32 %v312, 16
        %v315 = vadd.s32 %v312, 24
        %v316 = vadd.s32 %v312, 32
        %v317 = vadd.s32 %v312, 40
        %v318 = vadd.s32 %v312, 48
        %v319 = vadd.s32 %v312, 56
        %vm320 = vcmp.lt.s32.totalorder %v312, 0
        %v321 = vsub.s32 0, %v312
        %v322 = vsel %vm320, %v321, %v312
        %v323 = vshrl.u32 %v322, 3
        %v324 = vand.u32 %v322, 7
        %v325 = vsub.s32 0, %v324
        %v326 = vsel %vm320, %v325, %v324
        %vm327 = vcmp.lt.s32.totalorder %v313, 0
        %v328 = vsub.s32 0, %v313
        %v329 = vsel %vm327, %v328, %v313
        %v330 = vshrl.u32 %v329, 3
        %v331 = vand.u32 %v329, 7
        %v332 = vsub.s32 0, %v331
        %v333 = vsel %vm327, %v332, %v331
        %vm334 = vcmp.lt.s32.totalorder %v314, 0
        %v335 = vsub.s32 0, %v314
        %v336 = vsel %vm334, %v335, %v314
        %v337 = vshrl.u32 %v336, 3
        %v338 = vand.u32 %v336, 7
        %v339 = vsub.s32 0, %v338
        %v340 = vsel %vm334, %v339, %v338
        %vm341 = vcmp.lt.s32.totalorder %v315, 0
        %v342 = vsub.s32 0, %v315
        %v343 = vsel %vm341, %v342, %v315
        %v344 = vshrl.u32 %v343, 3
        %v345 = vand.u32 %v343, 7
        %v346 = vsub.s32 0, %v345
        %v347 = vsel %vm341, %v346, %v345
        %vm348 = vcmp.lt.s32.totalorder %v316, 0
        %v349 = vsub.s32 0, %v316
        %v350 = vsel %vm348, %v349, %v316
        %v351 = vshrl.u32 %v350, 3
        %v352 = vand.u32 %v350, 7
        %v353 = vsub.s32 0, %v352
        %v354 = vsel %vm348, %v353, %v352
        %vm355 = vcmp.lt.s32.totalorder %v317, 0
        %v356 = vsub.s32 0, %v317
        %v357 = vsel %vm355, %v356, %v317
        %v358 = vshrl.u32 %v357, 3
        %v359 = vand.u32 %v357, 7
        %v360 = vsub.s32 0, %v359
        %v361 = vsel %vm355, %v360, %v359
        %vm362 = vcmp.lt.s32.totalorder %v318, 0
        %v363 = vsub.s32 0, %v318
        %v364 = vsel %vm362, %v363, %v318
        %v365 = vshrl.u32 %v364, 3
        %v366 = vand.u32 %v364, 7
        %v367 = vsub.s32 0, %v366
        %v368 = vsel %vm362, %v367, %v366
        %vm369 = vcmp.lt.s32.totalorder %v319, 0
        %v370 = vsub.s32 0, %v319
        %v371 = vsel %vm369, %v370, %v319
        %v372 = vshrl.u32 %v371, 3
        %v373 = vand.u32 %v371, 7
        %v374 = vsub.s32 0, %v373
        %v375 = vsel %vm369, %v374, %v373
        %vm376 = vcmp.ne.s32.totalorder %v326, 0
        %vm377 = vcmp.ne.s32.totalorder %v333, 0
        %vm378 = vcmp.ne.s32.totalorder %v340, 0
        %vm379 = vcmp.ne.s32.totalorder %v347, 0
        %vm380 = vcmp.ne.s32.totalorder %v354, 0
        %vm381 = vcmp.ne.s32.totalorder %v361, 0
        %vm382 = vcmp.ne.s32.totalorder %v368, 0
        %vm383 = vcmp.ne.s32.totalorder %v375, 0
        %vm384 = vcmp.lt.s32.totalorder %v326, 0
        %vm385 = vcmp.lt.s32.totalorder %v333, 0
        %vm386 = vcmp.lt.s32.totalorder %v340, 0
        %vm387 = vcmp.lt.s32.totalorder %v347, 0
        %vm388 = vcmp.lt.s32.totalorder %v354, 0
        %vm389 = vcmp.lt.s32.totalorder %v361, 0
        %vm390 = vcmp.lt.s32.totalorder %v368, 0
        %vm391 = vcmp.lt.s32.totalorder %v375, 0
        %vm392 = vmand %vm384, %vm376
        %vm393 = vmand %vm385, %vm377
        %vm394 = vmand %vm386, %vm378
        %vm395 = vmand %vm387, %vm379
        %vm396 = vmand %vm388, %vm380
        %vm397 = vmand %vm389, %vm381
        %vm398 = vmand %vm390, %vm382
        %vm399 = vmand %vm391, %vm383
        %v400 = vadd.s32 %v326, 8
        %v401 = vadd.s32 %v333, 8
        %v402 = vadd.s32 %v340, 8
        %v403 = vadd.s32 %v347, 8
        %v404 = vadd.s32 %v354, 8
        %v405 = vadd.s32 %v361, 8
        %v406 = vadd.s32 %v368, 8
        %v407 = vadd.s32 %v375, 8
        %v408 = vsel %vm392, %v400, %v326
        %v409 = vsel %vm393, %v401, %v333
        %v410 = vsel %vm394, %v402, %v340
        %v411 = vsel %vm395, %v403, %v347
        %v412 = vsel %vm396, %v404, %v354
        %v413 = vsel %vm397, %v405, %v361
        %v414 = vsel %vm398, %v406, %v368
        %v415 = vsel %vm399, %v407, %v375
        %vm444 = vcmask 1040384
        %v445 = vrot.slane %v271, 7
        %v446 = vrot.slane %v272, 7
        %v447 = vrot.slane %v273, 7
        %v448 = vrot.slane %v274, 7
        %v449 = vrot.slane %v275, 7
        %v450 = vsel %vm444, %v445, %v449
        %v451 = vrot.slane %v276, 7
        %v452 = vsel %vm444, %v446, %v451
        %v453 = vrot.slane %v277, 7
        %v454 = vsel %vm444, %v447, %v453
        %v455 = vrot.slane %v278, 7
        %v456 = vsel %vm444, %v448, %v455
        %v457 = vrot.slane %v279, 7
        %v458 = vsel %vm444, %v449, %v457
        %v459 = vrot.slane %v280, 7
        %v460 = vsel %vm444, %v451, %v459
        %v461 = vrot.slane %v281, 7
        %v462 = vsel %vm444, %v453, %v461
        %v463 = vrot.slane %v282, 7
        %v464 = vsel %vm444, %v455, %v463
        %v465 = vrot.slane %v283, 7
        %v466 = vsel %vm444, %v457, %v465
        %v467 = vrot.slane %v284, 7
        %v468 = vsel %vm444, %v459, %v467
        %v469 = vrot.slane %v285, 7
        %v470 = vsel %vm444, %v461, %v469
        %v471 = vrot.slane %v286, 7
        %v472 = vsel %vm444, %v463, %v471
        %v473 = vrot.slane %v287, 7
        %v474 = vsel %vm444, %v465, %v473
        %v475 = vrot.slane %v288, 7
        %v476 = vsel %vm444, %v467, %v475
        %v477 = vrot.slane %v289, 7
        %v478 = vsel %vm444, %v469, %v477
        %v479 = vrot.slane %v290, 7
        %v480 = vsel %vm444, %v471, %v479
        %v481 = vrot.slane %v291, 7
        %v482 = vsel %vm444, %v473, %v481
        %v483 = vrot.slane %v292, 7
        %v484 = vsel %vm444, %v475, %v483
        %v485 = vrot.slane %v293, 7
        %v486 = vsel %vm444, %v477, %v485
        %v487 = vrot.slane %v294, 7
        %v488 = vsel %vm444, %v479, %v487
        %v489 = vrot.slane %v295, 7
        %v490 = vsel %vm444, %v481, %v489
        %v491 = vrot.slane %v296, 7
        %v492 = vsel %vm444, %v483, %v491
        %v493 = vrot.slane %v297, 7
        %v494 = vsel %vm444, %v485, %v493
        %v495 = vrot.slane %v298, 7
        %v496 = vsel %vm444, %v487, %v495
        %v525 = vsel %vm444, 0.0, %v445
        %v526 = vsel %vm444, 0.0, %v446
        %v527 = vsel %vm444, 0.0, %v447
        %v528 = vsel %vm444, 0.0, %v448
        %vm529 = vcmp.eq.s32.totalorder %v408, 0
        %vm530 = vcmp.eq.s32.totalorder %v409, 0
        %vm531 = vcmp.eq.s32.totalorder %v410, 0
        %vm532 = vcmp.eq.s32.totalorder %v411, 0
        %vm533 = vcmp.eq.s32.totalorder %v412, 0
        %vm534 = vcmp.eq.s32.totalorder %v413, 0
        %vm535 = vcmp.eq.s32.totalorder %v414, 0
        %vm536 = vcmp.eq.s32.totalorder %v415, 0
        %v537 = vsel %vm529, 1, 0
        %v538 = vsel %vm530, 1, 0
        %v539 = vsel %vm531, 1, 0
        %v540 = vsel %vm532, 1, 0
        %v541 = vsel %vm533, 1, 0
        %v542 = vsel %vm534, 1, 0
        %v543 = vsel %vm535, 1, 0
        %v544 = vsel %vm536, 1, 0
        %vm545 = vcmp.eq.s32.totalorder %v537, 1
        %vm546 = vcmp.eq.s32.totalorder %v538, 1
        %vm547 = vcmp.eq.s32.totalorder %v539, 1
        %vm548 = vcmp.eq.s32.totalorder %v540, 1
        %vm549 = vcmp.eq.s32.totalorder %v541, 1
        %vm550 = vcmp.eq.s32.totalorder %v542, 1
        %vm551 = vcmp.eq.s32.totalorder %v543, 1
        %vm552 = vcmp.eq.s32.totalorder %v544, 1
        %v553 = vsel %vm546, 0.0, %v525
        %v554 = vsel %vm546, 0.0, %v526
        %v555 = vsel %vm546, 0.0, %v527
        %v556 = vsel %vm546, 0.0, %v528
        %v557 = vsel %vm547, 0.0, %v450
        %v558 = vsel %vm547, 0.0, %v452
        %v559 = vsel %vm547, 0.0, %v454
        %v560 = vsel %vm547, 0.0, %v456
        %v561 = vsel %vm548, 0.0, %v458
        %v562 = vsel %vm548, 0.0, %v460
        %v563 = vsel %vm548, 0.0, %v462
        %v564 = vsel %vm548, 0.0, %v464
        %v565 = vsel %vm549, 0.0, %v466
        %v566 = vsel %vm549, 0.0, %v468
        %v567 = vsel %vm549, 0.0, %v470
        %v568 = vsel %vm549, 0.0, %v472
        %v569 = vsel %vm550, 0.0, %v474
        %v570 = vsel %vm550, 0.0, %v476
        %v571 = vsel %vm550, 0.0, %v478
        %v572 = vsel %vm550, 0.0, %v480
        %v573 = vsel %vm551, 0.0, %v482
        %v574 = vsel %vm551, 0.0, %v484
        %v575 = vsel %vm551, 0.0, %v486
        %v576 = vsel %vm551, 0.0, %v488
        %v577 = vsel %vm552, 0.0, %v490
        %v578 = vsel %vm552, 0.0, %v492
        %v579 = vsel %vm552, 0.0, %v494
        %v580 = vsel %vm552, 0.0, %v496
        %v581 = vlaneseq
        %v582 = vshrl.u32 %v581, 7
        %v583 = vsub.s32 0, %v582
        %v584 = vrot.slane %v303, %v583
        %v585 = vlaneseq
        %v586 = vshrl.u32 %v585, 7
        %v587 = vsub.s32 0, %v586
        %v588 = vrot.slane %v304, %v587
        %v589 = vlaneseq
        %v590 = vshrl.u32 %v589, 7
        %v591 = vsub.s32 0, %v590
        %v592 = vrot.slane %v305, %v591
        %v593 = vlaneseq
        %v594 = vshrl.u32 %v593, 7
        %v595 = vsub.s32 0, %v594
        %v596 = vrot.slane %v306, %v595
        %v597 = vmul.f32 %v584, 0.0
        %v598 = vmul.f32 %v588, 0.0
        %v599 = vmul.f32 %v592, 0.0
        %v600 = vmul.f32 %v596, 0.0
        %v601 = vmul.f32 %v553, %v584
        %v602 = vmul.f32 %v554, %v588
        %v603 = vmul.f32 %v555, %v592
        %v604 = vmul.f32 %v556, %v596
        %v605 = vmul.f32 %v557, %v584
        %v606 = vmul.f32 %v558, %v588
        %v607 = vmul.f32 %v559, %v592
        %v608 = vmul.f32 %v560, %v596
        %v609 = vmul.f32 %v561, %v584
        %v610 = vmul.f32 %v562, %v588
        %v611 = vmul.f32 %v563, %v592
        %v612 = vmul.f32 %v564, %v596
        %v613 = vmul.f32 %v565, %v584
        %v614 = vmul.f32 %v566, %v588
        %v615 = vmul.f32 %v567, %v592
        %v616 = vmul.f32 %v568, %v596
        %v617 = vmul.f32 %v569, %v584
        %v618 = vmul.f32 %v570, %v588
        %v619 = vmul.f32 %v571, %v592
        %v620 = vmul.f32 %v572, %v596
        %v621 = vmul.f32 %v573, %v584
        %v622 = vmul.f32 %v574, %v588
        %v623 = vmul.f32 %v575, %v592
        %v624 = vmul.f32 %v576, %v596
        %v625 = vmul.f32 %v577, %v584
        %v626 = vmul.f32 %v578, %v588
        %v627 = vmul.f32 %v579, %v592
        %v628 = vmul.f32 %v580, %v596
        %v629 = vadd.f32 %v597, 0.0
        %v630 = vadd.f32 %v598, 0.0
        %v631 = vadd.f32 %v599, 0.0
        %v632 = vadd.f32 %v600, 0.0
        %v633 = vadd.f32 %v601, 0.0
        %v634 = vadd.f32 %v602, 0.0
        %v635 = vadd.f32 %v603, 0.0
        %v636 = vadd.f32 %v604, 0.0
        %v637 = vadd.f32 %v605, 0.0
        %v638 = vadd.f32 %v606, 0.0
        %v639 = vadd.f32 %v607, 0.0
        %v640 = vadd.f32 %v608, 0.0
        %v641 = vadd.f32 %v609, 0.0
        %v642 = vadd.f32 %v610, 0.0
        %v643 = vadd.f32 %v611, 0.0
        %v644 = vadd.f32 %v612, 0.0
        %v645 = vadd.f32 %v613, 0.0
        %v646 = vadd.f32 %v614, 0.0
        %v647 = vadd.f32 %v615, 0.0
        %v648 = vadd.f32 %v616, 0.0
        %v649 = vadd.f32 %v617, 0.0
        %v650 = vadd.f32 %v618, 0.0
        %v651 = vadd.f32 %v619, 0.0
        %v652 = vadd.f32 %v620, 0.0
        %v653 = vadd.f32 %v621, 0.0
        %v654 = vadd.f32 %v622, 0.0
        %v655 = vadd.f32 %v623, 0.0
        %v656 = vadd.f32 %v624, 0.0
        %v657 = vadd.f32 %v625, 0.0
        %v658 = vadd.f32 %v626, 0.0
        %v659 = vadd.f32 %v627, 0.0
        %v660 = vadd.f32 %v628, 0.0
        %v661 = vlaneseq
        %v662 = vshrl.u32 %v661, 7
        %v663 = vsub.s32 1, %v662
        %v664 = vrot.slane %v303, %v663
        %v665 = vlaneseq
        %v666 = vshrl.u32 %v665, 7
        %v667 = vsub.s32 1, %v666
        %v668 = vrot.slane %v304, %v667
        %v669 = vlaneseq
        %v670 = vshrl.u32 %v669, 7
        %v671 = vsub.s32 1, %v670
        %v672 = vrot.slane %v305, %v671
        %v673 = vlaneseq
        %v674 = vshrl.u32 %v673, 7
        %v675 = vsub.s32 1, %v674
        %v676 = vrot.slane %v306, %v675
        %v677 = vmul.f32 %v664, 0.0
        %v678 = vmul.f32 %v668, 0.0
        %v679 = vmul.f32 %v672, 0.0
        %v680 = vmul.f32 %v676, 0.0
        %v681 = vmul.f32 %v271, %v664
        %v682 = vmul.f32 %v272, %v668
        %v683 = vmul.f32 %v273, %v672
        %v684 = vmul.f32 %v274, %v676
        %v685 = vmul.f32 %v275, %v664
        %v686 = vmul.f32 %v276, %v668
        %v687 = vmul.f32 %v277, %v672
        %v688 = vmul.f32 %v278, %v676
        %v689 = vmul.f32 %v279, %v664
        %v690 = vmul.f32 %v280, %v668
        %v691 = vmul.f32 %v281, %v672
        %v692 = vmul.f32 %v282, %v676
        %v693 = vmul.f32 %v283, %v664
        %v694 = vmul.f32 %v284, %v668
        %v695 = vmul.f32 %v285, %v672
        %v696 = vmul.f32 %v286, %v676
        %v697 = vmul.f32 %v287, %v664
        %v698 = vmul.f32 %v288, %v668
        %v699 = vmul.f32 %v289, %v672
        %v700 = vmul.f32 %v290, %v676
        %v701 = vmul.f32 %v291, %v664
        %v702 = vmul.f32 %v292, %v668
        %v703 = vmul.f32 %v293, %v672
        %v704 = vmul.f32 %v294, %v676
        %v705 = vmul.f32 %v295, %v664
        %v706 = vmul.f32 %v296, %v668
        %v707 = vmul.f32 %v297, %v672
        %v708 = vmul.f32 %v298, %v676
        %v709 = vadd.f32 %v629, %v677
        %v710 = vadd.f32 %v630, %v678
        %v711 = vadd.f32 %v631, %v679
        %v712 = vadd.f32 %v632, %v680
        %v713 = vadd.f32 %v633, %v681
        %v714 = vadd.f32 %v634, %v682
        %v715 = vadd.f32 %v635, %v683
        %v716 = vadd.f32 %v636, %v684
        %v717 = vadd.f32 %v637, %v685
        %v718 = vadd.f32 %v638, %v686
        %v719 = vadd.f32 %v639, %v687
        %v720 = vadd.f32 %v640, %v688
        %v721 = vadd.f32 %v641, %v689
        %v722 = vadd.f32 %v642, %v690
        %v723 = vadd.f32 %v643, %v691
        %v724 = vadd.f32 %v644, %v692
        %v725 = vadd.f32 %v645, %v693
        %v726 = vadd.f32 %v646, %v694
        %v727 = vadd.f32 %v647, %v695
        %v728 = vadd.f32 %v648, %v696
        %v729 = vadd.f32 %v649, %v697
        %v730 = vadd.f32 %v650, %v698
        %v731 = vadd.f32 %v651, %v699
        %v732 = vadd.f32 %v652, %v700
        %v733 = vadd.f32 %v653, %v701
        %v734 = vadd.f32 %v654, %v702
        %v735 = vadd.f32 %v655, %v703
        %v736 = vadd.f32 %v656, %v704
        %v737 = vadd.f32 %v657, %v705
        %v738 = vadd.f32 %v658, %v706
        %v739 = vadd.f32 %v659, %v707
        %v740 = vadd.f32 %v660, %v708
        %vm745 = vcmask 1046528
        %v746 = vrot.slane %v271, 1
        %v747 = vrot.slane %v272, 1
        %v748 = vrot.slane %v273, 1
        %v749 = vrot.slane %v274, 1
        %v750 = vrot.slane %v275, 1
        %v751 = vsel %vm745, %v746, %v750
        %v752 = vrot.slane %v276, 1
        %v753 = vsel %vm745, %v747, %v752
        %v754 = vrot.slane %v277, 1
        %v755 = vsel %vm745, %v748, %v754
        %v756 = vrot.slane %v278, 1
        %v757 = vsel %vm745, %v749, %v756
        %v758 = vrot.slane %v279, 1
        %v759 = vsel %vm745, %v750, %v758
        %v760 = vrot.slane %v280, 1
        %v761 = vsel %vm745, %v752, %v760
        %v762 = vrot.slane %v281, 1
        %v763 = vsel %vm745, %v754, %v762
        %v764 = vrot.slane %v282, 1
        %v765 = vsel %vm745, %v756, %v764
        %v766 = vrot.slane %v283, 1
        %v767 = vsel %vm745, %v758, %v766
        %v768 = vrot.slane %v284, 1
        %v769 = vsel %vm745, %v760, %v768
        %v770 = vrot.slane %v285, 1
        %v771 = vsel %vm745, %v762, %v770
        %v772 = vrot.slane %v286, 1
        %v773 = vsel %vm745, %v764, %v772
        %v774 = vrot.slane %v287, 1
        %v775 = vsel %vm745, %v766, %v774
        %v776 = vrot.slane %v288, 1
        %v777 = vsel %vm745, %v768, %v776
        %v778 = vrot.slane %v289, 1
        %v779 = vsel %vm745, %v770, %v778
        %v780 = vrot.slane %v290, 1
        %v781 = vsel %vm745, %v772, %v780
        %v782 = vrot.slane %v291, 1
        %v783 = vsel %vm745, %v774, %v782
        %v784 = vrot.slane %v292, 1
        %v785 = vsel %vm745, %v776, %v784
        %v786 = vrot.slane %v293, 1
        %v787 = vsel %vm745, %v778, %v786
        %v788 = vrot.slane %v294, 1
        %v789 = vsel %vm745, %v780, %v788
        %v790 = vrot.slane %v295, 1
        %v791 = vsel %vm745, %v782, %v790
        %v792 = vrot.slane %v296, 1
        %v793 = vsel %vm745, %v784, %v792
        %v794 = vrot.slane %v297, 1
        %v795 = vsel %vm745, %v786, %v794
        %v796 = vrot.slane %v298, 1
        %v797 = vsel %vm745, %v788, %v796
        %v798 = vrot.slane %v299, 1
        %v799 = vsel %vm745, %v790, %v798
        %v800 = vrot.slane %v300, 1
        %v801 = vsel %vm745, %v792, %v800
        %v802 = vrot.slane %v301, 1
        %v803 = vsel %vm745, %v794, %v802
        %v804 = vrot.slane %v302, 1
        %v805 = vsel %vm745, %v796, %v804
        %v838 = vsel %vm745, 0.0, %v746
        %v839 = vsel %vm745, 0.0, %v747
        %v840 = vsel %vm745, 0.0, %v748
        %v841 = vsel %vm745, 0.0, %v749
        %vm842 = vcmp.eq.s32.totalorder %v408, 7
        %vm843 = vcmp.eq.s32.totalorder %v409, 7
        %vm844 = vcmp.eq.s32.totalorder %v410, 7
        %vm845 = vcmp.eq.s32.totalorder %v411, 7
        %vm846 = vcmp.eq.s32.totalorder %v412, 7
        %vm847 = vcmp.eq.s32.totalorder %v413, 7
        %vm848 = vcmp.eq.s32.totalorder %v414, 7
        %vm849 = vcmp.eq.s32.totalorder %v415, 7
        %v850 = vsel %vm842, 1, 0
        %v851 = vsel %vm843, 1, 0
        %v852 = vsel %vm844, 1, 0
        %v853 = vsel %vm845, 1, 0
        %v854 = vsel %vm846, 1, 0
        %v855 = vsel %vm847, 1, 0
        %v856 = vsel %vm848, 1, 0
        %v857 = vsel %vm849, 1, 0
        %vm858 = vcmp.eq.s32.totalorder %v850, 1
        %vm859 = vcmp.eq.s32.totalorder %v851, 1
        %vm860 = vcmp.eq.s32.totalorder %v852, 1
        %vm861 = vcmp.eq.s32.totalorder %v853, 1
        %vm862 = vcmp.eq.s32.totalorder %v854, 1
        %vm863 = vcmp.eq.s32.totalorder %v855, 1
        %vm864 = vcmp.eq.s32.totalorder %v856, 1
        %vm865 = vcmp.eq.s32.totalorder %v857, 1
        %v866 = vsel %vm858, 0.0, %v838
        %v867 = vsel %vm858, 0.0, %v839
        %v868 = vsel %vm858, 0.0, %v840
        %v869 = vsel %vm858, 0.0, %v841
        %v870 = vsel %vm859, 0.0, %v751
        %v871 = vsel %vm859, 0.0, %v753
        %v872 = vsel %vm859, 0.0, %v755
        %v873 = vsel %vm859, 0.0, %v757
        %v874 = vsel %vm860, 0.0, %v759
        %v875 = vsel %vm860, 0.0, %v761
        %v876 = vsel %vm860, 0.0, %v763
        %v877 = vsel %vm860, 0.0, %v765
        %v878 = vsel %vm861, 0.0, %v767
        %v879 = vsel %vm861, 0.0, %v769
        %v880 = vsel %vm861, 0.0, %v771
        %v881 = vsel %vm861, 0.0, %v773
        %v882 = vsel %vm862, 0.0, %v775
        %v883 = vsel %vm862, 0.0, %v777
        %v884 = vsel %vm862, 0.0, %v779
        %v885 = vsel %vm862, 0.0, %v781
        %v886 = vsel %vm863, 0.0, %v783
        %v887 = vsel %vm863, 0.0, %v785
        %v888 = vsel %vm863, 0.0, %v787
        %v889 = vsel %vm863, 0.0, %v789
        %v890 = vsel %vm864, 0.0, %v791
        %v891 = vsel %vm864, 0.0, %v793
        %v892 = vsel %vm864, 0.0, %v795
        %v893 = vsel %vm864, 0.0, %v797
        %v894 = vsel %vm865, 0.0, %v799
        %v895 = vsel %vm865, 0.0, %v801
        %v896 = vsel %vm865, 0.0, %v803
        %v897 = vsel %vm865, 0.0, %v805
        %v898 = vlaneseq
        %v899 = vshrl.u32 %v898, 7
        %v900 = vsub.s32 2, %v899
        %v901 = vrot.slane %v303, %v900
        %v902 = vlaneseq
        %v903 = vshrl.u32 %v902, 7
        %v904 = vsub.s32 2, %v903
        %v905 = vrot.slane %v304, %v904
        %v906 = vlaneseq
        %v907 = vshrl.u32 %v906, 7
        %v908 = vsub.s32 2, %v907
        %v909 = vrot.slane %v305, %v908
        %v910 = vlaneseq
        %v911 = vshrl.u32 %v910, 7
        %v912 = vsub.s32 2, %v911
        %v913 = vrot.slane %v306, %v912
        %v914 = vmul.f32 %v866, %v901
        %v915 = vmul.f32 %v867, %v905
        %v916 = vmul.f32 %v868, %v909
        %v917 = vmul.f32 %v869, %v913
        %v918 = vmul.f32 %v870, %v901
        %v919 = vmul.f32 %v871, %v905
        %v920 = vmul.f32 %v872, %v909
        %v921 = vmul.f32 %v873, %v913
        %v922 = vmul.f32 %v874, %v901
        %v923 = vmul.f32 %v875, %v905
        %v924 = vmul.f32 %v876, %v909
        %v925 = vmul.f32 %v877, %v913
        %v926 = vmul.f32 %v878, %v901
        %v927 = vmul.f32 %v879, %v905
        %v928 = vmul.f32 %v880, %v909
        %v929 = vmul.f32 %v881, %v913
        %v930 = vmul.f32 %v882, %v901
        %v931 = vmul.f32 %v883, %v905
        %v932 = vmul.f32 %v884, %v909
        %v933 = vmul.f32 %v885, %v913
        %v934 = vmul.f32 %v886, %v901
        %v935 = vmul.f32 %v887, %v905
        %v936 = vmul.f32 %v888, %v909
        %v937 = vmul.f32 %v889, %v913
        %v938 = vmul.f32 %v890, %v901
        %v939 = vmul.f32 %v891, %v905
        %v940 = vmul.f32 %v892, %v909
        %v941 = vmul.f32 %v893, %v913
        %v942 = vmul.f32 %v894, %v901
        %v943 = vmul.f32 %v895, %v905
        %v944 = vmul.f32 %v896, %v909
        %v945 = vmul.f32 %v897, %v913
        %v946 = vadd.f32 %v709, %v914
        %v947 = vadd.f32 %v710, %v915
        %v948 = vadd.f32 %v711, %v916
        %v949 = vadd.f32 %v712, %v917
        %v950 = vadd.f32 %v713, %v918
        %v951 = vadd.f32 %v714, %v919
        %v952 = vadd.f32 %v715, %v920
        %v953 = vadd.f32 %v716, %v921
        %v954 = vadd.f32 %v717, %v922
        %v955 = vadd.f32 %v718, %v923
        %v956 = vadd.f32 %v719, %v924
        %v957 = vadd.f32 %v720, %v925
        %v958 = vadd.f32 %v721, %v926
        %v959 = vadd.f32 %v722, %v927
        %v960 = vadd.f32 %v723, %v928
        %v961 = vadd.f32 %v724, %v929
        %v962 = vadd.f32 %v725, %v930
        %v963 = vadd.f32 %v726, %v931
        %v964 = vadd.f32 %v727, %v932
        %v965 = vadd.f32 %v728, %v933
        %v966 = vadd.f32 %v729, %v934
        %v967 = vadd.f32 %v730, %v935
        %v968 = vadd.f32 %v731, %v936
        %v969 = vadd.f32 %v732, %v937
        %v970 = vadd.f32 %v733, %v938
        %v971 = vadd.f32 %v734, %v939
        %v972 = vadd.f32 %v735, %v940
        %v973 = vadd.f32 %v736, %v941
        %v974 = vadd.f32 %v737, %v942
        %v975 = vadd.f32 %v738, %v943
        %v976 = vadd.f32 %v739, %v944
        %v977 = vadd.f32 %v740, %v945
        %v978 = vrot.slane %v299, 7
        %v979 = vsel %vm444, %v489, %v978
        %v980 = vrot.slane %v300, 7
        %v981 = vsel %vm444, %v491, %v980
        %v982 = vrot.slane %v301, 7
        %v983 = vsel %vm444, %v493, %v982
        %v984 = vrot.slane %v302, 7
        %v985 = vsel %vm444, %v495, %v984
        %v990 = vsel %vm545, 0.0, %v525
        %v991 = vsel %vm545, 0.0, %v526
        %v992 = vsel %vm545, 0.0, %v527
        %v993 = vsel %vm545, 0.0, %v528
        %v994 = vsel %vm546, 0.0, %v450
        %v995 = vsel %vm546, 0.0, %v452
        %v996 = vsel %vm546, 0.0, %v454
        %v997 = vsel %vm546, 0.0, %v456
        %v998 = vsel %vm547, 0.0, %v458
        %v999 = vsel %vm547, 0.0, %v460
        %v1000 = vsel %vm547, 0.0, %v462
        %v1001 = vsel %vm547, 0.0, %v464
        %v1002 = vsel %vm548, 0.0, %v466
        %v1003 = vsel %vm548, 0.0, %v468
        %v1004 = vsel %vm548, 0.0, %v470
        %v1005 = vsel %vm548, 0.0, %v472
        %v1006 = vsel %vm549, 0.0, %v474
        %v1007 = vsel %vm549, 0.0, %v476
        %v1008 = vsel %vm549, 0.0, %v478
        %v1009 = vsel %vm549, 0.0, %v480
        %v1010 = vsel %vm550, 0.0, %v482
        %v1011 = vsel %vm550, 0.0, %v484
        %v1012 = vsel %vm550, 0.0, %v486
        %v1013 = vsel %vm550, 0.0, %v488
        %v1014 = vsel %vm551, 0.0, %v490
        %v1015 = vsel %vm551, 0.0, %v492
        %v1016 = vsel %vm551, 0.0, %v494
        %v1017 = vsel %vm551, 0.0, %v496
        %v1018 = vsel %vm552, 0.0, %v979
        %v1019 = vsel %vm552, 0.0, %v981
        %v1020 = vsel %vm552, 0.0, %v983
        %v1021 = vsel %vm552, 0.0, %v985
        %v1022 = vlaneseq
        %v1023 = vshrl.u32 %v1022, 7
        %v1024 = vsub.s32 3, %v1023
        %v1025 = vrot.slane %v303, %v1024
        %v1026 = vlaneseq
        %v1027 = vshrl.u32 %v1026, 7
        %v1028 = vsub.s32 3, %v1027
        %v1029 = vrot.slane %v304, %v1028
        %v1030 = vlaneseq
        %v1031 = vshrl.u32 %v1030, 7
        %v1032 = vsub.s32 3, %v1031
        %v1033 = vrot.slane %v305, %v1032
        %v1034 = vlaneseq
        %v1035 = vshrl.u32 %v1034, 7
        %v1036 = vsub.s32 3, %v1035
        %v1037 = vrot.slane %v306, %v1036
        %v1038 = vmul.f32 %v990, %v1025
        %v1039 = vmul.f32 %v991, %v1029
        %v1040 = vmul.f32 %v992, %v1033
        %v1041 = vmul.f32 %v993, %v1037
        %v1042 = vmul.f32 %v994, %v1025
        %v1043 = vmul.f32 %v995, %v1029
        %v1044 = vmul.f32 %v996, %v1033
        %v1045 = vmul.f32 %v997, %v1037
        %v1046 = vmul.f32 %v998, %v1025
        %v1047 = vmul.f32 %v999, %v1029
        %v1048 = vmul.f32 %v1000, %v1033
        %v1049 = vmul.f32 %v1001, %v1037
        %v1050 = vmul.f32 %v1002, %v1025
        %v1051 = vmul.f32 %v1003, %v1029
        %v1052 = vmul.f32 %v1004, %v1033
        %v1053 = vmul.f32 %v1005, %v1037
        %v1054 = vmul.f32 %v1006, %v1025
        %v1055 = vmul.f32 %v1007, %v1029
        %v1056 = vmul.f32 %v1008, %v1033
        %v1057 = vmul.f32 %v1009, %v1037
        %v1058 = vmul.f32 %v1010, %v1025
        %v1059 = vmul.f32 %v1011, %v1029
        %v1060 = vmul.f32 %v1012, %v1033
        %v1061 = vmul.f32 %v1013, %v1037
        %v1062 = vmul.f32 %v1014, %v1025
        %v1063 = vmul.f32 %v1015, %v1029
        %v1064 = vmul.f32 %v1016, %v1033
        %v1065 = vmul.f32 %v1017, %v1037
        %v1066 = vmul.f32 %v1018, %v1025
        %v1067 = vmul.f32 %v1019, %v1029
        %v1068 = vmul.f32 %v1020, %v1033
        %v1069 = vmul.f32 %v1021, %v1037
        %v1070 = vadd.f32 %v946, %v1038
        %v1071 = vadd.f32 %v947, %v1039
        %v1072 = vadd.f32 %v948, %v1040
        %v1073 = vadd.f32 %v949, %v1041
        %v1074 = vadd.f32 %v950, %v1042
        %v1075 = vadd.f32 %v951, %v1043
        %v1076 = vadd.f32 %v952, %v1044
        %v1077 = vadd.f32 %v953, %v1045
        %v1078 = vadd.f32 %v954, %v1046
        %v1079 = vadd.f32 %v955, %v1047
        %v1080 = vadd.f32 %v956, %v1048
        %v1081 = vadd.f32 %v957, %v1049
        %v1082 = vadd.f32 %v958, %v1050
        %v1083 = vadd.f32 %v959, %v1051
        %v1084 = vadd.f32 %v960, %v1052
        %v1085 = vadd.f32 %v961, %v1053
        %v1086 = vadd.f32 %v962, %v1054
        %v1087 = vadd.f32 %v963, %v1055
        %v1088 = vadd.f32 %v964, %v1056
        %v1089 = vadd.f32 %v965, %v1057
        %v1090 = vadd.f32 %v966, %v1058
        %v1091 = vadd.f32 %v967, %v1059
        %v1092 = vadd.f32 %v968, %v1060
        %v1093 = vadd.f32 %v969, %v1061
        %v1094 = vadd.f32 %v970, %v1062
        %v1095 = vadd.f32 %v971, %v1063
        %v1096 = vadd.f32 %v972, %v1064
        %v1097 = vadd.f32 %v973, %v1065
        %v1098 = vadd.f32 %v974, %v1066
        %v1099 = vadd.f32 %v975, %v1067
        %v1100 = vadd.f32 %v976, %v1068
        %v1101 = vadd.f32 %v977, %v1069
        %v1102 = vlaneseq
        %v1103 = vshrl.u32 %v1102, 7
        %v1104 = vsub.s32 4, %v1103
        %v1105 = vrot.slane %v303, %v1104
        %v1106 = vlaneseq
        %v1107 = vshrl.u32 %v1106, 7
        %v1108 = vsub.s32 4, %v1107
        %v1109 = vrot.slane %v304, %v1108
        %v1110 = vlaneseq
        %v1111 = vshrl.u32 %v1110, 7
        %v1112 = vsub.s32 4, %v1111
        %v1113 = vrot.slane %v305, %v1112
        %v1114 = vlaneseq
        %v1115 = vshrl.u32 %v1114, 7
        %v1116 = vsub.s32 4, %v1115
        %v1117 = vrot.slane %v306, %v1116
        %v1118 = vmul.f32 %v271, %v1105
        %v1119 = vmul.f32 %v272, %v1109
        %v1120 = vmul.f32 %v273, %v1113
        %v1121 = vmul.f32 %v274, %v1117
        %v1122 = vmul.f32 %v275, %v1105
        %v1123 = vmul.f32 %v276, %v1109
        %v1124 = vmul.f32 %v277, %v1113
        %v1125 = vmul.f32 %v278, %v1117
        %v1126 = vmul.f32 %v279, %v1105
        %v1127 = vmul.f32 %v280, %v1109
        %v1128 = vmul.f32 %v281, %v1113
        %v1129 = vmul.f32 %v282, %v1117
        %v1130 = vmul.f32 %v283, %v1105
        %v1131 = vmul.f32 %v284, %v1109
        %v1132 = vmul.f32 %v285, %v1113
        %v1133 = vmul.f32 %v286, %v1117
        %v1134 = vmul.f32 %v287, %v1105
        %v1135 = vmul.f32 %v288, %v1109
        %v1136 = vmul.f32 %v289, %v1113
        %v1137 = vmul.f32 %v290, %v1117
        %v1138 = vmul.f32 %v291, %v1105
        %v1139 = vmul.f32 %v292, %v1109
        %v1140 = vmul.f32 %v293, %v1113
        %v1141 = vmul.f32 %v294, %v1117
        %v1142 = vmul.f32 %v295, %v1105
        %v1143 = vmul.f32 %v296, %v1109
        %v1144 = vmul.f32 %v297, %v1113
        %v1145 = vmul.f32 %v298, %v1117
        %v1146 = vmul.f32 %v299, %v1105
        %v1147 = vmul.f32 %v300, %v1109
        %v1148 = vmul.f32 %v301, %v1113
        %v1149 = vmul.f32 %v302, %v1117
        %v1150 = vadd.f32 %v1070, %v1118
        %v1151 = vadd.f32 %v1071, %v1119
        %v1152 = vadd.f32 %v1072, %v1120
        %v1153 = vadd.f32 %v1073, %v1121
        %v1154 = vadd.f32 %v1074, %v1122
        %v1155 = vadd.f32 %v1075, %v1123
        %v1156 = vadd.f32 %v1076, %v1124
        %v1157 = vadd.f32 %v1077, %v1125
        %v1158 = vadd.f32 %v1078, %v1126
        %v1159 = vadd.f32 %v1079, %v1127
        %v1160 = vadd.f32 %v1080, %v1128
        %v1161 = vadd.f32 %v1081, %v1129
        %v1162 = vadd.f32 %v1082, %v1130
        %v1163 = vadd.f32 %v1083, %v1131
        %v1164 = vadd.f32 %v1084, %v1132
        %v1165 = vadd.f32 %v1085, %v1133
        %v1166 = vadd.f32 %v1086, %v1134
        %v1167 = vadd.f32 %v1087, %v1135
        %v1168 = vadd.f32 %v1088, %v1136
        %v1169 = vadd.f32 %v1089, %v1137
        %v1170 = vadd.f32 %v1090, %v1138
        %v1171 = vadd.f32 %v1091, %v1139
        %v1172 = vadd.f32 %v1092, %v1140
        %v1173 = vadd.f32 %v1093, %v1141
        %v1174 = vadd.f32 %v1094, %v1142
        %v1175 = vadd.f32 %v1095, %v1143
        %v1176 = vadd.f32 %v1096, %v1144
        %v1177 = vadd.f32 %v1097, %v1145
        %v1178 = vadd.f32 %v1098, %v1146
        %v1179 = vadd.f32 %v1099, %v1147
        %v1180 = vadd.f32 %v1100, %v1148
        %v1181 = vadd.f32 %v1101, %v1149
        %v1186 = vsel %vm745, %v798, 0.0
        %v1187 = vsel %vm745, %v800, 0.0
        %v1188 = vsel %vm745, %v802, 0.0
        %v1189 = vsel %vm745, %v804, 0.0
        %v1190 = vsel %vm858, 0.0, %v751
        %v1191 = vsel %vm858, 0.0, %v753
        %v1192 = vsel %vm858, 0.0, %v755
        %v1193 = vsel %vm858, 0.0, %v757
        %v1194 = vsel %vm859, 0.0, %v759
        %v1195 = vsel %vm859, 0.0, %v761
        %v1196 = vsel %vm859, 0.0, %v763
        %v1197 = vsel %vm859, 0.0, %v765
        %v1198 = vsel %vm860, 0.0, %v767
        %v1199 = vsel %vm860, 0.0, %v769
        %v1200 = vsel %vm860, 0.0, %v771
        %v1201 = vsel %vm860, 0.0, %v773
        %v1202 = vsel %vm861, 0.0, %v775
        %v1203 = vsel %vm861, 0.0, %v777
        %v1204 = vsel %vm861, 0.0, %v779
        %v1205 = vsel %vm861, 0.0, %v781
        %v1206 = vsel %vm862, 0.0, %v783
        %v1207 = vsel %vm862, 0.0, %v785
        %v1208 = vsel %vm862, 0.0, %v787
        %v1209 = vsel %vm862, 0.0, %v789
        %v1210 = vsel %vm863, 0.0, %v791
        %v1211 = vsel %vm863, 0.0, %v793
        %v1212 = vsel %vm863, 0.0, %v795
        %v1213 = vsel %vm863, 0.0, %v797
        %v1214 = vsel %vm864, 0.0, %v799
        %v1215 = vsel %vm864, 0.0, %v801
        %v1216 = vsel %vm864, 0.0, %v803
        %v1217 = vsel %vm864, 0.0, %v805
        %v1218 = vsel %vm865, 0.0, %v1186
        %v1219 = vsel %vm865, 0.0, %v1187
        %v1220 = vsel %vm865, 0.0, %v1188
        %v1221 = vsel %vm865, 0.0, %v1189
        %v1222 = vlaneseq
        %v1223 = vshrl.u32 %v1222, 7
        %v1224 = vsub.s32 5, %v1223
        %v1225 = vrot.slane %v303, %v1224
        %v1226 = vlaneseq
        %v1227 = vshrl.u32 %v1226, 7
        %v1228 = vsub.s32 5, %v1227
        %v1229 = vrot.slane %v304, %v1228
        %v1230 = vlaneseq
        %v1231 = vshrl.u32 %v1230, 7
        %v1232 = vsub.s32 5, %v1231
        %v1233 = vrot.slane %v305, %v1232
        %v1234 = vlaneseq
        %v1235 = vshrl.u32 %v1234, 7
        %v1236 = vsub.s32 5, %v1235
        %v1237 = vrot.slane %v306, %v1236
        %v1238 = vmul.f32 %v1190, %v1225
        %v1239 = vmul.f32 %v1191, %v1229
        %v1240 = vmul.f32 %v1192, %v1233
        %v1241 = vmul.f32 %v1193, %v1237
        %v1242 = vmul.f32 %v1194, %v1225
        %v1243 = vmul.f32 %v1195, %v1229
        %v1244 = vmul.f32 %v1196, %v1233
        %v1245 = vmul.f32 %v1197, %v1237
        %v1246 = vmul.f32 %v1198, %v1225
        %v1247 = vmul.f32 %v1199, %v1229
        %v1248 = vmul.f32 %v1200, %v1233
        %v1249 = vmul.f32 %v1201, %v1237
        %v1250 = vmul.f32 %v1202, %v1225
        %v1251 = vmul.f32 %v1203, %v1229
        %v1252 = vmul.f32 %v1204, %v1233
        %v1253 = vmul.f32 %v1205, %v1237
        %v1254 = vmul.f32 %v1206, %v1225
        %v1255 = vmul.f32 %v1207, %v1229
        %v1256 = vmul.f32 %v1208, %v1233
        %v1257 = vmul.f32 %v1209, %v1237
        %v1258 = vmul.f32 %v1210, %v1225
        %v1259 = vmul.f32 %v1211, %v1229
        %v1260 = vmul.f32 %v1212, %v1233
        %v1261 = vmul.f32 %v1213, %v1237
        %v1262 = vmul.f32 %v1214, %v1225
        %v1263 = vmul.f32 %v1215, %v1229
        %v1264 = vmul.f32 %v1216, %v1233
        %v1265 = vmul.f32 %v1217, %v1237
        %v1266 = vmul.f32 %v1218, %v1225
        %v1267 = vmul.f32 %v1219, %v1229
        %v1268 = vmul.f32 %v1220, %v1233
        %v1269 = vmul.f32 %v1221, %v1237
        %v1270 = vadd.f32 %v1150, %v1238
        %v1271 = vadd.f32 %v1151, %v1239
        %v1272 = vadd.f32 %v1152, %v1240
        %v1273 = vadd.f32 %v1153, %v1241
        %v1274 = vadd.f32 %v1154, %v1242
        %v1275 = vadd.f32 %v1155, %v1243
        %v1276 = vadd.f32 %v1156, %v1244
        %v1277 = vadd.f32 %v1157, %v1245
        %v1278 = vadd.f32 %v1158, %v1246
        %v1279 = vadd.f32 %v1159, %v1247
        %v1280 = vadd.f32 %v1160, %v1248
        %v1281 = vadd.f32 %v1161, %v1249
        %v1282 = vadd.f32 %v1162, %v1250
        %v1283 = vadd.f32 %v1163, %v1251
        %v1284 = vadd.f32 %v1164, %v1252
        %v1285 = vadd.f32 %v1165, %v1253
        %v1286 = vadd.f32 %v1166, %v1254
        %v1287 = vadd.f32 %v1167, %v1255
        %v1288 = vadd.f32 %v1168, %v1256
        %v1289 = vadd.f32 %v1169, %v1257
        %v1290 = vadd.f32 %v1170, %v1258
        %v1291 = vadd.f32 %v1171, %v1259
        %v1292 = vadd.f32 %v1172, %v1260
        %v1293 = vadd.f32 %v1173, %v1261
        %v1294 = vadd.f32 %v1174, %v1262
        %v1295 = vadd.f32 %v1175, %v1263
        %v1296 = vadd.f32 %v1176, %v1264
        %v1297 = vadd.f32 %v1177, %v1265
        %v1298 = vadd.f32 %v1178, %v1266
        %v1299 = vadd.f32 %v1179, %v1267
        %v1300 = vadd.f32 %v1180, %v1268
        %v1301 = vadd.f32 %v1181, %v1269
        %v1306 = vsel %vm444, %v978, 0.0
        %v1307 = vsel %vm444, %v980, 0.0
        %v1308 = vsel %vm444, %v982, 0.0
        %v1309 = vsel %vm444, %v984, 0.0
        %v1310 = vsel %vm545, 0.0, %v450
        %v1311 = vsel %vm545, 0.0, %v452
        %v1312 = vsel %vm545, 0.0, %v454
        %v1313 = vsel %vm545, 0.0, %v456
        %v1314 = vsel %vm546, 0.0, %v458
        %v1315 = vsel %vm546, 0.0, %v460
        %v1316 = vsel %vm546, 0.0, %v462
        %v1317 = vsel %vm546, 0.0, %v464
        %v1318 = vsel %vm547, 0.0, %v466
        %v1319 = vsel %vm547, 0.0, %v468
        %v1320 = vsel %vm547, 0.0, %v470
        %v1321 = vsel %vm547, 0.0, %v472
        %v1322 = vsel %vm548, 0.0, %v474
        %v1323 = vsel %vm548, 0.0, %v476
        %v1324 = vsel %vm548, 0.0, %v478
        %v1325 = vsel %vm548, 0.0, %v480
        %v1326 = vsel %vm549, 0.0, %v482
        %v1327 = vsel %vm549, 0.0, %v484
        %v1328 = vsel %vm549, 0.0, %v486
        %v1329 = vsel %vm549, 0.0, %v488
        %v1330 = vsel %vm550, 0.0, %v490
        %v1331 = vsel %vm550, 0.0, %v492
        %v1332 = vsel %vm550, 0.0, %v494
        %v1333 = vsel %vm550, 0.0, %v496
        %v1334 = vsel %vm551, 0.0, %v979
        %v1335 = vsel %vm551, 0.0, %v981
        %v1336 = vsel %vm551, 0.0, %v983
        %v1337 = vsel %vm551, 0.0, %v985
        %v1338 = vsel %vm552, 0.0, %v1306
        %v1339 = vsel %vm552, 0.0, %v1307
        %v1340 = vsel %vm552, 0.0, %v1308
        %v1341 = vsel %vm552, 0.0, %v1309
        %v1342 = vlaneseq
        %v1343 = vshrl.u32 %v1342, 7
        %v1344 = vsub.s32 6, %v1343
        %v1345 = vrot.slane %v303, %v1344
        %v1346 = vlaneseq
        %v1347 = vshrl.u32 %v1346, 7
        %v1348 = vsub.s32 6, %v1347
        %v1349 = vrot.slane %v304, %v1348
        %v1350 = vlaneseq
        %v1351 = vshrl.u32 %v1350, 7
        %v1352 = vsub.s32 6, %v1351
        %v1353 = vrot.slane %v305, %v1352
        %v1354 = vlaneseq
        %v1355 = vshrl.u32 %v1354, 7
        %v1356 = vsub.s32 6, %v1355
        %v1357 = vrot.slane %v306, %v1356
        %v1358 = vmul.f32 %v1310, %v1345
        %v1359 = vmul.f32 %v1311, %v1349
        %v1360 = vmul.f32 %v1312, %v1353
        %v1361 = vmul.f32 %v1313, %v1357
        %v1362 = vmul.f32 %v1314, %v1345
        %v1363 = vmul.f32 %v1315, %v1349
        %v1364 = vmul.f32 %v1316, %v1353
        %v1365 = vmul.f32 %v1317, %v1357
        %v1366 = vmul.f32 %v1318, %v1345
        %v1367 = vmul.f32 %v1319, %v1349
        %v1368 = vmul.f32 %v1320, %v1353
        %v1369 = vmul.f32 %v1321, %v1357
        %v1370 = vmul.f32 %v1322, %v1345
        %v1371 = vmul.f32 %v1323, %v1349
        %v1372 = vmul.f32 %v1324, %v1353
        %v1373 = vmul.f32 %v1325, %v1357
        %v1374 = vmul.f32 %v1326, %v1345
        %v1375 = vmul.f32 %v1327, %v1349
        %v1376 = vmul.f32 %v1328, %v1353
        %v1377 = vmul.f32 %v1329, %v1357
        %v1378 = vmul.f32 %v1330, %v1345
        %v1379 = vmul.f32 %v1331, %v1349
        %v1380 = vmul.f32 %v1332, %v1353
        %v1381 = vmul.f32 %v1333, %v1357
        %v1382 = vmul.f32 %v1334, %v1345
        %v1383 = vmul.f32 %v1335, %v1349
        %v1384 = vmul.f32 %v1336, %v1353
        %v1385 = vmul.f32 %v1337, %v1357
        %v1386 = vmul.f32 %v1338, %v1345
        %v1387 = vmul.f32 %v1339, %v1349
        %v1388 = vmul.f32 %v1340, %v1353
        %v1389 = vmul.f32 %v1341, %v1357
        %v1390 = vadd.f32 %v1270, %v1358
        %v1391 = vadd.f32 %v1271, %v1359
        %v1392 = vadd.f32 %v1272, %v1360
        %v1393 = vadd.f32 %v1273, %v1361
        %v1394 = vadd.f32 %v1274, %v1362
        %v1395 = vadd.f32 %v1275, %v1363
        %v1396 = vadd.f32 %v1276, %v1364
        %v1397 = vadd.f32 %v1277, %v1365
        %v1398 = vadd.f32 %v1278, %v1366
        %v1399 = vadd.f32 %v1279, %v1367
        %v1400 = vadd.f32 %v1280, %v1368
        %v1401 = vadd.f32 %v1281, %v1369
        %v1402 = vadd.f32 %v1282, %v1370
        %v1403 = vadd.f32 %v1283, %v1371
        %v1404 = vadd.f32 %v1284, %v1372
        %v1405 = vadd.f32 %v1285, %v1373
        %v1406 = vadd.f32 %v1286, %v1374
        %v1407 = vadd.f32 %v1287, %v1375
        %v1408 = vadd.f32 %v1288, %v1376
        %v1409 = vadd.f32 %v1289, %v1377
        %v1410 = vadd.f32 %v1290, %v1378
        %v1411 = vadd.f32 %v1291, %v1379
        %v1412 = vadd.f32 %v1292, %v1380
        %v1413 = vadd.f32 %v1293, %v1381
        %v1414 = vadd.f32 %v1294, %v1382
        %v1415 = vadd.f32 %v1295, %v1383
        %v1416 = vadd.f32 %v1296, %v1384
        %v1417 = vadd.f32 %v1297, %v1385
        %v1418 = vadd.f32 %v1298, %v1386
        %v1419 = vadd.f32 %v1299, %v1387
        %v1420 = vadd.f32 %v1300, %v1388
        %v1421 = vadd.f32 %v1301, %v1389
        %v1422 = vlaneseq
        %v1423 = vshrl.u32 %v1422, 7
        %v1424 = vsub.s32 7, %v1423
        %v1425 = vrot.slane %v303, %v1424
        %v1426 = vlaneseq
        %v1427 = vshrl.u32 %v1426, 7
        %v1428 = vsub.s32 7, %v1427
        %v1429 = vrot.slane %v304, %v1428
        %v1430 = vlaneseq
        %v1431 = vshrl.u32 %v1430, 7
        %v1432 = vsub.s32 7, %v1431
        %v1433 = vrot.slane %v305, %v1432
        %v1434 = vlaneseq
        %v1435 = vshrl.u32 %v1434, 7
        %v1436 = vsub.s32 7, %v1435
        %v1437 = vrot.slane %v306, %v1436
        %v1438 = vmul.f32 %v275, %v1425
        %v1439 = vmul.f32 %v276, %v1429
        %v1440 = vmul.f32 %v277, %v1433
        %v1441 = vmul.f32 %v278, %v1437
        %v1442 = vmul.f32 %v279, %v1425
        %v1443 = vmul.f32 %v280, %v1429
        %v1444 = vmul.f32 %v281, %v1433
        %v1445 = vmul.f32 %v282, %v1437
        %v1446 = vmul.f32 %v283, %v1425
        %v1447 = vmul.f32 %v284, %v1429
        %v1448 = vmul.f32 %v285, %v1433
        %v1449 = vmul.f32 %v286, %v1437
        %v1450 = vmul.f32 %v287, %v1425
        %v1451 = vmul.f32 %v288, %v1429
        %v1452 = vmul.f32 %v289, %v1433
        %v1453 = vmul.f32 %v290, %v1437
        %v1454 = vmul.f32 %v291, %v1425
        %v1455 = vmul.f32 %v292, %v1429
        %v1456 = vmul.f32 %v293, %v1433
        %v1457 = vmul.f32 %v294, %v1437
        %v1458 = vmul.f32 %v295, %v1425
        %v1459 = vmul.f32 %v296, %v1429
        %v1460 = vmul.f32 %v297, %v1433
        %v1461 = vmul.f32 %v298, %v1437
        %v1462 = vmul.f32 %v299, %v1425
        %v1463 = vmul.f32 %v300, %v1429
        %v1464 = vmul.f32 %v301, %v1433
        %v1465 = vmul.f32 %v302, %v1437
        %v1466 = vmul.f32 %v1425, 0.0
        %v1467 = vmul.f32 %v1429, 0.0
        %v1468 = vmul.f32 %v1433, 0.0
        %v1469 = vmul.f32 %v1437, 0.0
        %v1470 = vadd.f32 %v1390, %v1438
        %v1471 = vadd.f32 %v1391, %v1439
        %v1472 = vadd.f32 %v1392, %v1440
        %v1473 = vadd.f32 %v1393, %v1441
        %v1474 = vadd.f32 %v1394, %v1442
        %v1475 = vadd.f32 %v1395, %v1443
        %v1476 = vadd.f32 %v1396, %v1444
        %v1477 = vadd.f32 %v1397, %v1445
        %v1478 = vadd.f32 %v1398, %v1446
        %v1479 = vadd.f32 %v1399, %v1447
        %v1480 = vadd.f32 %v1400, %v1448
        %v1481 = vadd.f32 %v1401, %v1449
        %v1482 = vadd.f32 %v1402, %v1450
        %v1483 = vadd.f32 %v1403, %v1451
        %v1484 = vadd.f32 %v1404, %v1452
        %v1485 = vadd.f32 %v1405, %v1453
        %v1486 = vadd.f32 %v1406, %v1454
        %v1487 = vadd.f32 %v1407, %v1455
        %v1488 = vadd.f32 %v1408, %v1456
        %v1489 = vadd.f32 %v1409, %v1457
        %v1490 = vadd.f32 %v1410, %v1458
        %v1491 = vadd.f32 %v1411, %v1459
        %v1492 = vadd.f32 %v1412, %v1460
        %v1493 = vadd.f32 %v1413, %v1461
        %v1494 = vadd.f32 %v1414, %v1462
        %v1495 = vadd.f32 %v1415, %v1463
        %v1496 = vadd.f32 %v1416, %v1464
        %v1497 = vadd.f32 %v1417, %v1465
        %v1498 = vadd.f32 %v1418, %v1466
        %v1499 = vadd.f32 %v1419, %v1467
        %v1500 = vadd.f32 %v1420, %v1468
        %v1501 = vadd.f32 %v1421, %v1469
        %v1502 = vsel %vm858, 0.0, %v759
        %v1503 = vsel %vm858, 0.0, %v761
        %v1504 = vsel %vm858, 0.0, %v763
        %v1505 = vsel %vm858, 0.0, %v765
        %v1506 = vsel %vm859, 0.0, %v767
        %v1507 = vsel %vm859, 0.0, %v769
        %v1508 = vsel %vm859, 0.0, %v771
        %v1509 = vsel %vm859, 0.0, %v773
        %v1510 = vsel %vm860, 0.0, %v775
        %v1511 = vsel %vm860, 0.0, %v777
        %v1512 = vsel %vm860, 0.0, %v779
        %v1513 = vsel %vm860, 0.0, %v781
        %v1514 = vsel %vm861, 0.0, %v783
        %v1515 = vsel %vm861, 0.0, %v785
        %v1516 = vsel %vm861, 0.0, %v787
        %v1517 = vsel %vm861, 0.0, %v789
        %v1518 = vsel %vm862, 0.0, %v791
        %v1519 = vsel %vm862, 0.0, %v793
        %v1520 = vsel %vm862, 0.0, %v795
        %v1521 = vsel %vm862, 0.0, %v797
        %v1522 = vsel %vm863, 0.0, %v799
        %v1523 = vsel %vm863, 0.0, %v801
        %v1524 = vsel %vm863, 0.0, %v803
        %v1525 = vsel %vm863, 0.0, %v805
        %v1526 = vsel %vm864, 0.0, %v1186
        %v1527 = vsel %vm864, 0.0, %v1187
        %v1528 = vsel %vm864, 0.0, %v1188
        %v1529 = vsel %vm864, 0.0, %v1189
        %v1530 = vlaneseq
        %v1531 = vshrl.u32 %v1530, 7
        %v1532 = vsub.s32 0, %v1531
        %v1533 = vrot.slane %v307, %v1532
        %v1534 = vlaneseq
        %v1535 = vshrl.u32 %v1534, 7
        %v1536 = vsub.s32 0, %v1535
        %v1537 = vrot.slane %v308, %v1536
        %v1538 = vlaneseq
        %v1539 = vshrl.u32 %v1538, 7
        %v1540 = vsub.s32 0, %v1539
        %v1541 = vrot.slane %v309, %v1540
        %v1542 = vlaneseq
        %v1543 = vshrl.u32 %v1542, 7
        %v1544 = vsub.s32 0, %v1543
        %v1545 = vrot.slane %v310, %v1544
        %v1546 = vmul.f32 %v1502, %v1533
        %v1547 = vmul.f32 %v1503, %v1537
        %v1548 = vmul.f32 %v1504, %v1541
        %v1549 = vmul.f32 %v1505, %v1545
        %v1550 = vmul.f32 %v1506, %v1533
        %v1551 = vmul.f32 %v1507, %v1537
        %v1552 = vmul.f32 %v1508, %v1541
        %v1553 = vmul.f32 %v1509, %v1545
        %v1554 = vmul.f32 %v1510, %v1533
        %v1555 = vmul.f32 %v1511, %v1537
        %v1556 = vmul.f32 %v1512, %v1541
        %v1557 = vmul.f32 %v1513, %v1545
        %v1558 = vmul.f32 %v1514, %v1533
        %v1559 = vmul.f32 %v1515, %v1537
        %v1560 = vmul.f32 %v1516, %v1541
        %v1561 = vmul.f32 %v1517, %v1545
        %v1562 = vmul.f32 %v1518, %v1533
        %v1563 = vmul.f32 %v1519, %v1537
        %v1564 = vmul.f32 %v1520, %v1541
        %v1565 = vmul.f32 %v1521, %v1545
        %v1566 = vmul.f32 %v1522, %v1533
        %v1567 = vmul.f32 %v1523, %v1537
        %v1568 = vmul.f32 %v1524, %v1541
        %v1569 = vmul.f32 %v1525, %v1545
        %v1570 = vmul.f32 %v1526, %v1533
        %v1571 = vmul.f32 %v1527, %v1537
        %v1572 = vmul.f32 %v1528, %v1541
        %v1573 = vmul.f32 %v1529, %v1545
        %v1574 = vmul.f32 %v1533, 0.0
        %v1575 = vmul.f32 %v1537, 0.0
        %v1576 = vmul.f32 %v1541, 0.0
        %v1577 = vmul.f32 %v1545, 0.0
        %v1578 = vadd.f32 %v1470, %v1546
        %v1579 = vadd.f32 %v1471, %v1547
        %v1580 = vadd.f32 %v1472, %v1548
        %v1581 = vadd.f32 %v1473, %v1549
        %v1582 = vadd.f32 %v1474, %v1550
        %v1583 = vadd.f32 %v1475, %v1551
        %v1584 = vadd.f32 %v1476, %v1552
        %v1585 = vadd.f32 %v1477, %v1553
        %v1586 = vadd.f32 %v1478, %v1554
        %v1587 = vadd.f32 %v1479, %v1555
        %v1588 = vadd.f32 %v1480, %v1556
        %v1589 = vadd.f32 %v1481, %v1557
        %v1590 = vadd.f32 %v1482, %v1558
        %v1591 = vadd.f32 %v1483, %v1559
        %v1592 = vadd.f32 %v1484, %v1560
        %v1593 = vadd.f32 %v1485, %v1561
        %v1594 = vadd.f32 %v1486, %v1562
        %v1595 = vadd.f32 %v1487, %v1563
        %v1596 = vadd.f32 %v1488, %v1564
        %v1597 = vadd.f32 %v1489, %v1565
        %v1598 = vadd.f32 %v1490, %v1566
        %v1599 = vadd.f32 %v1491, %v1567
        %v1600 = vadd.f32 %v1492, %v1568
        %v1601 = vadd.f32 %v1493, %v1569
        %v1602 = vadd.f32 %v1494, %v1570
        %v1603 = vadd.f32 %v1495, %v1571
        %v1604 = vadd.f32 %v1496, %v1572
        %v1605 = vadd.f32 %v1497, %v1573
        %v1606 = vadd.f32 %v1498, %v1574
        %v1607 = vadd.f32 %v1499, %v1575
        %v1608 = vadd.f32 %v1500, %v1576
        %v1609 = vadd.f32 %v1501, %v1577
        %v1610 = vld [vmem:[%s3] sm:$0xf]
        %v1612 = vlaneseq
        %v1613 = vshrl.u32 %v1612, 7
        %v1614 = vsub.s32 0, %v1613
        %v1615 = vrot.slane %v1610, %v1614
        %v1616 = vlaneseq
        %v1617 = vshrl.u32 %v1616, 7
        %v1618 = vsub.s32 1, %v1617
        %v1619 = vrot.slane %v1610, %v1618
        %v1620 = vlaneseq
        %v1621 = vshrl.u32 %v1620, 7
        %v1622 = vsub.s32 2, %v1621
        %v1623 = vrot.slane %v1610, %v1622
        %v1624 = vlaneseq
        %v1625 = vshrl.u32 %v1624, 7
        %v1626 = vsub.s32 3, %v1625
        %v1627 = vrot.slane %v1610, %v1626
        %v1632 = vadd.f32 %v1578, %v1615
        %v1633 = vadd.f32 %v1579, %v1619
        %v1634 = vadd.f32 %v1580, %v1623
        %v1635 = vadd.f32 %v1581, %v1627
        %v1636 = vadd.f32 %v1582, %v1615
        %v1637 = vadd.f32 %v1583, %v1619
        %v1638 = vadd.f32 %v1584, %v1623
        %v1639 = vadd.f32 %v1585, %v1627
        %v1640 = vadd.f32 %v1586, %v1615
        %v1641 = vadd.f32 %v1587, %v1619
        %v1642 = vadd.f32 %v1588, %v1623
        %v1643 = vadd.f32 %v1589, %v1627
        %v1644 = vadd.f32 %v1590, %v1615
        %v1645 = vadd.f32 %v1591, %v1619
        %v1646 = vadd.f32 %v1592, %v1623
        %v1647 = vadd.f32 %v1593, %v1627
        %v1648 = vadd.f32 %v1594, %v1615
        %v1649 = vadd.f32 %v1595, %v1619
        %v1650 = vadd.f32 %v1596, %v1623
        %v1651 = vadd.f32 %v1597, %v1627
        %v1652 = vadd.f32 %v1598, %v1615
        %v1653 = vadd.f32 %v1599, %v1619
        %v1654 = vadd.f32 %v1600, %v1623
        %v1655 = vadd.f32 %v1601, %v1627
        %v1656 = vadd.f32 %v1602, %v1615
        %v1657 = vadd.f32 %v1603, %v1619
        %v1658 = vadd.f32 %v1604, %v1623
        %v1659 = vadd.f32 %v1605, %v1627
        %v1660 = vadd.f32 %v1606, %v1615
        %v1661 = vadd.f32 %v1607, %v1619
        %v1662 = vadd.f32 %v1608, %v1623
        %v1663 = vadd.f32 %v1609, %v1627
        %v1664 = vmul.f32 %v1632, 0.5
        %v1665 = vmul.f32 %v1633, 0.5
        %v1666 = vmul.f32 %v1634, 0.5
        %v1667 = vmul.f32 %v1635, 0.5
        %v1668 = vmul.f32 %v1636, 0.5
        %v1669 = vmul.f32 %v1637, 0.5
        %v1670 = vmul.f32 %v1638, 0.5
        %v1671 = vmul.f32 %v1639, 0.5
        %v1672 = vmul.f32 %v1640, 0.5
        %v1673 = vmul.f32 %v1641, 0.5
        %v1674 = vmul.f32 %v1642, 0.5
        %v1675 = vmul.f32 %v1643, 0.5
        %v1676 = vmul.f32 %v1644, 0.5
        %v1677 = vmul.f32 %v1645, 0.5
        %v1678 = vmul.f32 %v1646, 0.5
        %v1679 = vmul.f32 %v1647, 0.5
        %v1680 = vmul.f32 %v1648, 0.5
        %v1681 = vmul.f32 %v1649, 0.5
        %v1682 = vmul.f32 %v1650, 0.5
        %v1683 = vmul.f32 %v1651, 0.5
        %v1684 = vmul.f32 %v1652, 0.5
        %v1685 = vmul.f32 %v1653, 0.5
        %v1686 = vmul.f32 %v1654, 0.5
        %v1687 = vmul.f32 %v1655, 0.5
        %v1688 = vmul.f32 %v1656, 0.5
        %v1689 = vmul.f32 %v1657, 0.5
        %v1690 = vmul.f32 %v1658, 0.5
        %v1691 = vmul.f32 %v1659, 0.5
        %v1692 = vmul.f32 %v1660, 0.5
        %v1693 = vmul.f32 %v1661, 0.5
        %v1694 = vmul.f32 %v1662, 0.5
        %v1695 = vmul.f32 %v1663, 0.5
        %v1696 = vmul.f32 %v1632, 0.70710677
        %v1697 = vmul.f32 %v1633, 0.70710677
        %v1698 = vmul.f32 %v1634, 0.70710677
        %v1699 = vmul.f32 %v1635, 0.70710677
        %v1700 = vmul.f32 %v1636, 0.70710677
        %v1701 = vmul.f32 %v1637, 0.70710677
        %v1702 = vmul.f32 %v1638, 0.70710677
        %v1703 = vmul.f32 %v1639, 0.70710677
        %v1704 = vmul.f32 %v1640, 0.70710677
        %v1705 = vmul.f32 %v1641, 0.70710677
        %v1706 = vmul.f32 %v1642, 0.70710677
        %v1707 = vmul.f32 %v1643, 0.70710677
        %v1708 = vmul.f32 %v1644, 0.70710677
        %v1709 = vmul.f32 %v1645, 0.70710677
        %v1710 = vmul.f32 %v1646, 0.70710677
        %v1711 = vmul.f32 %v1647, 0.70710677
        %v1712 = vmul.f32 %v1648, 0.70710677
        %v1713 = vmul.f32 %v1649, 0.70710677
        %v1714 = vmul.f32 %v1650, 0.70710677
        %v1715 = vmul.f32 %v1651, 0.70710677
        %v1716 = vmul.f32 %v1652, 0.70710677
        %v1717 = vmul.f32 %v1653, 0.70710677
        %v1718 = vmul.f32 %v1654, 0.70710677
        %v1719 = vmul.f32 %v1655, 0.70710677
        %v1720 = vmul.f32 %v1656, 0.70710677
        %v1721 = vmul.f32 %v1657, 0.70710677
        %v1722 = vmul.f32 %v1658, 0.70710677
        %v1723 = vmul.f32 %v1659, 0.70710677
        %v1724 = vmul.f32 %v1660, 0.70710677
        %v1725 = vmul.f32 %v1661, 0.70710677
        %v1726 = vmul.f32 %v1662, 0.70710677
        %v1727 = vmul.f32 %v1663, 0.70710677
        %v1728 = verf.f32.pop %v1696
        %v1729 = verf.f32.pop %v1697
        %v1730 = verf.f32.pop %v1698
        %v1731 = verf.f32.pop %v1699
        %v1732 = verf.f32.pop %v1700
        %v1733 = verf.f32.pop %v1701
        %v1734 = verf.f32.pop %v1702
        %v1735 = verf.f32.pop %v1703
        %v1736 = verf.f32.pop %v1704
        %v1737 = verf.f32.pop %v1705
        %v1738 = verf.f32.pop %v1706
        %v1739 = verf.f32.pop %v1707
        %v1740 = verf.f32.pop %v1708
        %v1741 = verf.f32.pop %v1709
        %v1742 = verf.f32.pop %v1710
        %v1743 = verf.f32.pop %v1711
        %v1744 = verf.f32.pop %v1712
        %v1745 = verf.f32.pop %v1713
        %v1746 = verf.f32.pop %v1714
        %v1747 = verf.f32.pop %v1715
        %v1748 = verf.f32.pop %v1716
        %v1749 = verf.f32.pop %v1717
        %v1750 = verf.f32.pop %v1718
        %v1751 = verf.f32.pop %v1719
        %v1752 = verf.f32.pop %v1720
        %v1753 = verf.f32.pop %v1721
        %v1754 = verf.f32.pop %v1722
        %v1755 = verf.f32.pop %v1723
        %v1756 = verf.f32.pop %v1724
        %v1757 = verf.f32.pop %v1725
        %v1758 = verf.f32.pop %v1726
        %v1759 = verf.f32.pop %v1727
        %v1760 = vadd.f32 %v1728, 1.0
        %v1761 = vadd.f32 %v1729, 1.0
        %v1762 = vadd.f32 %v1730, 1.0
        %v1763 = vadd.f32 %v1731, 1.0
        %v1764 = vadd.f32 %v1732, 1.0
        %v1765 = vadd.f32 %v1733, 1.0
        %v1766 = vadd.f32 %v1734, 1.0
        %v1767 = vadd.f32 %v1735, 1.0
        %v1768 = vadd.f32 %v1736, 1.0
        %v1769 = vadd.f32 %v1737, 1.0
        %v1770 = vadd.f32 %v1738, 1.0
        %v1771 = vadd.f32 %v1739, 1.0
        %v1772 = vadd.f32 %v1740, 1.0
        %v1773 = vadd.f32 %v1741, 1.0
        %v1774 = vadd.f32 %v1742, 1.0
        %v1775 = vadd.f32 %v1743, 1.0
        %v1776 = vadd.f32 %v1744, 1.0
        %v1777 = vadd.f32 %v1745, 1.0
        %v1778 = vadd.f32 %v1746, 1.0
        %v1779 = vadd.f32 %v1747, 1.0
        %v1780 = vadd.f32 %v1748, 1.0
        %v1781 = vadd.f32 %v1749, 1.0
        %v1782 = vadd.f32 %v1750, 1.0
        %v1783 = vadd.f32 %v1751, 1.0
        %v1784 = vadd.f32 %v1752, 1.0
        %v1785 = vadd.f32 %v1753, 1.0
        %v1786 = vadd.f32 %v1754, 1.0
        %v1787 = vadd.f32 %v1755, 1.0
        %v1788 = vadd.f32 %v1756, 1.0
        %v1789 = vadd.f32 %v1757, 1.0
        %v1790 = vadd.f32 %v1758, 1.0
        %v1791 = vadd.f32 %v1759, 1.0
        %v1792 = vmul.f32 %v1664, %v1760
        %v1793 = vmul.f32 %v1665, %v1761
        %v1794 = vmul.f32 %v1666, %v1762
        %v1795 = vmul.f32 %v1667, %v1763
        %v1796 = vmul.f32 %v1668, %v1764
        %v1797 = vmul.f32 %v1669, %v1765
        %v1798 = vmul.f32 %v1670, %v1766
        %v1799 = vmul.f32 %v1671, %v1767
        %v1800 = vmul.f32 %v1672, %v1768
        %v1801 = vmul.f32 %v1673, %v1769
        %v1802 = vmul.f32 %v1674, %v1770
        %v1803 = vmul.f32 %v1675, %v1771
        %v1804 = vmul.f32 %v1676, %v1772
        %v1805 = vmul.f32 %v1677, %v1773
        %v1806 = vmul.f32 %v1678, %v1774
        %v1807 = vmul.f32 %v1679, %v1775
        %v1808 = vmul.f32 %v1680, %v1776
        %v1809 = vmul.f32 %v1681, %v1777
        %v1810 = vmul.f32 %v1682, %v1778
        %v1811 = vmul.f32 %v1683, %v1779
        %v1812 = vmul.f32 %v1684, %v1780
        %v1813 = vmul.f32 %v1685, %v1781
        %v1814 = vmul.f32 %v1686, %v1782
        %v1815 = vmul.f32 %v1687, %v1783
        %v1816 = vmul.f32 %v1688, %v1784
        %v1817 = vmul.f32 %v1689, %v1785
        %v1818 = vmul.f32 %v1690, %v1786
        %v1819 = vmul.f32 %v1691, %v1787
        %v1820 = vmul.f32 %v1692, %v1788
        %v1821 = vmul.f32 %v1693, %v1789
        %v1822 = vmul.f32 %v1694, %v1790
        %v1823 = vmul.f32 %v1695, %v1791
        %v1824 = vpack.c.bf16 %v1796, %v1792
        %v1825 = vpack.c.bf16 %v1797, %v1793
        %v1826 = vpack.c.bf16 %v1798, %v1794
        %v1827 = vpack.c.bf16 %v1799, %v1795
        %v1828 = vpack.c.bf16 %v1804, %v1800
        %v1829 = vpack.c.bf16 %v1805, %v1801
        %v1830 = vpack.c.bf16 %v1806, %v1802
        %v1831 = vpack.c.bf16 %v1807, %v1803
        %v1832 = vpack.c.bf16 %v1812, %v1808
        %v1833 = vpack.c.bf16 %v1813, %v1809
        %v1834 = vpack.c.bf16 %v1814, %v1810
        %v1835 = vpack.c.bf16 %v1815, %v1811
        %v1836 = vpack.c.bf16 %v1820, %v1816
        %v1837 = vpack.c.bf16 %v1821, %v1817
        %v1838 = vpack.c.bf16 %v1822, %v1818
        %v1839 = vpack.c.bf16 %v1823, %v1819
        %v1840 = vld [vmem:[%s4] sm:$0xf]
        %v1841 = vld [vmem:[%s4 + $0x4] sm:$0xf]
        %v1842 = vld [vmem:[%s4 + $0x8] sm:$0xf]
        %v1843 = vld [vmem:[%s4 + $0xc] sm:$0xf]
        %v1844 = vld [vmem:[%s4 + $0x10] sm:$0xf]
        %v1845 = vld [vmem:[%s4 + $0x14] sm:$0xf]
        %v1846 = vld [vmem:[%s4 + $0x18] sm:$0xf]
        %v1847 = vld [vmem:[%s4 + $0x1c] sm:$0xf]
        %v1848 = vld [vmem:[%s4 + $0x20] sm:$0xf]
        %v1849 = vld [vmem:[%s4 + $0x24] sm:$0xf]
        %v1850 = vld [vmem:[%s4 + $0x28] sm:$0xf]
        %v1851 = vld [vmem:[%s4 + $0x2c] sm:$0xf]
        %v1852 = vld [vmem:[%s4 + $0x30] sm:$0xf]
        %v1853 = vld [vmem:[%s4 + $0x34] sm:$0xf]
        %v1854 = vld [vmem:[%s4 + $0x38] sm:$0xf]
        %v1855 = vld [vmem:[%s4 + $0x3c] sm:$0xf]
        %v1856 = vld [vmem:[%s4 + $0x40] sm:$0xf]
        %v1857 = vld [vmem:[%s4 + $0x44] sm:$0xf]
        %v1858 = vld [vmem:[%s4 + $0x48] sm:$0xf]
        %v1859 = vld [vmem:[%s4 + $0x4c] sm:$0xf]
        %v1860 = vld [vmem:[%s4 + $0x50] sm:$0xf]
        %v1861 = vld [vmem:[%s4 + $0x54] sm:$0xf]
        %v1862 = vld [vmem:[%s4 + $0x58] sm:$0xf]
        %v1863 = vld [vmem:[%s4 + $0x5c] sm:$0xf]
        %v1864 = vld [vmem:[%s4 + $0x60] sm:$0xf]
        %v1865 = vld [vmem:[%s4 + $0x64] sm:$0xf]
        %v1866 = vld [vmem:[%s4 + $0x68] sm:$0xf]
        %v1867 = vld [vmem:[%s4 + $0x6c] sm:$0xf]
        %v1868 = vld [vmem:[%s4 + $0x70] sm:$0xf]
        %v1869 = vld [vmem:[%s4 + $0x74] sm:$0xf]
        %v1870 = vld [vmem:[%s4 + $0x78] sm:$0xf]
        %v1871 = vld [vmem:[%s4 + $0x7c] sm:$0xf]
        %v1872 = vld [vmem:[%s4 + $0x80] sm:$0xf]
        %v1873 = vld [vmem:[%s4 + $0x84] sm:$0xf]
        %v1874 = vld [vmem:[%s4 + $0x88] sm:$0xf]
        %v1875 = vld [vmem:[%s4 + $0x8c] sm:$0xf]
        %v1876 = vld [vmem:[%s4 + $0x90] sm:$0xf]
        %v1877 = vld [vmem:[%s4 + $0x94] sm:$0xf]
        %v1878 = vld [vmem:[%s4 + $0x98] sm:$0xf]
        %v1879 = vld [vmem:[%s4 + $0x9c] sm:$0xf]
        %v1880 = vld [vmem:[%s4 + $0xa0] sm:$0xf]
        %v1881 = vld [vmem:[%s4 + $0xa4] sm:$0xf]
        %v1882 = vld [vmem:[%s4 + $0xa8] sm:$0xf]
        %v1883 = vld [vmem:[%s4 + $0xac] sm:$0xf]
        %v1884 = vld [vmem:[%s4 + $0xb0] sm:$0xf]
        %v1885 = vld [vmem:[%s4 + $0xb4] sm:$0xf]
        %v1886 = vld [vmem:[%s4 + $0xb8] sm:$0xf]
        %v1887 = vld [vmem:[%s4 + $0xbc] sm:$0xf]
        %v1888 = vld [vmem:[%s4 + $0xc0] sm:$0xf]
        %v1889 = vld [vmem:[%s4 + $0xc4] sm:$0xf]
        %v1890 = vld [vmem:[%s4 + $0xc8] sm:$0xf]
        %v1891 = vld [vmem:[%s4 + $0xcc] sm:$0xf]
        %v1892 = vld [vmem:[%s4 + $0xd0] sm:$0xf]
        %v1893 = vld [vmem:[%s4 + $0xd4] sm:$0xf]
        %v1894 = vld [vmem:[%s4 + $0xd8] sm:$0xf]
        %v1895 = vld [vmem:[%s4 + $0xdc] sm:$0xf]
        %v1896 = vld [vmem:[%s4 + $0xe0] sm:$0xf]
        %v1897 = vld [vmem:[%s4 + $0xe4] sm:$0xf]
        %v1898 = vld [vmem:[%s4 + $0xe8] sm:$0xf]
        %v1899 = vld [vmem:[%s4 + $0xec] sm:$0xf]
        %v1900 = vld [vmem:[%s4 + $0xf0] sm:$0xf]
        %v1901 = vld [vmem:[%s4 + $0xf4] sm:$0xf]
        %v1902 = vld [vmem:[%s4 + $0xf8] sm:$0xf]
        %v1903 = vld [vmem:[%s4 + $0xfc] sm:$0xf]
        %v1904 = vld [vmem:[%s5] sm:$0x1]
        %v1906 = vlaneseq
        %v1907 = vshrl.u32 %v1906, 7
        %v1908 = vsub.s32 0, %v1907
        %v1909 = vrot.slane %v1904, %v1908
        %v1975 = vunpack.c.l.b16 %v1840
        %v1976 = vunpack.c.l.b16 %v1841
        %v1977 = vunpack.c.l.b16 %v1842
        %v1978 = vunpack.c.l.b16 %v1843
        %v1979 = vunpack.c.l.b16 %v1844
        %v1980 = vunpack.c.l.b16 %v1845
        %v1981 = vunpack.c.l.b16 %v1846
        %v1982 = vunpack.c.l.b16 %v1847
        %v1983 = vunpack.c.l.b16 %v1848
        %v1984 = vunpack.c.l.b16 %v1849
        %v1985 = vunpack.c.l.b16 %v1850
        %v1986 = vunpack.c.l.b16 %v1851
        %v1987 = vunpack.c.l.b16 %v1852
        %v1988 = vunpack.c.l.b16 %v1853
        %v1989 = vunpack.c.l.b16 %v1854
        %v1990 = vunpack.c.l.b16 %v1855
        %v1991 = vunpack.c.l.b16 %v1856
        %v1992 = vunpack.c.l.b16 %v1857
        %v1993 = vunpack.c.l.b16 %v1858
        %v1994 = vunpack.c.l.b16 %v1859
        %v1995 = vunpack.c.l.b16 %v1860
        %v1996 = vunpack.c.l.b16 %v1861
        %v1997 = vunpack.c.l.b16 %v1862
        %v1998 = vunpack.c.l.b16 %v1863
        %v1999 = vunpack.c.l.b16 %v1864
        %v2000 = vunpack.c.l.b16 %v1865
        %v2001 = vunpack.c.l.b16 %v1866
        %v2002 = vunpack.c.l.b16 %v1867
        %v2003 = vunpack.c.l.b16 %v1868
        %v2004 = vunpack.c.l.b16 %v1869
        %v2005 = vunpack.c.l.b16 %v1870
        %v2006 = vunpack.c.l.b16 %v1871
        %v2007 = vunpack.c.l.b16 %v1872
        %v2008 = vunpack.c.l.b16 %v1873
        %v2009 = vunpack.c.l.b16 %v1874
        %v2010 = vunpack.c.l.b16 %v1875
        %v2011 = vunpack.c.l.b16 %v1876
        %v2012 = vunpack.c.l.b16 %v1877
        %v2013 = vunpack.c.l.b16 %v1878
        %v2014 = vunpack.c.l.b16 %v1879
        %v2015 = vunpack.c.l.b16 %v1880
        %v2016 = vunpack.c.l.b16 %v1881
        %v2017 = vunpack.c.l.b16 %v1882
        %v2018 = vunpack.c.l.b16 %v1883
        %v2019 = vunpack.c.l.b16 %v1884
        %v2020 = vunpack.c.l.b16 %v1885
        %v2021 = vunpack.c.l.b16 %v1886
        %v2022 = vunpack.c.l.b16 %v1887
        %v2023 = vunpack.c.l.b16 %v1888
        %v2024 = vunpack.c.l.b16 %v1889
        %v2025 = vunpack.c.l.b16 %v1890
        %v2026 = vunpack.c.l.b16 %v1891
        %v2027 = vunpack.c.l.b16 %v1892
        %v2028 = vunpack.c.l.b16 %v1893
        %v2029 = vunpack.c.l.b16 %v1894
        %v2030 = vunpack.c.l.b16 %v1895
        %v2031 = vunpack.c.l.b16 %v1896
        %v2032 = vunpack.c.l.b16 %v1897
        %v2033 = vunpack.c.l.b16 %v1898
        %v2034 = vunpack.c.l.b16 %v1899
        %v2035 = vunpack.c.l.b16 %v1900
        %v2036 = vunpack.c.l.b16 %v1901
        %v2037 = vunpack.c.l.b16 %v1902
        %v2038 = vunpack.c.l.b16 %v1903
        %v2039 = vpack.c.b16 %v1976, %v1975
        %v2040 = vpack.c.b16 %v1978, %v1977
        %v2041 = vpack.c.b16 %v1980, %v1979
        %v2042 = vpack.c.b16 %v1982, %v1981
        %v2043 = vpack.c.b16 %v1984, %v1983
        %v2044 = vpack.c.b16 %v1986, %v1985
        %v2045 = vpack.c.b16 %v1988, %v1987
        %v2046 = vpack.c.b16 %v1990, %v1989
        %v2047 = vpack.c.b16 %v1992, %v1991
        %v2048 = vpack.c.b16 %v1994, %v1993
        %v2049 = vpack.c.b16 %v1996, %v1995
        %v2050 = vpack.c.b16 %v1998, %v1997
        %v2051 = vpack.c.b16 %v2000, %v1999
        %v2052 = vpack.c.b16 %v2002, %v2001
        %v2053 = vpack.c.b16 %v2004, %v2003
        %v2054 = vpack.c.b16 %v2006, %v2005
        %v2055 = vpack.c.b16 %v2008, %v2007
        %v2056 = vpack.c.b16 %v2010, %v2009
        %v2057 = vpack.c.b16 %v2012, %v2011
        %v2058 = vpack.c.b16 %v2014, %v2013
        %v2059 = vpack.c.b16 %v2016, %v2015
        %v2060 = vpack.c.b16 %v2018, %v2017
        %v2061 = vpack.c.b16 %v2020, %v2019
        %v2062 = vpack.c.b16 %v2022, %v2021
        %v2063 = vpack.c.b16 %v2024, %v2023
        %v2064 = vpack.c.b16 %v2026, %v2025
        %v2065 = vpack.c.b16 %v2028, %v2027
        %v2066 = vpack.c.b16 %v2030, %v2029
        %v2067 = vpack.c.b16 %v2032, %v2031
        %v2068 = vpack.c.b16 %v2034, %v2033
        %v2069 = vpack.c.b16 %v2036, %v2035
        %v2070 = vpack.c.b16 %v2038, %v2037
        %2103 = vmatprep.subr.bf16.mxu0 0
        %2104 = vmatpush1.bf16.msra.mxu0 %v2039
        %2105 = vmatprep.subr.bf16.mxu0 0
        %2106 = vmatpush1.bf16.msra.mxu0 %v2040
        %2107 = vmatprep.subr.bf16.mxu0 0
        %2108 = vmatpush1.bf16.msra.mxu0 %v2041
        %2109 = vmatprep.subr.bf16.mxu0 0
        %2110 = vmatpush1.bf16.msra.mxu0 %v2042
        %2111 = vmatprep.subr.bf16.mxu0 0
        %2112 = vmatpush1.bf16.msra.mxu0 %v2043
        %2113 = vmatprep.subr.bf16.mxu0 0
        %2114 = vmatpush1.bf16.msra.mxu0 %v2044
        %2115 = vmatprep.subr.bf16.mxu0 0
        %2116 = vmatpush1.bf16.msra.mxu0 %v2045
        %2117 = vmatprep.subr.bf16.mxu0 0
        %2118 = vmatpush1.bf16.msra.mxu0 %v2046
        %2119 = vmatprep.subr.bf16.mxu0 0
        %2120 = vmatpush1.bf16.msra.mxu0 %v2047
        %2121 = vmatprep.subr.bf16.mxu0 0
        %2122 = vmatpush1.bf16.msra.mxu0 %v2048
        %2123 = vmatprep.subr.bf16.mxu0 0
        %2124 = vmatpush1.bf16.msra.mxu0 %v2049
        %2125 = vmatprep.subr.bf16.mxu0 0
        %2126 = vmatpush1.bf16.msra.mxu0 %v2050
        %2127 = vmatprep.subr.bf16.mxu0 0
        %2128 = vmatpush1.bf16.msra.mxu0 %v2051
        %2129 = vmatprep.subr.bf16.mxu0 0
        %2130 = vmatpush1.bf16.msra.mxu0 %v2052
        %2131 = vmatprep.subr.bf16.mxu0 0
        %2132 = vmatpush1.bf16.msra.mxu0 %v2053
        %2133 = vmatprep.subr.bf16.mxu0 0
        %2134 = vmatpush1.bf16.msra.mxu0 %v2054
        %2135 = vmatprep.mubr.bf16.mxu0 %v1825
        %2136 = vmatmul.mubr.bf16.gmra.mrb[0].mxu0 %v1824
        %v2137 = vpop.f32.mrb[0].mxu0
        %v2138 = vadd.f32 %v1909, %v2137
        %v2139 = vpop.f32.mrb[0].mxu0
        %v2140 = vpop.f32.mrb[0].mxu0
        %v2141 = vadd.f32 %v1909, %v2140
        %v2142 = vpop.f32.mrb[0].mxu0
        %2143 = vmatprep.mubr.bf16.mxu0 %v1829
        %2144 = vmatmul.mubr.bf16.gmra.mrb[0].mxu0 %v1828
        %v2145 = vpop.f32.mrb[0].mxu0
        %v2146 = vadd.f32 %v1909, %v2145
        %v2147 = vpop.f32.mrb[0].mxu0
        %v2148 = vpop.f32.mrb[0].mxu0
        %v2149 = vadd.f32 %v1909, %v2148
        %v2150 = vpop.f32.mrb[0].mxu0
        %2151 = vmatprep.mubr.bf16.mxu0 %v1833
        %2152 = vmatmul.mubr.bf16.gmra.mrb[0].mxu0 %v1832
        %v2153 = vpop.f32.mrb[0].mxu0
        %v2154 = vadd.f32 %v1909, %v2153
        %v2155 = vpop.f32.mrb[0].mxu0
        %v2156 = vpop.f32.mrb[0].mxu0
        %v2157 = vadd.f32 %v1909, %v2156
        %v2158 = vpop.f32.mrb[0].mxu0
        %2159 = vmatprep.mubr.bf16.mxu0 %v1837
        %2160 = vmatmul.mubr.bf16.gmra.mrb[0].mxu0 %v1836
        %v2161 = vpop.f32.mrb[0].mxu0
        %v2162 = vadd.f32 %v1909, %v2161
        %v2163 = vpop.f32.mrb[0].mxu0
        %v2164 = vpop.f32.mrb[0].mxu0
        %v2165 = vadd.f32 %v1909, %v2164
        %v2166 = vpop.f32.mrb[0].mxu0
        %2167 = vdwg.mxu0
        %2168 = vmatprep.subr.bf16.mxu0 0
        %2169 = vmatpush1.bf16.msra.mxu0 %v2055
        %2170 = vmatprep.subr.bf16.mxu0 0
        %2171 = vmatpush1.bf16.msra.mxu0 %v2056
        %2172 = vmatprep.subr.bf16.mxu0 0
        %2173 = vmatpush1.bf16.msra.mxu0 %v2057
        %2174 = vmatprep.subr.bf16.mxu0 0
        %2175 = vmatpush1.bf16.msra.mxu0 %v2058
        %2176 = vmatprep.subr.bf16.mxu0 0
        %2177 = vmatpush1.bf16.msra.mxu0 %v2059
        %2178 = vmatprep.subr.bf16.mxu0 0
        %2179 = vmatpush1.bf16.msra.mxu0 %v2060
        %2180 = vmatprep.subr.bf16.mxu0 0
        %2181 = vmatpush1.bf16.msra.mxu0 %v2061
        %2182 = vmatprep.subr.bf16.mxu0 0
        %2183 = vmatpush1.bf16.msra.mxu0 %v2062
        %2184 = vmatprep.subr.bf16.mxu0 0
        %2185 = vmatpush1.bf16.msra.mxu0 %v2063
        %2186 = vmatprep.subr.bf16.mxu0 0
        %2187 = vmatpush1.bf16.msra.mxu0 %v2064
        %2188 = vmatprep.subr.bf16.mxu0 0
        %2189 = vmatpush1.bf16.msra.mxu0 %v2065
        %2190 = vmatprep.subr.bf16.mxu0 0
        %2191 = vmatpush1.bf16.msra.mxu0 %v2066
        %2192 = vmatprep.subr.bf16.mxu0 0
        %2193 = vmatpush1.bf16.msra.mxu0 %v2067
        %2194 = vmatprep.subr.bf16.mxu0 0
        %2195 = vmatpush1.bf16.msra.mxu0 %v2068
        %2196 = vmatprep.subr.bf16.mxu0 0
        %2197 = vmatpush1.bf16.msra.mxu0 %v2069
        %2198 = vmatprep.subr.bf16.mxu0 0
        %2199 = vmatpush1.bf16.msra.mxu0 %v2070
        %2200 = vmatprep.mubr.bf16.mxu0 %v1827
        %2201 = vmatmul.mubr.bf16.gmra.mrb[0].mxu0 %v1826
        %v2202 = vpop.f32.mrb[0].mxu0
        %v2203 = vadd.f32 %v2138, %v2202
        %v2204 = vpop.f32.mrb[0].mxu0
        %v2205 = vpop.f32.mrb[0].mxu0
        %v2206 = vadd.f32 %v2141, %v2205
        %v2207 = vpop.f32.mrb[0].mxu0
        %2208 = vmatprep.mubr.bf16.mxu0 %v1831
        %2209 = vmatmul.mubr.bf16.gmra.mrb[0].mxu0 %v1830
        %v2210 = vpop.f32.mrb[0].mxu0
        %v2211 = vadd.f32 %v2146, %v2210
        %v2212 = vpop.f32.mrb[0].mxu0
        %v2213 = vpop.f32.mrb[0].mxu0
        %v2214 = vadd.f32 %v2149, %v2213
        %v2215 = vpop.f32.mrb[0].mxu0
        %2216 = vmatprep.mubr.bf16.mxu0 %v1835
        %2217 = vmatmul.mubr.bf16.gmra.mrb[0].mxu0 %v1834
        %v2218 = vpop.f32.mrb[0].mxu0
        %v2219 = vadd.f32 %v2154, %v2218
        %v2220 = vpop.f32.mrb[0].mxu0
        %v2221 = vpop.f32.mrb[0].mxu0
        %v2222 = vadd.f32 %v2157, %v2221
        %v2223 = vpop.f32.mrb[0].mxu0
        %2224 = vmatprep.mubr.bf16.mxu0 %v1839
        %2225 = vmatmul.mubr.bf16.gmra.mrb[0].mxu0 %v1838
        %v2226 = vpop.f32.mrb[0].mxu0
        %v2227 = vadd.f32 %v2162, %v2226
        %v2228 = vpop.f32.mrb[0].mxu0
        %v2229 = vpop.f32.mrb[0].mxu0
        %v2230 = vadd.f32 %v2165, %v2229
        %v2231 = vpop.f32.mrb[0].mxu0
        %2232 = vdwg.mxu0
        %v2233 = vld [vmem:[%s269] sm:$0xff]
        %v2234 = vld [vmem:[%s269 + $0x8] sm:$0xff]
        %v2235 = vld [vmem:[%s269 + $0x10] sm:$0xff]
        %v2236 = vld [vmem:[%s269 + $0x18] sm:$0xff]
        %v2237 = vld [vmem:[%s269 + $0x20] sm:$0xff]
        %v2238 = vld [vmem:[%s269 + $0x28] sm:$0xff]
        %v2239 = vld [vmem:[%s269 + $0x30] sm:$0xff]
        %v2240 = vld [vmem:[%s269 + $0x38] sm:$0xff]
        %v2241 = vadd.f32 %v2203, %v2233
        %v2242 = vadd.f32 %v2206, %v2234
        %v2243 = vadd.f32 %v2211, %v2235
        %v2244 = vadd.f32 %v2214, %v2236
        %v2245 = vadd.f32 %v2219, %v2237
        %v2246 = vadd.f32 %v2222, %v2238
        %v2247 = vadd.f32 %v2227, %v2239
        %v2248 = vadd.f32 %v2230, %v2240
        %2249 = vst [vmem:[%s259] sm:$0xff] %v2241
        %2250 = vst [vmem:[%s259 + $0x8] sm:$0xff] %v2242
        %2251 = vst [vmem:[%s259 + $0x10] sm:$0xff] %v2243
        %2252 = vst [vmem:[%s259 + $0x18] sm:$0xff] %v2244
        %2253 = vst [vmem:[%s259 + $0x20] sm:$0xff] %v2245
        %2254 = vst [vmem:[%s259 + $0x28] sm:$0xff] %v2246
        %2255 = vst [vmem:[%s259 + $0x30] sm:$0xff] %v2247
        %2256 = vst [vmem:[%s259 + $0x38] sm:$0xff] %v2248
        %s2257 = sand.u32 %s164, 1
        %s2258 = scalar_lea.sflag [#allocation3], %s2257
        %s2259 = sand.u32 %s164, 1
        %s2260 = smul.addr %s2259, 64
        %s2261 = scalar_lea.vmem [#allocation2], %s2260
        // Predicated region
        $region45: #{inter_frame_attention.5} parent=43 // pred_check
          %p2262 = pneg %p174
        $region46: #{inter_frame_attention.5} parent=43 // pred_check_branch
          %2264 = sbr.rel (%p2262) target = $region48
        $region47: #{inter_frame_attention.5} parent=43 // pred_region
          %s2266 = ssub.s32 1024, 1024
          %2267 = vsyncadd %s2258, %s2266
          %s2268 = smul.addr %s20, 8
          %s2269 = smul.addr %s2268, 128
          %s2270 = scalar_lea.hbm %s6, %s2269
          %s2271 = sshll.u32 %s2261, 4
          %s2272 = int_to_ptr.vmem [resolvable:$true] %s2271
          %2277 = dma.vmem_to_hbm [thread:$0]  %s2272, 1024, %s2270, %s2258, 128, 128, 8
        $region48: #{inter_frame_attention.5} parent=43 // pred_fallthru
          _
      $region44: #{inter_frame_attention.5} parent=5 // pred_fallthru
        _
      %p2278 = scmp.le.s32.totalorder 2, %s15
      // Predicated region
      $region49: #{inter_frame_attention.5} parent=5 // pred_check
        %p2279 = pneg %p2278
      $region50: #{inter_frame_attention.5} parent=5 // pred_check_branch
        %2281 = sbr.rel (%p2279) target = $region52
      $region51: #{inter_frame_attention.5} parent=5 // pred_region
        %s2282 = ssub.s32 %s15, 2
        // Predicated region
        $region53: #{inter_frame_attention.5} parent=51 // pred_check
          %p2283 = pneg %p180
        $region54: #{inter_frame_attention.5} parent=51 // pred_check_branch
          %2285 = sbr.rel (%p2283) target = $region56
        $region55: #{inter_frame_attention.5} parent=51 // pred_region
          %s2286 = sand.u32 %s165, 1
          %s2287 = scalar_lea.sflag [#allocation3], %s2286
          %s2288 = sand.u32 %s165, 1
          %s2289 = smul.addr %s2288, 64
          %s2290 = scalar_lea.vmem [#allocation2], %s2289
          %2291 = dma.done %s2287, 1024
        $region56: #{inter_frame_attention.5} parent=51 // pred_fallthru
          _
      $region52: #{inter_frame_attention.5} parent=5 // pred_fallthru
        _
    $region6: #{inter_frame_attention.5} parent=1 // loop_footer
      %s19 = sadd.s32 1, %s15
    $region7: #{inter_frame_attention.5} parent=1 // loop_footer_branch
      %14 = sbr.rel target = $region3
    $region8: #{inter_frame_attention.5} parent=1 // loop_exit
      _
    %2292 = vsyncpa [#allocation3], 1
    %s2293 = scalar_lea.sflag [#allocation3], 1
    %2294 = vsyncpa %s2293, 1

// kernel: inter_frame_attention.3
$region0: #{inter_frame_attention.3}
  #allocation0 [shape = 'u32[]', space=smem, size = 0x4, offset = 0x4, fixed_abs, tag = 'smem constant byte address 0x4 - core index']
  #allocation1 [shape = 'u32[144,128]{1,0:T(1,128)}', space=vmem, size = 0x12000, scoped, tag = 'internal scratch']
  %s0 = inlined_call_operand.vmem [shape: f32[4,64,128], index: 0, kind: input, shape index: {}, may-alias: {0,1}]
  %s1 = inlined_call_operand.vmem [shape: f32[4,64,128], index: 1, kind: input, shape index: {}, may-alias: {0,1}]
  %s2 = inlined_call_operand.vmem [shape: f32[64,2], index: 2, kind: input, shape index: {}]
  %s3 = inlined_call_operand.vmem [shape: f32[1,128], index: 3, kind: input, shape index: {}]
  %s4 = inlined_call_operand.vmem [shape: f32[1,128], index: 4, kind: input, shape index: {}]
  %s5 = inlined_call_operand.vmem [shape: bf16[128,128], index: 5, kind: input, shape index: {}]
  %s6 = inlined_call_operand.vmem [shape: f32[1,128], index: 6, kind: input, shape index: {}]
  %s7 = inlined_call_operand.vmem [shape: bf16[128,256], index: 7, kind: input, shape index: {}]
  %s8 = inlined_call_operand.vmem [shape: f32[1,256], index: 8, kind: input, shape index: {}]
  %s9 = inlined_call_operand.vmem [shape: f32[2,128], index: 9, kind: input, shape index: {}]
  %s10 = inlined_call_operand.vmem [shape: f32[1,128], index: 10, kind: input, shape index: {}]
  %s11 = inlined_call_operand.vmem [shape: bf16[128,128], index: 11, kind: input, shape index: {}]
  %s12 = inlined_call_operand.vmem [shape: f32[1,128], index: 12, kind: input, shape index: {}]
  %s13 = inlined_call_operand.vmem [shape: bf16[128,128], index: 13, kind: input, shape index: {}]
  %s14 = inlined_call_operand.vmem [shape: f32[1,128], index: 14, kind: input, shape index: {}]
  %s15 = inlined_call_operand.vmem [shape: f32[4,64,128], index: 15, kind: output, shape index: {0}]
  %s16 = inlined_call_operand.hbm [shape: f32[4,64,128], index: 16, kind: output, shape index: {1}]
  %17 = xla_tuple %s15, %s16
  %s18 = sld [smem:[#allocation0]]
  $region101: #{inter_frame_attention.3} parent=0
    _
  %s20 = ssub.s32 1, %s18
  %s21 = scalar_select 0, %s20, %s18
  $region1: #{inter_frame_attention.3} parent=0
    #allocation2 [shape = 'u8[65536]{0}', space=vmem, size = 0x10000, scoped, tag = 'output window, operand 1']
    #allocation3 [shape = 's32[2]{0}', space=sflag, size = 0x8, scoped, tag = 'scoped memory for inter_frame_attention.3']
    %22 = vsyncpa [#allocation3], 0
    %s23 = scalar_lea.sflag [#allocation3], 1
    %24 = vsyncpa %s23, 0
    loop: start=0, step=1, limit=6
    $region2: #{inter_frame_attention.3} parent=1 // loop_pre_header
      _
    $region3: #{inter_frame_attention.3} parent=1 // loop_header
      %s26 = sphi 0, %s30
      %p27 = scmp.ge.s32.totalorder %s26, 6
      %s36 = sphi 0, %s38
      %s39 = sphi 0, %s36
      %s40 = sphi 0, %s39
      %s56 = sphi 0, %s40
      %s88 = sphi 0, %s90
      %s91 = sphi 0, %s88
      %s92 = sphi 0, %s91
      %s108 = sphi 0, %s92
      %s112 = sphi 0, %s112
      %s114 = sphi 0, %s112
      %s115 = sphi 0, %s114
      %s129 = sphi 0, %s115
      %s133 = sphi 0, %s133
      %s135 = sphi 0, %s133
      %s136 = sphi 0, %s135
      %s150 = sphi 0, %s136
      %s154 = sphi 0, %s154
      %s156 = sphi 0, %s154
      %s157 = sphi 0, %s156
      %s171 = sphi 0, %s157
      %s175 = sphi 0, %s175
      %s177 = sphi 0, %s175
      %s178 = sphi 0, %s177
      %s192 = sphi 0, %s178
      %s196 = sphi 0, %s196
      %s198 = sphi 0, %s196
      %s199 = sphi 0, %s198
      %s213 = sphi 0, %s199
      %s217 = sphi 0, %s217
      %s219 = sphi 0, %s217
      %s220 = sphi 0, %s219
      %s234 = sphi 0, %s220
      %s238 = sphi 0, %s238
      %s240 = sphi 0, %s238
      %s241 = sphi 0, %s240
      %s255 = sphi 0, %s241
      %s259 = sphi 0, %s259
      %s261 = sphi 0, %s259
      %s262 = sphi 0, %s261
      %s276 = sphi 0, %s262
      %s280 = sphi 0, %s280
      %s282 = sphi 0, %s280
      %s283 = sphi 0, %s282
      %s297 = sphi 0, %s283
      %s301 = sphi 0, %s301
      %s303 = sphi 0, %s301
      %s304 = sphi 0, %s303
      %s318 = sphi 0, %s304
      %s322 = sphi 0, %s322
      %s324 = sphi 0, %s322
      %s325 = sphi 0, %s324
      %s339 = sphi 0, %s325
      %s343 = sphi 0, %s343
      %s345 = sphi 0, %s343
      %s346 = sphi 0, %s345
      %s360 = sphi 0, %s346
      %s364 = sphi 0, %s364
      %s366 = sphi 0, %s364
      %s367 = sphi 0, %s366
      %s381 = sphi 0, %s367
      %s387 = sphi 0, %s389
      %s390 = sphi 0, %s387
      %s391 = sphi 0, %s390
      %s407 = sphi 0, %s391
      %s413 = sphi 0, %s415
      %s416 = sphi 0, %s413
      %s417 = sphi 0, %s416
      %s433 = sphi 0, %s417
    $region4: #{inter_frame_attention.3} parent=1 // loop_header_branch
      %29 = sbr.rel (%p27) target = $region8
    $region5: #{inter_frame_attention.3} parent=1 // loop_body
      %s31 = ssub.s32 %s26, 1
      %s32 = ssub.s32 %s26, 2
      %s33 = sadd.s32 %s26, 1
      %s34 = ssub.s32 %s26, %s33
      %p35 = scmp.eq.s32.totalorder %s34, 0
      %s37 = sadd.s32 %s36, 1
      %s38 = scalar_select %p35, %s36, %s37
      %p41 = pneg %p35
      %p42 = scmp.eq.s32.totalorder %s26, 3
      %p43 = por %p41, %p42
      %p44 = scmp.ne.s32.totalorder %s36, %s39
      %p45 = scmp.eq.s32.totalorder %s26, 0
      %p46 = por %p44, %p45
      %p47 = scmp.ne.s32.totalorder %s36, %s39
      %p48 = scmp.eq.s32.totalorder %s31, 3
      %p49 = por %p47, %p48
      %p50 = scmp.ne.s32.totalorder %s39, %s40
      %p51 = scmp.eq.s32.totalorder %s31, 0
      %p52 = por %p50, %p51
      %p53 = scmp.ne.s32.totalorder %s39, %s40
      %p54 = scmp.eq.s32.totalorder %s32, 3
      %p55 = por %p53, %p54
      %p57 = scmp.ne.s32.totalorder %s40, %s56
      %p58 = scmp.eq.s32.totalorder %s32, 0
      %p59 = por %p57, %p58
      %s60 = sadd.s32 %s26, 2
      %p61 = scmp.lt.s32.totalorder %s60, 0
      %s62 = ssub.s32 0, %s60
      %s63 = scalar_select %p61, %s62, %s60
      %s64 = sand.u32 %s63, 3
      %s65 = ssub.s32 0, %s64
      %s66 = scalar_select %p61, %s65, %s64
      %p67 = scmp.ne.s32.totalorder %s66, 0
      %p68 = scmp.lt.s32.totalorder %s66, 0
      %p69 = pnand %p68, %p67
      %p70 = pneg %p69
      %s71 = sadd.s32 %s66, 4
      %s72 = scalar_select %p70, %s71, %s66
      %s73 = sadd.s32 %s33, 2
      %p74 = scmp.lt.s32.totalorder %s73, 0
      %s75 = ssub.s32 0, %s73
      %s76 = scalar_select %p74, %s75, %s73
      %s77 = sand.u32 %s76, 3
      %s78 = ssub.s32 0, %s77
      %s79 = scalar_select %p74, %s78, %s77
      %p80 = scmp.ne.s32.totalorder %s79, 0
      %p81 = scmp.lt.s32.totalorder %s79, 0
      %p82 = pnand %p81, %p80
      %p83 = pneg %p82
      %s84 = sadd.s32 %s79, 4
      %s85 = scalar_select %p83, %s84, %s79
      %s86 = ssub.s32 %s72, %s85
      %p87 = scmp.eq.s32.totalorder %s86, 0
      %s89 = sadd.s32 %s88, 1
      %s90 = scalar_select %p87, %s88, %s89
      %p93 = pneg %p87
      %p94 = scmp.eq.s32.totalorder %s26, 3
      %p95 = por %p93, %p94
      %p96 = scmp.ne.s32.totalorder %s88, %s91
      %p97 = scmp.eq.s32.totalorder %s26, 0
      %p98 = por %p96, %p97
      %p99 = scmp.ne.s32.totalorder %s88, %s91
      %p100 = scmp.eq.s32.totalorder %s31, 3
      %p101 = por %p99, %p100
      %p102 = scmp.ne.s32.totalorder %s91, %s92
      %p103 = scmp.eq.s32.totalorder %s31, 0
      %p104 = por %p102, %p103
      %p105 = scmp.ne.s32.totalorder %s91, %s92
      %p106 = scmp.eq.s32.totalorder %s32, 3
      %p107 = por %p105, %p106
      %p109 = scmp.ne.s32.totalorder %s92, %s108
      %p110 = scmp.eq.s32.totalorder %s32, 0
      %p111 = por %p109, %p110
      %s113 = sadd.s32 %s112, 1
      %p116 = scmp.eq.s32.totalorder %s26, 3
      %p117 = scmp.ne.s32.totalorder %s112, %s114
      %p118 = scmp.eq.s32.totalorder %s26, 0
      %p119 = por %p117, %p118
      %p120 = scmp.ne.s32.totalorder %s112, %s114
      %p121 = scmp.eq.s32.totalorder %s31, 3
      %p122 = por %p120, %p121
      %p123 = scmp.ne.s32.totalorder %s114, %s115
      %p124 = scmp.eq.s32.totalorder %s31, 0
      %p125 = por %p123, %p124
      %p126 = scmp.ne.s32.totalorder %s114, %s115
      %p127 = scmp.eq.s32.totalorder %s32, 3
      %p128 = por %p126, %p127
      %p130 = scmp.ne.s32.totalorder %s115, %s129
      %p131 = scmp.eq.s32.totalorder %s32, 0
      %p132 = por %p130, %p131
      %s134 = sadd.s32 %s133, 1
      %p137 = scmp.eq.s32.totalorder %s26, 3
      %p138 = scmp.ne.s32.totalorder %s133, %s135
      %p139 = scmp.eq.s32.totalorder %s26, 0
      %p140 = por %p138, %p139
      %p141 = scmp.ne.s32.totalorder %s133, %s135
      %p142 = scmp.eq.s32.totalorder %s31, 3
      %p143 = por %p141, %p142
      %p144 = scmp.ne.s32.totalorder %s135, %s136
      %p145 = scmp.eq.s32.totalorder %s31, 0
      %p146 = por %p144, %p145
      %p147 = scmp.ne.s32.totalorder %s135, %s136
      %p148 = scmp.eq.s32.totalorder %s32, 3
      %p149 = por %p147, %p148
      %p151 = scmp.ne.s32.totalorder %s136, %s150
      %p152 = scmp.eq.s32.totalorder %s32, 0
      %p153 = por %p151, %p152
      %s155 = sadd.s32 %s154, 1
      %p158 = scmp.eq.s32.totalorder %s26, 3
      %p159 = scmp.ne.s32.totalorder %s154, %s156
      %p160 = scmp.eq.s32.totalorder %s26, 0
      %p161 = por %p159, %p160
      %p162 = scmp.ne.s32.totalorder %s154, %s156
      %p163 = scmp.eq.s32.totalorder %s31, 3
      %p164 = por %p162, %p163
      %p165 = scmp.ne.s32.totalorder %s156, %s157
      %p166 = scmp.eq.s32.totalorder %s31, 0
      %p167 = por %p165, %p166
      %p168 = scmp.ne.s32.totalorder %s156, %s157
      %p169 = scmp.eq.s32.totalorder %s32, 3
      %p170 = por %p168, %p169
      %p172 = scmp.ne.s32.totalorder %s157, %s171
      %p173 = scmp.eq.s32.totalorder %s32, 0
      %p174 = por %p172, %p173
      %s176 = sadd.s32 %s175, 1
      %p179 = scmp.eq.s32.totalorder %s26, 3
      %p180 = scmp.ne.s32.totalorder %s175, %s177
      %p181 = scmp.eq.s32.totalorder %s26, 0
      %p182 = por %p180, %p181
      %p183 = scmp.ne.s32.totalorder %s175, %s177
      %p184 = scmp.eq.s32.totalorder %s31, 3
      %p185 = por %p183, %p184
      %p186 = scmp.ne.s32.totalorder %s177, %s178
      %p187 = scmp.eq.s32.totalorder %s31, 0
      %p188 = por %p186, %p187
      %p189 = scmp.ne.s32.totalorder %s177, %s178
      %p190 = scmp.eq.s32.totalorder %s32, 3
      %p191 = por %p189, %p190
      %p193 = scmp.ne.s32.totalorder %s178, %s192
      %p194 = scmp.eq.s32.totalorder %s32, 0
      %p195 = por %p193, %p194
      %s197 = sadd.s32 %s196, 1
      %p200 = scmp.eq.s32.totalorder %s26, 3
      %p201 = scmp.ne.s32.totalorder %s196, %s198
      %p202 = scmp.eq.s32.totalorder %s26, 0
      %p203 = por %p201, %p202
      %p204 = scmp.ne.s32.totalorder %s196, %s198
      %p205 = scmp.eq.s32.totalorder %s31, 3
      %p206 = por %p204, %p205
      %p207 = scmp.ne.s32.totalorder %s198, %s199
      %p208 = scmp.eq.s32.totalorder %s31, 0
      %p209 = por %p207, %p208
      %p210 = scmp.ne.s32.totalorder %s198, %s199
      %p211 = scmp.eq.s32.totalorder %s32, 3
      %p212 = por %p210, %p211
      %p214 = scmp.ne.s32.totalorder %s199, %s213
      %p215 = scmp.eq.s32.totalorder %s32, 0
      %p216 = por %p214, %p215
      %s218 = sadd.s32 %s217, 1
      %p221 = scmp.eq.s32.totalorder %s26, 3
      %p222 = scmp.ne.s32.totalorder %s217, %s219
      %p223 = scmp.eq.s32.totalorder %s26, 0
      %p224 = por %p222, %p223
      %p225 = scmp.ne.s32.totalorder %s217, %s219
      %p226 = scmp.eq.s32.totalorder %s31, 3
      %p227 = por %p225, %p226
      %p228 = scmp.ne.s32.totalorder %s219, %s220
      %p229 = scmp.eq.s32.totalorder %s31, 0
      %p230 = por %p228, %p229
      %p231 = scmp.ne.s32.totalorder %s219, %s220
      %p232 = scmp.eq.s32.totalorder %s32, 3
      %p233 = por %p231, %p232
      %p235 = scmp.ne.s32.totalorder %s220, %s234
      %p236 = scmp.eq.s32.totalorder %s32, 0
      %p237 = por %p235, %p236
      %s239 = sadd.s32 %s238, 1
      %p242 = scmp.eq.s32.totalorder %s26, 3
      %p243 = scmp.ne.s32.totalorder %s238, %s240
      %p244 = scmp.eq.s32.totalorder %s26, 0
      %p245 = por %p243, %p244
      %p246 = scmp.ne.s32.totalorder %s238, %s240
      %p247 = scmp.eq.s32.totalorder %s31, 3
      %p248 = por %p246, %p247
      %p249 = scmp.ne.s32.totalorder %s240, %s241
      %p250 = scmp.eq.s32.totalorder %s31, 0
      %p251 = por %p249, %p250
      %p252 = scmp.ne.s32.totalorder %s240, %s241
      %p253 = scmp.eq.s32.totalorder %s32, 3
      %p254 = por %p252, %p253
      %p256 = scmp.ne.s32.totalorder %s241, %s255
      %p257 = scmp.eq.s32.totalorder %s32, 0
      %p258 = por %p256, %p257
      %s260 = sadd.s32 %s259, 1
      %p263 = scmp.eq.s32.totalorder %s26, 3
      %p264 = scmp.ne.s32.totalorder %s259, %s261
      %p265 = scmp.eq.s32.totalorder %s26, 0
      %p266 = por %p264, %p265
      %p267 = scmp.ne.s32.totalorder %s259, %s261
      %p268 = scmp.eq.s32.totalorder %s31, 3
      %p269 = por %p267, %p268
      %p270 = scmp.ne.s32.totalorder %s261, %s262
      %p271 = scmp.eq.s32.totalorder %s31, 0
      %p272 = por %p270, %p271
      %p273 = scmp.ne.s32.totalorder %s261, %s262
      %p274 = scmp.eq.s32.totalorder %s32, 3
      %p275 = por %p273, %p274
      %p277 = scmp.ne.s32.totalorder %s262, %s276
      %p278 = scmp.eq.s32.totalorder %s32, 0
      %p279 = por %p277, %p278
      %s281 = sadd.s32 %s280, 1
      %p284 = scmp.eq.s32.totalorder %s26, 3
      %p285 = scmp.ne.s32.totalorder %s280, %s282
      %p286 = scmp.eq.s32.totalorder %s26, 0
      %p287 = por %p285, %p286
      %p288 = scmp.ne.s32.totalorder %s280, %s282
      %p289 = scmp.eq.s32.totalorder %s31, 3
      %p290 = por %p288, %p289
      %p291 = scmp.ne.s32.totalorder %s282, %s283
      %p292 = scmp.eq.s32.totalorder %s31, 0
      %p293 = por %p291, %p292
      %p294 = scmp.ne.s32.totalorder %s282, %s283
      %p295 = scmp.eq.s32.totalorder %s32, 3
      %p296 = por %p294, %p295
      %p298 = scmp.ne.s32.totalorder %s283, %s297
      %p299 = scmp.eq.s32.totalorder %s32, 0
      %p300 = por %p298, %p299
      %s302 = sadd.s32 %s301, 1
      %p305 = scmp.eq.s32.totalorder %s26, 3
      %p306 = scmp.ne.s32.totalorder %s301, %s303
      %p307 = scmp.eq.s32.totalorder %s26, 0
      %p308 = por %p306, %p307
      %p309 = scmp.ne.s32.totalorder %s301, %s303
      %p310 = scmp.eq.s32.totalorder %s31, 3
      %p311 = por %p309, %p310
      %p312 = scmp.ne.s32.totalorder %s303, %s304
      %p313 = scmp.eq.s32.totalorder %s31, 0
      %p314 = por %p312, %p313
      %p315 = scmp.ne.s32.totalorder %s303, %s304
      %p316 = scmp.eq.s32.totalorder %s32, 3
      %p317 = por %p315, %p316
      %p319 = scmp.ne.s32.totalorder %s304, %s318
      %p320 = scmp.eq.s32.totalorder %s32, 0
      %p321 = por %p319, %p320
      %s323 = sadd.s32 %s322, 1
      %p326 = scmp.eq.s32.totalorder %s26, 3
      %p327 = scmp.ne.s32.totalorder %s322, %s324
      %p328 = scmp.eq.s32.totalorder %s26, 0
      %p329 = por %p327, %p328
      %p330 = scmp.ne.s32.totalorder %s322, %s324
      %p331 = scmp.eq.s32.totalorder %s31, 3
      %p332 = por %p330, %p331
      %p333 = scmp.ne.s32.totalorder %s324, %s325
      %p334 = scmp.eq.s32.totalorder %s31, 0
      %p335 = por %p333, %p334
      %p336 = scmp.ne.s32.totalorder %s324, %s325
      %p337 = scmp.eq.s32.totalorder %s32, 3
      %p338 = por %p336, %p337
      %p340 = scmp.ne.s32.totalorder %s325, %s339
      %p341 = scmp.eq.s32.totalorder %s32, 0
      %p342 = por %p340, %p341
      %s344 = sadd.s32 %s343, 1
      %p347 = scmp.eq.s32.totalorder %s26, 3
      %p348 = scmp.ne.s32.totalorder %s343, %s345
      %p349 = scmp.eq.s32.totalorder %s26, 0
      %p350 = por %p348, %p349
      %p351 = scmp.ne.s32.totalorder %s343, %s345
      %p352 = scmp.eq.s32.totalorder %s31, 3
      %p353 = por %p351, %p352
      %p354 = scmp.ne.s32.totalorder %s345, %s346
      %p355 = scmp.eq.s32.totalorder %s31, 0
      %p356 = por %p354, %p355
      %p357 = scmp.ne.s32.totalorder %s345, %s346
      %p358 = scmp.eq.s32.totalorder %s32, 3
      %p359 = por %p357, %p358
      %p361 = scmp.ne.s32.totalorder %s346, %s360
      %p362 = scmp.eq.s32.totalorder %s32, 0
      %p363 = por %p361, %p362
      %s365 = sadd.s32 %s364, 1
      %p368 = scmp.eq.s32.totalorder %s26, 3
      %p369 = scmp.ne.s32.totalorder %s364, %s366
      %p370 = scmp.eq.s32.totalorder %s26, 0
      %p371 = por %p369, %p370
      %p372 = scmp.ne.s32.totalorder %s364, %s366
      %p373 = scmp.eq.s32.totalorder %s31, 3
      %p374 = por %p372, %p373
      %p375 = scmp.ne.s32.totalorder %s366, %s367
      %p376 = scmp.eq.s32.totalorder %s31, 0
      %p377 = por %p375, %p376
      %p378 = scmp.ne.s32.totalorder %s366, %s367
      %p379 = scmp.eq.s32.totalorder %s32, 3
      %p380 = por %p378, %p379
      %p382 = scmp.ne.s32.totalorder %s367, %s381
      %p383 = scmp.eq.s32.totalorder %s32, 0
      %p384 = por %p382, %p383
      %s385 = ssub.s32 %s26, %s33
      %p386 = scmp.eq.s32.totalorder %s385, 0
      %s388 = sadd.s32 %s387, 1
      %s389 = scalar_select %p386, %s387, %s388
      %p392 = pneg %p386
      %p393 = scmp.eq.s32.totalorder %s26, 3
      %p394 = por %p392, %p393
      %p395 = scmp.ne.s32.totalorder %s387, %s390
      %p396 = scmp.eq.s32.totalorder %s26, 0
      %p397 = por %p395, %p396
      %p398 = scmp.ne.s32.totalorder %s387, %s390
      %p399 = scmp.eq.s32.totalorder %s31, 3
      %p400 = por %p398, %p399
      %p401 = scmp.ne.s32.totalorder %s390, %s391
      %p402 = scmp.eq.s32.totalorder %s31, 0
      %p403 = por %p401, %p402
      %p404 = scmp.ne.s32.totalorder %s390, %s391
      %p405 = scmp.eq.s32.totalorder %s32, 3
      %p406 = por %p404, %p405
      %p408 = scmp.ne.s32.totalorder %s391, %s407
      %p409 = scmp.eq.s32.totalorder %s32, 0
      %p410 = por %p408, %p409
      %s411 = ssub.s32 %s26, %s33
      %p412 = scmp.eq.s32.totalorder %s411, 0
      %s414 = sadd.s32 %s413, 1
      %s415 = scalar_select %p412, %s413, %s414
      %p418 = pneg %p412
      %p419 = scmp.eq.s32.totalorder %s26, 3
      %p420 = por %p418, %p419
      %p421 = scmp.ne.s32.totalorder %s413, %s416
      %p422 = scmp.eq.s32.totalorder %s26, 0
      %p423 = por %p421, %p422
      %p424 = scmp.ne.s32.totalorder %s413, %s416
      %p425 = scmp.eq.s32.totalorder %s31, 3
      %p426 = por %p424, %p425
      %p427 = scmp.ne.s32.totalorder %s416, %s417
      %p428 = scmp.eq.s32.totalorder %s31, 0
      %p429 = por %p427, %p428
      %p430 = scmp.ne.s32.totalorder %s416, %s417
      %p431 = scmp.eq.s32.totalorder %s32, 3
      %p432 = por %p430, %p431
      %p434 = scmp.ne.s32.totalorder %s417, %s433
      %p435 = scmp.eq.s32.totalorder %s32, 0
      %p436 = por %p434, %p435
      %p437 = scmp.le.s32.totalorder 1, %s26
      %p438 = scmp.lt.s32.totalorder %s26, 5
      %p439 = pnand %p437, %p438
      %p440 = pneg %p439
      // Predicated region
      $region9: #{inter_frame_attention.3} parent=5 // pred_check
        _
      $region10: #{inter_frame_attention.3} parent=5 // pred_check_branch
        %442 = sbr.rel (%p439) target = $region12
      $region11: #{inter_frame_attention.3} parent=5 // pred_region
        %s443 = ssub.s32 %s26, 1
        // Predicated region
        $region13: #{inter_frame_attention.3} parent=11 // pred_check
          %p444 = pneg %p125
        $region14: #{inter_frame_attention.3} parent=11 // pred_check_branch
          %446 = sbr.rel (%p444) target = $region16
        $region15: #{inter_frame_attention.3} parent=11 // pred_region
          _
        $region16: #{inter_frame_attention.3} parent=11 // pred_fallthru
          _
        // Predicated region
        $region17: #{inter_frame_attention.3} parent=11 // pred_check
          %p447 = pneg %p146
        $region18: #{inter_frame_attention.3} parent=11 // pred_check_branch
          %449 = sbr.rel (%p447) target = $region20
        $region19: #{inter_frame_attention.3} parent=11 // pred_region
          _
        $region20: #{inter_frame_attention.3} parent=11 // pred_fallthru
          _
        // Predicated region
        $region21: #{inter_frame_attention.3} parent=11 // pred_check
          %p450 = pneg %p167
        $region22: #{inter_frame_attention.3} parent=11 // pred_check_branch
          %452 = sbr.rel (%p450) target = $region24
        $region23: #{inter_frame_attention.3} parent=11 // pred_region
          _
        $region24: #{inter_frame_attention.3} parent=11 // pred_fallthru
          _
        // Predicated region
        $region25: #{inter_frame_attention.3} parent=11 // pred_check
          %p453 = pneg %p188
        $region26: #{inter_frame_attention.3} parent=11 // pred_check_branch
          %455 = sbr.rel (%p453) target = $region28
        $region27: #{inter_frame_attention.3} parent=11 // pred_region
          _
        $region28: #{inter_frame_attention.3} parent=11 // pred_fallthru
          _
        // Predicated region
        $region29: #{inter_frame_attention.3} parent=11 // pred_check
          %p456 = pneg %p209
        $region30: #{inter_frame_attention.3} parent=11 // pred_check_branch
          %458 = sbr.rel (%p456) target = $region32
        $region31: #{inter_frame_attention.3} parent=11 // pred_region
          _
        $region32: #{inter_frame_attention.3} parent=11 // pred_fallthru
          _
        // Predicated region
        $region33: #{inter_frame_attention.3} parent=11 // pred_check
          %p459 = pneg %p230
        $region34: #{inter_frame_attention.3} parent=11 // pred_check_branch
          %461 = sbr.rel (%p459) target = $region36
        $region35: #{inter_frame_attention.3} parent=11 // pred_region
          _
        $region36: #{inter_frame_attention.3} parent=11 // pred_fallthru
          _
        // Predicated region
        $region37: #{inter_frame_attention.3} parent=11 // pred_check
          %p462 = pneg %p251
        $region38: #{inter_frame_attention.3} parent=11 // pred_check_branch
          %464 = sbr.rel (%p462) target = $region40
        $region39: #{inter_frame_attention.3} parent=11 // pred_region
          _
        $region40: #{inter_frame_attention.3} parent=11 // pred_fallthru
          _
        // Predicated region
        $region41: #{inter_frame_attention.3} parent=11 // pred_check
          %p465 = pneg %p272
        $region42: #{inter_frame_attention.3} parent=11 // pred_check_branch
          %467 = sbr.rel (%p465) target = $region44
        $region43: #{inter_frame_attention.3} parent=11 // pred_region
          _
        $region44: #{inter_frame_attention.3} parent=11 // pred_fallthru
          _
        // Predicated region
        $region45: #{inter_frame_attention.3} parent=11 // pred_check
          %p468 = pneg %p293
        $region46: #{inter_frame_attention.3} parent=11 // pred_check_branch
          %470 = sbr.rel (%p468) target = $region48
        $region47: #{inter_frame_attention.3} parent=11 // pred_region
          _
        $region48: #{inter_frame_attention.3} parent=11 // pred_fallthru
          _
        // Predicated region
        $region49: #{inter_frame_attention.3} parent=11 // pred_check
          %p471 = pneg %p314
        $region50: #{inter_frame_attention.3} parent=11 // pred_check_branch
          %473 = sbr.rel (%p471) target = $region52
        $region51: #{inter_frame_attention.3} parent=11 // pred_region
          _
        $region52: #{inter_frame_attention.3} parent=11 // pred_fallthru
          _
        // Predicated region
        $region53: #{inter_frame_attention.3} parent=11 // pred_check
          %p474 = pneg %p335
        $region54: #{inter_frame_attention.3} parent=11 // pred_check_branch
          %476 = sbr.rel (%p474) target = $region56
        $region55: #{inter_frame_attention.3} parent=11 // pred_region
          _
        $region56: #{inter_frame_attention.3} parent=11 // pred_fallthru
          _
        // Predicated region
        $region57: #{inter_frame_attention.3} parent=11 // pred_check
          %p477 = pneg %p356
        $region58: #{inter_frame_attention.3} parent=11 // pred_check_branch
          %479 = sbr.rel (%p477) target = $region60
        $region59: #{inter_frame_attention.3} parent=11 // pred_region
          _
        $region60: #{inter_frame_attention.3} parent=11 // pred_fallthru
          _
        // Predicated region
        $region61: #{inter_frame_attention.3} parent=11 // pred_check
          %p480 = pneg %p377
        $region62: #{inter_frame_attention.3} parent=11 // pred_check_branch
          %482 = sbr.rel (%p480) target = $region64
        $region63: #{inter_frame_attention.3} parent=11 // pred_region
          _
        $region64: #{inter_frame_attention.3} parent=11 // pred_fallthru
          _
      $region12: #{inter_frame_attention.3} parent=5 // pred_fallthru
        _
      %p483 = scmp.lt.s32.totalorder %s26, 4
      // Predicated region
      $region65: #{inter_frame_attention.3} parent=5 // pred_check
        %p484 = pneg %p483
      $region66: #{inter_frame_attention.3} parent=5 // pred_check_branch
        %486 = sbr.rel (%p484) target = $region68
      $region67: #{inter_frame_attention.3} parent=5 // pred_region
        // Predicated region
        $region69: #{inter_frame_attention.3} parent=67 // pred_check
          %p487 = pneg %p46
        $region70: #{inter_frame_attention.3} parent=67 // pred_check_branch
          %489 = sbr.rel (%p487) target = $region72
        $region71: #{inter_frame_attention.3} parent=67 // pred_region
          %p490 = scmp.lt.s32.totalorder %s26, 3
          %s491 = scalar_select %p490, %s26, 3
          %s492 = smul.addr %s491, 8
          %s493 = smul.addr %s492, 8
          %s494 = scalar_lea.vmem %s0, %s493
        $region72: #{inter_frame_attention.3} parent=67 // pred_fallthru
          _
        // Predicated region
        $region73: #{inter_frame_attention.3} parent=67 // pred_check
          %p495 = pneg %p98
        $region74: #{inter_frame_attention.3} parent=67 // pred_check_branch
          %497 = sbr.rel (%p495) target = $region76
        $region75: #{inter_frame_attention.3} parent=67 // pred_region
          %s498 = sadd.s32 %s26, 2
          %p499 = scmp.lt.s32.totalorder %s498, 0
          %s500 = ssub.s32 0, %s498
          %s501 = scalar_select %p499, %s500, %s498
          %s502 = sand.u32 %s501, 3
          %s503 = ssub.s32 0, %s502
          %s504 = scalar_select %p499, %s503, %s502
          %p505 = scmp.ne.s32.totalorder %s504, 0
          %p506 = scmp.lt.s32.totalorder %s504, 0
          %p507 = pnand %p506, %p505
          %p508 = pneg %p507
          %s509 = sadd.s32 %s504, 4
          %s510 = scalar_select %p508, %s509, %s504
          %p511 = scmp.lt.s32.totalorder %s510, 3
          %s512 = scalar_select %p511, %s510, 3
          %s513 = smul.addr %s512, 8
          %s514 = smul.addr %s513, 8
          %s515 = scalar_lea.vmem %s1, %s514
          %s516 = sadd.s32 %s26, 2
          %p517 = scmp.lt.s32.totalorder %s516, 0
          %s518 = ssub.s32 0, %s516
          %s519 = scalar_select %p517, %s518, %s516
          %s520 = sand.u32 %s519, 3
          %s521 = ssub.s32 0, %s520
          %s522 = scalar_select %p517, %s521, %s520
          %p523 = scmp.ne.s32.totalorder %s522, 0
          %p524 = scmp.lt.s32.totalorder %s522, 0
          %p525 = pnand %p524, %p523
          %p526 = pneg %p525
          %s527 = sadd.s32 %s522, 4
          %s528 = scalar_select %p526, %s527, %s522
        $region76: #{inter_frame_attention.3} parent=67 // pred_fallthru
          _
      $region68: #{inter_frame_attention.3} parent=5 // pred_fallthru
        _
      %p529 = scmp.le.s32.totalorder 1, %s26
      %p530 = scmp.lt.s32.totalorder %s26, 5
      %p531 = pnand %p529, %p530
      %p532 = pneg %p531
      // Predicated region
      $region77: #{inter_frame_attention.3} parent=5 // pred_check
        _
      $region78: #{inter_frame_attention.3} parent=5 // pred_check_branch
        %534 = sbr.rel (%p531) target = $region80
      $region79: #{inter_frame_attention.3} parent=5 // pred_region
        %s535 = ssub.s32 %s26, 1
        %p536 = scmp.lt.s32.totalorder %s31, 3
        %s537 = scalar_select %p536, %s31, 3
        %s538 = smul.addr %s537, 8
        %s539 = smul.addr %s538, 8
        %s540 = scalar_lea.vmem %s0, %s539
        %p541 = pneg %p52
        %p542 = pneg %p49
        %s543 = sadd.s32 %s31, 2
        %p544 = scmp.lt.s32.totalorder %s543, 0
        %s545 = ssub.s32 0, %s543
        %s546 = scalar_select %p544, %s545, %s543
        %s547 = sand.u32 %s546, 3
        %s548 = ssub.s32 0, %s547
        %s549 = scalar_select %p544, %s548, %s547
        %p550 = scmp.ne.s32.totalorder %s549, 0
        %p551 = scmp.lt.s32.totalorder %s549, 0
        %p552 = pnand %p551, %p550
        %p553 = pneg %p552
        %s554 = sadd.s32 %s549, 4
        %s555 = scalar_select %p553, %s554, %s549
        %p556 = scmp.lt.s32.totalorder %s555, 3
        %s557 = scalar_select %p556, %s555, 3
        %s558 = smul.addr %s557, 8
        %s559 = smul.addr %s558, 8
        %s560 = scalar_lea.vmem %s1, %s559
        %p561 = pneg %p104
        %p562 = pneg %p101
        %p563 = pneg %p125
        %p564 = pneg %p122
        %p565 = pneg %p146
        %p566 = pneg %p143
        %p567 = pneg %p167
        %p568 = pneg %p164
        %p569 = pneg %p188
        %p570 = pneg %p185
        %p571 = pneg %p209
        %p572 = pneg %p206
        %p573 = pneg %p230
        %p574 = pneg %p227
        %p575 = pneg %p251
        %p576 = pneg %p248
        %p577 = pneg %p272
        %p578 = pneg %p269
        %p579 = pneg %p293
        %p580 = pneg %p290
        %p581 = pneg %p314
        %p582 = pneg %p311
        %p583 = pneg %p335
        %p584 = pneg %p332
        %p585 = pneg %p356
        %p586 = pneg %p353
        %p587 = pneg %p377
        %p588 = pneg %p374
        %p589 = pneg %p403
        %p590 = pneg %p400
        %p591 = scmp.lt.s32.totalorder %s31, 3
        %s592 = scalar_select %p591, %s31, 3
        %s593 = smul.addr %s592, 8
        %s594 = smul.addr %s593, 8
        %s595 = scalar_lea.vmem %s15, %s594
        %p596 = pneg %p429
        %p597 = pneg %p426
        %s598 = sand.u32 %s416, 1
        %s599 = scalar_lea.sflag [#allocation3], %s598
        %s600 = sand.u32 %s416, 1
        %s601 = smul.addr %s600, 64
        %s602 = scalar_lea.vmem [#allocation2], %s601
        %p603 = scmp.lt.s32.totalorder %s31, 3
        %s604 = scalar_select %p603, %s31, 3
        %s605 = smul.addr %s604, 8
        %s606 = smul.addr %s605, 8
        %s607 = scalar_lea.vmem %s0, %s606
        %s608 = sadd.s32 %s31, 2
        %p609 = scmp.lt.s32.totalorder %s608, 0
        %s610 = ssub.s32 0, %s608
        %s611 = scalar_select %p609, %s610, %s608
        %s612 = sand.u32 %s611, 3
        %s613 = ssub.s32 0, %s612
        %s614 = scalar_select %p609, %s613, %s612
        %p615 = scmp.ne.s32.totalorder %s614, 0
        %p616 = scmp.lt.s32.totalorder %s614, 0
        %p617 = pnand %p616, %p615
        %p618 = pneg %p617
        %s619 = sadd.s32 %s614, 4
        %s620 = scalar_select %p618, %s619, %s614
        %p621 = scmp.lt.s32.totalorder %s620, 3
        %s622 = scalar_select %p621, %s620, 3
        %s623 = smul.addr %s622, 8
        %s624 = smul.addr %s623, 8
        %s625 = scalar_lea.vmem %s1, %s624
        %s626 = sadd.s32 %s31, 2
        %p627 = scmp.lt.s32.totalorder %s626, 0
        %s628 = ssub.s32 0, %s626
        %s629 = scalar_select %p627, %s628, %s626
        %s630 = sand.u32 %s629, 3
        %s631 = ssub.s32 0, %s630
        %s632 = scalar_select %p627, %s631, %s630
        %p633 = scmp.ne.s32.totalorder %s632, 0
        %p634 = scmp.lt.s32.totalorder %s632, 0
        %p635 = pnand %p634, %p633
        %p636 = pneg %p635
        %s637 = sadd.s32 %s632, 4
        %s638 = scalar_select %p636, %s637, %s632
        %p639 = scmp.lt.s32.totalorder %s31, 3
        %s640 = scalar_select %p639, %s31, 3
        %s641 = smul.addr %s640, 8
        %s642 = smul.addr %s641, 8
        %s643 = scalar_lea.vmem %s15, %s642
        %v645 = vld [vmem:[%s607] sm:$0xff]
        %v646 = vld [vmem:[%s607 + $0x8] sm:$0xff]
        %v647 = vld [vmem:[%s607 + $0x10] sm:$0xff]
        %v648 = vld [vmem:[%s607 + $0x18] sm:$0xff]
        %v649 = vld [vmem:[%s607 + $0x20] sm:$0xff]
        %v650 = vld [vmem:[%s607 + $0x28] sm:$0xff]
        %v651 = vld [vmem:[%s607 + $0x30] sm:$0xff]
        %v652 = vld [vmem:[%s607 + $0x38] sm:$0xff]
        %v653 = vld [vmem:[%s625] sm:$0xff]
        %v654 = vld [vmem:[%s625 + $0x8] sm:$0xff]
        %v655 = vld [vmem:[%s625 + $0x10] sm:$0xff]
        %v656 = vld [vmem:[%s625 + $0x18] sm:$0xff]
        %v657 = vld [vmem:[%s625 + $0x20] sm:$0xff]
        %v658 = vld [vmem:[%s625 + $0x28] sm:$0xff]
        %v659 = vld [vmem:[%s625 + $0x30] sm:$0xff]
        %v660 = vld [vmem:[%s625 + $0x38] sm:$0xff]
        %v661 = vld [vmem:[%s3] sm:$0x1]
        %v662 = vld [vmem:[%s4] sm:$0x1]
        %663 = vadd.xlane.f32.xlu0 %v645
        %v664 = vpop.xlane.xlu0 %663
        %665 = vadd.xlane.f32.xlu0 %v646
        %v666 = vpop.xlane.xlu0 %665
        %667 = vadd.xlane.f32.xlu0 %v647
        %v668 = vpop.xlane.xlu0 %667
        %669 = vadd.xlane.f32.xlu0 %v648
        %v670 = vpop.xlane.xlu0 %669
        %671 = vadd.xlane.f32.xlu0 %v649
        %v672 = vpop.xlane.xlu0 %671
        %673 = vadd.xlane.f32.xlu0 %v650
        %v674 = vpop.xlane.xlu0 %673
        %675 = vadd.xlane.f32.xlu0 %v651
        %v676 = vpop.xlane.xlu0 %675
        %677 = vadd.xlane.f32.xlu0 %v652
        %v678 = vpop.xlane.xlu0 %677
        %v679 = vrcp.pop 128.0
        %v680 = vmul.f32 %v664, %v679
        %v681 = vmul.f32 %v666, %v679
        %v682 = vmul.f32 %v668, %v679
        %v683 = vmul.f32 %v670, %v679
        %v684 = vmul.f32 %v672, %v679
        %v685 = vmul.f32 %v674, %v679
        %v686 = vmul.f32 %v676, %v679
        %v687 = vmul.f32 %v678, %v679
        %v688 = vsub.f32 %v645, %v680
        %v689 = vsub.f32 %v646, %v681
        %v690 = vsub.f32 %v647, %v682
        %v691 = vsub.f32 %v648, %v683
        %v692 = vsub.f32 %v649, %v684
        %v693 = vsub.f32 %v650, %v685
        %v694 = vsub.f32 %v651, %v686
        %v695 = vsub.f32 %v652, %v687
        %v696 = vmul.f32 %v688, %v688
        %v697 = vmul.f32 %v689, %v689
        %v698 = vmul.f32 %v690, %v690
        %v699 = vmul.f32 %v691, %v691
        %v700 = vmul.f32 %v692, %v692
        %v701 = vmul.f32 %v693, %v693
        %v702 = vmul.f32 %v694, %v694
        %v703 = vmul.f32 %v695, %v695
        %704 = vadd.xlane.f32.xlu0 %v696
        %v705 = vpop.xlane.xlu0 %704
        %706 = vadd.xlane.f32.xlu0 %v697
        %v707 = vpop.xlane.xlu0 %706
        %708 = vadd.xlane.f32.xlu0 %v698
        %v709 = vpop.xlane.xlu0 %708
        %710 = vadd.xlane.f32.xlu0 %v699
        %v711 = vpop.xlane.xlu0 %710
        %712 = vadd.xlane.f32.xlu0 %v700
        %v713 = vpop.xlane.xlu0 %712
        %714 = vadd.xlane.f32.xlu0 %v701
        %v715 = vpop.xlane.xlu0 %714
        %716 = vadd.xlane.f32.xlu0 %v702
        %v717 = vpop.xlane.xlu0 %716
        %718 = vadd.xlane.f32.xlu0 %v703
        %v719 = vpop.xlane.xlu0 %718
        %v720 = vmul.f32 %v705, %v679
        %v721 = vmul.f32 %v707, %v679
        %v722 = vmul.f32 %v709, %v679
        %v723 = vmul.f32 %v711, %v679
        %v724 = vmul.f32 %v713, %v679
        %v725 = vmul.f32 %v715, %v679
        %v726 = vmul.f32 %v717, %v679
        %v727 = vmul.f32 %v719, %v679
        %v728 = vadd.f32 %v720, 1e-05
        %v729 = vadd.f32 %v721, 1e-05
        %v730 = vadd.f32 %v722, 1e-05
        %v731 = vadd.f32 %v723, 1e-05
        %v732 = vadd.f32 %v724, 1e-05
        %v733 = vadd.f32 %v725, 1e-05
        %v734 = vadd.f32 %v726, 1e-05
        %v735 = vadd.f32 %v727, 1e-05
        %v736 = vrsqrt.pop %v728
        %v737 = vrsqrt.pop %v729
        %v738 = vrsqrt.pop %v730
        %v739 = vrsqrt.pop %v731
        %v740 = vrsqrt.pop %v732
        %v741 = vrsqrt.pop %v733
        %v742 = vrsqrt.pop %v734
        %v743 = vrsqrt.pop %v735
        %v744 = vmul.f32 %v688, %v736
        %v745 = vmul.f32 %v689, %v737
        %v746 = vmul.f32 %v690, %v738
        %v747 = vmul.f32 %v691, %v739
        %v748 = vmul.f32 %v692, %v740
        %v749 = vmul.f32 %v693, %v741
        %v750 = vmul.f32 %v694, %v742
        %v751 = vmul.f32 %v695, %v743
        %v753 = vlaneseq
        %v754 = vshrl.u32 %v753, 7
        %v755 = vsub.s32 0, %v754
        %v756 = vrot.slane %v661, %v755
        %v758 = vmul.f32 %v744, %v756
        %v759 = vmul.f32 %v745, %v756
        %v760 = vmul.f32 %v746, %v756
        %v761 = vmul.f32 %v747, %v756
        %v762 = vmul.f32 %v748, %v756
        %v763 = vmul.f32 %v749, %v756
        %v764 = vmul.f32 %v750, %v756
        %v765 = vmul.f32 %v751, %v756
        %v767 = vlaneseq
        %v768 = vshrl.u32 %v767, 7
        %v769 = vsub.s32 0, %v768
        %v770 = vrot.slane %v662, %v769
        %v772 = vadd.f32 %v758, %v770
        %v773 = vadd.f32 %v759, %v770
        %v774 = vadd.f32 %v760, %v770
        %v775 = vadd.f32 %v761, %v770
        %v776 = vadd.f32 %v762, %v770
        %v777 = vadd.f32 %v763, %v770
        %v778 = vadd.f32 %v764, %v770
        %v779 = vadd.f32 %v765, %v770
        %780 = vadd.xlane.f32.xlu0 %v653
        %v781 = vpop.xlane.xlu0 %780
        %782 = vadd.xlane.f32.xlu0 %v654
        %v783 = vpop.xlane.xlu0 %782
        %784 = vadd.xlane.f32.xlu0 %v655
        %v785 = vpop.xlane.xlu0 %784
        %786 = vadd.xlane.f32.xlu0 %v656
        %v787 = vpop.xlane.xlu0 %786
        %788 = vadd.xlane.f32.xlu0 %v657
        %v789 = vpop.xlane.xlu0 %788
        %790 = vadd.xlane.f32.xlu0 %v658
        %v791 = vpop.xlane.xlu0 %790
        %792 = vadd.xlane.f32.xlu0 %v659
        %v793 = vpop.xlane.xlu0 %792
        %794 = vadd.xlane.f32.xlu0 %v660
        %v795 = vpop.xlane.xlu0 %794
        %v796 = vmul.f32 %v781, %v679
        %v797 = vmul.f32 %v783, %v679
        %v798 = vmul.f32 %v785, %v679
        %v799 = vmul.f32 %v787, %v679
        %v800 = vmul.f32 %v789, %v679
        %v801 = vmul.f32 %v791, %v679
        %v802 = vmul.f32 %v793, %v679
        %v803 = vmul.f32 %v795, %v679
        %v804 = vsub.f32 %v653, %v796
        %v805 = vsub.f32 %v654, %v797
        %v806 = vsub.f32 %v655, %v798
        %v807 = vsub.f32 %v656, %v799
        %v808 = vsub.f32 %v657, %v800
        %v809 = vsub.f32 %v658, %v801
        %v810 = vsub.f32 %v659, %v802
        %v811 = vsub.f32 %v660, %v803
        %v812 = vmul.f32 %v804, %v804
        %v813 = vmul.f32 %v805, %v805
        %v814 = vmul.f32 %v806, %v806
        %v815 = vmul.f32 %v807, %v807
        %v816 = vmul.f32 %v808, %v808
        %v817 = vmul.f32 %v809, %v809
        %v818 = vmul.f32 %v810, %v810
        %v819 = vmul.f32 %v811, %v811
        %820 = vadd.xlane.f32.xlu0 %v812
        %v821 = vpop.xlane.xlu0 %820
        %822 = vadd.xlane.f32.xlu0 %v813
        %v823 = vpop.xlane.xlu0 %822
        %824 = vadd.xlane.f32.xlu0 %v814
        %v825 = vpop.xlane.xlu0 %824
        %826 = vadd.xlane.f32.xlu0 %v815
        %v827 = vpop.xlane.xlu0 %826
        %828 = vadd.xlane.f32.xlu0 %v816
        %v829 = vpop.xlane.xlu0 %828
        %830 = vadd.xlane.f32.xlu0 %v817
        %v831 = vpop.xlane.xlu0 %830
        %832 = vadd.xlane.f32.xlu0 %v818
        %v833 = vpop.xlane.xlu0 %832
        %834 = vadd.xlane.f32.xlu0 %v819
        %v835 = vpop.xlane.xlu0 %834
        %v836 = vmul.f32 %v821, %v679
        %v837 = vmul.f32 %v823, %v679
        %v838 = vmul.f32 %v825, %v679
        %v839 = vmul.f32 %v827, %v679
        %v840 = vmul.f32 %v829, %v679
        %v841 = vmul.f32 %v831, %v679
        %v842 = vmul.f32 %v833, %v679
        %v843 = vmul.f32 %v835, %v679
        %v844 = vadd.f32 %v836, 1e-05
        %v845 = vadd.f32 %v837, 1e-05
        %v846 = vadd.f32 %v838, 1e-05
        %v847 = vadd.f32 %v839, 1e-05
        %v848 = vadd.f32 %v840, 1e-05
        %v849 = vadd.f32 %v841, 1e-05
        %v850 = vadd.f32 %v842, 1e-05
        %v851 = vadd.f32 %v843, 1e-05
        %v852 = vrsqrt.pop %v844
        %v853 = vrsqrt.pop %v845
        %v854 = vrsqrt.pop %v846
        %v855 = vrsqrt.pop %v847
        %v856 = vrsqrt.pop %v848
        %v857 = vrsqrt.pop %v849
        %v858 = vrsqrt.pop %v850
        %v859 = vrsqrt.pop %v851
        %v860 = vmul.f32 %v804, %v852
        %v861 = vmul.f32 %v805, %v853
        %v862 = vmul.f32 %v806, %v854
        %v863 = vmul.f32 %v807, %v855
        %v864 = vmul.f32 %v808, %v856
        %v865 = vmul.f32 %v809, %v857
        %v866 = vmul.f32 %v810, %v858
        %v867 = vmul.f32 %v811, %v859
        %v868 = vmul.f32 %v860, %v756
        %v869 = vmul.f32 %v861, %v756
        %v870 = vmul.f32 %v862, %v756
        %v871 = vmul.f32 %v863, %v756
        %v872 = vmul.f32 %v864, %v756
        %v873 = vmul.f32 %v865, %v756
        %v874 = vmul.f32 %v866, %v756
        %v875 = vmul.f32 %v867, %v756
        %v876 = vadd.f32 %v868, %v770
        %v877 = vadd.f32 %v869, %v770
        %v878 = vadd.f32 %v870, %v770
        %v879 = vadd.f32 %v871, %v770
        %v880 = vadd.f32 %v872, %v770
        %v881 = vadd.f32 %v873, %v770
        %v882 = vadd.f32 %v874, %v770
        %v883 = vadd.f32 %v875, %v770
        %v884 = vpack.c.bf16 %v773, %v772
        %v885 = vpack.c.bf16 %v775, %v774
        %v886 = vpack.c.bf16 %v777, %v776
        %v887 = vpack.c.bf16 %v779, %v778
        %v888 = vld [vmem:[%s5] sm:$0xf]
        %v889 = vld [vmem:[%s5 + $0x4] sm:$0xf]
        %v890 = vld [vmem:[%s5 + $0x8] sm:$0xf]
        %v891 = vld [vmem:[%s5 + $0xc] sm:$0xf]
        %v892 = vld [vmem:[%s5 + $0x10] sm:$0xf]
        %v893 = vld [vmem:[%s5 + $0x14] sm:$0xf]
        %v894 = vld [vmem:[%s5 + $0x18] sm:$0xf]
        %v895 = vld [vmem:[%s5 + $0x1c] sm:$0xf]
        %v896 = vld [vmem:[%s5 + $0x20] sm:$0xf]
        %v897 = vld [vmem:[%s5 + $0x24] sm:$0xf]
        %v898 = vld [vmem:[%s5 + $0x28] sm:$0xf]
        %v899 = vld [vmem:[%s5 + $0x2c] sm:$0xf]
        %v900 = vld [vmem:[%s5 + $0x30] sm:$0xf]
        %v901 = vld [vmem:[%s5 + $0x34] sm:$0xf]
        %v902 = vld [vmem:[%s5 + $0x38] sm:$0xf]
        %v903 = vld [vmem:[%s5 + $0x3c] sm:$0xf]
        %v904 = vld [vmem:[%s6] sm:$0x1]
        %v906 = vlaneseq
        %v907 = vshrl.u32 %v906, 7
        %v908 = vsub.s32 0, %v907
        %v909 = vrot.slane %v904, %v908
        %v927 = vunpack.c.l.b16 %v888
        %v928 = vunpack.c.l.b16 %v889
        %v929 = vunpack.c.l.b16 %v890
        %v930 = vunpack.c.l.b16 %v891
        %v931 = vunpack.c.l.b16 %v892
        %v932 = vunpack.c.l.b16 %v893
        %v933 = vunpack.c.l.b16 %v894
        %v934 = vunpack.c.l.b16 %v895
        %v935 = vunpack.c.l.b16 %v896
        %v936 = vunpack.c.l.b16 %v897
        %v937 = vunpack.c.l.b16 %v898
        %v938 = vunpack.c.l.b16 %v899
        %v939 = vunpack.c.l.b16 %v900
        %v940 = vunpack.c.l.b16 %v901
        %v941 = vunpack.c.l.b16 %v902
        %v942 = vunpack.c.l.b16 %v903
        %v943 = vpack.c.b16 %v928, %v927
        %v944 = vpack.c.b16 %v930, %v929
        %v945 = vpack.c.b16 %v932, %v931
        %v946 = vpack.c.b16 %v934, %v933
        %v947 = vpack.c.b16 %v936, %v935
        %v948 = vpack.c.b16 %v938, %v937
        %v949 = vpack.c.b16 %v940, %v939
        %v950 = vpack.c.b16 %v942, %v941
        %959 = vmatprep.subr.bf16.mxu0 0
        %960 = vmatpush1.bf16.msra.mxu0 %v943
        %961 = vmatprep.subr.bf16.mxu0 0
        %962 = vmatpush1.bf16.msra.mxu0 %v944
        %963 = vmatprep.subr.bf16.mxu0 0
        %964 = vmatpush1.bf16.msra.mxu0 %v945
        %965 = vmatprep.subr.bf16.mxu0 0
        %966 = vmatpush1.bf16.msra.mxu0 %v946
        %967 = vmatprep.subr.bf16.mxu0 0
        %968 = vmatpush1.bf16.msra.mxu0 %v947
        %969 = vmatprep.subr.bf16.mxu0 0
        %970 = vmatpush1.bf16.msra.mxu0 %v948
        %971 = vmatprep.subr.bf16.mxu0 0
        %972 = vmatpush1.bf16.msra.mxu0 %v949
        %973 = vmatprep.subr.bf16.mxu0 0
        %974 = vmatpush1.bf16.msra.mxu0 %v950
        %975 = vmatprep.subr.bf16.mxu0 0
        %976 = vmatpush1.bf16.msra.mxu0 0
        %977 = vmatprep.subr.bf16.mxu0 0
        %978 = vmatpush1.bf16.msra.mxu0 0
        %979 = vmatprep.subr.bf16.mxu0 0
        %980 = vmatpush1.bf16.msra.mxu0 0
        %981 = vmatprep.subr.bf16.mxu0 0
        %982 = vmatpush1.bf16.msra.mxu0 0
        %983 = vmatprep.subr.bf16.mxu0 0
        %984 = vmatpush1.bf16.msra.mxu0 0
        %985 = vmatprep.subr.bf16.mxu0 0
        %986 = vmatpush1.bf16.msra.mxu0 0
        %987 = vmatprep.subr.bf16.mxu0 0
        %988 = vmatpush1.bf16.msra.mxu0 0
        %989 = vmatprep.subr.bf16.mxu0 0
        %990 = vmatpush1.bf16.msra.mxu0 0
        %991 = vmatprep.mubr.bf16.mxu0 0
        %992 = vmatmul.mubr.bf16.gmra.mrb[0].mxu0 %v884
        %v993 = vpop.f32.mrb[0].mxu0
        %v994 = vadd.f32 %v909, %v993
        %v995 = vpop.f32.mrb[0].mxu0
        %v996 = vpop.f32.mrb[0].mxu0
        %v997 = vadd.f32 %v909, %v996
        %v998 = vpop.f32.mrb[0].mxu0
        %999 = vmatprep.mubr.bf16.mxu0 0
        %1000 = vmatmul.mubr.bf16.gmra.mrb[0].mxu0 %v885
        %v1001 = vpop.f32.mrb[0].mxu0
        %v1002 = vadd.f32 %v909, %v1001
        %v1003 = vpop.f32.mrb[0].mxu0
        %v1004 = vpop.f32.mrb[0].mxu0
        %v1005 = vadd.f32 %v909, %v1004
        %v1006 = vpop.f32.mrb[0].mxu0
        %1007 = vmatprep.mubr.bf16.mxu0 0
        %1008 = vmatmul.mubr.bf16.gmra.mrb[0].mxu0 %v886
        %v1009 = vpop.f32.mrb[0].mxu0
        %v1010 = vadd.f32 %v909, %v1009
        %v1011 = vpop.f32.mrb[0].mxu0
        %v1012 = vpop.f32.mrb[0].mxu0
        %v1013 = vadd.f32 %v909, %v1012
        %v1014 = vpop.f32.mrb[0].mxu0
        %1015 = vmatprep.mubr.bf16.mxu0 0
        %1016 = vmatmul.mubr.bf16.gmra.mrb[0].mxu0 %v887
        %v1017 = vpop.f32.mrb[0].mxu0
        %v1018 = vadd.f32 %v909, %v1017
        %v1019 = vpop.f32.mrb[0].mxu0
        %v1020 = vpop.f32.mrb[0].mxu0
        %v1021 = vadd.f32 %v909, %v1020
        %v1022 = vpop.f32.mrb[0].mxu0
        %1023 = vdwg.mxu0
        %v1024 = vpack.c.bf16 %v877, %v876
        %v1025 = vpack.c.bf16 %v879, %v878
        %v1026 = vpack.c.bf16 %v881, %v880
        %v1027 = vpack.c.bf16 %v883, %v882
        %v1028 = vld [vmem:[%s7] sm:$0xff]
        %v1029 = vld [vmem:[%s7 + $0x8] sm:$0xff]
        %v1030 = vld [vmem:[%s7 + $0x10] sm:$0xff]
        %v1031 = vld [vmem:[%s7 + $0x18] sm:$0xff]
        %v1032 = vld [vmem:[%s7 + $0x20] sm:$0xff]
        %v1033 = vld [vmem:[%s7 + $0x28] sm:$0xff]
        %v1034 = vld [vmem:[%s7 + $0x30] sm:$0xff]
        %v1035 = vld [vmem:[%s7 + $0x38] sm:$0xff]
        %v1036 = vld [vmem:[%s7 + $0x40] sm:$0xff]
        %v1037 = vld [vmem:[%s7 + $0x48] sm:$0xff]
        %v1038 = vld [vmem:[%s7 + $0x50] sm:$0xff]
        %v1039 = vld [vmem:[%s7 + $0x58] sm:$0xff]
        %v1040 = vld [vmem:[%s7 + $0x60] sm:$0xff]
        %v1041 = vld [vmem:[%s7 + $0x68] sm:$0xff]
        %v1042 = vld [vmem:[%s7 + $0x70] sm:$0xff]
        %v1043 = vld [vmem:[%s7 + $0x78] sm:$0xff]
        %v1044 = vld [vmem:[%s8] sm:$0x3]
        %v1046 = vlaneseq
        %v1047 = vshrl.u32 %v1046, 7
        %v1048 = vsub.s32 0, %v1047
        %v1049 = vrot.slane %v1044, %v1048
        %v1050 = vlaneseq
        %v1051 = vshrl.u32 %v1050, 7
        %v1052 = vsub.s32 1, %v1051
        %v1053 = vrot.slane %v1044, %v1052
        %v1072 = vunpack.c.l.b16 %v1028
        %v1073 = vunpack.c.h.b16 %v1028
        %v1074 = vunpack.c.l.b16 %v1029
        %v1075 = vunpack.c.h.b16 %v1029
        %v1076 = vunpack.c.l.b16 %v1030
        %v1077 = vunpack.c.h.b16 %v1030
        %v1078 = vunpack.c.l.b16 %v1031
        %v1079 = vunpack.c.h.b16 %v1031
        %v1080 = vunpack.c.l.b16 %v1032
        %v1081 = vunpack.c.h.b16 %v1032
        %v1082 = vunpack.c.l.b16 %v1033
        %v1083 = vunpack.c.h.b16 %v1033
        %v1084 = vunpack.c.l.b16 %v1034
        %v1085 = vunpack.c.h.b16 %v1034
        %v1086 = vunpack.c.l.b16 %v1035
        %v1087 = vunpack.c.h.b16 %v1035
        %v1088 = vunpack.c.l.b16 %v1036
        %v1089 = vunpack.c.h.b16 %v1036
        %v1090 = vunpack.c.l.b16 %v1037
        %v1091 = vunpack.c.h.b16 %v1037
        %v1092 = vunpack.c.l.b16 %v1038
        %v1093 = vunpack.c.h.b16 %v1038
        %v1094 = vunpack.c.l.b16 %v1039
        %v1095 = vunpack.c.h.b16 %v1039
        %v1096 = vunpack.c.l.b16 %v1040
        %v1097 = vunpack.c.h.b16 %v1040
        %v1098 = vunpack.c.l.b16 %v1041
        %v1099 = vunpack.c.h.b16 %v1041
        %v1100 = vunpack.c.l.b16 %v1042
        %v1101 = vunpack.c.h.b16 %v1042
        %v1102 = vunpack.c.l.b16 %v1043
        %v1103 = vunpack.c.h.b16 %v1043
        %v1104 = vpack.c.b16 %v1074, %v1072
        %v1105 = vpack.c.b16 %v1075, %v1073
        %v1106 = vpack.c.b16 %v1078, %v1076
        %v1107 = vpack.c.b16 %v1079, %v1077
        %v1108 = vpack.c.b16 %v1082, %v1080
        %v1109 = vpack.c.b16 %v1083, %v1081
        %v1110 = vpack.c.b16 %v1086, %v1084
        %v1111 = vpack.c.b16 %v1087, %v1085
        %v1112 = vpack.c.b16 %v1090, %v1088
        %v1113 = vpack.c.b16 %v1091, %v1089
        %v1114 = vpack.c.b16 %v1094, %v1092
        %v1115 = vpack.c.b16 %v1095, %v1093
        %v1116 = vpack.c.b16 %v1098, %v1096
        %v1117 = vpack.c.b16 %v1099, %v1097
        %v1118 = vpack.c.b16 %v1102, %v1100
        %v1119 = vpack.c.b16 %v1103, %v1101
        %1136 = vmatprep.subr.bf16.mxu0 %v1105
        %1137 = vmatpush1.bf16.msra.mxu0 %v1104
        %1138 = vmatprep.subr.bf16.mxu0 %v1107
        %1139 = vmatpush1.bf16.msra.mxu0 %v1106
        %1140 = vmatprep.subr.bf16.mxu0 %v1109
        %1141 = vmatpush1.bf16.msra.mxu0 %v1108
        %1142 = vmatprep.subr.bf16.mxu0 %v1111
        %1143 = vmatpush1.bf16.msra.mxu0 %v1110
        %1144 = vmatprep.subr.bf16.mxu0 %v1113
        %1145 = vmatpush1.bf16.msra.mxu0 %v1112
        %1146 = vmatprep.subr.bf16.mxu0 %v1115
        %1147 = vmatpush1.bf16.msra.mxu0 %v1114
        %1148 = vmatprep.subr.bf16.mxu0 %v1117
        %1149 = vmatpush1.bf16.msra.mxu0 %v1116
        %1150 = vmatprep.subr.bf16.mxu0 %v1119
        %1151 = vmatpush1.bf16.msra.mxu0 %v1118
        %1152 = vmatprep.subr.bf16.mxu0 0
        %1153 = vmatpush1.bf16.msra.mxu0 0
        %1154 = vmatprep.subr.bf16.mxu0 0
        %1155 = vmatpush1.bf16.msra.mxu0 0
        %1156 = vmatprep.subr.bf16.mxu0 0
        %1157 = vmatpush1.bf16.msra.mxu0 0
        %1158 = vmatprep.subr.bf16.mxu0 0
        %1159 = vmatpush1.bf16.msra.mxu0 0
        %1160 = vmatprep.subr.bf16.mxu0 0
        %1161 = vmatpush1.bf16.msra.mxu0 0
        %1162 = vmatprep.subr.bf16.mxu0 0
        %1163 = vmatpush1.bf16.msra.mxu0 0
        %1164 = vmatprep.subr.bf16.mxu0 0
        %1165 = vmatpush1.bf16.msra.mxu0 0
        %1166 = vmatprep.subr.bf16.mxu0 0
        %1167 = vmatpush1.bf16.msra.mxu0 0
        %1168 = vmatprep.mubr.bf16.mxu0 0
        %1169 = vmatmul.mubr.bf16.gmra.mrb[0].mxu0 %v1024
        %v1170 = vpop.f32.mrb[0].mxu0
        %v1171 = vadd.f32 %v1049, %v1170
        %v1172 = vpop.f32.mrb[0].mxu0
        %v1173 = vadd.f32 %v1053, %v1172
        %v1174 = vpop.f32.mrb[0].mxu0
        %v1175 = vadd.f32 %v1049, %v1174
        %v1176 = vpop.f32.mrb[0].mxu0
        %v1177 = vadd.f32 %v1053, %v1176
        %1178 = vmatprep.mubr.bf16.mxu0 0
        %1179 = vmatmul.mubr.bf16.gmra.mrb[0].mxu0 %v1025
        %v1180 = vpop.f32.mrb[0].mxu0
        %v1181 = vadd.f32 %v1049, %v1180
        %v1182 = vpop.f32.mrb[0].mxu0
        %v1183 = vadd.f32 %v1053, %v1182
        %v1184 = vpop.f32.mrb[0].mxu0
        %v1185 = vadd.f32 %v1049, %v1184
        %v1186 = vpop.f32.mrb[0].mxu0
        %v1187 = vadd.f32 %v1053, %v1186
        %1188 = vmatprep.mubr.bf16.mxu0 0
        %1189 = vmatmul.mubr.bf16.gmra.mrb[0].mxu0 %v1026
        %v1190 = vpop.f32.mrb[0].mxu0
        %v1191 = vadd.f32 %v1049, %v1190
        %v1192 = vpop.f32.mrb[0].mxu0
        %v1193 = vadd.f32 %v1053, %v1192
        %v1194 = vpop.f32.mrb[0].mxu0
        %v1195 = vadd.f32 %v1049, %v1194
        %v1196 = vpop.f32.mrb[0].mxu0
        %v1197 = vadd.f32 %v1053, %v1196
        %1198 = vmatprep.mubr.bf16.mxu0 0
        %1199 = vmatmul.mubr.bf16.gmra.mrb[0].mxu0 %v1027
        %v1200 = vpop.f32.mrb[0].mxu0
        %v1201 = vadd.f32 %v1049, %v1200
        %v1202 = vpop.f32.mrb[0].mxu0
        %v1203 = vadd.f32 %v1053, %v1202
        %v1204 = vpop.f32.mrb[0].mxu0
        %v1205 = vadd.f32 %v1049, %v1204
        %v1206 = vpop.f32.mrb[0].mxu0
        %v1207 = vadd.f32 %v1053, %v1206
        %1208 = vdwg.mxu0
        %v1209 = vld [vmem:[%s2] sm:$0xff]
        %v1210 = vld [vmem:[%s2 + $0x8] sm:$0xff]
        %v1211 = vld [vmem:[%s2 + $0x10] sm:$0xff]
        %v1212 = vld [vmem:[%s2 + $0x18] sm:$0xff]
        %v1213 = vld [vmem:[%s2 + $0x20] sm:$0xff]
        %v1214 = vld [vmem:[%s2 + $0x28] sm:$0xff]
        %v1215 = vld [vmem:[%s2 + $0x30] sm:$0xff]
        %v1216 = vld [vmem:[%s2 + $0x38] sm:$0xff]
        %v1217 = vld [vmem:[%s9] sm:$0x3]
        %1219 = vset.pattern.permute.xlu0 0
        %1220 = vperm.xlu0 %1219, %v1209
        %v1221 = vpop.permute.xlu0 %1220
        %1224 = vset.pattern.permute.xlu0 0
        %1225 = vperm.xlu0 %1224, %v1210
        %v1226 = vpop.permute.xlu0 %1225
        %1229 = vset.pattern.permute.xlu0 0
        %1230 = vperm.xlu0 %1229, %v1211
        %v1231 = vpop.permute.xlu0 %1230
        %1234 = vset.pattern.permute.xlu0 0
        %1235 = vperm.xlu0 %1234, %v1212
        %v1236 = vpop.permute.xlu0 %1235
        %1239 = vset.pattern.permute.xlu0 0
        %1240 = vperm.xlu0 %1239, %v1213
        %v1241 = vpop.permute.xlu0 %1240
        %1244 = vset.pattern.permute.xlu0 0
        %1245 = vperm.xlu0 %1244, %v1214
        %v1246 = vpop.permute.xlu0 %1245
        %1249 = vset.pattern.permute.xlu0 0
        %1250 = vperm.xlu0 %1249, %v1215
        %v1251 = vpop.permute.xlu0 %1250
        %1254 = vset.pattern.permute.xlu0 0
        %1255 = vperm.xlu0 %1254, %v1216
        %v1256 = vpop.permute.xlu0 %1255
        %v1258 = vlaneseq
        %v1259 = vshrl.u32 %v1258, 7
        %v1260 = vsub.s32 0, %v1259
        %v1261 = vrot.slane %v1217, %v1260
        %v1262 = vmul.f32 %v1221, %v1261
        %v1263 = vmul.f32 %v1226, %v1261
        %v1264 = vmul.f32 %v1231, %v1261
        %v1265 = vmul.f32 %v1236, %v1261
        %v1266 = vmul.f32 %v1241, %v1261
        %v1267 = vmul.f32 %v1246, %v1261
        %v1268 = vmul.f32 %v1251, %v1261
        %v1269 = vmul.f32 %v1256, %v1261
        %1270 = vset.pattern.permute.xlu0 1
        %1271 = vperm.xlu0 %1270, %v1209
        %v1272 = vpop.permute.xlu0 %1271
        %1274 = vset.pattern.permute.xlu0 1
        %1275 = vperm.xlu0 %1274, %v1210
        %v1276 = vpop.permute.xlu0 %1275
        %1278 = vset.pattern.permute.xlu0 1
        %1279 = vperm.xlu0 %1278, %v1211
        %v1280 = vpop.permute.xlu0 %1279
        %1282 = vset.pattern.permute.xlu0 1
        %1283 = vperm.xlu0 %1282, %v1212
        %v1284 = vpop.permute.xlu0 %1283
        %1286 = vset.pattern.permute.xlu0 1
        %1287 = vperm.xlu0 %1286, %v1213
        %v1288 = vpop.permute.xlu0 %1287
        %1290 = vset.pattern.permute.xlu0 1
        %1291 = vperm.xlu0 %1290, %v1214
        %v1292 = vpop.permute.xlu0 %1291
        %1294 = vset.pattern.permute.xlu0 1
        %1295 = vperm.xlu0 %1294, %v1215
        %v1296 = vpop.permute.xlu0 %1295
        %1298 = vset.pattern.permute.xlu0 1
        %1299 = vperm.xlu0 %1298, %v1216
        %v1300 = vpop.permute.xlu0 %1299
        %v1302 = vlaneseq
        %v1303 = vshrl.u32 %v1302, 7
        %v1304 = vsub.s32 1, %v1303
        %v1305 = vrot.slane %v1217, %v1304
        %v1306 = vmul.f32 %v1272, %v1305
        %v1307 = vmul.f32 %v1276, %v1305
        %v1308 = vmul.f32 %v1280, %v1305
        %v1309 = vmul.f32 %v1284, %v1305
        %v1310 = vmul.f32 %v1288, %v1305
        %v1311 = vmul.f32 %v1292, %v1305
        %v1312 = vmul.f32 %v1296, %v1305
        %v1313 = vmul.f32 %v1300, %v1305
        %v1314 = vadd.f32 %v1262, %v1306
        %v1315 = vadd.f32 %v1263, %v1307
        %v1316 = vadd.f32 %v1264, %v1308
        %v1317 = vadd.f32 %v1265, %v1309
        %v1318 = vadd.f32 %v1266, %v1310
        %v1319 = vadd.f32 %v1267, %v1311
        %v1320 = vadd.f32 %v1268, %v1312
        %v1321 = vadd.f32 %v1269, %v1313
        %v1322 = vld [vmem:[%s10] sm:$0x1]
        %v1324 = vlaneseq
        %v1325 = vshrl.u32 %v1324, 7
        %v1326 = vsub.s32 0, %v1325
        %v1327 = vrot.slane %v1322, %v1326
        %v1329 = vadd.f32 %v1314, %v1327
        %v1330 = vadd.f32 %v1315, %v1327
        %v1331 = vadd.f32 %v1316, %v1327
        %v1332 = vadd.f32 %v1317, %v1327
        %v1333 = vadd.f32 %v1318, %v1327
        %v1334 = vadd.f32 %v1319, %v1327
        %v1335 = vadd.f32 %v1320, %v1327
        %v1336 = vadd.f32 %v1321, %v1327
        %v1337 = vmul.f32 %v994, 0.25
        %v1338 = vmul.f32 %v997, 0.25
        %v1339 = vmul.f32 %v1002, 0.25
        %v1340 = vmul.f32 %v1005, 0.25
        %v1341 = vmul.f32 %v1010, 0.25
        %v1342 = vmul.f32 %v1013, 0.25
        %v1343 = vmul.f32 %v1018, 0.25
        %v1344 = vmul.f32 %v1021, 0.25
        %v1345 = vpack.c.bf16 %v1338, %v1337
        %v1346 = vpack.c.bf16 %v1340, %v1339
        %v1347 = vpack.c.bf16 %v1342, %v1341
        %v1348 = vpack.c.bf16 %v1344, %v1343
        %v1349 = vpack.c.bf16 %v1175, %v1171
        %v1350 = vpack.c.bf16 %v1185, %v1181
        %v1351 = vpack.c.bf16 %v1195, %v1191
        %v1352 = vpack.c.bf16 %v1205, %v1201
        %vm1353 = vcmask 130048
        %v1355 = vsel %vm1353, %v1345, 0
        %v1358 = vsel %vm1353, %v1346, 0
        %v1361 = vsel %vm1353, %v1347, 0
        %v1364 = vsel %vm1353, %v1348, 0
        %v1367 = vsel %vm1353, %v1349, 0
        %v1370 = vsel %vm1353, %v1350, 0
        %v1373 = vsel %vm1353, %v1351, 0
        %v1376 = vsel %vm1353, %v1352, 0
        %1378 = vmatprep.subr.bf16.mxu0 0
        %1379 = vmatpush1.bf16.xpose.msra.mxu0 %v1367
        %1380 = vmatprep.subr.bf16.mxu0 0
        %1381 = vmatpush1.bf16.xpose.msra.mxu0 %v1370
        %1382 = vmatprep.subr.bf16.mxu0 0
        %1383 = vmatpush1.bf16.xpose.msra.mxu0 %v1373
        %1384 = vmatprep.subr.bf16.mxu0 0
        %1385 = vmatpush1.bf16.xpose.msra.mxu0 %v1376
        %1386 = vmatprep.subr.bf16.mxu0 0
        %1387 = vmatpush1.bf16.xpose.msra.mxu0 0
        %1388 = vmatprep.subr.bf16.mxu0 0
        %1389 = vmatpush1.bf16.xpose.msra.mxu0 0
        %1390 = vmatprep.subr.bf16.mxu0 0
        %1391 = vmatpush1.bf16.xpose.msra.mxu0 0
        %1392 = vmatprep.subr.bf16.mxu0 0
        %1393 = vmatpush1.bf16.xpose.msra.mxu0 0
        %1394 = vmatprep.subr.bf16.mxu0 0
        %1395 = vmatpush1.bf16.xpose.msra.mxu0 0
        %1396 = vmatprep.subr.bf16.mxu0 0
        %1397 = vmatpush1.bf16.xpose.msra.mxu0 0
        %1398 = vmatprep.subr.bf16.mxu0 0
        %1399 = vmatpush1.bf16.xpose.msra.mxu0 0
        %1400 = vmatprep.subr.bf16.mxu0 0
        %1401 = vmatpush1.bf16.xpose.msra.mxu0 0
        %1402 = vmatprep.subr.bf16.mxu0 0
        %1403 = vmatpush1.bf16.xpose.msra.mxu0 0
        %1404 = vmatprep.subr.bf16.mxu0 0
        %1405 = vmatpush1.bf16.xpose.msra.mxu0 0
        %1406 = vmatprep.subr.bf16.mxu0 0
        %1407 = vmatpush1.bf16.xpose.msra.mxu0 0
        %1408 = vmatprep.subr.bf16.mxu0 0
        %1409 = vmatpush1.bf16.xpose.msra.mxu0 0
        %1410 = vmatprep.mubr.bf16.mxu0 0
        %1411 = vmatmul.mubr.bf16.gmra.mrb[0].mxu0 %v1355
        %v1412 = vpop.f32.mrb[0].mxu0
        %v1413 = vadd.f32 0.0, %v1412
        %v1414 = vpop.f32.mrb[0].mxu0
        %v1415 = vpop.f32.mrb[0].mxu0
        %v1416 = vadd.f32 0.0, %v1415
        %v1417 = vpop.f32.mrb[0].mxu0
        %1418 = vmatprep.mubr.bf16.mxu0 0
        %1419 = vmatmul.mubr.bf16.gmra.mrb[0].mxu0 %v1358
        %v1420 = vpop.f32.mrb[0].mxu0
        %v1421 = vadd.f32 0.0, %v1420
        %v1422 = vpop.f32.mrb[0].mxu0
        %v1423 = vpop.f32.mrb[0].mxu0
        %v1424 = vadd.f32 0.0, %v1423
        %v1425 = vpop.f32.mrb[0].mxu0
        %1426 = vmatprep.mubr.bf16.mxu0 0
        %1427 = vmatmul.mubr.bf16.gmra.mrb[0].mxu0 %v1361
        %v1428 = vpop.f32.mrb[0].mxu0
        %v1429 = vadd.f32 0.0, %v1428
        %v1430 = vpop.f32.mrb[0].mxu0
        %v1431 = vpop.f32.mrb[0].mxu0
        %v1432 = vadd.f32 0.0, %v1431
        %v1433 = vpop.f32.mrb[0].mxu0
        %1434 = vmatprep.mubr.bf16.mxu0 0
        %1435 = vmatmul.mubr.bf16.gmra.mrb[0].mxu0 %v1364
        %v1436 = vpop.f32.mrb[0].mxu0
        %v1437 = vadd.f32 0.0, %v1436
        %v1438 = vpop.f32.mrb[0].mxu0
        %v1439 = vpop.f32.mrb[0].mxu0
        %v1440 = vadd.f32 0.0, %v1439
        %v1441 = vpop.f32.mrb[0].mxu0
        %1442 = vdwg.mxu0
        %vm1443 = vcmask 523264
        %v1444 = vsel %vm1443, %v1413, -inf
        %1445 = vmax.xlane.f32.xlu0 %v1444
        %v1446 = vpop.xlane.xlu0 %1445
        %v1447 = vsel %vm1443, %v1416, -inf
        %1448 = vmax.xlane.f32.xlu0 %v1447
        %v1449 = vpop.xlane.xlu0 %1448
        %v1450 = vsel %vm1443, %v1421, -inf
        %1451 = vmax.xlane.f32.xlu0 %v1450
        %v1452 = vpop.xlane.xlu0 %1451
        %v1453 = vsel %vm1443, %v1424, -inf
        %1454 = vmax.xlane.f32.xlu0 %v1453
        %v1455 = vpop.xlane.xlu0 %1454
        %v1456 = vsel %vm1443, %v1429, -inf
        %1457 = vmax.xlane.f32.xlu0 %v1456
        %v1458 = vpop.xlane.xlu0 %1457
        %v1459 = vsel %vm1443, %v1432, -inf
        %1460 = vmax.xlane.f32.xlu0 %v1459
        %v1461 = vpop.xlane.xlu0 %1460
        %v1462 = vsel %vm1443, %v1437, -inf
        %1463 = vmax.xlane.f32.xlu0 %v1462
        %v1464 = vpop.xlane.xlu0 %1463
        %v1465 = vsel %vm1443, %v1440, -inf
        %1466 = vmax.xlane.f32.xlu0 %v1465
        %v1467 = vpop.xlane.xlu0 %1466
        %v1468 = vsub.f32 %v1413, %v1446
        %v1469 = vsub.f32 %v1416, %v1449
        %v1470 = vsub.f32 %v1421, %v1452
        %v1471 = vsub.f32 %v1424, %v1455
        %v1472 = vsub.f32 %v1429, %v1458
        %v1473 = vsub.f32 %v1432, %v1461
        %v1474 = vsub.f32 %v1437, %v1464
        %v1475 = vsub.f32 %v1440, %v1467
        %v1476 = vmul.f32 %v1468, 1.442695
        %v1477 = vpow.pop %v1476
        %v1478 = vmul.f32 %v1469, 1.442695
        %v1479 = vpow.pop %v1478
        %v1480 = vmul.f32 %v1470, 1.442695
        %v1481 = vpow.pop %v1480
        %v1482 = vmul.f32 %v1471, 1.442695
        %v1483 = vpow.pop %v1482
        %v1484 = vmul.f32 %v1472, 1.442695
        %v1485 = vpow.pop %v1484
        %v1486 = vmul.f32 %v1473, 1.442695
        %v1487 = vpow.pop %v1486
        %v1488 = vmul.f32 %v1474, 1.442695
        %v1489 = vpow.pop %v1488
        %v1490 = vmul.f32 %v1475, 1.442695
        %v1491 = vpow.pop %v1490
        %v1492 = vsel %vm1443, %v1477, 0.0
        %1493 = vadd.xlane.f32.xlu0 %v1492
        %v1494 = vpop.xlane.xlu0 %1493
        %v1495 = vsel %vm1443, %v1479, 0.0
        %1496 = vadd.xlane.f32.xlu0 %v1495
        %v1497 = vpop.xlane.xlu0 %1496
        %v1498 = vsel %vm1443, %v1481, 0.0
        %1499 = vadd.xlane.f32.xlu0 %v1498
        %v1500 = vpop.xlane.xlu0 %1499
        %v1501 = vsel %vm1443, %v1483, 0.0
        %1502 = vadd.xlane.f32.xlu0 %v1501
        %v1503 = vpop.xlane.xlu0 %1502
        %v1504 = vsel %vm1443, %v1485, 0.0
        %1505 = vadd.xlane.f32.xlu0 %v1504
        %v1506 = vpop.xlane.xlu0 %1505
        %v1507 = vsel %vm1443, %v1487, 0.0
        %1508 = vadd.xlane.f32.xlu0 %v1507
        %v1509 = vpop.xlane.xlu0 %1508
        %v1510 = vsel %vm1443, %v1489, 0.0
        %1511 = vadd.xlane.f32.xlu0 %v1510
        %v1512 = vpop.xlane.xlu0 %1511
        %v1513 = vsel %vm1443, %v1491, 0.0
        %1514 = vadd.xlane.f32.xlu0 %v1513
        %v1515 = vpop.xlane.xlu0 %1514
        %v1516 = vrcp.pop %v1494
        %v1517 = vrcp.pop %v1497
        %v1518 = vrcp.pop %v1500
        %v1519 = vrcp.pop %v1503
        %v1520 = vrcp.pop %v1506
        %v1521 = vrcp.pop %v1509
        %v1522 = vrcp.pop %v1512
        %v1523 = vrcp.pop %v1515
        %v1524 = vmul.f32 %v1477, %v1516
        %v1525 = vmul.f32 %v1479, %v1517
        %v1526 = vmul.f32 %v1481, %v1518
        %v1527 = vmul.f32 %v1483, %v1519
        %v1528 = vmul.f32 %v1485, %v1520
        %v1529 = vmul.f32 %v1487, %v1521
        %v1530 = vmul.f32 %v1489, %v1522
        %v1531 = vmul.f32 %v1491, %v1523
        %1540 = vrot.lane.b32.xlu0 %v1329, 16
        %v1541 = vpop.permute.xlu0 %1540
        %1542 = vrot.lane.b32.xlu0 %v1330, 16
        %v1543 = vpop.permute.xlu0 %1542
        %1544 = vrot.lane.b32.xlu0 %v1331, 16
        %v1545 = vpop.permute.xlu0 %1544
        %1546 = vrot.lane.b32.xlu0 %v1332, 16
        %v1547 = vpop.permute.xlu0 %1546
        %1548 = vrot.lane.b32.xlu0 %v1333, 16
        %v1549 = vpop.permute.xlu0 %1548
        %1550 = vrot.lane.b32.xlu0 %v1334, 16
        %v1551 = vpop.permute.xlu0 %1550
        %1552 = vrot.lane.b32.xlu0 %v1335, 16
        %v1553 = vpop.permute.xlu0 %1552
        %1554 = vrot.lane.b32.xlu0 %v1336, 16
        %v1555 = vpop.permute.xlu0 %1554
        %v1564 = vsel %vm1353, %v1173, %v1541
        %v1565 = vsel %vm1353, %v1177, %v1543
        %v1566 = vsel %vm1353, %v1183, %v1545
        %v1567 = vsel %vm1353, %v1187, %v1547
        %v1568 = vsel %vm1353, %v1193, %v1549
        %v1569 = vsel %vm1353, %v1197, %v1551
        %v1570 = vsel %vm1353, %v1203, %v1553
        %v1571 = vsel %vm1353, %v1207, %v1555
        %v1572 = vpack.c.bf16 %v1525, %v1524
        %v1573 = vpack.c.bf16 %v1527, %v1526
        %v1574 = vpack.c.bf16 %v1529, %v1528
        %v1575 = vpack.c.bf16 %v1531, %v1530
        %v1576 = vpack.c.bf16 %v1565, %v1564
        %v1577 = vpack.c.bf16 %v1567, %v1566
        %v1578 = vpack.c.bf16 %v1569, %v1568
        %v1579 = vpack.c.bf16 %v1571, %v1570
        %v1581 = vsel %vm1443, %v1572, 0
        %v1584 = vsel %vm1443, %v1573, 0
        %v1587 = vsel %vm1443, %v1574, 0
        %v1590 = vsel %vm1443, %v1575, 0
        %1592 = vmatprep.subr.bf16.mxu0 0
        %1593 = vmatpush1.bf16.msra.mxu0 %v1576
        %1594 = vmatprep.subr.bf16.mxu0 0
        %1595 = vmatpush1.bf16.msra.mxu0 %v1577
        %1596 = vmatprep.subr.bf16.mxu0 0
        %1597 = vmatpush1.bf16.msra.mxu0 %v1578
        %1598 = vmatprep.subr.bf16.mxu0 0
        %1599 = vmatpush1.bf16.msra.mxu0 %v1579
        %1600 = vmatprep.subr.bf16.mxu0 0
        %1601 = vmatpush1.bf16.msra.mxu0 0
        %1602 = vmatprep.subr.bf16.mxu0 0
        %1603 = vmatpush1.bf16.msra.mxu0 0
        %1604 = vmatprep.subr.bf16.mxu0 0
        %1605 = vmatpush1.bf16.msra.mxu0 0
        %1606 = vmatprep.subr.bf16.mxu0 0
        %1607 = vmatpush1.bf16.msra.mxu0 0
        %1608 = vmatprep.subr.bf16.mxu0 0
        %1609 = vmatpush1.bf16.msra.mxu0 0
        %1610 = vmatprep.subr.bf16.mxu0 0
        %1611 = vmatpush1.bf16.msra.mxu0 0
        %1612 = vmatprep.subr.bf16.mxu0 0
        %1613 = vmatpush1.bf16.msra.mxu0 0
        %1614 = vmatprep.subr.bf16.mxu0 0
        %1615 = vmatpush1.bf16.msra.mxu0 0
        %1616 = vmatprep.subr.bf16.mxu0 0
        %1617 = vmatpush1.bf16.msra.mxu0 0
        %1618 = vmatprep.subr.bf16.mxu0 0
        %1619 = vmatpush1.bf16.msra.mxu0 0
        %1620 = vmatprep.subr.bf16.mxu0 0
        %1621 = vmatpush1.bf16.msra.mxu0 0
        %1622 = vmatprep.subr.bf16.mxu0 0
        %1623 = vmatpush1.bf16.msra.mxu0 0
        %1624 = vmatprep.mubr.bf16.mxu0 0
        %1625 = vmatmul.mubr.bf16.gmra.mrb[0].mxu0 %v1581
        %v1626 = vpop.f32.mrb[0].mxu0
        %v1627 = vadd.f32 0.0, %v1626
        %v1628 = vpop.f32.mrb[0].mxu0
        %v1629 = vpop.f32.mrb[0].mxu0
        %v1630 = vadd.f32 0.0, %v1629
        %v1631 = vpop.f32.mrb[0].mxu0
        %1632 = vmatprep.mubr.bf16.mxu0 0
        %1633 = vmatmul.mubr.bf16.gmra.mrb[0].mxu0 %v1584
        %v1634 = vpop.f32.mrb[0].mxu0
        %v1635 = vadd.f32 0.0, %v1634
        %v1636 = vpop.f32.mrb[0].mxu0
        %v1637 = vpop.f32.mrb[0].mxu0
        %v1638 = vadd.f32 0.0, %v1637
        %v1639 = vpop.f32.mrb[0].mxu0
        %1640 = vmatprep.mubr.bf16.mxu0 0
        %1641 = vmatmul.mubr.bf16.gmra.mrb[0].mxu0 %v1587
        %v1642 = vpop.f32.mrb[0].mxu0
        %v1643 = vadd.f32 0.0, %v1642
        %v1644 = vpop.f32.mrb[0].mxu0
        %v1645 = vpop.f32.mrb[0].mxu0
        %v1646 = vadd.f32 0.0, %v1645
        %v1647 = vpop.f32.mrb[0].mxu0
        %1648 = vmatprep.mubr.bf16.mxu0 0
        %1649 = vmatmul.mubr.bf16.gmra.mrb[0].mxu0 %v1590
        %v1650 = vpop.f32.mrb[0].mxu0
        %v1651 = vadd.f32 0.0, %v1650
        %v1652 = vpop.f32.mrb[0].mxu0
        %v1653 = vpop.f32.mrb[0].mxu0
        %v1654 = vadd.f32 0.0, %v1653
        %v1655 = vpop.f32.mrb[0].mxu0
        %1656 = vdwg.mxu0
        %1661 = vrot.lane.b32.xlu0 %v1345, 112
        %v1662 = vpop.permute.xlu0 %1661
        %1663 = vrot.lane.b32.xlu0 %v1346, 112
        %v1664 = vpop.permute.xlu0 %1663
        %1665 = vrot.lane.b32.xlu0 %v1347, 112
        %v1666 = vpop.permute.xlu0 %1665
        %1667 = vrot.lane.b32.xlu0 %v1348, 112
        %v1668 = vpop.permute.xlu0 %1667
        %1673 = vrot.lane.b32.xlu0 %v1349, 112
        %v1674 = vpop.permute.xlu0 %1673
        %1675 = vrot.lane.b32.xlu0 %v1350, 112
        %v1676 = vpop.permute.xlu0 %1675
        %1677 = vrot.lane.b32.xlu0 %v1351, 112
        %v1678 = vpop.permute.xlu0 %1677
        %1679 = vrot.lane.b32.xlu0 %v1352, 112
        %v1680 = vpop.permute.xlu0 %1679
        %v1682 = vsel %vm1353, %v1662, 0
        %v1685 = vsel %vm1353, %v1664, 0
        %v1688 = vsel %vm1353, %v1666, 0
        %v1691 = vsel %vm1353, %v1668, 0
        %v1694 = vsel %vm1353, %v1674, 0
        %v1697 = vsel %vm1353, %v1676, 0
        %v1700 = vsel %vm1353, %v1678, 0
        %v1703 = vsel %vm1353, %v1680, 0
        %1705 = vmatprep.subr.bf16.mxu0 0
        %1706 = vmatpush1.bf16.xpose.msra.mxu0 %v1694
        %1707 = vmatprep.subr.bf16.mxu0 0
        %1708 = vmatpush1.bf16.xpose.msra.mxu0 %v1697
        %1709 = vmatprep.subr.bf16.mxu0 0
        %1710 = vmatpush1.bf16.xpose.msra.mxu0 %v1700
        %1711 = vmatprep.subr.bf16.mxu0 0
        %1712 = vmatpush1.bf16.xpose.msra.mxu0 %v1703
        %1713 = vmatprep.subr.bf16.mxu0 0
        %1714 = vmatpush1.bf16.xpose.msra.mxu0 0
        %1715 = vmatprep.subr.bf16.mxu0 0
        %1716 = vmatpush1.bf16.xpose.msra.mxu0 0
        %1717 = vmatprep.subr.bf16.mxu0 0
        %1718 = vmatpush1.bf16.xpose.msra.mxu0 0
        %1719 = vmatprep.subr.bf16.mxu0 0
        %1720 = vmatpush1.bf16.xpose.msra.mxu0 0
        %1721 = vmatprep.subr.bf16.mxu0 0
        %1722 = vmatpush1.bf16.xpose.msra.mxu0 0
        %1723 = vmatprep.subr.bf16.mxu0 0
        %1724 = vmatpush1.bf16.xpose.msra.mxu0 0
        %1725 = vmatprep.subr.bf16.mxu0 0
        %1726 = vmatpush1.bf16.xpose.msra.mxu0 0
        %1727 = vmatprep.subr.bf16.mxu0 0
        %1728 = vmatpush1.bf16.xpose.msra.mxu0 0
        %1729 = vmatprep.subr.bf16.mxu0 0
        %1730 = vmatpush1.bf16.xpose.msra.mxu0 0
        %1731 = vmatprep.subr.bf16.mxu0 0
        %1732 = vmatpush1.bf16.xpose.msra.mxu0 0
        %1733 = vmatprep.subr.bf16.mxu0 0
        %1734 = vmatpush1.bf16.xpose.msra.mxu0 0
        %1735 = vmatprep.subr.bf16.mxu0 0
        %1736 = vmatpush1.bf16.xpose.msra.mxu0 0
        %1737 = vmatprep.mubr.bf16.mxu0 0
        %1738 = vmatmul.mubr.bf16.gmra.mrb[0].mxu0 %v1682
        %v1739 = vpop.f32.mrb[0].mxu0
        %v1740 = vadd.f32 0.0, %v1739
        %v1741 = vpop.f32.mrb[0].mxu0
        %v1742 = vpop.f32.mrb[0].mxu0
        %v1743 = vadd.f32 0.0, %v1742
        %v1744 = vpop.f32.mrb[0].mxu0
        %1745 = vmatprep.mubr.bf16.mxu0 0
        %1746 = vmatmul.mubr.bf16.gmra.mrb[0].mxu0 %v1685
        %v1747 = vpop.f32.mrb[0].mxu0
        %v1748 = vadd.f32 0.0, %v1747
        %v1749 = vpop.f32.mrb[0].mxu0
        %v1750 = vpop.f32.mrb[0].mxu0
        %v1751 = vadd.f32 0.0, %v1750
        %v1752 = vpop.f32.mrb[0].mxu0
        %1753 = vmatprep.mubr.bf16.mxu0 0
        %1754 = vmatmul.mubr.bf16.gmra.mrb[0].mxu0 %v1688
        %v1755 = vpop.f32.mrb[0].mxu0
        %v1756 = vadd.f32 0.0, %v1755
        %v1757 = vpop.f32.mrb[0].mxu0
        %v1758 = vpop.f32.mrb[0].mxu0
        %v1759 = vadd.f32 0.0, %v1758
        %v1760 = vpop.f32.mrb[0].mxu0
        %1761 = vmatprep.mubr.bf16.mxu0 0
        %1762 = vmatmul.mubr.bf16.gmra.mrb[0].mxu0 %v1691
        %v1763 = vpop.f32.mrb[0].mxu0
        %v1764 = vadd.f32 0.0, %v1763
        %v1765 = vpop.f32.mrb[0].mxu0
        %v1766 = vpop.f32.mrb[0].mxu0
        %v1767 = vadd.f32 0.0, %v1766
        %v1768 = vpop.f32.mrb[0].mxu0
        %1769 = vdwg.mxu0
        %v1770 = vsel %vm1443, %v1740, -inf
        %1771 = vmax.xlane.f32.xlu0 %v1770
        %v1772 = vpop.xlane.xlu0 %1771
        %v1773 = vsel %vm1443, %v1743, -inf
        %1774 = vmax.xlane.f32.xlu0 %v1773
        %v1775 = vpop.xlane.xlu0 %1774
        %v1776 = vsel %vm1443, %v1748, -inf
        %1777 = vmax.xlane.f32.xlu0 %v1776
        %v1778 = vpop.xlane.xlu0 %1777
        %v1779 = vsel %vm1443, %v1751, -inf
        %1780 = vmax.xlane.f32.xlu0 %v1779
        %v1781 = vpop.xlane.xlu0 %1780
        %v1782 = vsel %vm1443, %v1756, -inf
        %1783 = vmax.xlane.f32.xlu0 %v1782
        %v1784 = vpop.xlane.xlu0 %1783
        %v1785 = vsel %vm1443, %v1759, -inf
        %1786 = vmax.xlane.f32.xlu0 %v1785
        %v1787 = vpop.xlane.xlu0 %1786
        %v1788 = vsel %vm1443, %v1764, -inf
        %1789 = vmax.xlane.f32.xlu0 %v1788
        %v1790 = vpop.xlane.xlu0 %1789
        %v1791 = vsel %vm1443, %v1767, -inf
        %1792 = vmax.xlane.f32.xlu0 %v1791
        %v1793 = vpop.xlane.xlu0 %1792
        %v1794 = vsub.f32 %v1740, %v1772
        %v1795 = vsub.f32 %v1743, %v1775
        %v1796 = vsub.f32 %v1748, %v1778
        %v1797 = vsub.f32 %v1751, %v1781
        %v1798 = vsub.f32 %v1756, %v1784
        %v1799 = vsub.f32 %v1759, %v1787
        %v1800 = vsub.f32 %v1764, %v1790
        %v1801 = vsub.f32 %v1767, %v1793
        %v1802 = vmul.f32 %v1794, 1.442695
        %v1803 = vpow.pop %v1802
        %v1804 = vmul.f32 %v1795, 1.442695
        %v1805 = vpow.pop %v1804
        %v1806 = vmul.f32 %v1796, 1.442695
        %v1807 = vpow.pop %v1806
        %v1808 = vmul.f32 %v1797, 1.442695
        %v1809 = vpow.pop %v1808
        %v1810 = vmul.f32 %v1798, 1.442695
        %v1811 = vpow.pop %v1810
        %v1812 = vmul.f32 %v1799, 1.442695
        %v1813 = vpow.pop %v1812
        %v1814 = vmul.f32 %v1800, 1.442695
        %v1815 = vpow.pop %v1814
        %v1816 = vmul.f32 %v1801, 1.442695
        %v1817 = vpow.pop %v1816
        %v1818 = vsel %vm1443, %v1803, 0.0
        %1819 = vadd.xlane.f32.xlu0 %v1818
        %v1820 = vpop.xlane.xlu0 %1819
        %v1821 = vsel %vm1443, %v1805, 0.0
        %1822 = vadd.xlane.f32.xlu0 %v1821
        %v1823 = vpop.xlane.xlu0 %1822
        %v1824 = vsel %vm1443, %v1807, 0.0
        %1825 = vadd.xlane.f32.xlu0 %v1824
        %v1826 = vpop.xlane.xlu0 %1825
        %v1827 = vsel %vm1443, %v1809, 0.0
        %1828 = vadd.xlane.f32.xlu0 %v1827
        %v1829 = vpop.xlane.xlu0 %1828
        %v1830 = vsel %vm1443, %v1811, 0.0
        %1831 = vadd.xlane.f32.xlu0 %v1830
        %v1832 = vpop.xlane.xlu0 %1831
        %v1833 = vsel %vm1443, %v1813, 0.0
        %1834 = vadd.xlane.f32.xlu0 %v1833
        %v1835 = vpop.xlane.xlu0 %1834
        %v1836 = vsel %vm1443, %v1815, 0.0
        %1837 = vadd.xlane.f32.xlu0 %v1836
        %v1838 = vpop.xlane.xlu0 %1837
        %v1839 = vsel %vm1443, %v1817, 0.0
        %1840 = vadd.xlane.f32.xlu0 %v1839
        %v1841 = vpop.xlane.xlu0 %1840
        %v1842 = vrcp.pop %v1820
        %v1843 = vrcp.pop %v1823
        %v1844 = vrcp.pop %v1826
        %v1845 = vrcp.pop %v1829
        %v1846 = vrcp.pop %v1832
        %v1847 = vrcp.pop %v1835
        %v1848 = vrcp.pop %v1838
        %v1849 = vrcp.pop %v1841
        %v1850 = vmul.f32 %v1803, %v1842
        %v1851 = vmul.f32 %v1805, %v1843
        %v1852 = vmul.f32 %v1807, %v1844
        %v1853 = vmul.f32 %v1809, %v1845
        %v1854 = vmul.f32 %v1811, %v1846
        %v1855 = vmul.f32 %v1813, %v1847
        %v1856 = vmul.f32 %v1815, %v1848
        %v1857 = vmul.f32 %v1817, %v1849
        %1866 = vrot.lane.b32.xlu0 %v1173, 112
        %v1867 = vpop.permute.xlu0 %1866
        %1868 = vrot.lane.b32.xlu0 %v1177, 112
        %v1869 = vpop.permute.xlu0 %1868
        %1870 = vrot.lane.b32.xlu0 %v1183, 112
        %v1871 = vpop.permute.xlu0 %1870
        %1872 = vrot.lane.b32.xlu0 %v1187, 112
        %v1873 = vpop.permute.xlu0 %1872
        %1874 = vrot.lane.b32.xlu0 %v1193, 112
        %v1875 = vpop.permute.xlu0 %1874
        %1876 = vrot.lane.b32.xlu0 %v1197, 112
        %v1877 = vpop.permute.xlu0 %1876
        %1878 = vrot.lane.b32.xlu0 %v1203, 112
        %v1879 = vpop.permute.xlu0 %1878
        %1880 = vrot.lane.b32.xlu0 %v1207, 112
        %v1881 = vpop.permute.xlu0 %1880
        %v1890 = vsel %vm1353, %v1867, %v1329
        %v1891 = vsel %vm1353, %v1869, %v1330
        %v1892 = vsel %vm1353, %v1871, %v1331
        %v1893 = vsel %vm1353, %v1873, %v1332
        %v1894 = vsel %vm1353, %v1875, %v1333
        %v1895 = vsel %vm1353, %v1877, %v1334
        %v1896 = vsel %vm1353, %v1879, %v1335
        %v1897 = vsel %vm1353, %v1881, %v1336
        %v1898 = vpack.c.bf16 %v1851, %v1850
        %v1899 = vpack.c.bf16 %v1853, %v1852
        %v1900 = vpack.c.bf16 %v1855, %v1854
        %v1901 = vpack.c.bf16 %v1857, %v1856
        %v1902 = vpack.c.bf16 %v1891, %v1890
        %v1903 = vpack.c.bf16 %v1893, %v1892
        %v1904 = vpack.c.bf16 %v1895, %v1894
        %v1905 = vpack.c.bf16 %v1897, %v1896
        %v1907 = vsel %vm1443, %v1898, 0
        %v1910 = vsel %vm1443, %v1899, 0
        %v1913 = vsel %vm1443, %v1900, 0
        %v1916 = vsel %vm1443, %v1901, 0
        %1918 = vmatprep.subr.bf16.mxu0 0
        %1919 = vmatpush1.bf16.msra.mxu0 %v1902
        %1920 = vmatprep.subr.bf16.mxu0 0
        %1921 = vmatpush1.bf16.msra.mxu0 %v1903
        %1922 = vmatprep.subr.bf16.mxu0 0
        %1923 = vmatpush1.bf16.msra.mxu0 %v1904
        %1924 = vmatprep.subr.bf16.mxu0 0
        %1925 = vmatpush1.bf16.msra.mxu0 %v1905
        %1926 = vmatprep.subr.bf16.mxu0 0
        %1927 = vmatpush1.bf16.msra.mxu0 0
        %1928 = vmatprep.subr.bf16.mxu0 0
        %1929 = vmatpush1.bf16.msra.mxu0 0
        %1930 = vmatprep.subr.bf16.mxu0 0
        %1931 = vmatpush1.bf16.msra.mxu0 0
        %1932 = vmatprep.subr.bf16.mxu0 0
        %1933 = vmatpush1.bf16.msra.mxu0 0
        %1934 = vmatprep.subr.bf16.mxu0 0
        %1935 = vmatpush1.bf16.msra.mxu0 0
        %1936 = vmatprep.subr.bf16.mxu0 0
        %1937 = vmatpush1.bf16.msra.mxu0 0
        %1938 = vmatprep.subr.bf16.mxu0 0
        %1939 = vmatpush1.bf16.msra.mxu0 0
        %1940 = vmatprep.subr.bf16.mxu0 0
        %1941 = vmatpush1.bf16.msra.mxu0 0
        %1942 = vmatprep.subr.bf16.mxu0 0
        %1943 = vmatpush1.bf16.msra.mxu0 0
        %1944 = vmatprep.subr.bf16.mxu0 0
        %1945 = vmatpush1.bf16.msra.mxu0 0
        %1946 = vmatprep.subr.bf16.mxu0 0
        %1947 = vmatpush1.bf16.msra.mxu0 0
        %1948 = vmatprep.subr.bf16.mxu0 0
        %1949 = vmatpush1.bf16.msra.mxu0 0
        %1950 = vmatprep.mubr.bf16.mxu0 0
        %1951 = vmatmul.mubr.bf16.gmra.mrb[0].mxu0 %v1907
        %v1952 = vpop.f32.mrb[0].mxu0
        %v1953 = vadd.f32 0.0, %v1952
        %v1954 = vpop.f32.mrb[0].mxu0
        %v1955 = vpop.f32.mrb[0].mxu0
        %v1956 = vadd.f32 0.0, %v1955
        %v1957 = vpop.f32.mrb[0].mxu0
        %1958 = vmatprep.mubr.bf16.mxu0 0
        %1959 = vmatmul.mubr.bf16.gmra.mrb[0].mxu0 %v1910
        %v1960 = vpop.f32.mrb[0].mxu0
        %v1961 = vadd.f32 0.0, %v1960
        %v1962 = vpop.f32.mrb[0].mxu0
        %v1963 = vpop.f32.mrb[0].mxu0
        %v1964 = vadd.f32 0.0, %v1963
        %v1965 = vpop.f32.mrb[0].mxu0
        %1966 = vmatprep.mubr.bf16.mxu0 0
        %1967 = vmatmul.mubr.bf16.gmra.mrb[0].mxu0 %v1913
        %v1968 = vpop.f32.mrb[0].mxu0
        %v1969 = vadd.f32 0.0, %v1968
        %v1970 = vpop.f32.mrb[0].mxu0
        %v1971 = vpop.f32.mrb[0].mxu0
        %v1972 = vadd.f32 0.0, %v1971
        %v1973 = vpop.f32.mrb[0].mxu0
        %1974 = vmatprep.mubr.bf16.mxu0 0
        %1975 = vmatmul.mubr.bf16.gmra.mrb[0].mxu0 %v1916
        %v1976 = vpop.f32.mrb[0].mxu0
        %v1977 = vadd.f32 0.0, %v1976
        %v1978 = vpop.f32.mrb[0].mxu0
        %v1979 = vpop.f32.mrb[0].mxu0
        %v1980 = vadd.f32 0.0, %v1979
        %v1981 = vpop.f32.mrb[0].mxu0
        %1982 = vdwg.mxu0
        %1983 = vrot.lane.b32.xlu0 %v1345, 96
        %v1984 = vpop.permute.xlu0 %1983
        %1985 = vrot.lane.b32.xlu0 %v1346, 96
        %v1986 = vpop.permute.xlu0 %1985
        %1987 = vrot.lane.b32.xlu0 %v1347, 96
        %v1988 = vpop.permute.xlu0 %1987
        %1989 = vrot.lane.b32.xlu0 %v1348, 96
        %v1990 = vpop.permute.xlu0 %1989
        %1991 = vrot.lane.b32.xlu0 %v1349, 96
        %v1992 = vpop.permute.xlu0 %1991
        %1993 = vrot.lane.b32.xlu0 %v1350, 96
        %v1994 = vpop.permute.xlu0 %1993
        %1995 = vrot.lane.b32.xlu0 %v1351, 96
        %v1996 = vpop.permute.xlu0 %1995
        %1997 = vrot.lane.b32.xlu0 %v1352, 96
        %v1998 = vpop.permute.xlu0 %1997
        %v2000 = vsel %vm1353, %v1984, 0
        %v2003 = vsel %vm1353, %v1986, 0
        %v2006 = vsel %vm1353, %v1988, 0
        %v2009 = vsel %vm1353, %v1990, 0
        %v2012 = vsel %vm1353, %v1992, 0
        %v2015 = vsel %vm1353, %v1994, 0
        %v2018 = vsel %vm1353, %v1996, 0
        %v2021 = vsel %vm1353, %v1998, 0
        %2023 = vmatprep.subr.bf16.mxu0 0
        %2024 = vmatpush1.bf16.xpose.msra.mxu0 %v2012
        %2025 = vmatprep.subr.bf16.mxu0 0
        %2026 = vmatpush1.bf16.xpose.msra.mxu0 %v2015
        %2027 = vmatprep.subr.bf16.mxu0 0
        %2028 = vmatpush1.bf16.xpose.msra.mxu0 %v2018
        %2029 = vmatprep.subr.bf16.mxu0 0
        %2030 = vmatpush1.bf16.xpose.msra.mxu0 %v2021
        %2031 = vmatprep.subr.bf16.mxu0 0
        %2032 = vmatpush1.bf16.xpose.msra.mxu0 0
        %2033 = vmatprep.subr.bf16.mxu0 0
        %2034 = vmatpush1.bf16.xpose.msra.mxu0 0
        %2035 = vmatprep.subr.bf16.mxu0 0
        %2036 = vmatpush1.bf16.xpose.msra.mxu0 0
        %2037 = vmatprep.subr.bf16.mxu0 0
        %2038 = vmatpush1.bf16.xpose.msra.mxu0 0
        %2039 = vmatprep.subr.bf16.mxu0 0
        %2040 = vmatpush1.bf16.xpose.msra.mxu0 0
        %2041 = vmatprep.subr.bf16.mxu0 0
        %2042 = vmatpush1.bf16.xpose.msra.mxu0 0
        %2043 = vmatprep.subr.bf16.mxu0 0
        %2044 = vmatpush1.bf16.xpose.msra.mxu0 0
        %2045 = vmatprep.subr.bf16.mxu0 0
        %2046 = vmatpush1.bf16.xpose.msra.mxu0 0
        %2047 = vmatprep.subr.bf16.mxu0 0
        %2048 = vmatpush1.bf16.xpose.msra.mxu0 0
        %2049 = vmatprep.subr.bf16.mxu0 0
        %2050 = vmatpush1.bf16.xpose.msra.mxu0 0
        %2051 = vmatprep.subr.bf16.mxu0 0
        %2052 = vmatpush1.bf16.xpose.msra.mxu0 0
        %2053 = vmatprep.subr.bf16.mxu0 0
        %2054 = vmatpush1.bf16.xpose.msra.mxu0 0
        %2055 = vmatprep.mubr.bf16.mxu0 0
        %2056 = vmatmul.mubr.bf16.gmra.mrb[0].mxu0 %v2000
        %v2057 = vpop.f32.mrb[0].mxu0
        %v2058 = vadd.f32 0.0, %v2057
        %v2059 = vpop.f32.mrb[0].mxu0
        %v2060 = vpop.f32.mrb[0].mxu0
        %v2061 = vadd.f32 0.0, %v2060
        %v2062 = vpop.f32.mrb[0].mxu0
        %2063 = vmatprep.mubr.bf16.mxu0 0
        %2064 = vmatmul.mubr.bf16.gmra.mrb[0].mxu0 %v2003
        %v2065 = vpop.f32.mrb[0].mxu0
        %v2066 = vadd.f32 0.0, %v2065
        %v2067 = vpop.f32.mrb[0].mxu0
        %v2068 = vpop.f32.mrb[0].mxu0
        %v2069 = vadd.f32 0.0, %v2068
        %v2070 = vpop.f32.mrb[0].mxu0
        %2071 = vmatprep.mubr.bf16.mxu0 0
        %2072 = vmatmul.mubr.bf16.gmra.mrb[0].mxu0 %v2006
        %v2073 = vpop.f32.mrb[0].mxu0
        %v2074 = vadd.f32 0.0, %v2073
        %v2075 = vpop.f32.mrb[0].mxu0
        %v2076 = vpop.f32.mrb[0].mxu0
        %v2077 = vadd.f32 0.0, %v2076
        %v2078 = vpop.f32.mrb[0].mxu0
        %2079 = vmatprep.mubr.bf16.mxu0 0
        %2080 = vmatmul.mubr.bf16.gmra.mrb[0].mxu0 %v2009
        %v2081 = vpop.f32.mrb[0].mxu0
        %v2082 = vadd.f32 0.0, %v2081
        %v2083 = vpop.f32.mrb[0].mxu0
        %v2084 = vpop.f32.mrb[0].mxu0
        %v2085 = vadd.f32 0.0, %v2084
        %v2086 = vpop.f32.mrb[0].mxu0
        %2087 = vdwg.mxu0
        %v2088 = vsel %vm1443, %v2058, -inf
        %2089 = vmax.xlane.f32.xlu0 %v2088
        %v2090 = vpop.xlane.xlu0 %2089
        %v2091 = vsel %vm1443, %v2061, -inf
        %2092 = vmax.xlane.f32.xlu0 %v2091
        %v2093 = vpop.xlane.xlu0 %2092
        %v2094 = vsel %vm1443, %v2066, -inf
        %2095 = vmax.xlane.f32.xlu0 %v2094
        %v2096 = vpop.xlane.xlu0 %2095
        %v2097 = vsel %vm1443, %v2069, -inf
        %2098 = vmax.xlane.f32.xlu0 %v2097
        %v2099 = vpop.xlane.xlu0 %2098
        %v2100 = vsel %vm1443, %v2074, -inf
        %2101 = vmax.xlane.f32.xlu0 %v2100
        %v2102 = vpop.xlane.xlu0 %2101
        %v2103 = vsel %vm1443, %v2077, -inf
        %2104 = vmax.xlane.f32.xlu0 %v2103
        %v2105 = vpop.xlane.xlu0 %2104
        %v2106 = vsel %vm1443, %v2082, -inf
        %2107 = vmax.xlane.f32.xlu0 %v2106
        %v2108 = vpop.xlane.xlu0 %2107
        %v2109 = vsel %vm1443, %v2085, -inf
        %2110 = vmax.xlane.f32.xlu0 %v2109
        %v2111 = vpop.xlane.xlu0 %2110
        %v2112 = vsub.f32 %v2058, %v2090
        %v2113 = vsub.f32 %v2061, %v2093
        %v2114 = vsub.f32 %v2066, %v2096
        %v2115 = vsub.f32 %v2069, %v2099
        %v2116 = vsub.f32 %v2074, %v2102
        %v2117 = vsub.f32 %v2077, %v2105
        %v2118 = vsub.f32 %v2082, %v2108
        %v2119 = vsub.f32 %v2085, %v2111
        %v2120 = vmul.f32 %v2112, 1.442695
        %v2121 = vpow.pop %v2120
        %v2122 = vmul.f32 %v2113, 1.442695
        %v2123 = vpow.pop %v2122
        %v2124 = vmul.f32 %v2114, 1.442695
        %v2125 = vpow.pop %v2124
        %v2126 = vmul.f32 %v2115, 1.442695
        %v2127 = vpow.pop %v2126
        %v2128 = vmul.f32 %v2116, 1.442695
        %v2129 = vpow.pop %v2128
        %v2130 = vmul.f32 %v2117, 1.442695
        %v2131 = vpow.pop %v2130
        %v2132 = vmul.f32 %v2118, 1.442695
        %v2133 = vpow.pop %v2132
        %v2134 = vmul.f32 %v2119, 1.442695
        %v2135 = vpow.pop %v2134
        %v2136 = vsel %vm1443, %v2121, 0.0
        %2137 = vadd.xlane.f32.xlu0 %v2136
        %v2138 = vpop.xlane.xlu0 %2137
        %v2139 = vsel %vm1443, %v2123, 0.0
        %2140 = vadd.xlane.f32.xlu0 %v2139
        %v2141 = vpop.xlane.xlu0 %2140
        %v2142 = vsel %vm1443, %v2125, 0.0
        %2143 = vadd.xlane.f32.xlu0 %v2142
        %v2144 = vpop.xlane.xlu0 %2143
        %v2145 = vsel %vm1443, %v2127, 0.0
        %2146 = vadd.xlane.f32.xlu0 %v2145
        %v2147 = vpop.xlane.xlu0 %2146
        %v2148 = vsel %vm1443, %v2129, 0.0
        %2149 = vadd.xlane.f32.xlu0 %v2148
        %v2150 = vpop.xlane.xlu0 %2149
        %v2151 = vsel %vm1443, %v2131, 0.0
        %2152 = vadd.xlane.f32.xlu0 %v2151
        %v2153 = vpop.xlane.xlu0 %2152
        %v2154 = vsel %vm1443, %v2133, 0.0
        %2155 = vadd.xlane.f32.xlu0 %v2154
        %v2156 = vpop.xlane.xlu0 %2155
        %v2157 = vsel %vm1443, %v2135, 0.0
        %2158 = vadd.xlane.f32.xlu0 %v2157
        %v2159 = vpop.xlane.xlu0 %2158
        %v2160 = vrcp.pop %v2138
        %v2161 = vrcp.pop %v2141
        %v2162 = vrcp.pop %v2144
        %v2163 = vrcp.pop %v2147
        %v2164 = vrcp.pop %v2150
        %v2165 = vrcp.pop %v2153
        %v2166 = vrcp.pop %v2156
        %v2167 = vrcp.pop %v2159
        %v2168 = vmul.f32 %v2121, %v2160
        %v2169 = vmul.f32 %v2123, %v2161
        %v2170 = vmul.f32 %v2125, %v2162
        %v2171 = vmul.f32 %v2127, %v2163
        %v2172 = vmul.f32 %v2129, %v2164
        %v2173 = vmul.f32 %v2131, %v2165
        %v2174 = vmul.f32 %v2133, %v2166
        %v2175 = vmul.f32 %v2135, %v2167
        %2176 = vrot.lane.b32.xlu0 %v1173, 96
        %v2177 = vpop.permute.xlu0 %2176
        %2178 = vrot.lane.b32.xlu0 %v1177, 96
        %v2179 = vpop.permute.xlu0 %2178
        %2180 = vrot.lane.b32.xlu0 %v1183, 96
        %v2181 = vpop.permute.xlu0 %2180
        %2182 = vrot.lane.b32.xlu0 %v1187, 96
        %v2183 = vpop.permute.xlu0 %2182
        %2184 = vrot.lane.b32.xlu0 %v1193, 96
        %v2185 = vpop.permute.xlu0 %2184
        %2186 = vrot.lane.b32.xlu0 %v1197, 96
        %v2187 = vpop.permute.xlu0 %2186
        %2188 = vrot.lane.b32.xlu0 %v1203, 96
        %v2189 = vpop.permute.xlu0 %2188
        %2190 = vrot.lane.b32.xlu0 %v1207, 96
        %v2191 = vpop.permute.xlu0 %2190
        %2200 = vrot.lane.b32.xlu0 %v1329, 112
        %v2201 = vpop.permute.xlu0 %2200
        %2202 = vrot.lane.b32.xlu0 %v1330, 112
        %v2203 = vpop.permute.xlu0 %2202
        %2204 = vrot.lane.b32.xlu0 %v1331, 112
        %v2205 = vpop.permute.xlu0 %2204
        %2206 = vrot.lane.b32.xlu0 %v1332, 112
        %v2207 = vpop.permute.xlu0 %2206
        %2208 = vrot.lane.b32.xlu0 %v1333, 112
        %v2209 = vpop.permute.xlu0 %2208
        %2210 = vrot.lane.b32.xlu0 %v1334, 112
        %v2211 = vpop.permute.xlu0 %2210
        %2212 = vrot.lane.b32.xlu0 %v1335, 112
        %v2213 = vpop.permute.xlu0 %2212
        %2214 = vrot.lane.b32.xlu0 %v1336, 112
        %v2215 = vpop.permute.xlu0 %2214
        %v2224 = vsel %vm1353, %v2177, %v2201
        %v2225 = vsel %vm1353, %v2179, %v2203
        %v2226 = vsel %vm1353, %v2181, %v2205
        %v2227 = vsel %vm1353, %v2183, %v2207
        %v2228 = vsel %vm1353, %v2185, %v2209
        %v2229 = vsel %vm1353, %v2187, %v2211
        %v2230 = vsel %vm1353, %v2189, %v2213
        %v2231 = vsel %vm1353, %v2191, %v2215
        %v2232 = vpack.c.bf16 %v2169, %v2168
        %v2233 = vpack.c.bf16 %v2171, %v2170
        %v2234 = vpack.c.bf16 %v2173, %v2172
        %v2235 = vpack.c.bf16 %v2175, %v2174
        %v2236 = vpack.c.bf16 %v2225, %v2224
        %v2237 = vpack.c.bf16 %v2227, %v2226
        %v2238 = vpack.c.bf16 %v2229, %v2228
        %v2239 = vpack.c.bf16 %v2231, %v2230
        %v2241 = vsel %vm1443, %v2232, 0
        %v2244 = vsel %vm1443, %v2233, 0
        %v2247 = vsel %vm1443, %v2234, 0
        %v2250 = vsel %vm1443, %v2235, 0
        %2252 = vmatprep.subr.bf16.mxu0 0
        %2253 = vmatpush1.bf16.msra.mxu0 %v2236
        %2254 = vmatprep.subr.bf16.mxu0 0
        %2255 = vmatpush1.bf16.msra.mxu0 %v2237
        %2256 = vmatprep.subr.bf16.mxu0 0
        %2257 = vmatpush1.bf16.msra.mxu0 %v2238
        %2258 = vmatprep.subr.bf16.mxu0 0
        %2259 = vmatpush1.bf16.msra.mxu0 %v2239
        %2260 = vmatprep.subr.bf16.mxu0 0
        %2261 = vmatpush1.bf16.msra.mxu0 0
        %2262 = vmatprep.subr.bf16.mxu0 0
        %2263 = vmatpush1.bf16.msra.mxu0 0
        %2264 = vmatprep.subr.bf16.mxu0 0
        %2265 = vmatpush1.bf16.msra.mxu0 0
        %2266 = vmatprep.subr.bf16.mxu0 0
        %2267 = vmatpush1.bf16.msra.mxu0 0
        %2268 = vmatprep.subr.bf16.mxu0 0
        %2269 = vmatpush1.bf16.msra.mxu0 0
        %2270 = vmatprep.subr.bf16.mxu0 0
        %2271 = vmatpush1.bf16.msra.mxu0 0
        %2272 = vmatprep.subr.bf16.mxu0 0
        %2273 = vmatpush1.bf16.msra.mxu0 0
        %2274 = vmatprep.subr.bf16.mxu0 0
        %2275 = vmatpush1.bf16.msra.mxu0 0
        %2276 = vmatprep.subr.bf16.mxu0 0
        %2277 = vmatpush1.bf16.msra.mxu0 0
        %2278 = vmatprep.subr.bf16.mxu0 0
        %2279 = vmatpush1.bf16.msra.mxu0 0
        %2280 = vmatprep.subr.bf16.mxu0 0
        %2281 = vmatpush1.bf16.msra.mxu0 0
        %2282 = vmatprep.subr.bf16.mxu0 0
        %2283 = vmatpush1.bf16.msra.mxu0 0
        %2284 = vmatprep.mubr.bf16.mxu0 0
        %2285 = vmatmul.mubr.bf16.gmra.mrb[0].mxu0 %v2241
        %v2286 = vpop.f32.mrb[0].mxu0
        %v2287 = vadd.f32 0.0, %v2286
        %v2288 = vpop.f32.mrb[0].mxu0
        %v2289 = vpop.f32.mrb[0].mxu0
        %v2290 = vadd.f32 0.0, %v2289
        %v2291 = vpop.f32.mrb[0].mxu0
        %2292 = vmatprep.mubr.bf16.mxu0 0
        %2293 = vmatmul.mubr.bf16.gmra.mrb[0].mxu0 %v2244
        %v2294 = vpop.f32.mrb[0].mxu0
        %v2295 = vadd.f32 0.0, %v2294
        %v2296 = vpop.f32.mrb[0].mxu0
        %v2297 = vpop.f32.mrb[0].mxu0
        %v2298 = vadd.f32 0.0, %v2297
        %v2299 = vpop.f32.mrb[0].mxu0
        %2300 = vmatprep.mubr.bf16.mxu0 0
        %2301 = vmatmul.mubr.bf16.gmra.mrb[0].mxu0 %v2247
        %v2302 = vpop.f32.mrb[0].mxu0
        %v2303 = vadd.f32 0.0, %v2302
        %v2304 = vpop.f32.mrb[0].mxu0
        %v2305 = vpop.f32.mrb[0].mxu0
        %v2306 = vadd.f32 0.0, %v2305
        %v2307 = vpop.f32.mrb[0].mxu0
        %2308 = vmatprep.mubr.bf16.mxu0 0
        %2309 = vmatmul.mubr.bf16.gmra.mrb[0].mxu0 %v2250
        %v2310 = vpop.f32.mrb[0].mxu0
        %v2311 = vadd.f32 0.0, %v2310
        %v2312 = vpop.f32.mrb[0].mxu0
        %v2313 = vpop.f32.mrb[0].mxu0
        %v2314 = vadd.f32 0.0, %v2313
        %v2315 = vpop.f32.mrb[0].mxu0
        %2316 = vdwg.mxu0
        %2317 = vrot.lane.b32.xlu0 %v1345, 80
        %v2318 = vpop.permute.xlu0 %2317
        %2319 = vrot.lane.b32.xlu0 %v1346, 80
        %v2320 = vpop.permute.xlu0 %2319
        %2321 = vrot.lane.b32.xlu0 %v1347, 80
        %v2322 = vpop.permute.xlu0 %2321
        %2323 = vrot.lane.b32.xlu0 %v1348, 80
        %v2324 = vpop.permute.xlu0 %2323
        %2325 = vrot.lane.b32.xlu0 %v1349, 80
        %v2326 = vpop.permute.xlu0 %2325
        %2327 = vrot.lane.b32.xlu0 %v1350, 80
        %v2328 = vpop.permute.xlu0 %2327
        %2329 = vrot.lane.b32.xlu0 %v1351, 80
        %v2330 = vpop.permute.xlu0 %2329
        %2331 = vrot.lane.b32.xlu0 %v1352, 80
        %v2332 = vpop.permute.xlu0 %2331
        %v2334 = vsel %vm1353, %v2318, 0
        %v2337 = vsel %vm1353, %v2320, 0
        %v2340 = vsel %vm1353, %v2322, 0
        %v2343 = vsel %vm1353, %v2324, 0
        %v2346 = vsel %vm1353, %v2326, 0
        %v2349 = vsel %vm1353, %v2328, 0
        %v2352 = vsel %vm1353, %v2330, 0
        %v2355 = vsel %vm1353, %v2332, 0
        %2357 = vmatprep.subr.bf16.mxu0 0
        %2358 = vmatpush1.bf16.xpose.msra.mxu0 %v2346
        %2359 = vmatprep.subr.bf16.mxu0 0
        %2360 = vmatpush1.bf16.xpose.msra.mxu0 %v2349
        %2361 = vmatprep.subr.bf16.mxu0 0
        %2362 = vmatpush1.bf16.xpose.msra.mxu0 %v2352
        %2363 = vmatprep.subr.bf16.mxu0 0
        %2364 = vmatpush1.bf16.xpose.msra.mxu0 %v2355
        %2365 = vmatprep.subr.bf16.mxu0 0
        %2366 = vmatpush1.bf16.xpose.msra.mxu0 0
        %2367 = vmatprep.subr.bf16.mxu0 0
        %2368 = vmatpush1.bf16.xpose.msra.mxu0 0
        %2369 = vmatprep.subr.bf16.mxu0 0
        %2370 = vmatpush1.bf16.xpose.msra.mxu0 0
        %2371 = vmatprep.subr.bf16.mxu0 0
        %2372 = vmatpush1.bf16.xpose.msra.mxu0 0
        %2373 = vmatprep.subr.bf16.mxu0 0
        %2374 = vmatpush1.bf16.xpose.msra.mxu0 0
        %2375 = vmatprep.subr.bf16.mxu0 0
        %2376 = vmatpush1.bf16.xpose.msra.mxu0 0
        %2377 = vmatprep.subr.bf16.mxu0 0
        %2378 = vmatpush1.bf16.xpose.msra.mxu0 0
        %2379 = vmatprep.subr.bf16.mxu0 0
        %2380 = vmatpush1.bf16.xpose.msra.mxu0 0
        %2381 = vmatprep.subr.bf16.mxu0 0
        %2382 = vmatpush1.bf16.xpose.msra.mxu0 0
        %2383 = vmatprep.subr.bf16.mxu0 0
        %2384 = vmatpush1.bf16.xpose.msra.mxu0 0
        %2385 = vmatprep.subr.bf16.mxu0 0
        %2386 = vmatpush1.bf16.xpose.msra.mxu0 0
        %2387 = vmatprep.subr.bf16.mxu0 0
        %2388 = vmatpush1.bf16.xpose.msra.mxu0 0
        %2389 = vmatprep.mubr.bf16.mxu0 0
        %2390 = vmatmul.mubr.bf16.gmra.mrb[0].mxu0 %v2334
        %v2391 = vpop.f32.mrb[0].mxu0
        %v2392 = vadd.f32 0.0, %v2391
        %v2393 = vpop.f32.mrb[0].mxu0
        %v2394 = vpop.f32.mrb[0].mxu0
        %v2395 = vadd.f32 0.0, %v2394
        %v2396 = vpop.f32.mrb[0].mxu0
        %2397 = vmatprep.mubr.bf16.mxu0 0
        %2398 = vmatmul.mubr.bf16.gmra.mrb[0].mxu0 %v2337
        %v2399 = vpop.f32.mrb[0].mxu0
        %v2400 = vadd.f32 0.0, %v2399
        %v2401 = vpop.f32.mrb[0].mxu0
        %v2402 = vpop.f32.mrb[0].mxu0
        %v2403 = vadd.f32 0.0, %v2402
        %v2404 = vpop.f32.mrb[0].mxu0
        %2405 = vmatprep.mubr.bf16.mxu0 0
        %2406 = vmatmul.mubr.bf16.gmra.mrb[0].mxu0 %v2340
        %v2407 = vpop.f32.mrb[0].mxu0
        %v2408 = vadd.f32 0.0, %v2407
        %v2409 = vpop.f32.mrb[0].mxu0
        %v2410 = vpop.f32.mrb[0].mxu0
        %v2411 = vadd.f32 0.0, %v2410
        %v2412 = vpop.f32.mrb[0].mxu0
        %2413 = vmatprep.mubr.bf16.mxu0 0
        %2414 = vmatmul.mubr.bf16.gmra.mrb[0].mxu0 %v2343
        %v2415 = vpop.f32.mrb[0].mxu0
        %v2416 = vadd.f32 0.0, %v2415
        %v2417 = vpop.f32.mrb[0].mxu0
        %v2418 = vpop.f32.mrb[0].mxu0
        %v2419 = vadd.f32 0.0, %v2418
        %v2420 = vpop.f32.mrb[0].mxu0
        %2421 = vdwg.mxu0
        %v2422 = vsel %vm1443, %v2392, -inf
        %2423 = vmax.xlane.f32.xlu0 %v2422
        %v2424 = vpop.xlane.xlu0 %2423
        %v2425 = vsel %vm1443, %v2395, -inf
        %2426 = vmax.xlane.f32.xlu0 %v2425
        %v2427 = vpop.xlane.xlu0 %2426
        %v2428 = vsel %vm1443, %v2400, -inf
        %2429 = vmax.xlane.f32.xlu0 %v2428
        %v2430 = vpop.xlane.xlu0 %2429
        %v2431 = vsel %vm1443, %v2403, -inf
        %2432 = vmax.xlane.f32.xlu0 %v2431
        %v2433 = vpop.xlane.xlu0 %2432
        %v2434 = vsel %vm1443, %v2408, -inf
        %2435 = vmax.xlane.f32.xlu0 %v2434
        %v2436 = vpop.xlane.xlu0 %2435
        %v2437 = vsel %vm1443, %v2411, -inf
        %2438 = vmax.xlane.f32.xlu0 %v2437
        %v2439 = vpop.xlane.xlu0 %2438
        %v2440 = vsel %vm1443, %v2416, -inf
        %2441 = vmax.xlane.f32.xlu0 %v2440
        %v2442 = vpop.xlane.xlu0 %2441
        %v2443 = vsel %vm1443, %v2419, -inf
        %2444 = vmax.xlane.f32.xlu0 %v2443
        %v2445 = vpop.xlane.xlu0 %2444
        %v2446 = vsub.f32 %v2392, %v2424
        %v2447 = vsub.f32 %v2395, %v2427
        %v2448 = vsub.f32 %v2400, %v2430
        %v2449 = vsub.f32 %v2403, %v2433
        %v2450 = vsub.f32 %v2408, %v2436
        %v2451 = vsub.f32 %v2411, %v2439
        %v2452 = vsub.f32 %v2416, %v2442
        %v2453 = vsub.f32 %v2419, %v2445
        %v2454 = vmul.f32 %v2446, 1.442695
        %v2455 = vpow.pop %v2454
        %v2456 = vmul.f32 %v2447, 1.442695
        %v2457 = vpow.pop %v2456
        %v2458 = vmul.f32 %v2448, 1.442695
        %v2459 = vpow.pop %v2458
        %v2460 = vmul.f32 %v2449, 1.442695
        %v2461 = vpow.pop %v2460
        %v2462 = vmul.f32 %v2450, 1.442695
        %v2463 = vpow.pop %v2462
        %v2464 = vmul.f32 %v2451, 1.442695
        %v2465 = vpow.pop %v2464
        %v2466 = vmul.f32 %v2452, 1.442695
        %v2467 = vpow.pop %v2466
        %v2468 = vmul.f32 %v2453, 1.442695
        %v2469 = vpow.pop %v2468
        %v2470 = vsel %vm1443, %v2455, 0.0
        %2471 = vadd.xlane.f32.xlu0 %v2470
        %v2472 = vpop.xlane.xlu0 %2471
        %v2473 = vsel %vm1443, %v2457, 0.0
        %2474 = vadd.xlane.f32.xlu0 %v2473
        %v2475 = vpop.xlane.xlu0 %2474
        %v2476 = vsel %vm1443, %v2459, 0.0
        %2477 = vadd.xlane.f32.xlu0 %v2476
        %v2478 = vpop.xlane.xlu0 %2477
        %v2479 = vsel %vm1443, %v2461, 0.0
        %2480 = vadd.xlane.f32.xlu0 %v2479
        %v2481 = vpop.xlane.xlu0 %2480
        %v2482 = vsel %vm1443, %v2463, 0.0
        %2483 = vadd.xlane.f32.xlu0 %v2482
        %v2484 = vpop.xlane.xlu0 %2483
        %v2485 = vsel %vm1443, %v2465, 0.0
        %2486 = vadd.xlane.f32.xlu0 %v2485
        %v2487 = vpop.xlane.xlu0 %2486
        %v2488 = vsel %vm1443, %v2467, 0.0
        %2489 = vadd.xlane.f32.xlu0 %v2488
        %v2490 = vpop.xlane.xlu0 %2489
        %v2491 = vsel %vm1443, %v2469, 0.0
        %2492 = vadd.xlane.f32.xlu0 %v2491
        %v2493 = vpop.xlane.xlu0 %2492
        %v2494 = vrcp.pop %v2472
        %v2495 = vrcp.pop %v2475
        %v2496 = vrcp.pop %v2478
        %v2497 = vrcp.pop %v2481
        %v2498 = vrcp.pop %v2484
        %v2499 = vrcp.pop %v2487
        %v2500 = vrcp.pop %v2490
        %v2501 = vrcp.pop %v2493
        %v2502 = vmul.f32 %v2455, %v2494
        %v2503 = vmul.f32 %v2457, %v2495
        %v2504 = vmul.f32 %v2459, %v2496
        %v2505 = vmul.f32 %v2461, %v2497
        %v2506 = vmul.f32 %v2463, %v2498
        %v2507 = vmul.f32 %v2465, %v2499
        %v2508 = vmul.f32 %v2467, %v2500
        %v2509 = vmul.f32 %v2469, %v2501
        %2510 = vrot.lane.b32.xlu0 %v1173, 80
        %v2511 = vpop.permute.xlu0 %2510
        %2512 = vrot.lane.b32.xlu0 %v1177, 80
        %v2513 = vpop.permute.xlu0 %2512
        %2514 = vrot.lane.b32.xlu0 %v1183, 80
        %v2515 = vpop.permute.xlu0 %2514
        %2516 = vrot.lane.b32.xlu0 %v1187, 80
        %v2517 = vpop.permute.xlu0 %2516
        %2518 = vrot.lane.b32.xlu0 %v1193, 80
        %v2519 = vpop.permute.xlu0 %2518
        %2520 = vrot.lane.b32.xlu0 %v1197, 80
        %v2521 = vpop.permute.xlu0 %2520
        %2522 = vrot.lane.b32.xlu0 %v1203, 80
        %v2523 = vpop.permute.xlu0 %2522
        %2524 = vrot.lane.b32.xlu0 %v1207, 80
        %v2525 = vpop.permute.xlu0 %2524
        %2534 = vrot.lane.b32.xlu0 %v1329, 96
        %v2535 = vpop.permute.xlu0 %2534
        %2536 = vrot.lane.b32.xlu0 %v1330, 96
        %v2537 = vpop.permute.xlu0 %2536
        %2538 = vrot.lane.b32.xlu0 %v1331, 96
        %v2539 = vpop.permute.xlu0 %2538
        %2540 = vrot.lane.b32.xlu0 %v1332, 96
        %v2541 = vpop.permute.xlu0 %2540
        %2542 = vrot.lane.b32.xlu0 %v1333, 96
        %v2543 = vpop.permute.xlu0 %2542
        %2544 = vrot.lane.b32.xlu0 %v1334, 96
        %v2545 = vpop.permute.xlu0 %2544
        %2546 = vrot.lane.b32.xlu0 %v1335, 96
        %v2547 = vpop.permute.xlu0 %2546
        %2548 = vrot.lane.b32.xlu0 %v1336, 96
        %v2549 = vpop.permute.xlu0 %2548
        %v2558 = vsel %vm1353, %v2511, %v2535
        %v2559 = vsel %vm1353, %v2513, %v2537
        %v2560 = vsel %vm1353, %v2515, %v2539
        %v2561 = vsel %vm1353, %v2517, %v2541
        %v2562 = vsel %vm1353, %v2519, %v2543
        %v2563 = vsel %vm1353, %v2521, %v2545
        %v2564 = vsel %vm1353, %v2523, %v2547
        %v2565 = vsel %vm1353, %v2525, %v2549
        %v2566 = vpack.c.bf16 %v2503, %v2502
        %v2567 = vpack.c.bf16 %v2505, %v2504
        %v2568 = vpack.c.bf16 %v2507, %v2506
        %v2569 = vpack.c.bf16 %v2509, %v2508
        %v2570 = vpack.c.bf16 %v2559, %v2558
        %v2571 = vpack.c.bf16 %v2561, %v2560
        %v2572 = vpack.c.bf16 %v2563, %v2562
        %v2573 = vpack.c.bf16 %v2565, %v2564
        %v2575 = vsel %vm1443, %v2566, 0
        %v2578 = vsel %vm1443, %v2567, 0
        %v2581 = vsel %vm1443, %v2568, 0
        %v2584 = vsel %vm1443, %v2569, 0
        %2586 = vmatprep.subr.bf16.mxu0 0
        %2587 = vmatpush1.bf16.msra.mxu0 %v2570
        %2588 = vmatprep.subr.bf16.mxu0 0
        %2589 = vmatpush1.bf16.msra.mxu0 %v2571
        %2590 = vmatprep.subr.bf16.mxu0 0
        %2591 = vmatpush1.bf16.msra.mxu0 %v2572
        %2592 = vmatprep.subr.bf16.mxu0 0
        %2593 = vmatpush1.bf16.msra.mxu0 %v2573
        %2594 = vmatprep.subr.bf16.mxu0 0
        %2595 = vmatpush1.bf16.msra.mxu0 0
        %2596 = vmatprep.subr.bf16.mxu0 0
        %2597 = vmatpush1.bf16.msra.mxu0 0
        %2598 = vmatprep.subr.bf16.mxu0 0
        %2599 = vmatpush1.bf16.msra.mxu0 0
        %2600 = vmatprep.subr.bf16.mxu0 0
        %2601 = vmatpush1.bf16.msra.mxu0 0
        %2602 = vmatprep.subr.bf16.mxu0 0
        %2603 = vmatpush1.bf16.msra.mxu0 0
        %2604 = vmatprep.subr.bf16.mxu0 0
        %2605 = vmatpush1.bf16.msra.mxu0 0
        %2606 = vmatprep.subr.bf16.mxu0 0
        %2607 = vmatpush1.bf16.msra.mxu0 0
        %2608 = vmatprep.subr.bf16.mxu0 0
        %2609 = vmatpush1.bf16.msra.mxu0 0
        %2610 = vmatprep.subr.bf16.mxu0 0
        %2611 = vmatpush1.bf16.msra.mxu0 0
        %2612 = vmatprep.subr.bf16.mxu0 0
        %2613 = vmatpush1.bf16.msra.mxu0 0
        %2614 = vmatprep.subr.bf16.mxu0 0
        %2615 = vmatpush1.bf16.msra.mxu0 0
        %2616 = vmatprep.subr.bf16.mxu0 0
        %2617 = vmatpush1.bf16.msra.mxu0 0
        %2618 = vmatprep.mubr.bf16.mxu0 0
        %2619 = vmatmul.mubr.bf16.gmra.mrb[0].mxu0 %v2575
        %v2620 = vpop.f32.mrb[0].mxu0
        %v2621 = vadd.f32 0.0, %v2620
        %v2622 = vpop.f32.mrb[0].mxu0
        %v2623 = vpop.f32.mrb[0].mxu0
        %v2624 = vadd.f32 0.0, %v2623
        %v2625 = vpop.f32.mrb[0].mxu0
        %2626 = vmatprep.mubr.bf16.mxu0 0
        %2627 = vmatmul.mubr.bf16.gmra.mrb[0].mxu0 %v2578
        %v2628 = vpop.f32.mrb[0].mxu0
        %v2629 = vadd.f32 0.0, %v2628
        %v2630 = vpop.f32.mrb[0].mxu0
        %v2631 = vpop.f32.mrb[0].mxu0
        %v2632 = vadd.f32 0.0, %v2631
        %v2633 = vpop.f32.mrb[0].mxu0
        %2634 = vmatprep.mubr.bf16.mxu0 0
        %2635 = vmatmul.mubr.bf16.gmra.mrb[0].mxu0 %v2581
        %v2636 = vpop.f32.mrb[0].mxu0
        %v2637 = vadd.f32 0.0, %v2636
        %v2638 = vpop.f32.mrb[0].mxu0
        %v2639 = vpop.f32.mrb[0].mxu0
        %v2640 = vadd.f32 0.0, %v2639
        %v2641 = vpop.f32.mrb[0].mxu0
        %2642 = vmatprep.mubr.bf16.mxu0 0
        %2643 = vmatmul.mubr.bf16.gmra.mrb[0].mxu0 %v2584
        %v2644 = vpop.f32.mrb[0].mxu0
        %v2645 = vadd.f32 0.0, %v2644
        %v2646 = vpop.f32.mrb[0].mxu0
        %v2647 = vpop.f32.mrb[0].mxu0
        %v2648 = vadd.f32 0.0, %v2647
        %v2649 = vpop.f32.mrb[0].mxu0
        %2650 = vdwg.mxu0
        %2651 = vrot.lane.b32.xlu0 %v1345, 64
        %v2652 = vpop.permute.xlu0 %2651
        %2653 = vrot.lane.b32.xlu0 %v1346, 64
        %v2654 = vpop.permute.xlu0 %2653
        %2655 = vrot.lane.b32.xlu0 %v1347, 64
        %v2656 = vpop.permute.xlu0 %2655
        %2657 = vrot.lane.b32.xlu0 %v1348, 64
        %v2658 = vpop.permute.xlu0 %2657
        %2659 = vrot.lane.b32.xlu0 %v1349, 64
        %v2660 = vpop.permute.xlu0 %2659
        %2661 = vrot.lane.b32.xlu0 %v1350, 64
        %v2662 = vpop.permute.xlu0 %2661
        %2663 = vrot.lane.b32.xlu0 %v1351, 64
        %v2664 = vpop.permute.xlu0 %2663
        %2665 = vrot.lane.b32.xlu0 %v1352, 64
        %v2666 = vpop.permute.xlu0 %2665
        %v2668 = vsel %vm1353, %v2652, 0
        %v2671 = vsel %vm1353, %v2654, 0
        %v2674 = vsel %vm1353, %v2656, 0
        %v2677 = vsel %vm1353, %v2658, 0
        %v2680 = vsel %vm1353, %v2660, 0
        %v2683 = vsel %vm1353, %v2662, 0
        %v2686 = vsel %vm1353, %v2664, 0
        %v2689 = vsel %vm1353, %v2666, 0
        %2691 = vmatprep.subr.bf16.mxu0 0
        %2692 = vmatpush1.bf16.xpose.msra.mxu0 %v2680
        %2693 = vmatprep.subr.bf16.mxu0 0
        %2694 = vmatpush1.bf16.xpose.msra.mxu0 %v2683
        %2695 = vmatprep.subr.bf16.mxu0 0
        %2696 = vmatpush1.bf16.xpose.msra.mxu0 %v2686
        %2697 = vmatprep.subr.bf16.mxu0 0
        %2698 = vmatpush1.bf16.xpose.msra.mxu0 %v2689
        %2699 = vmatprep.subr.bf16.mxu0 0
        %2700 = vmatpush1.bf16.xpose.msra.mxu0 0
        %2701 = vmatprep.subr.bf16.mxu0 0
        %2702 = vmatpush1.bf16.xpose.msra.mxu0 0
        %2703 = vmatprep.subr.bf16.mxu0 0
        %2704 = vmatpush1.bf16.xpose.msra.mxu0 0
        %2705 = vmatprep.subr.bf16.mxu0 0
        %2706 = vmatpush1.bf16.xpose.msra.mxu0 0
        %2707 = vmatprep.subr.bf16.mxu0 0
        %2708 = vmatpush1.bf16.xpose.msra.mxu0 0
        %2709 = vmatprep.subr.bf16.mxu0 0
        %2710 = vmatpush1.bf16.xpose.msra.mxu0 0
        %2711 = vmatprep.subr.bf16.mxu0 0
        %2712 = vmatpush1.bf16.xpose.msra.mxu0 0
        %2713 = vmatprep.subr.bf16.mxu0 0
        %2714 = vmatpush1.bf16.xpose.msra.mxu0 0
        %2715 = vmatprep.subr.bf16.mxu0 0
        %2716 = vmatpush1.bf16.xpose.msra.mxu0 0
        %2717 = vmatprep.subr.bf16.mxu0 0
        %2718 = vmatpush1.bf16.xpose.msra.mxu0 0
        %2719 = vmatprep.subr.bf16.mxu0 0
        %2720 = vmatpush1.bf16.xpose.msra.mxu0 0
        %2721 = vmatprep.subr.bf16.mxu0 0
        %2722 = vmatpush1.bf16.xpose.msra.mxu0 0
        %2723 = vmatprep.mubr.bf16.mxu0 0
        %2724 = vmatmul.mubr.bf16.gmra.mrb[0].mxu0 %v2668
        %v2725 = vpop.f32.mrb[0].mxu0
        %v2726 = vadd.f32 0.0, %v2725
        %v2727 = vpop.f32.mrb[0].mxu0
        %v2728 = vpop.f32.mrb[0].mxu0
        %v2729 = vadd.f32 0.0, %v2728
        %v2730 = vpop.f32.mrb[0].mxu0
        %2731 = vmatprep.mubr.bf16.mxu0 0
        %2732 = vmatmul.mubr.bf16.gmra.mrb[0].mxu0 %v2671
        %v2733 = vpop.f32.mrb[0].mxu0
        %v2734 = vadd.f32 0.0, %v2733
        %v2735 = vpop.f32.mrb[0].mxu0
        %v2736 = vpop.f32.mrb[0].mxu0
        %v2737 = vadd.f32 0.0, %v2736
        %v2738 = vpop.f32.mrb[0].mxu0
        %2739 = vmatprep.mubr.bf16.mxu0 0
        %2740 = vmatmul.mubr.bf16.gmra.mrb[0].mxu0 %v2674
        %v2741 = vpop.f32.mrb[0].mxu0
        %v2742 = vadd.f32 0.0, %v2741
        %v2743 = vpop.f32.mrb[0].mxu0
        %v2744 = vpop.f32.mrb[0].mxu0
        %v2745 = vadd.f32 0.0, %v2744
        %v2746 = vpop.f32.mrb[0].mxu0
        %2747 = vmatprep.mubr.bf16.mxu0 0
        %2748 = vmatmul.mubr.bf16.gmra.mrb[0].mxu0 %v2677
        %v2749 = vpop.f32.mrb[0].mxu0
        %v2750 = vadd.f32 0.0, %v2749
        %v2751 = vpop.f32.mrb[0].mxu0
        %v2752 = vpop.f32.mrb[0].mxu0
        %v2753 = vadd.f32 0.0, %v2752
        %v2754 = vpop.f32.mrb[0].mxu0
        %2755 = vdwg.mxu0
        %v2756 = vsel %vm1443, %v2726, -inf
        %2757 = vmax.xlane.f32.xlu0 %v2756
        %v2758 = vpop.xlane.xlu0 %2757
        %v2759 = vsel %vm1443, %v2729, -inf
        %2760 = vmax.xlane.f32.xlu0 %v2759
        %v2761 = vpop.xlane.xlu0 %2760
        %v2762 = vsel %vm1443, %v2734, -inf
        %2763 = vmax.xlane.f32.xlu0 %v2762
        %v2764 = vpop.xlane.xlu0 %2763
        %v2765 = vsel %vm1443, %v2737, -inf
        %2766 = vmax.xlane.f32.xlu0 %v2765
        %v2767 = vpop.xlane.xlu0 %2766
        %v2768 = vsel %vm1443, %v2742, -inf
        %2769 = vmax.xlane.f32.xlu0 %v2768
        %v2770 = vpop.xlane.xlu0 %2769
        %v2771 = vsel %vm1443, %v2745, -inf
        %2772 = vmax.xlane.f32.xlu0 %v2771
        %v2773 = vpop.xlane.xlu0 %2772
        %v2774 = vsel %vm1443, %v2750, -inf
        %2775 = vmax.xlane.f32.xlu0 %v2774
        %v2776 = vpop.xlane.xlu0 %2775
        %v2777 = vsel %vm1443, %v2753, -inf
        %2778 = vmax.xlane.f32.xlu0 %v2777
        %v2779 = vpop.xlane.xlu0 %2778
        %v2780 = vsub.f32 %v2726, %v2758
        %v2781 = vsub.f32 %v2729, %v2761
        %v2782 = vsub.f32 %v2734, %v2764
        %v2783 = vsub.f32 %v2737, %v2767
        %v2784 = vsub.f32 %v2742, %v2770
        %v2785 = vsub.f32 %v2745, %v2773
        %v2786 = vsub.f32 %v2750, %v2776
        %v2787 = vsub.f32 %v2753, %v2779
        %v2788 = vmul.f32 %v2780, 1.442695
        %v2789 = vpow.pop %v2788
        %v2790 = vmul.f32 %v2781, 1.442695
        %v2791 = vpow.pop %v2790
        %v2792 = vmul.f32 %v2782, 1.442695
        %v2793 = vpow.pop %v2792
        %v2794 = vmul.f32 %v2783, 1.442695
        %v2795 = vpow.pop %v2794
        %v2796 = vmul.f32 %v2784, 1.442695
        %v2797 = vpow.pop %v2796
        %v2798 = vmul.f32 %v2785, 1.442695
        %v2799 = vpow.pop %v2798
        %v2800 = vmul.f32 %v2786, 1.442695
        %v2801 = vpow.pop %v2800
        %v2802 = vmul.f32 %v2787, 1.442695
        %v2803 = vpow.pop %v2802
        %v2804 = vsel %vm1443, %v2789, 0.0
        %2805 = vadd.xlane.f32.xlu0 %v2804
        %v2806 = vpop.xlane.xlu0 %2805
        %v2807 = vsel %vm1443, %v2791, 0.0
        %2808 = vadd.xlane.f32.xlu0 %v2807
        %v2809 = vpop.xlane.xlu0 %2808
        %v2810 = vsel %vm1443, %v2793, 0.0
        %2811 = vadd.xlane.f32.xlu0 %v2810
        %v2812 = vpop.xlane.xlu0 %2811
        %v2813 = vsel %vm1443, %v2795, 0.0
        %2814 = vadd.xlane.f32.xlu0 %v2813
        %v2815 = vpop.xlane.xlu0 %2814
        %v2816 = vsel %vm1443, %v2797, 0.0
        %2817 = vadd.xlane.f32.xlu0 %v2816
        %v2818 = vpop.xlane.xlu0 %2817
        %v2819 = vsel %vm1443, %v2799, 0.0
        %2820 = vadd.xlane.f32.xlu0 %v2819
        %v2821 = vpop.xlane.xlu0 %2820
        %v2822 = vsel %vm1443, %v2801, 0.0
        %2823 = vadd.xlane.f32.xlu0 %v2822
        %v2824 = vpop.xlane.xlu0 %2823
        %v2825 = vsel %vm1443, %v2803, 0.0
        %2826 = vadd.xlane.f32.xlu0 %v2825
        %v2827 = vpop.xlane.xlu0 %2826
        %v2828 = vrcp.pop %v2806
        %v2829 = vrcp.pop %v2809
        %v2830 = vrcp.pop %v2812
        %v2831 = vrcp.pop %v2815
        %v2832 = vrcp.pop %v2818
        %v2833 = vrcp.pop %v2821
        %v2834 = vrcp.pop %v2824
        %v2835 = vrcp.pop %v2827
        %v2836 = vmul.f32 %v2789, %v2828
        %v2837 = vmul.f32 %v2791, %v2829
        %v2838 = vmul.f32 %v2793, %v2830
        %v2839 = vmul.f32 %v2795, %v2831
        %v2840 = vmul.f32 %v2797, %v2832
        %v2841 = vmul.f32 %v2799, %v2833
        %v2842 = vmul.f32 %v2801, %v2834
        %v2843 = vmul.f32 %v2803, %v2835
        %2844 = vrot.lane.b32.xlu0 %v1173, 64
        %v2845 = vpop.permute.xlu0 %2844
        %2846 = vrot.lane.b32.xlu0 %v1177, 64
        %v2847 = vpop.permute.xlu0 %2846
        %2848 = vrot.lane.b32.xlu0 %v1183, 64
        %v2849 = vpop.permute.xlu0 %2848
        %2850 = vrot.lane.b32.xlu0 %v1187, 64
        %v2851 = vpop.permute.xlu0 %2850
        %2852 = vrot.lane.b32.xlu0 %v1193, 64
        %v2853 = vpop.permute.xlu0 %2852
        %2854 = vrot.lane.b32.xlu0 %v1197, 64
        %v2855 = vpop.permute.xlu0 %2854
        %2856 = vrot.lane.b32.xlu0 %v1203, 64
        %v2857 = vpop.permute.xlu0 %2856
        %2858 = vrot.lane.b32.xlu0 %v1207, 64
        %v2859 = vpop.permute.xlu0 %2858
        %2868 = vrot.lane.b32.xlu0 %v1329, 80
        %v2869 = vpop.permute.xlu0 %2868
        %2870 = vrot.lane.b32.xlu0 %v1330, 80
        %v2871 = vpop.permute.xlu0 %2870
        %2872 = vrot.lane.b32.xlu0 %v1331, 80
        %v2873 = vpop.permute.xlu0 %2872
        %2874 = vrot.lane.b32.xlu0 %v1332, 80
        %v2875 = vpop.permute.xlu0 %2874
        %2876 = vrot.lane.b32.xlu0 %v1333, 80
        %v2877 = vpop.permute.xlu0 %2876
        %2878 = vrot.lane.b32.xlu0 %v1334, 80
        %v2879 = vpop.permute.xlu0 %2878
        %2880 = vrot.lane.b32.xlu0 %v1335, 80
        %v2881 = vpop.permute.xlu0 %2880
        %2882 = vrot.lane.b32.xlu0 %v1336, 80
        %v2883 = vpop.permute.xlu0 %2882
        %v2892 = vsel %vm1353, %v2845, %v2869
        %v2893 = vsel %vm1353, %v2847, %v2871
        %v2894 = vsel %vm1353, %v2849, %v2873
        %v2895 = vsel %vm1353, %v2851, %v2875
        %v2896 = vsel %vm1353, %v2853, %v2877
        %v2897 = vsel %vm1353, %v2855, %v2879
        %v2898 = vsel %vm1353, %v2857, %v2881
        %v2899 = vsel %vm1353, %v2859, %v2883
        %v2900 = vpack.c.bf16 %v2837, %v2836
        %v2901 = vpack.c.bf16 %v2839, %v2838
        %v2902 = vpack.c.bf16 %v2841, %v2840
        %v2903 = vpack.c.bf16 %v2843, %v2842
        %v2904 = vpack.c.bf16 %v2893, %v2892
        %v2905 = vpack.c.bf16 %v2895, %v2894
        %v2906 = vpack.c.bf16 %v2897, %v2896
        %v2907 = vpack.c.bf16 %v2899, %v2898
        %v2909 = vsel %vm1443, %v2900, 0
        %v2912 = vsel %vm1443, %v2901, 0
        %v2915 = vsel %vm1443, %v2902, 0
        %v2918 = vsel %vm1443, %v2903, 0
        %2920 = vmatprep.subr.bf16.mxu0 0
        %2921 = vmatpush1.bf16.msra.mxu0 %v2904
        %2922 = vmatprep.subr.bf16.mxu0 0
        %2923 = vmatpush1.bf16.msra.mxu0 %v2905
        %2924 = vmatprep.subr.bf16.mxu0 0
        %2925 = vmatpush1.bf16.msra.mxu0 %v2906
        %2926 = vmatprep.subr.bf16.mxu0 0
        %2927 = vmatpush1.bf16.msra.mxu0 %v2907
        %2928 = vmatprep.subr.bf16.mxu0 0
        %2929 = vmatpush1.bf16.msra.mxu0 0
        %2930 = vmatprep.subr.bf16.mxu0 0
        %2931 = vmatpush1.bf16.msra.mxu0 0
        %2932 = vmatprep.subr.bf16.mxu0 0
        %2933 = vmatpush1.bf16.msra.mxu0 0
        %2934 = vmatprep.subr.bf16.mxu0 0
        %2935 = vmatpush1.bf16.msra.mxu0 0
        %2936 = vmatprep.subr.bf16.mxu0 0
        %2937 = vmatpush1.bf16.msra.mxu0 0
        %2938 = vmatprep.subr.bf16.mxu0 0
        %2939 = vmatpush1.bf16.msra.mxu0 0
        %2940 = vmatprep.subr.bf16.mxu0 0
        %2941 = vmatpush1.bf16.msra.mxu0 0
        %2942 = vmatprep.subr.bf16.mxu0 0
        %2943 = vmatpush1.bf16.msra.mxu0 0
        %2944 = vmatprep.subr.bf16.mxu0 0
        %2945 = vmatpush1.bf16.msra.mxu0 0
        %2946 = vmatprep.subr.bf16.mxu0 0
        %2947 = vmatpush1.bf16.msra.mxu0 0
        %2948 = vmatprep.subr.bf16.mxu0 0
        %2949 = vmatpush1.bf16.msra.mxu0 0
        %2950 = vmatprep.subr.bf16.mxu0 0
        %2951 = vmatpush1.bf16.msra.mxu0 0
        %2952 = vmatprep.mubr.bf16.mxu0 0
        %2953 = vmatmul.mubr.bf16.gmra.mrb[0].mxu0 %v2909
        %v2954 = vpop.f32.mrb[0].mxu0
        %v2955 = vadd.f32 0.0, %v2954
        %v2956 = vpop.f32.mrb[0].mxu0
        %v2957 = vpop.f32.mrb[0].mxu0
        %v2958 = vadd.f32 0.0, %v2957
        %v2959 = vpop.f32.mrb[0].mxu0
        %2960 = vmatprep.mubr.bf16.mxu0 0
        %2961 = vmatmul.mubr.bf16.gmra.mrb[0].mxu0 %v2912
        %v2962 = vpop.f32.mrb[0].mxu0
        %v2963 = vadd.f32 0.0, %v2962
        %v2964 = vpop.f32.mrb[0].mxu0
        %v2965 = vpop.f32.mrb[0].mxu0
        %v2966 = vadd.f32 0.0, %v2965
        %v2967 = vpop.f32.mrb[0].mxu0
        %2968 = vmatprep.mubr.bf16.mxu0 0
        %2969 = vmatmul.mubr.bf16.gmra.mrb[0].mxu0 %v2915
        %v2970 = vpop.f32.mrb[0].mxu0
        %v2971 = vadd.f32 0.0, %v2970
        %v2972 = vpop.f32.mrb[0].mxu0
        %v2973 = vpop.f32.mrb[0].mxu0
        %v2974 = vadd.f32 0.0, %v2973
        %v2975 = vpop.f32.mrb[0].mxu0
        %2976 = vmatprep.mubr.bf16.mxu0 0
        %2977 = vmatmul.mubr.bf16.gmra.mrb[0].mxu0 %v2918
        %v2978 = vpop.f32.mrb[0].mxu0
        %v2979 = vadd.f32 0.0, %v2978
        %v2980 = vpop.f32.mrb[0].mxu0
        %v2981 = vpop.f32.mrb[0].mxu0
        %v2982 = vadd.f32 0.0, %v2981
        %v2983 = vpop.f32.mrb[0].mxu0
        %2984 = vdwg.mxu0
        %2985 = vrot.lane.b32.xlu0 %v1345, 48
        %v2986 = vpop.permute.xlu0 %2985
        %2987 = vrot.lane.b32.xlu0 %v1346, 48
        %v2988 = vpop.permute.xlu0 %2987
        %2989 = vrot.lane.b32.xlu0 %v1347, 48
        %v2990 = vpop.permute.xlu0 %2989
        %2991 = vrot.lane.b32.xlu0 %v1348, 48
        %v2992 = vpop.permute.xlu0 %2991
        %2993 = vrot.lane.b32.xlu0 %v1349, 48
        %v2994 = vpop.permute.xlu0 %2993
        %2995 = vrot.lane.b32.xlu0 %v1350, 48
        %v2996 = vpop.permute.xlu0 %2995
        %2997 = vrot.lane.b32.xlu0 %v1351, 48
        %v2998 = vpop.permute.xlu0 %2997
        %2999 = vrot.lane.b32.xlu0 %v1352, 48
        %v3000 = vpop.permute.xlu0 %2999
        %v3002 = vsel %vm1353, %v2986, 0
        %v3005 = vsel %vm1353, %v2988, 0
        %v3008 = vsel %vm1353, %v2990, 0
        %v3011 = vsel %vm1353, %v2992, 0
        %v3014 = vsel %vm1353, %v2994, 0
        %v3017 = vsel %vm1353, %v2996, 0
        %v3020 = vsel %vm1353, %v2998, 0
        %v3023 = vsel %vm1353, %v3000, 0
        %3025 = vmatprep.subr.bf16.mxu0 0
        %3026 = vmatpush1.bf16.xpose.msra.mxu0 %v3014
        %3027 = vmatprep.subr.bf16.mxu0 0
        %3028 = vmatpush1.bf16.xpose.msra.mxu0 %v3017
        %3029 = vmatprep.subr.bf16.mxu0 0
        %3030 = vmatpush1.bf16.xpose.msra.mxu0 %v3020
        %3031 = vmatprep.subr.bf16.mxu0 0
        %3032 = vmatpush1.bf16.xpose.msra.mxu0 %v3023
        %3033 = vmatprep.subr.bf16.mxu0 0
        %3034 = vmatpush1.bf16.xpose.msra.mxu0 0
        %3035 = vmatprep.subr.bf16.mxu0 0
        %3036 = vmatpush1.bf16.xpose.msra.mxu0 0
        %3037 = vmatprep.subr.bf16.mxu0 0
        %3038 = vmatpush1.bf16.xpose.msra.mxu0 0
        %3039 = vmatprep.subr.bf16.mxu0 0
        %3040 = vmatpush1.bf16.xpose.msra.mxu0 0
        %3041 = vmatprep.subr.bf16.mxu0 0
        %3042 = vmatpush1.bf16.xpose.msra.mxu0 0
        %3043 = vmatprep.subr.bf16.mxu0 0
        %3044 = vmatpush1.bf16.xpose.msra.mxu0 0
        %3045 = vmatprep.subr.bf16.mxu0 0
        %3046 = vmatpush1.bf16.xpose.msra.mxu0 0
        %3047 = vmatprep.subr.bf16.mxu0 0
        %3048 = vmatpush1.bf16.xpose.msra.mxu0 0
        %3049 = vmatprep.subr.bf16.mxu0 0
        %3050 = vmatpush1.bf16.xpose.msra.mxu0 0
        %3051 = vmatprep.subr.bf16.mxu0 0
        %3052 = vmatpush1.bf16.xpose.msra.mxu0 0
        %3053 = vmatprep.subr.bf16.mxu0 0
        %3054 = vmatpush1.bf16.xpose.msra.mxu0 0
        %3055 = vmatprep.subr.bf16.mxu0 0
        %3056 = vmatpush1.bf16.xpose.msra.mxu0 0
        %3057 = vmatprep.mubr.bf16.mxu0 0
        %3058 = vmatmul.mubr.bf16.gmra.mrb[0].mxu0 %v3002
        %v3059 = vpop.f32.mrb[0].mxu0
        %v3060 = vadd.f32 0.0, %v3059
        %v3061 = vpop.f32.mrb[0].mxu0
        %v3062 = vpop.f32.mrb[0].mxu0
        %v3063 = vadd.f32 0.0, %v3062
        %v3064 = vpop.f32.mrb[0].mxu0
        %3065 = vmatprep.mubr.bf16.mxu0 0
        %3066 = vmatmul.mubr.bf16.gmra.mrb[0].mxu0 %v3005
        %v3067 = vpop.f32.mrb[0].mxu0
        %v3068 = vadd.f32 0.0, %v3067
        %v3069 = vpop.f32.mrb[0].mxu0
        %v3070 = vpop.f32.mrb[0].mxu0
        %v3071 = vadd.f32 0.0, %v3070
        %v3072 = vpop.f32.mrb[0].mxu0
        %3073 = vmatprep.mubr.bf16.mxu0 0
        %3074 = vmatmul.mubr.bf16.gmra.mrb[0].mxu0 %v3008
        %v3075 = vpop.f32.mrb[0].mxu0
        %v3076 = vadd.f32 0.0, %v3075
        %v3077 = vpop.f32.mrb[0].mxu0
        %v3078 = vpop.f32.mrb[0].mxu0
        %v3079 = vadd.f32 0.0, %v3078
        %v3080 = vpop.f32.mrb[0].mxu0
        %3081 = vmatprep.mubr.bf16.mxu0 0
        %3082 = vmatmul.mubr.bf16.gmra.mrb[0].mxu0 %v3011
        %v3083 = vpop.f32.mrb[0].mxu0
        %v3084 = vadd.f32 0.0, %v3083
        %v3085 = vpop.f32.mrb[0].mxu0
        %v3086 = vpop.f32.mrb[0].mxu0
        %v3087 = vadd.f32 0.0, %v3086
        %v3088 = vpop.f32.mrb[0].mxu0
        %3089 = vdwg.mxu0
        %v3090 = vsel %vm1443, %v3060, -inf
        %3091 = vmax.xlane.f32.xlu0 %v3090
        %v3092 = vpop.xlane.xlu0 %3091
        %v3093 = vsel %vm1443, %v3063, -inf
        %3094 = vmax.xlane.f32.xlu0 %v3093
        %v3095 = vpop.xlane.xlu0 %3094
        %v3096 = vsel %vm1443, %v3068, -inf
        %3097 = vmax.xlane.f32.xlu0 %v3096
        %v3098 = vpop.xlane.xlu0 %3097
        %v3099 = vsel %vm1443, %v3071, -inf
        %3100 = vmax.xlane.f32.xlu0 %v3099
        %v3101 = vpop.xlane.xlu0 %3100
        %v3102 = vsel %vm1443, %v3076, -inf
        %3103 = vmax.xlane.f32.xlu0 %v3102
        %v3104 = vpop.xlane.xlu0 %3103
        %v3105 = vsel %vm1443, %v3079, -inf
        %3106 = vmax.xlane.f32.xlu0 %v3105
        %v3107 = vpop.xlane.xlu0 %3106
        %v3108 = vsel %vm1443, %v3084, -inf
        %3109 = vmax.xlane.f32.xlu0 %v3108
        %v3110 = vpop.xlane.xlu0 %3109
        %v3111 = vsel %vm1443, %v3087, -inf
        %3112 = vmax.xlane.f32.xlu0 %v3111
        %v3113 = vpop.xlane.xlu0 %3112
        %v3114 = vsub.f32 %v3060, %v3092
        %v3115 = vsub.f32 %v3063, %v3095
        %v3116 = vsub.f32 %v3068, %v3098
        %v3117 = vsub.f32 %v3071, %v3101
        %v3118 = vsub.f32 %v3076, %v3104
        %v3119 = vsub.f32 %v3079, %v3107
        %v3120 = vsub.f32 %v3084, %v3110
        %v3121 = vsub.f32 %v3087, %v3113
        %v3122 = vmul.f32 %v3114, 1.442695
        %v3123 = vpow.pop %v3122
        %v3124 = vmul.f32 %v3115, 1.442695
        %v3125 = vpow.pop %v3124
        %v3126 = vmul.f32 %v3116, 1.442695
        %v3127 = vpow.pop %v3126
        %v3128 = vmul.f32 %v3117, 1.442695
        %v3129 = vpow.pop %v3128
        %v3130 = vmul.f32 %v3118, 1.442695
        %v3131 = vpow.pop %v3130
        %v3132 = vmul.f32 %v3119, 1.442695
        %v3133 = vpow.pop %v3132
        %v3134 = vmul.f32 %v3120, 1.442695
        %v3135 = vpow.pop %v3134
        %v3136 = vmul.f32 %v3121, 1.442695
        %v3137 = vpow.pop %v3136
        %v3138 = vsel %vm1443, %v3123, 0.0
        %3139 = vadd.xlane.f32.xlu0 %v3138
        %v3140 = vpop.xlane.xlu0 %3139
        %v3141 = vsel %vm1443, %v3125, 0.0
        %3142 = vadd.xlane.f32.xlu0 %v3141
        %v3143 = vpop.xlane.xlu0 %3142
        %v3144 = vsel %vm1443, %v3127, 0.0
        %3145 = vadd.xlane.f32.xlu0 %v3144
        %v3146 = vpop.xlane.xlu0 %3145
        %v3147 = vsel %vm1443, %v3129, 0.0
        %3148 = vadd.xlane.f32.xlu0 %v3147
        %v3149 = vpop.xlane.xlu0 %3148
        %v3150 = vsel %vm1443, %v3131, 0.0
        %3151 = vadd.xlane.f32.xlu0 %v3150
        %v3152 = vpop.xlane.xlu0 %3151
        %v3153 = vsel %vm1443, %v3133, 0.0
        %3154 = vadd.xlane.f32.xlu0 %v3153
        %v3155 = vpop.xlane.xlu0 %3154
        %v3156 = vsel %vm1443, %v3135, 0.0
        %3157 = vadd.xlane.f32.xlu0 %v3156
        %v3158 = vpop.xlane.xlu0 %3157
        %v3159 = vsel %vm1443, %v3137, 0.0
        %3160 = vadd.xlane.f32.xlu0 %v3159
        %v3161 = vpop.xlane.xlu0 %3160
        %v3162 = vrcp.pop %v3140
        %v3163 = vrcp.pop %v3143
        %v3164 = vrcp.pop %v3146
        %v3165 = vrcp.pop %v3149
        %v3166 = vrcp.pop %v3152
        %v3167 = vrcp.pop %v3155
        %v3168 = vrcp.pop %v3158
        %v3169 = vrcp.pop %v3161
        %v3170 = vmul.f32 %v3123, %v3162
        %v3171 = vmul.f32 %v3125, %v3163
        %v3172 = vmul.f32 %v3127, %v3164
        %v3173 = vmul.f32 %v3129, %v3165
        %v3174 = vmul.f32 %v3131, %v3166
        %v3175 = vmul.f32 %v3133, %v3167
        %v3176 = vmul.f32 %v3135, %v3168
        %v3177 = vmul.f32 %v3137, %v3169
        %3178 = vrot.lane.b32.xlu0 %v1173, 48
        %v3179 = vpop.permute.xlu0 %3178
        %3180 = vrot.lane.b32.xlu0 %v1177, 48
        %v3181 = vpop.permute.xlu0 %3180
        %3182 = vrot.lane.b32.xlu0 %v1183, 48
        %v3183 = vpop.permute.xlu0 %3182
        %3184 = vrot.lane.b32.xlu0 %v1187, 48
        %v3185 = vpop.permute.xlu0 %3184
        %3186 = vrot.lane.b32.xlu0 %v1193, 48
        %v3187 = vpop.permute.xlu0 %3186
        %3188 = vrot.lane.b32.xlu0 %v1197, 48
        %v3189 = vpop.permute.xlu0 %3188
        %3190 = vrot.lane.b32.xlu0 %v1203, 48
        %v3191 = vpop.permute.xlu0 %3190
        %3192 = vrot.lane.b32.xlu0 %v1207, 48
        %v3193 = vpop.permute.xlu0 %3192
        %3202 = vrot.lane.b32.xlu0 %v1329, 64
        %v3203 = vpop.permute.xlu0 %3202
        %3204 = vrot.lane.b32.xlu0 %v1330, 64
        %v3205 = vpop.permute.xlu0 %3204
        %3206 = vrot.lane.b32.xlu0 %v1331, 64
        %v3207 = vpop.permute.xlu0 %3206
        %3208 = vrot.lane.b32.xlu0 %v1332, 64
        %v3209 = vpop.permute.xlu0 %3208
        %3210 = vrot.lane.b32.xlu0 %v1333, 64
        %v3211 = vpop.permute.xlu0 %3210
        %3212 = vrot.lane.b32.xlu0 %v1334, 64
        %v3213 = vpop.permute.xlu0 %3212
        %3214 = vrot.lane.b32.xlu0 %v1335, 64
        %v3215 = vpop.permute.xlu0 %3214
        %3216 = vrot.lane.b32.xlu0 %v1336, 64
        %v3217 = vpop.permute.xlu0 %3216
        %v3226 = vsel %vm1353, %v3179, %v3203
        %v3227 = vsel %vm1353, %v3181, %v3205
        %v3228 = vsel %vm1353, %v3183, %v3207
        %v3229 = vsel %vm1353, %v3185, %v3209
        %v3230 = vsel %vm1353, %v3187, %v3211
        %v3231 = vsel %vm1353, %v3189, %v3213
        %v3232 = vsel %vm1353, %v3191, %v3215
        %v3233 = vsel %vm1353, %v3193, %v3217
        %v3234 = vpack.c.bf16 %v3171, %v3170
        %v3235 = vpack.c.bf16 %v3173, %v3172
        %v3236 = vpack.c.bf16 %v3175, %v3174
        %v3237 = vpack.c.bf16 %v3177, %v3176
        %v3238 = vpack.c.bf16 %v3227, %v3226
        %v3239 = vpack.c.bf16 %v3229, %v3228
        %v3240 = vpack.c.bf16 %v3231, %v3230
        %v3241 = vpack.c.bf16 %v3233, %v3232
        %v3243 = vsel %vm1443, %v3234, 0
        %v3246 = vsel %vm1443, %v3235, 0
        %v3249 = vsel %vm1443, %v3236, 0
        %v3252 = vsel %vm1443, %v3237, 0
        %3254 = vmatprep.subr.bf16.mxu0 0
        %3255 = vmatpush1.bf16.msra.mxu0 %v3238
        %3256 = vmatprep.subr.bf16.mxu0 0
        %3257 = vmatpush1.bf16.msra.mxu0 %v3239
        %3258 = vmatprep.subr.bf16.mxu0 0
        %3259 = vmatpush1.bf16.msra.mxu0 %v3240
        %3260 = vmatprep.subr.bf16.mxu0 0
        %3261 = vmatpush1.bf16.msra.mxu0 %v3241
        %3262 = vmatprep.subr.bf16.mxu0 0
        %3263 = vmatpush1.bf16.msra.mxu0 0
        %3264 = vmatprep.subr.bf16.mxu0 0
        %3265 = vmatpush1.bf16.msra.mxu0 0
        %3266 = vmatprep.subr.bf16.mxu0 0
        %3267 = vmatpush1.bf16.msra.mxu0 0
        %3268 = vmatprep.subr.bf16.mxu0 0
        %3269 = vmatpush1.bf16.msra.mxu0 0
        %3270 = vmatprep.subr.bf16.mxu0 0
        %3271 = vmatpush1.bf16.msra.mxu0 0
        %3272 = vmatprep.subr.bf16.mxu0 0
        %3273 = vmatpush1.bf16.msra.mxu0 0
        %3274 = vmatprep.subr.bf16.mxu0 0
        %3275 = vmatpush1.bf16.msra.mxu0 0
        %3276 = vmatprep.subr.bf16.mxu0 0
        %3277 = vmatpush1.bf16.msra.mxu0 0
        %3278 = vmatprep.subr.bf16.mxu0 0
        %3279 = vmatpush1.bf16.msra.mxu0 0
        %3280 = vmatprep.subr.bf16.mxu0 0
        %3281 = vmatpush1.bf16.msra.mxu0 0
        %3282 = vmatprep.subr.bf16.mxu0 0
        %3283 = vmatpush1.bf16.msra.mxu0 0
        %3284 = vmatprep.subr.bf16.mxu0 0
        %3285 = vmatpush1.bf16.msra.mxu0 0
        %3286 = vmatprep.mubr.bf16.mxu0 0
        %3287 = vmatmul.mubr.bf16.gmra.mrb[0].mxu0 %v3243
        %v3288 = vpop.f32.mrb[0].mxu0
        %v3289 = vadd.f32 0.0, %v3288
        %v3290 = vpop.f32.mrb[0].mxu0
        %v3291 = vpop.f32.mrb[0].mxu0
        %v3292 = vadd.f32 0.0, %v3291
        %v3293 = vpop.f32.mrb[0].mxu0
        %3294 = vmatprep.mubr.bf16.mxu0 0
        %3295 = vmatmul.mubr.bf16.gmra.mrb[0].mxu0 %v3246
        %v3296 = vpop.f32.mrb[0].mxu0
        %v3297 = vadd.f32 0.0, %v3296
        %v3298 = vpop.f32.mrb[0].mxu0
        %v3299 = vpop.f32.mrb[0].mxu0
        %v3300 = vadd.f32 0.0, %v3299
        %v3301 = vpop.f32.mrb[0].mxu0
        %3302 = vmatprep.mubr.bf16.mxu0 0
        %3303 = vmatmul.mubr.bf16.gmra.mrb[0].mxu0 %v3249
        %v3304 = vpop.f32.mrb[0].mxu0
        %v3305 = vadd.f32 0.0, %v3304
        %v3306 = vpop.f32.mrb[0].mxu0
        %v3307 = vpop.f32.mrb[0].mxu0
        %v3308 = vadd.f32 0.0, %v3307
        %v3309 = vpop.f32.mrb[0].mxu0
        %3310 = vmatprep.mubr.bf16.mxu0 0
        %3311 = vmatmul.mubr.bf16.gmra.mrb[0].mxu0 %v3252
        %v3312 = vpop.f32.mrb[0].mxu0
        %v3313 = vadd.f32 0.0, %v3312
        %v3314 = vpop.f32.mrb[0].mxu0
        %v3315 = vpop.f32.mrb[0].mxu0
        %v3316 = vadd.f32 0.0, %v3315
        %v3317 = vpop.f32.mrb[0].mxu0
        %3318 = vdwg.mxu0
        %3319 = vrot.lane.b32.xlu0 %v1345, 32
        %v3320 = vpop.permute.xlu0 %3319
        %3321 = vrot.lane.b32.xlu0 %v1346, 32
        %v3322 = vpop.permute.xlu0 %3321
        %3323 = vrot.lane.b32.xlu0 %v1347, 32
        %v3324 = vpop.permute.xlu0 %3323
        %3325 = vrot.lane.b32.xlu0 %v1348, 32
        %v3326 = vpop.permute.xlu0 %3325
        %3327 = vrot.lane.b32.xlu0 %v1349, 32
        %v3328 = vpop.permute.xlu0 %3327
        %3329 = vrot.lane.b32.xlu0 %v1350, 32
        %v3330 = vpop.permute.xlu0 %3329
        %3331 = vrot.lane.b32.xlu0 %v1351, 32
        %v3332 = vpop.permute.xlu0 %3331
        %3333 = vrot.lane.b32.xlu0 %v1352, 32
        %v3334 = vpop.permute.xlu0 %3333
        %v3336 = vsel %vm1353, %v3320, 0
        %v3339 = vsel %vm1353, %v3322, 0
        %v3342 = vsel %vm1353, %v3324, 0
        %v3345 = vsel %vm1353, %v3326, 0
        %v3348 = vsel %vm1353, %v3328, 0
        %v3351 = vsel %vm1353, %v3330, 0
        %v3354 = vsel %vm1353, %v3332, 0
        %v3357 = vsel %vm1353, %v3334, 0
        %3359 = vmatprep.subr.bf16.mxu0 0
        %3360 = vmatpush1.bf16.xpose.msra.mxu0 %v3348
        %3361 = vmatprep.subr.bf16.mxu0 0
        %3362 = vmatpush1.bf16.xpose.msra.mxu0 %v3351
        %3363 = vmatprep.subr.bf16.mxu0 0
        %3364 = vmatpush1.bf16.xpose.msra.mxu0 %v3354
        %3365 = vmatprep.subr.bf16.mxu0 0
        %3366 = vmatpush1.bf16.xpose.msra.mxu0 %v3357
        %3367 = vmatprep.subr.bf16.mxu0 0
        %3368 = vmatpush1.bf16.xpose.msra.mxu0 0
        %3369 = vmatprep.subr.bf16.mxu0 0
        %3370 = vmatpush1.bf16.xpose.msra.mxu0 0
        %3371 = vmatprep.subr.bf16.mxu0 0
        %3372 = vmatpush1.bf16.xpose.msra.mxu0 0
        %3373 = vmatprep.subr.bf16.mxu0 0
        %3374 = vmatpush1.bf16.xpose.msra.mxu0 0
        %3375 = vmatprep.subr.bf16.mxu0 0
        %3376 = vmatpush1.bf16.xpose.msra.mxu0 0
        %3377 = vmatprep.subr.bf16.mxu0 0
        %3378 = vmatpush1.bf16.xpose.msra.mxu0 0
        %3379 = vmatprep.subr.bf16.mxu0 0
        %3380 = vmatpush1.bf16.xpose.msra.mxu0 0
        %3381 = vmatprep.subr.bf16.mxu0 0
        %3382 = vmatpush1.bf16.xpose.msra.mxu0 0
        %3383 = vmatprep.subr.bf16.mxu0 0
        %3384 = vmatpush1.bf16.xpose.msra.mxu0 0
        %3385 = vmatprep.subr.bf16.mxu0 0
        %3386 = vmatpush1.bf16.xpose.msra.mxu0 0
        %3387 = vmatprep.subr.bf16.mxu0 0
        %3388 = vmatpush1.bf16.xpose.msra.mxu0 0
        %3389 = vmatprep.subr.bf16.mxu0 0
        %3390 = vmatpush1.bf16.xpose.msra.mxu0 0
        %3391 = vmatprep.mubr.bf16.mxu0 0
        %3392 = vmatmul.mubr.bf16.gmra.mrb[0].mxu0 %v3336
        %v3393 = vpop.f32.mrb[0].mxu0
        %v3394 = vadd.f32 0.0, %v3393
        %v3395 = vpop.f32.mrb[0].mxu0
        %v3396 = vpop.f32.mrb[0].mxu0
        %v3397 = vadd.f32 0.0, %v3396
        %v3398 = vpop.f32.mrb[0].mxu0
        %3399 = vmatprep.mubr.bf16.mxu0 0
        %3400 = vmatmul.mubr.bf16.gmra.mrb[0].mxu0 %v3339
        %v3401 = vpop.f32.mrb[0].mxu0
        %v3402 = vadd.f32 0.0, %v3401
        %v3403 = vpop.f32.mrb[0].mxu0
        %v3404 = vpop.f32.mrb[0].mxu0
        %v3405 = vadd.f32 0.0, %v3404
        %v3406 = vpop.f32.mrb[0].mxu0
        %3407 = vmatprep.mubr.bf16.mxu0 0
        %3408 = vmatmul.mubr.bf16.gmra.mrb[0].mxu0 %v3342
        %v3409 = vpop.f32.mrb[0].mxu0
        %v3410 = vadd.f32 0.0, %v3409
        %v3411 = vpop.f32.mrb[0].mxu0
        %v3412 = vpop.f32.mrb[0].mxu0
        %v3413 = vadd.f32 0.0, %v3412
        %v3414 = vpop.f32.mrb[0].mxu0
        %3415 = vmatprep.mubr.bf16.mxu0 0
        %3416 = vmatmul.mubr.bf16.gmra.mrb[0].mxu0 %v3345
        %v3417 = vpop.f32.mrb[0].mxu0
        %v3418 = vadd.f32 0.0, %v3417
        %v3419 = vpop.f32.mrb[0].mxu0
        %v3420 = vpop.f32.mrb[0].mxu0
        %v3421 = vadd.f32 0.0, %v3420
        %v3422 = vpop.f32.mrb[0].mxu0
        %3423 = vdwg.mxu0
        %v3424 = vsel %vm1443, %v3394, -inf
        %3425 = vmax.xlane.f32.xlu0 %v3424
        %v3426 = vpop.xlane.xlu0 %3425
        %v3427 = vsel %vm1443, %v3397, -inf
        %3428 = vmax.xlane.f32.xlu0 %v3427
        %v3429 = vpop.xlane.xlu0 %3428
        %v3430 = vsel %vm1443, %v3402, -inf
        %3431 = vmax.xlane.f32.xlu0 %v3430
        %v3432 = vpop.xlane.xlu0 %3431
        %v3433 = vsel %vm1443, %v3405, -inf
        %3434 = vmax.xlane.f32.xlu0 %v3433
        %v3435 = vpop.xlane.xlu0 %3434
        %v3436 = vsel %vm1443, %v3410, -inf
        %3437 = vmax.xlane.f32.xlu0 %v3436
        %v3438 = vpop.xlane.xlu0 %3437
        %v3439 = vsel %vm1443, %v3413, -inf
        %3440 = vmax.xlane.f32.xlu0 %v3439
        %v3441 = vpop.xlane.xlu0 %3440
        %v3442 = vsel %vm1443, %v3418, -inf
        %3443 = vmax.xlane.f32.xlu0 %v3442
        %v3444 = vpop.xlane.xlu0 %3443
        %v3445 = vsel %vm1443, %v3421, -inf
        %3446 = vmax.xlane.f32.xlu0 %v3445
        %v3447 = vpop.xlane.xlu0 %3446
        %v3448 = vsub.f32 %v3394, %v3426
        %v3449 = vsub.f32 %v3397, %v3429
        %v3450 = vsub.f32 %v3402, %v3432
        %v3451 = vsub.f32 %v3405, %v3435
        %v3452 = vsub.f32 %v3410, %v3438
        %v3453 = vsub.f32 %v3413, %v3441
        %v3454 = vsub.f32 %v3418, %v3444
        %v3455 = vsub.f32 %v3421, %v3447
        %v3456 = vmul.f32 %v3448, 1.442695
        %v3457 = vpow.pop %v3456
        %v3458 = vmul.f32 %v3449, 1.442695
        %v3459 = vpow.pop %v3458
        %v3460 = vmul.f32 %v3450, 1.442695
        %v3461 = vpow.pop %v3460
        %v3462 = vmul.f32 %v3451, 1.442695
        %v3463 = vpow.pop %v3462
        %v3464 = vmul.f32 %v3452, 1.442695
        %v3465 = vpow.pop %v3464
        %v3466 = vmul.f32 %v3453, 1.442695
        %v3467 = vpow.pop %v3466
        %v3468 = vmul.f32 %v3454, 1.442695
        %v3469 = vpow.pop %v3468
        %v3470 = vmul.f32 %v3455, 1.442695
        %v3471 = vpow.pop %v3470
        %v3472 = vsel %vm1443, %v3457, 0.0
        %3473 = vadd.xlane.f32.xlu0 %v3472
        %v3474 = vpop.xlane.xlu0 %3473
        %v3475 = vsel %vm1443, %v3459, 0.0
        %3476 = vadd.xlane.f32.xlu0 %v3475
        %v3477 = vpop.xlane.xlu0 %3476
        %v3478 = vsel %vm1443, %v3461, 0.0
        %3479 = vadd.xlane.f32.xlu0 %v3478
        %v3480 = vpop.xlane.xlu0 %3479
        %v3481 = vsel %vm1443, %v3463, 0.0
        %3482 = vadd.xlane.f32.xlu0 %v3481
        %v3483 = vpop.xlane.xlu0 %3482
        %v3484 = vsel %vm1443, %v3465, 0.0
        %3485 = vadd.xlane.f32.xlu0 %v3484
        %v3486 = vpop.xlane.xlu0 %3485
        %v3487 = vsel %vm1443, %v3467, 0.0
        %3488 = vadd.xlane.f32.xlu0 %v3487
        %v3489 = vpop.xlane.xlu0 %3488
        %v3490 = vsel %vm1443, %v3469, 0.0
        %3491 = vadd.xlane.f32.xlu0 %v3490
        %v3492 = vpop.xlane.xlu0 %3491
        %v3493 = vsel %vm1443, %v3471, 0.0
        %3494 = vadd.xlane.f32.xlu0 %v3493
        %v3495 = vpop.xlane.xlu0 %3494
        %v3496 = vrcp.pop %v3474
        %v3497 = vrcp.pop %v3477
        %v3498 = vrcp.pop %v3480
        %v3499 = vrcp.pop %v3483
        %v3500 = vrcp.pop %v3486
        %v3501 = vrcp.pop %v3489
        %v3502 = vrcp.pop %v3492
        %v3503 = vrcp.pop %v3495
        %v3504 = vmul.f32 %v3457, %v3496
        %v3505 = vmul.f32 %v3459, %v3497
        %v3506 = vmul.f32 %v3461, %v3498
        %v3507 = vmul.f32 %v3463, %v3499
        %v3508 = vmul.f32 %v3465, %v3500
        %v3509 = vmul.f32 %v3467, %v3501
        %v3510 = vmul.f32 %v3469, %v3502
        %v3511 = vmul.f32 %v3471, %v3503
        %3512 = vrot.lane.b32.xlu0 %v1173, 32
        %v3513 = vpop.permute.xlu0 %3512
        %3514 = vrot.lane.b32.xlu0 %v1177, 32
        %v3515 = vpop.permute.xlu0 %3514
        %3516 = vrot.lane.b32.xlu0 %v1183, 32
        %v3517 = vpop.permute.xlu0 %3516
        %3518 = vrot.lane.b32.xlu0 %v1187, 32
        %v3519 = vpop.permute.xlu0 %3518
        %3520 = vrot.lane.b32.xlu0 %v1193, 32
        %v3521 = vpop.permute.xlu0 %3520
        %3522 = vrot.lane.b32.xlu0 %v1197, 32
        %v3523 = vpop.permute.xlu0 %3522
        %3524 = vrot.lane.b32.xlu0 %v1203, 32
        %v3525 = vpop.permute.xlu0 %3524
        %3526 = vrot.lane.b32.xlu0 %v1207, 32
        %v3527 = vpop.permute.xlu0 %3526
        %3536 = vrot.lane.b32.xlu0 %v1329, 48
        %v3537 = vpop.permute.xlu0 %3536
        %3538 = vrot.lane.b32.xlu0 %v1330, 48
        %v3539 = vpop.permute.xlu0 %3538
        %3540 = vrot.lane.b32.xlu0 %v1331, 48
        %v3541 = vpop.permute.xlu0 %3540
        %3542 = vrot.lane.b32.xlu0 %v1332, 48
        %v3543 = vpop.permute.xlu0 %3542
        %3544 = vrot.lane.b32.xlu0 %v1333, 48
        %v3545 = vpop.permute.xlu0 %3544
        %3546 = vrot.lane.b32.xlu0 %v1334, 48
        %v3547 = vpop.permute.xlu0 %3546
        %3548 = vrot.lane.b32.xlu0 %v1335, 48
        %v3549 = vpop.permute.xlu0 %3548
        %3550 = vrot.lane.b32.xlu0 %v1336, 48
        %v3551 = vpop.permute.xlu0 %3550
        %v3560 = vsel %vm1353, %v3513, %v3537
        %v3561 = vsel %vm1353, %v3515, %v3539
        %v3562 = vsel %vm1353, %v3517, %v3541
        %v3563 = vsel %vm1353, %v3519, %v3543
        %v3564 = vsel %vm1353, %v3521, %v3545
        %v3565 = vsel %vm1353, %v3523, %v3547
        %v3566 = vsel %vm1353, %v3525, %v3549
        %v3567 = vsel %vm1353, %v3527, %v3551
        %v3568 = vpack.c.bf16 %v3505, %v3504
        %v3569 = vpack.c.bf16 %v3507, %v3506
        %v3570 = vpack.c.bf16 %v3509, %v3508
        %v3571 = vpack.c.bf16 %v3511, %v3510
        %v3572 = vpack.c.bf16 %v3561, %v3560
        %v3573 = vpack.c.bf16 %v3563, %v3562
        %v3574 = vpack.c.bf16 %v3565, %v3564
        %v3575 = vpack.c.bf16 %v3567, %v3566
        %v3577 = vsel %vm1443, %v3568, 0
        %v3580 = vsel %vm1443, %v3569, 0
        %v3583 = vsel %vm1443, %v3570, 0
        %v3586 = vsel %vm1443, %v3571, 0
        %3588 = vmatprep.subr.bf16.mxu0 0
        %3589 = vmatpush1.bf16.msra.mxu0 %v3572
        %3590 = vmatprep.subr.bf16.mxu0 0
        %3591 = vmatpush1.bf16.msra.mxu0 %v3573
        %3592 = vmatprep.subr.bf16.mxu0 0
        %3593 = vmatpush1.bf16.msra.mxu0 %v3574
        %3594 = vmatprep.subr.bf16.mxu0 0
        %3595 = vmatpush1.bf16.msra.mxu0 %v3575
        %3596 = vmatprep.subr.bf16.mxu0 0
        %3597 = vmatpush1.bf16.msra.mxu0 0
        %3598 = vmatprep.subr.bf16.mxu0 0
        %3599 = vmatpush1.bf16.msra.mxu0 0
        %3600 = vmatprep.subr.bf16.mxu0 0
        %3601 = vmatpush1.bf16.msra.mxu0 0
        %3602 = vmatprep.subr.bf16.mxu0 0
        %3603 = vmatpush1.bf16.msra.mxu0 0
        %3604 = vmatprep.subr.bf16.mxu0 0
        %3605 = vmatpush1.bf16.msra.mxu0 0
        %3606 = vmatprep.subr.bf16.mxu0 0
        %3607 = vmatpush1.bf16.msra.mxu0 0
        %3608 = vmatprep.subr.bf16.mxu0 0
        %3609 = vmatpush1.bf16.msra.mxu0 0
        %3610 = vmatprep.subr.bf16.mxu0 0
        %3611 = vmatpush1.bf16.msra.mxu0 0
        %3612 = vmatprep.subr.bf16.mxu0 0
        %3613 = vmatpush1.bf16.msra.mxu0 0
        %3614 = vmatprep.subr.bf16.mxu0 0
        %3615 = vmatpush1.bf16.msra.mxu0 0
        %3616 = vmatprep.subr.bf16.mxu0 0
        %3617 = vmatpush1.bf16.msra.mxu0 0
        %3618 = vmatprep.subr.bf16.mxu0 0
        %3619 = vmatpush1.bf16.msra.mxu0 0
        %3620 = vmatprep.mubr.bf16.mxu0 0
        %3621 = vmatmul.mubr.bf16.gmra.mrb[0].mxu0 %v3577
        %v3622 = vpop.f32.mrb[0].mxu0
        %v3623 = vadd.f32 0.0, %v3622
        %v3624 = vpop.f32.mrb[0].mxu0
        %v3625 = vpop.f32.mrb[0].mxu0
        %v3626 = vadd.f32 0.0, %v3625
        %v3627 = vpop.f32.mrb[0].mxu0
        %3628 = vmatprep.mubr.bf16.mxu0 0
        %3629 = vmatmul.mubr.bf16.gmra.mrb[0].mxu0 %v3580
        %v3630 = vpop.f32.mrb[0].mxu0
        %v3631 = vadd.f32 0.0, %v3630
        %v3632 = vpop.f32.mrb[0].mxu0
        %v3633 = vpop.f32.mrb[0].mxu0
        %v3634 = vadd.f32 0.0, %v3633
        %v3635 = vpop.f32.mrb[0].mxu0
        %3636 = vmatprep.mubr.bf16.mxu0 0
        %3637 = vmatmul.mubr.bf16.gmra.mrb[0].mxu0 %v3583
        %v3638 = vpop.f32.mrb[0].mxu0
        %v3639 = vadd.f32 0.0, %v3638
        %v3640 = vpop.f32.mrb[0].mxu0
        %v3641 = vpop.f32.mrb[0].mxu0
        %v3642 = vadd.f32 0.0, %v3641
        %v3643 = vpop.f32.mrb[0].mxu0
        %3644 = vmatprep.mubr.bf16.mxu0 0
        %3645 = vmatmul.mubr.bf16.gmra.mrb[0].mxu0 %v3586
        %v3646 = vpop.f32.mrb[0].mxu0
        %v3647 = vadd.f32 0.0, %v3646
        %v3648 = vpop.f32.mrb[0].mxu0
        %v3649 = vpop.f32.mrb[0].mxu0
        %v3650 = vadd.f32 0.0, %v3649
        %v3651 = vpop.f32.mrb[0].mxu0
        %3652 = vdwg.mxu0
        %3653 = vrot.lane.b32.xlu0 %v1345, 16
        %v3654 = vpop.permute.xlu0 %3653
        %3655 = vrot.lane.b32.xlu0 %v1346, 16
        %v3656 = vpop.permute.xlu0 %3655
        %3657 = vrot.lane.b32.xlu0 %v1347, 16
        %v3658 = vpop.permute.xlu0 %3657
        %3659 = vrot.lane.b32.xlu0 %v1348, 16
        %v3660 = vpop.permute.xlu0 %3659
        %3661 = vrot.lane.b32.xlu0 %v1349, 16
        %v3662 = vpop.permute.xlu0 %3661
        %3663 = vrot.lane.b32.xlu0 %v1350, 16
        %v3664 = vpop.permute.xlu0 %3663
        %3665 = vrot.lane.b32.xlu0 %v1351, 16
        %v3666 = vpop.permute.xlu0 %3665
        %3667 = vrot.lane.b32.xlu0 %v1352, 16
        %v3668 = vpop.permute.xlu0 %3667
        %v3670 = vsel %vm1353, %v3654, 0
        %v3673 = vsel %vm1353, %v3656, 0
        %v3676 = vsel %vm1353, %v3658, 0
        %v3679 = vsel %vm1353, %v3660, 0
        %v3682 = vsel %vm1353, %v3662, 0
        %v3685 = vsel %vm1353, %v3664, 0
        %v3688 = vsel %vm1353, %v3666, 0
        %v3691 = vsel %vm1353, %v3668, 0
        %3693 = vmatprep.subr.bf16.mxu0 0
        %3694 = vmatpush1.bf16.xpose.msra.mxu0 %v3682
        %3695 = vmatprep.subr.bf16.mxu0 0
        %3696 = vmatpush1.bf16.xpose.msra.mxu0 %v3685
        %3697 = vmatprep.subr.bf16.mxu0 0
        %3698 = vmatpush1.bf16.xpose.msra.mxu0 %v3688
        %3699 = vmatprep.subr.bf16.mxu0 0
        %3700 = vmatpush1.bf16.xpose.msra.mxu0 %v3691
        %3701 = vmatprep.subr.bf16.mxu0 0
        %3702 = vmatpush1.bf16.xpose.msra.mxu0 0
        %3703 = vmatprep.subr.bf16.mxu0 0
        %3704 = vmatpush1.bf16.xpose.msra.mxu0 0
        %3705 = vmatprep.subr.bf16.mxu0 0
        %3706 = vmatpush1.bf16.xpose.msra.mxu0 0
        %3707 = vmatprep.subr.bf16.mxu0 0
        %3708 = vmatpush1.bf16.xpose.msra.mxu0 0
        %3709 = vmatprep.subr.bf16.mxu0 0
        %3710 = vmatpush1.bf16.xpose.msra.mxu0 0
        %3711 = vmatprep.subr.bf16.mxu0 0
        %3712 = vmatpush1.bf16.xpose.msra.mxu0 0
        %3713 = vmatprep.subr.bf16.mxu0 0
        %3714 = vmatpush1.bf16.xpose.msra.mxu0 0
        %3715 = vmatprep.subr.bf16.mxu0 0
        %3716 = vmatpush1.bf16.xpose.msra.mxu0 0
        %3717 = vmatprep.subr.bf16.mxu0 0
        %3718 = vmatpush1.bf16.xpose.msra.mxu0 0
        %3719 = vmatprep.subr.bf16.mxu0 0
        %3720 = vmatpush1.bf16.xpose.msra.mxu0 0
        %3721 = vmatprep.subr.bf16.mxu0 0
        %3722 = vmatpush1.bf16.xpose.msra.mxu0 0
        %3723 = vmatprep.subr.bf16.mxu0 0
        %3724 = vmatpush1.bf16.xpose.msra.mxu0 0
        %3725 = vmatprep.mubr.bf16.mxu0 0
        %3726 = vmatmul.mubr.bf16.gmra.mrb[0].mxu0 %v3670
        %v3727 = vpop.f32.mrb[0].mxu0
        %v3728 = vadd.f32 0.0, %v3727
        %v3729 = vpop.f32.mrb[0].mxu0
        %v3730 = vpop.f32.mrb[0].mxu0
        %v3731 = vadd.f32 0.0, %v3730
        %v3732 = vpop.f32.mrb[0].mxu0
        %3733 = vmatprep.mubr.bf16.mxu0 0
        %3734 = vmatmul.mubr.bf16.gmra.mrb[0].mxu0 %v3673
        %v3735 = vpop.f32.mrb[0].mxu0
        %v3736 = vadd.f32 0.0, %v3735
        %v3737 = vpop.f32.mrb[0].mxu0
        %v3738 = vpop.f32.mrb[0].mxu0
        %v3739 = vadd.f32 0.0, %v3738
        %v3740 = vpop.f32.mrb[0].mxu0
        %3741 = vmatprep.mubr.bf16.mxu0 0
        %3742 = vmatmul.mubr.bf16.gmra.mrb[0].mxu0 %v3676
        %v3743 = vpop.f32.mrb[0].mxu0
        %v3744 = vadd.f32 0.0, %v3743
        %v3745 = vpop.f32.mrb[0].mxu0
        %v3746 = vpop.f32.mrb[0].mxu0
        %v3747 = vadd.f32 0.0, %v3746
        %v3748 = vpop.f32.mrb[0].mxu0
        %3749 = vmatprep.mubr.bf16.mxu0 0
        %3750 = vmatmul.mubr.bf16.gmra.mrb[0].mxu0 %v3679
        %v3751 = vpop.f32.mrb[0].mxu0
        %v3752 = vadd.f32 0.0, %v3751
        %v3753 = vpop.f32.mrb[0].mxu0
        %v3754 = vpop.f32.mrb[0].mxu0
        %v3755 = vadd.f32 0.0, %v3754
        %v3756 = vpop.f32.mrb[0].mxu0
        %3757 = vdwg.mxu0
        %v3758 = vsel %vm1443, %v3728, -inf
        %3759 = vmax.xlane.f32.xlu0 %v3758
        %v3760 = vpop.xlane.xlu0 %3759
        %v3761 = vsel %vm1443, %v3731, -inf
        %3762 = vmax.xlane.f32.xlu0 %v3761
        %v3763 = vpop.xlane.xlu0 %3762
        %v3764 = vsel %vm1443, %v3736, -inf
        %3765 = vmax.xlane.f32.xlu0 %v3764
        %v3766 = vpop.xlane.xlu0 %3765
        %v3767 = vsel %vm1443, %v3739, -inf
        %3768 = vmax.xlane.f32.xlu0 %v3767
        %v3769 = vpop.xlane.xlu0 %3768
        %v3770 = vsel %vm1443, %v3744, -inf
        %3771 = vmax.xlane.f32.xlu0 %v3770
        %v3772 = vpop.xlane.xlu0 %3771
        %v3773 = vsel %vm1443, %v3747, -inf
        %3774 = vmax.xlane.f32.xlu0 %v3773
        %v3775 = vpop.xlane.xlu0 %3774
        %v3776 = vsel %vm1443, %v3752, -inf
        %3777 = vmax.xlane.f32.xlu0 %v3776
        %v3778 = vpop.xlane.xlu0 %3777
        %v3779 = vsel %vm1443, %v3755, -inf
        %3780 = vmax.xlane.f32.xlu0 %v3779
        %v3781 = vpop.xlane.xlu0 %3780
        %v3782 = vsub.f32 %v3728, %v3760
        %v3783 = vsub.f32 %v3731, %v3763
        %v3784 = vsub.f32 %v3736, %v3766
        %v3785 = vsub.f32 %v3739, %v3769
        %v3786 = vsub.f32 %v3744, %v3772
        %v3787 = vsub.f32 %v3747, %v3775
        %v3788 = vsub.f32 %v3752, %v3778
        %v3789 = vsub.f32 %v3755, %v3781
        %v3790 = vmul.f32 %v3782, 1.442695
        %v3791 = vpow.pop %v3790
        %v3792 = vmul.f32 %v3783, 1.442695
        %v3793 = vpow.pop %v3792
        %v3794 = vmul.f32 %v3784, 1.442695
        %v3795 = vpow.pop %v3794
        %v3796 = vmul.f32 %v3785, 1.442695
        %v3797 = vpow.pop %v3796
        %v3798 = vmul.f32 %v3786, 1.442695
        %v3799 = vpow.pop %v3798
        %v3800 = vmul.f32 %v3787, 1.442695
        %v3801 = vpow.pop %v3800
        %v3802 = vmul.f32 %v3788, 1.442695
        %v3803 = vpow.pop %v3802
        %v3804 = vmul.f32 %v3789, 1.442695
        %v3805 = vpow.pop %v3804
        %v3806 = vsel %vm1443, %v3791, 0.0
        %3807 = vadd.xlane.f32.xlu0 %v3806
        %v3808 = vpop.xlane.xlu0 %3807
        %v3809 = vsel %vm1443, %v3793, 0.0
        %3810 = vadd.xlane.f32.xlu0 %v3809
        %v3811 = vpop.xlane.xlu0 %3810
        %v3812 = vsel %vm1443, %v3795, 0.0
        %3813 = vadd.xlane.f32.xlu0 %v3812
        %v3814 = vpop.xlane.xlu0 %3813
        %v3815 = vsel %vm1443, %v3797, 0.0
        %3816 = vadd.xlane.f32.xlu0 %v3815
        %v3817 = vpop.xlane.xlu0 %3816
        %v3818 = vsel %vm1443, %v3799, 0.0
        %3819 = vadd.xlane.f32.xlu0 %v3818
        %v3820 = vpop.xlane.xlu0 %3819
        %v3821 = vsel %vm1443, %v3801, 0.0
        %3822 = vadd.xlane.f32.xlu0 %v3821
        %v3823 = vpop.xlane.xlu0 %3822
        %v3824 = vsel %vm1443, %v3803, 0.0
        %3825 = vadd.xlane.f32.xlu0 %v3824
        %v3826 = vpop.xlane.xlu0 %3825
        %v3827 = vsel %vm1443, %v3805, 0.0
        %3828 = vadd.xlane.f32.xlu0 %v3827
        %v3829 = vpop.xlane.xlu0 %3828
        %v3830 = vrcp.pop %v3808
        %v3831 = vrcp.pop %v3811
        %v3832 = vrcp.pop %v3814
        %v3833 = vrcp.pop %v3817
        %v3834 = vrcp.pop %v3820
        %v3835 = vrcp.pop %v3823
        %v3836 = vrcp.pop %v3826
        %v3837 = vrcp.pop %v3829
        %v3838 = vmul.f32 %v3791, %v3830
        %v3839 = vmul.f32 %v3793, %v3831
        %v3840 = vmul.f32 %v3795, %v3832
        %v3841 = vmul.f32 %v3797, %v3833
        %v3842 = vmul.f32 %v3799, %v3834
        %v3843 = vmul.f32 %v3801, %v3835
        %v3844 = vmul.f32 %v3803, %v3836
        %v3845 = vmul.f32 %v3805, %v3837
        %3846 = vrot.lane.b32.xlu0 %v1173, 16
        %v3847 = vpop.permute.xlu0 %3846
        %3848 = vrot.lane.b32.xlu0 %v1177, 16
        %v3849 = vpop.permute.xlu0 %3848
        %3850 = vrot.lane.b32.xlu0 %v1183, 16
        %v3851 = vpop.permute.xlu0 %3850
        %3852 = vrot.lane.b32.xlu0 %v1187, 16
        %v3853 = vpop.permute.xlu0 %3852
        %3854 = vrot.lane.b32.xlu0 %v1193, 16
        %v3855 = vpop.permute.xlu0 %3854
        %3856 = vrot.lane.b32.xlu0 %v1197, 16
        %v3857 = vpop.permute.xlu0 %3856
        %3858 = vrot.lane.b32.xlu0 %v1203, 16
        %v3859 = vpop.permute.xlu0 %3858
        %3860 = vrot.lane.b32.xlu0 %v1207, 16
        %v3861 = vpop.permute.xlu0 %3860
        %3870 = vrot.lane.b32.xlu0 %v1329, 32
        %v3871 = vpop.permute.xlu0 %3870
        %3872 = vrot.lane.b32.xlu0 %v1330, 32
        %v3873 = vpop.permute.xlu0 %3872
        %3874 = vrot.lane.b32.xlu0 %v1331, 32
        %v3875 = vpop.permute.xlu0 %3874
        %3876 = vrot.lane.b32.xlu0 %v1332, 32
        %v3877 = vpop.permute.xlu0 %3876
        %3878 = vrot.lane.b32.xlu0 %v1333, 32
        %v3879 = vpop.permute.xlu0 %3878
        %3880 = vrot.lane.b32.xlu0 %v1334, 32
        %v3881 = vpop.permute.xlu0 %3880
        %3882 = vrot.lane.b32.xlu0 %v1335, 32
        %v3883 = vpop.permute.xlu0 %3882
        %3884 = vrot.lane.b32.xlu0 %v1336, 32
        %v3885 = vpop.permute.xlu0 %3884
        %v3894 = vsel %vm1353, %v3847, %v3871
        %v3895 = vsel %vm1353, %v3849, %v3873
        %v3896 = vsel %vm1353, %v3851, %v3875
        %v3897 = vsel %vm1353, %v3853, %v3877
        %v3898 = vsel %vm1353, %v3855, %v3879
        %v3899 = vsel %vm1353, %v3857, %v3881
        %v3900 = vsel %vm1353, %v3859, %v3883
        %v3901 = vsel %vm1353, %v3861, %v3885
        %v3902 = vpack.c.bf16 %v3839, %v3838
        %v3903 = vpack.c.bf16 %v3841, %v3840
        %v3904 = vpack.c.bf16 %v3843, %v3842
        %v3905 = vpack.c.bf16 %v3845, %v3844
        %v3906 = vpack.c.bf16 %v3895, %v3894
        %v3907 = vpack.c.bf16 %v3897, %v3896
        %v3908 = vpack.c.bf16 %v3899, %v3898
        %v3909 = vpack.c.bf16 %v3901, %v3900
        %v3911 = vsel %vm1443, %v3902, 0
        %v3914 = vsel %vm1443, %v3903, 0
        %v3917 = vsel %vm1443, %v3904, 0
        %v3920 = vsel %vm1443, %v3905, 0
        %3922 = vmatprep.subr.bf16.mxu0 0
        %3923 = vmatpush1.bf16.msra.mxu0 %v3906
        %3924 = vmatprep.subr.bf16.mxu0 0
        %3925 = vmatpush1.bf16.msra.mxu0 %v3907
        %3926 = vmatprep.subr.bf16.mxu0 0
        %3927 = vmatpush1.bf16.msra.mxu0 %v3908
        %3928 = vmatprep.subr.bf16.mxu0 0
        %3929 = vmatpush1.bf16.msra.mxu0 %v3909
        %3930 = vmatprep.subr.bf16.mxu0 0
        %3931 = vmatpush1.bf16.msra.mxu0 0
        %3932 = vmatprep.subr.bf16.mxu0 0
        %3933 = vmatpush1.bf16.msra.mxu0 0
        %3934 = vmatprep.subr.bf16.mxu0 0
        %3935 = vmatpush1.bf16.msra.mxu0 0
        %3936 = vmatprep.subr.bf16.mxu0 0
        %3937 = vmatpush1.bf16.msra.mxu0 0
        %3938 = vmatprep.subr.bf16.mxu0 0
        %3939 = vmatpush1.bf16.msra.mxu0 0
        %3940 = vmatprep.subr.bf16.mxu0 0
        %3941 = vmatpush1.bf16.msra.mxu0 0
        %3942 = vmatprep.subr.bf16.mxu0 0
        %3943 = vmatpush1.bf16.msra.mxu0 0
        %3944 = vmatprep.subr.bf16.mxu0 0
        %3945 = vmatpush1.bf16.msra.mxu0 0
        %3946 = vmatprep.subr.bf16.mxu0 0
        %3947 = vmatpush1.bf16.msra.mxu0 0
        %3948 = vmatprep.subr.bf16.mxu0 0
        %3949 = vmatpush1.bf16.msra.mxu0 0
        %3950 = vmatprep.subr.bf16.mxu0 0
        %3951 = vmatpush1.bf16.msra.mxu0 0
        %3952 = vmatprep.subr.bf16.mxu0 0
        %3953 = vmatpush1.bf16.msra.mxu0 0
        %3954 = vmatprep.mubr.bf16.mxu0 0
        %3955 = vmatmul.mubr.bf16.gmra.mrb[0].mxu0 %v3911
        %v3956 = vpop.f32.mrb[0].mxu0
        %v3957 = vadd.f32 0.0, %v3956
        %v3958 = vpop.f32.mrb[0].mxu0
        %v3959 = vpop.f32.mrb[0].mxu0
        %v3960 = vadd.f32 0.0, %v3959
        %v3961 = vpop.f32.mrb[0].mxu0
        %3962 = vmatprep.mubr.bf16.mxu0 0
        %3963 = vmatmul.mubr.bf16.gmra.mrb[0].mxu0 %v3914
        %v3964 = vpop.f32.mrb[0].mxu0
        %v3965 = vadd.f32 0.0, %v3964
        %v3966 = vpop.f32.mrb[0].mxu0
        %v3967 = vpop.f32.mrb[0].mxu0
        %v3968 = vadd.f32 0.0, %v3967
        %v3969 = vpop.f32.mrb[0].mxu0
        %3970 = vmatprep.mubr.bf16.mxu0 0
        %3971 = vmatmul.mubr.bf16.gmra.mrb[0].mxu0 %v3917
        %v3972 = vpop.f32.mrb[0].mxu0
        %v3973 = vadd.f32 0.0, %v3972
        %v3974 = vpop.f32.mrb[0].mxu0
        %v3975 = vpop.f32.mrb[0].mxu0
        %v3976 = vadd.f32 0.0, %v3975
        %v3977 = vpop.f32.mrb[0].mxu0
        %3978 = vmatprep.mubr.bf16.mxu0 0
        %3979 = vmatmul.mubr.bf16.gmra.mrb[0].mxu0 %v3920
        %v3980 = vpop.f32.mrb[0].mxu0
        %v3981 = vadd.f32 0.0, %v3980
        %v3982 = vpop.f32.mrb[0].mxu0
        %v3983 = vpop.f32.mrb[0].mxu0
        %v3984 = vadd.f32 0.0, %v3983
        %v3985 = vpop.f32.mrb[0].mxu0
        %3986 = vdwg.mxu0
        %3995 = vrot.lane.b32.xlu0 %v1953, 16
        %v3996 = vpop.permute.xlu0 %3995
        %3997 = vrot.lane.b32.xlu0 %v1956, 16
        %v3998 = vpop.permute.xlu0 %3997
        %3999 = vrot.lane.b32.xlu0 %v1961, 16
        %v4000 = vpop.permute.xlu0 %3999
        %4001 = vrot.lane.b32.xlu0 %v1964, 16
        %v4002 = vpop.permute.xlu0 %4001
        %4003 = vrot.lane.b32.xlu0 %v1969, 16
        %v4004 = vpop.permute.xlu0 %4003
        %4005 = vrot.lane.b32.xlu0 %v1972, 16
        %v4006 = vpop.permute.xlu0 %4005
        %4007 = vrot.lane.b32.xlu0 %v1977, 16
        %v4008 = vpop.permute.xlu0 %4007
        %4009 = vrot.lane.b32.xlu0 %v1980, 16
        %v4010 = vpop.permute.xlu0 %4009
        %4027 = vrot.lane.b32.xlu0 %v2287, 32
        %v4028 = vpop.permute.xlu0 %4027
        %4029 = vrot.lane.b32.xlu0 %v2290, 32
        %v4030 = vpop.permute.xlu0 %4029
        %4031 = vrot.lane.b32.xlu0 %v2295, 32
        %v4032 = vpop.permute.xlu0 %4031
        %4033 = vrot.lane.b32.xlu0 %v2298, 32
        %v4034 = vpop.permute.xlu0 %4033
        %4035 = vrot.lane.b32.xlu0 %v2303, 32
        %v4036 = vpop.permute.xlu0 %4035
        %4037 = vrot.lane.b32.xlu0 %v2306, 32
        %v4038 = vpop.permute.xlu0 %4037
        %4039 = vrot.lane.b32.xlu0 %v2311, 32
        %v4040 = vpop.permute.xlu0 %4039
        %4041 = vrot.lane.b32.xlu0 %v2314, 32
        %v4042 = vpop.permute.xlu0 %4041
        %4059 = vrot.lane.b32.xlu0 %v2621, 48
        %v4060 = vpop.permute.xlu0 %4059
        %4061 = vrot.lane.b32.xlu0 %v2624, 48
        %v4062 = vpop.permute.xlu0 %4061
        %4063 = vrot.lane.b32.xlu0 %v2629, 48
        %v4064 = vpop.permute.xlu0 %4063
        %4065 = vrot.lane.b32.xlu0 %v2632, 48
        %v4066 = vpop.permute.xlu0 %4065
        %4067 = vrot.lane.b32.xlu0 %v2637, 48
        %v4068 = vpop.permute.xlu0 %4067
        %4069 = vrot.lane.b32.xlu0 %v2640, 48
        %v4070 = vpop.permute.xlu0 %4069
        %4071 = vrot.lane.b32.xlu0 %v2645, 48
        %v4072 = vpop.permute.xlu0 %4071
        %4073 = vrot.lane.b32.xlu0 %v2648, 48
        %v4074 = vpop.permute.xlu0 %4073
        %4091 = vrot.lane.b32.xlu0 %v2955, 64
        %v4092 = vpop.permute.xlu0 %4091
        %4093 = vrot.lane.b32.xlu0 %v2958, 64
        %v4094 = vpop.permute.xlu0 %4093
        %4095 = vrot.lane.b32.xlu0 %v2963, 64
        %v4096 = vpop.permute.xlu0 %4095
        %4097 = vrot.lane.b32.xlu0 %v2966, 64
        %v4098 = vpop.permute.xlu0 %4097
        %4099 = vrot.lane.b32.xlu0 %v2971, 64
        %v4100 = vpop.permute.xlu0 %4099
        %4101 = vrot.lane.b32.xlu0 %v2974, 64
        %v4102 = vpop.permute.xlu0 %4101
        %4103 = vrot.lane.b32.xlu0 %v2979, 64
        %v4104 = vpop.permute.xlu0 %4103
        %4105 = vrot.lane.b32.xlu0 %v2982, 64
        %v4106 = vpop.permute.xlu0 %4105
        %4123 = vrot.lane.b32.xlu0 %v3289, 80
        %v4124 = vpop.permute.xlu0 %4123
        %4125 = vrot.lane.b32.xlu0 %v3292, 80
        %v4126 = vpop.permute.xlu0 %4125
        %4127 = vrot.lane.b32.xlu0 %v3297, 80
        %v4128 = vpop.permute.xlu0 %4127
        %4129 = vrot.lane.b32.xlu0 %v3300, 80
        %v4130 = vpop.permute.xlu0 %4129
        %4131 = vrot.lane.b32.xlu0 %v3305, 80
        %v4132 = vpop.permute.xlu0 %4131
        %4133 = vrot.lane.b32.xlu0 %v3308, 80
        %v4134 = vpop.permute.xlu0 %4133
        %4135 = vrot.lane.b32.xlu0 %v3313, 80
        %v4136 = vpop.permute.xlu0 %4135
        %4137 = vrot.lane.b32.xlu0 %v3316, 80
        %v4138 = vpop.permute.xlu0 %4137
        %4155 = vrot.lane.b32.xlu0 %v3623, 96
        %v4156 = vpop.permute.xlu0 %4155
        %4157 = vrot.lane.b32.xlu0 %v3626, 96
        %v4158 = vpop.permute.xlu0 %4157
        %4159 = vrot.lane.b32.xlu0 %v3631, 96
        %v4160 = vpop.permute.xlu0 %4159
        %4161 = vrot.lane.b32.xlu0 %v3634, 96
        %v4162 = vpop.permute.xlu0 %4161
        %4163 = vrot.lane.b32.xlu0 %v3639, 96
        %v4164 = vpop.permute.xlu0 %4163
        %4165 = vrot.lane.b32.xlu0 %v3642, 96
        %v4166 = vpop.permute.xlu0 %4165
        %4167 = vrot.lane.b32.xlu0 %v3647, 96
        %v4168 = vpop.permute.xlu0 %4167
        %4169 = vrot.lane.b32.xlu0 %v3650, 96
        %v4170 = vpop.permute.xlu0 %4169
        %4187 = vrot.lane.b32.xlu0 %v3957, 112
        %v4188 = vpop.permute.xlu0 %4187
        %4189 = vrot.lane.b32.xlu0 %v3960, 112
        %v4190 = vpop.permute.xlu0 %4189
        %4191 = vrot.lane.b32.xlu0 %v3965, 112
        %v4192 = vpop.permute.xlu0 %4191
        %4193 = vrot.lane.b32.xlu0 %v3968, 112
        %v4194 = vpop.permute.xlu0 %4193
        %4195 = vrot.lane.b32.xlu0 %v3973, 112
        %v4196 = vpop.permute.xlu0 %4195
        %4197 = vrot.lane.b32.xlu0 %v3976, 112
        %v4198 = vpop.permute.xlu0 %4197
        %4199 = vrot.lane.b32.xlu0 %v3981, 112
        %v4200 = vpop.permute.xlu0 %4199
        %4201 = vrot.lane.b32.xlu0 %v3984, 112
        %v4202 = vpop.permute.xlu0 %4201
        %v4211 = vsel %vm1353, %v1627, %v3996
        %v4212 = vsel %vm1353, %v1630, %v3998
        %v4213 = vsel %vm1353, %v1635, %v4000
        %v4214 = vsel %vm1353, %v1638, %v4002
        %v4215 = vsel %vm1353, %v1643, %v4004
        %v4216 = vsel %vm1353, %v1646, %v4006
        %v4217 = vsel %vm1353, %v1651, %v4008
        %v4218 = vsel %vm1353, %v1654, %v4010
        %vm4219 = vcmask 261120
        %v4220 = vsel %vm4219, %v4211, %v4028
        %v4221 = vsel %vm4219, %v4212, %v4030
        %v4222 = vsel %vm4219, %v4213, %v4032
        %v4223 = vsel %vm4219, %v4214, %v4034
        %v4224 = vsel %vm4219, %v4215, %v4036
        %v4225 = vsel %vm4219, %v4216, %v4038
        %v4226 = vsel %vm4219, %v4217, %v4040
        %v4227 = vsel %vm4219, %v4218, %v4042
        %vm4228 = vcmask 392192
        %v4229 = vsel %vm4228, %v4220, %v4060
        %v4230 = vsel %vm4228, %v4221, %v4062
        %v4231 = vsel %vm4228, %v4222, %v4064
        %v4232 = vsel %vm4228, %v4223, %v4066
        %v4233 = vsel %vm4228, %v4224, %v4068
        %v4234 = vsel %vm4228, %v4225, %v4070
        %v4235 = vsel %vm4228, %v4226, %v4072
        %v4236 = vsel %vm4228, %v4227, %v4074
        %v4237 = vsel %vm1443, %v4229, %v4092
        %v4238 = vsel %vm1443, %v4230, %v4094
        %v4239 = vsel %vm1443, %v4231, %v4096
        %v4240 = vsel %vm1443, %v4232, %v4098
        %v4241 = vsel %vm1443, %v4233, %v4100
        %v4242 = vsel %vm1443, %v4234, %v4102
        %v4243 = vsel %vm1443, %v4235, %v4104
        %v4244 = vsel %vm1443, %v4236, %v4106
        %vm4245 = vcmask 654336
        %v4246 = vsel %vm4245, %v4237, %v4124
        %v4247 = vsel %vm4245, %v4238, %v4126
        %v4248 = vsel %vm4245, %v4239, %v4128
        %v4249 = vsel %vm4245, %v4240, %v4130
        %v4250 = vsel %vm4245, %v4241, %v4132
        %v4251 = vsel %vm4245, %v4242, %v4134
        %v4252 = vsel %vm4245, %v4243, %v4136
        %v4253 = vsel %vm4245, %v4244, %v4138
        %vm4254 = vcmask 785408
        %v4255 = vsel %vm4254, %v4246, %v4156
        %v4256 = vsel %vm4254, %v4247, %v4158
        %v4257 = vsel %vm4254, %v4248, %v4160
        %v4258 = vsel %vm4254, %v4249, %v4162
        %v4259 = vsel %vm4254, %v4250, %v4164
        %v4260 = vsel %vm4254, %v4251, %v4166
        %v4261 = vsel %vm4254, %v4252, %v4168
        %v4262 = vsel %vm4254, %v4253, %v4170
        %vm4263 = vcmask 916480
        %v4264 = vsel %vm4263, %v4255, %v4188
        %v4265 = vsel %vm4263, %v4256, %v4190
        %v4266 = vsel %vm4263, %v4257, %v4192
        %v4267 = vsel %vm4263, %v4258, %v4194
        %v4268 = vsel %vm4263, %v4259, %v4196
        %v4269 = vsel %vm4263, %v4260, %v4198
        %v4270 = vsel %vm4263, %v4261, %v4200
        %v4271 = vsel %vm4263, %v4262, %v4202
        %4280 = vrot.lane.b32.xlu0 %v1627, 112
        %v4281 = vpop.permute.xlu0 %4280
        %4282 = vrot.lane.b32.xlu0 %v1630, 112
        %v4283 = vpop.permute.xlu0 %4282
        %4284 = vrot.lane.b32.xlu0 %v1635, 112
        %v4285 = vpop.permute.xlu0 %4284
        %4286 = vrot.lane.b32.xlu0 %v1638, 112
        %v4287 = vpop.permute.xlu0 %4286
        %4288 = vrot.lane.b32.xlu0 %v1643, 112
        %v4289 = vpop.permute.xlu0 %4288
        %4290 = vrot.lane.b32.xlu0 %v1646, 112
        %v4291 = vpop.permute.xlu0 %4290
        %4292 = vrot.lane.b32.xlu0 %v1651, 112
        %v4293 = vpop.permute.xlu0 %4292
        %4294 = vrot.lane.b32.xlu0 %v1654, 112
        %v4295 = vpop.permute.xlu0 %4294
        %4304 = vrot.lane.b32.xlu0 %v2287, 16
        %v4305 = vpop.permute.xlu0 %4304
        %4306 = vrot.lane.b32.xlu0 %v2290, 16
        %v4307 = vpop.permute.xlu0 %4306
        %4308 = vrot.lane.b32.xlu0 %v2295, 16
        %v4309 = vpop.permute.xlu0 %4308
        %4310 = vrot.lane.b32.xlu0 %v2298, 16
        %v4311 = vpop.permute.xlu0 %4310
        %4312 = vrot.lane.b32.xlu0 %v2303, 16
        %v4313 = vpop.permute.xlu0 %4312
        %4314 = vrot.lane.b32.xlu0 %v2306, 16
        %v4315 = vpop.permute.xlu0 %4314
        %4316 = vrot.lane.b32.xlu0 %v2311, 16
        %v4317 = vpop.permute.xlu0 %4316
        %4318 = vrot.lane.b32.xlu0 %v2314, 16
        %v4319 = vpop.permute.xlu0 %4318
        %4328 = vrot.lane.b32.xlu0 %v2621, 32
        %v4329 = vpop.permute.xlu0 %4328
        %4330 = vrot.lane.b32.xlu0 %v2624, 32
        %v4331 = vpop.permute.xlu0 %4330
        %4332 = vrot.lane.b32.xlu0 %v2629, 32
        %v4333 = vpop.permute.xlu0 %4332
        %4334 = vrot.lane.b32.xlu0 %v2632, 32
        %v4335 = vpop.permute.xlu0 %4334
        %4336 = vrot.lane.b32.xlu0 %v2637, 32
        %v4337 = vpop.permute.xlu0 %4336
        %4338 = vrot.lane.b32.xlu0 %v2640, 32
        %v4339 = vpop.permute.xlu0 %4338
        %4340 = vrot.lane.b32.xlu0 %v2645, 32
        %v4341 = vpop.permute.xlu0 %4340
        %4342 = vrot.lane.b32.xlu0 %v2648, 32
        %v4343 = vpop.permute.xlu0 %4342
        %4352 = vrot.lane.b32.xlu0 %v2955, 48
        %v4353 = vpop.permute.xlu0 %4352
        %4354 = vrot.lane.b32.xlu0 %v2958, 48
        %v4355 = vpop.permute.xlu0 %4354
        %4356 = vrot.lane.b32.xlu0 %v2963, 48
        %v4357 = vpop.permute.xlu0 %4356
        %4358 = vrot.lane.b32.xlu0 %v2966, 48
        %v4359 = vpop.permute.xlu0 %4358
        %4360 = vrot.lane.b32.xlu0 %v2971, 48
        %v4361 = vpop.permute.xlu0 %4360
        %4362 = vrot.lane.b32.xlu0 %v2974, 48
        %v4363 = vpop.permute.xlu0 %4362
        %4364 = vrot.lane.b32.xlu0 %v2979, 48
        %v4365 = vpop.permute.xlu0 %4364
        %4366 = vrot.lane.b32.xlu0 %v2982, 48
        %v4367 = vpop.permute.xlu0 %4366
        %4376 = vrot.lane.b32.xlu0 %v3289, 64
        %v4377 = vpop.permute.xlu0 %4376
        %4378 = vrot.lane.b32.xlu0 %v3292, 64
        %v4379 = vpop.permute.xlu0 %4378
        %4380 = vrot.lane.b32.xlu0 %v3297, 64
        %v4381 = vpop.permute.xlu0 %4380
        %4382 = vrot.lane.b32.xlu0 %v3300, 64
        %v4383 = vpop.permute.xlu0 %4382
        %4384 = vrot.lane.b32.xlu0 %v3305, 64
        %v4385 = vpop.permute.xlu0 %4384
        %4386 = vrot.lane.b32.xlu0 %v3308, 64
        %v4387 = vpop.permute.xlu0 %4386
        %4388 = vrot.lane.b32.xlu0 %v3313, 64
        %v4389 = vpop.permute.xlu0 %4388
        %4390 = vrot.lane.b32.xlu0 %v3316, 64
        %v4391 = vpop.permute.xlu0 %4390
        %4400 = vrot.lane.b32.xlu0 %v3623, 80
        %v4401 = vpop.permute.xlu0 %4400
        %4402 = vrot.lane.b32.xlu0 %v3626, 80
        %v4403 = vpop.permute.xlu0 %4402
        %4404 = vrot.lane.b32.xlu0 %v3631, 80
        %v4405 = vpop.permute.xlu0 %4404
        %4406 = vrot.lane.b32.xlu0 %v3634, 80
        %v4407 = vpop.permute.xlu0 %4406
        %4408 = vrot.lane.b32.xlu0 %v3639, 80
        %v4409 = vpop.permute.xlu0 %4408
        %4410 = vrot.lane.b32.xlu0 %v3642, 80
        %v4411 = vpop.permute.xlu0 %4410
        %4412 = vrot.lane.b32.xlu0 %v3647, 80
        %v4413 = vpop.permute.xlu0 %4412
        %4414 = vrot.lane.b32.xlu0 %v3650, 80
        %v4415 = vpop.permute.xlu0 %4414
        %4424 = vrot.lane.b32.xlu0 %v3957, 96
        %v4425 = vpop.permute.xlu0 %4424
        %4426 = vrot.lane.b32.xlu0 %v3960, 96
        %v4427 = vpop.permute.xlu0 %4426
        %4428 = vrot.lane.b32.xlu0 %v3965, 96
        %v4429 = vpop.permute.xlu0 %4428
        %4430 = vrot.lane.b32.xlu0 %v3968, 96
        %v4431 = vpop.permute.xlu0 %4430
        %4432 = vrot.lane.b32.xlu0 %v3973, 96
        %v4433 = vpop.permute.xlu0 %4432
        %4434 = vrot.lane.b32.xlu0 %v3976, 96
        %v4435 = vpop.permute.xlu0 %4434
        %4436 = vrot.lane.b32.xlu0 %v3981, 96
        %v4437 = vpop.permute.xlu0 %4436
        %4438 = vrot.lane.b32.xlu0 %v3984, 96
        %v4439 = vpop.permute.xlu0 %4438
        %v4448 = vsel %vm1353, %v4281, %v1953
        %v4449 = vsel %vm1353, %v4283, %v1956
        %v4450 = vsel %vm1353, %v4285, %v1961
        %v4451 = vsel %vm1353, %v4287, %v1964
        %v4452 = vsel %vm1353, %v4289, %v1969
        %v4453 = vsel %vm1353, %v4291, %v1972
        %v4454 = vsel %vm1353, %v4293, %v1977
        %v4455 = vsel %vm1353, %v4295, %v1980
        %v4456 = vsel %vm4219, %v4448, %v4305
        %v4457 = vsel %vm4219, %v4449, %v4307
        %v4458 = vsel %vm4219, %v4450, %v4309
        %v4459 = vsel %vm4219, %v4451, %v4311
        %v4460 = vsel %vm4219, %v4452, %v4313
        %v4461 = vsel %vm4219, %v4453, %v4315
        %v4462 = vsel %vm4219, %v4454, %v4317
        %v4463 = vsel %vm4219, %v4455, %v4319
        %v4464 = vsel %vm4228, %v4456, %v4329
        %v4465 = vsel %vm4228, %v4457, %v4331
        %v4466 = vsel %vm4228, %v4458, %v4333
        %v4467 = vsel %vm4228, %v4459, %v4335
        %v4468 = vsel %vm4228, %v4460, %v4337
        %v4469 = vsel %vm4228, %v4461, %v4339
        %v4470 = vsel %vm4228, %v4462, %v4341
        %v4471 = vsel %vm4228, %v4463, %v4343
        %v4472 = vsel %vm1443, %v4464, %v4353
        %v4473 = vsel %vm1443, %v4465, %v4355
        %v4474 = vsel %vm1443, %v4466, %v4357
        %v4475 = vsel %vm1443, %v4467, %v4359
        %v4476 = vsel %vm1443, %v4468, %v4361
        %v4477 = vsel %vm1443, %v4469, %v4363
        %v4478 = vsel %vm1443, %v4470, %v4365
        %v4479 = vsel %vm1443, %v4471, %v4367
        %v4480 = vsel %vm4245, %v4472, %v4377
        %v4481 = vsel %vm4245, %v4473, %v4379
        %v4482 = vsel %vm4245, %v4474, %v4381
        %v4483 = vsel %vm4245, %v4475, %v4383
        %v4484 = vsel %vm4245, %v4476, %v4385
        %v4485 = vsel %vm4245, %v4477, %v4387
        %v4486 = vsel %vm4245, %v4478, %v4389
        %v4487 = vsel %vm4245, %v4479, %v4391
        %v4488 = vsel %vm4254, %v4480, %v4401
        %v4489 = vsel %vm4254, %v4481, %v4403
        %v4490 = vsel %vm4254, %v4482, %v4405
        %v4491 = vsel %vm4254, %v4483, %v4407
        %v4492 = vsel %vm4254, %v4484, %v4409
        %v4493 = vsel %vm4254, %v4485, %v4411
        %v4494 = vsel %vm4254, %v4486, %v4413
        %v4495 = vsel %vm4254, %v4487, %v4415
        %v4496 = vsel %vm4263, %v4488, %v4425
        %v4497 = vsel %vm4263, %v4489, %v4427
        %v4498 = vsel %vm4263, %v4490, %v4429
        %v4499 = vsel %vm4263, %v4491, %v4431
        %v4500 = vsel %vm4263, %v4492, %v4433
        %v4501 = vsel %vm4263, %v4493, %v4435
        %v4502 = vsel %vm4263, %v4494, %v4437
        %v4503 = vsel %vm4263, %v4495, %v4439
        %v4504 = vpack.c.bf16 %v4265, %v4264
        %v4505 = vpack.c.bf16 %v4267, %v4266
        %v4506 = vpack.c.bf16 %v4269, %v4268
        %v4507 = vpack.c.bf16 %v4271, %v4270
        %v4508 = vld [vmem:[%s11] sm:$0xf]
        %v4509 = vld [vmem:[%s11 + $0x4] sm:$0xf]
        %v4510 = vld [vmem:[%s11 + $0x8] sm:$0xf]
        %v4511 = vld [vmem:[%s11 + $0xc] sm:$0xf]
        %v4512 = vld [vmem:[%s11 + $0x10] sm:$0xf]
        %v4513 = vld [vmem:[%s11 + $0x14] sm:$0xf]
        %v4514 = vld [vmem:[%s11 + $0x18] sm:$0xf]
        %v4515 = vld [vmem:[%s11 + $0x1c] sm:$0xf]
        %v4516 = vld [vmem:[%s11 + $0x20] sm:$0xf]
        %v4517 = vld [vmem:[%s11 + $0x24] sm:$0xf]
        %v4518 = vld [vmem:[%s11 + $0x28] sm:$0xf]
        %v4519 = vld [vmem:[%s11 + $0x2c] sm:$0xf]
        %v4520 = vld [vmem:[%s11 + $0x30] sm:$0xf]
        %v4521 = vld [vmem:[%s11 + $0x34] sm:$0xf]
        %v4522 = vld [vmem:[%s11 + $0x38] sm:$0xf]
        %v4523 = vld [vmem:[%s11 + $0x3c] sm:$0xf]
        %v4524 = vld [vmem:[%s12] sm:$0x1]
        %v4526 = vlaneseq
        %v4527 = vshrl.u32 %v4526, 7
        %v4528 = vsub.s32 0, %v4527
        %v4529 = vrot.slane %v4524, %v4528
        %v4547 = vunpack.c.l.b16 %v4508
        %v4548 = vunpack.c.l.b16 %v4509
        %v4549 = vunpack.c.l.b16 %v4510
        %v4550 = vunpack.c.l.b16 %v4511
        %v4551 = vunpack.c.l.b16 %v4512
        %v4552 = vunpack.c.l.b16 %v4513
        %v4553 = vunpack.c.l.b16 %v4514
        %v4554 = vunpack.c.l.b16 %v4515
        %v4555 = vunpack.c.l.b16 %v4516
        %v4556 = vunpack.c.l.b16 %v4517
        %v4557 = vunpack.c.l.b16 %v4518
        %v4558 = vunpack.c.l.b16 %v4519
        %v4559 = vunpack.c.l.b16 %v4520
        %v4560 = vunpack.c.l.b16 %v4521
        %v4561 = vunpack.c.l.b16 %v4522
        %v4562 = vunpack.c.l.b16 %v4523
        %v4563 = vpack.c.b16 %v4548, %v4547
        %v4564 = vpack.c.b16 %v4550, %v4549
        %v4565 = vpack.c.b16 %v4552, %v4551
        %v4566 = vpack.c.b16 %v4554, %v4553
        %v4567 = vpack.c.b16 %v4556, %v4555
        %v4568 = vpack.c.b16 %v4558, %v4557
        %v4569 = vpack.c.b16 %v4560, %v4559
        %v4570 = vpack.c.b16 %v4562, %v4561
        %4579 = vmatprep.subr.bf16.mxu0 0
        %4580 = vmatpush1.bf16.msra.mxu0 %v4563
        %4581 = vmatprep.subr.bf16.mxu0 0
        %4582 = vmatpush1.bf16.msra.mxu0 %v4564
        %4583 = vmatprep.subr.bf16.mxu0 0
        %4584 = vmatpush1.bf16.msra.mxu0 %v4565
        %4585 = vmatprep.subr.bf16.mxu0 0
        %4586 = vmatpush1.bf16.msra.mxu0 %v4566
        %4587 = vmatprep.subr.bf16.mxu0 0
        %4588 = vmatpush1.bf16.msra.mxu0 %v4567
        %4589 = vmatprep.subr.bf16.mxu0 0
        %4590 = vmatpush1.bf16.msra.mxu0 %v4568
        %4591 = vmatprep.subr.bf16.mxu0 0
        %4592 = vmatpush1.bf16.msra.mxu0 %v4569
        %4593 = vmatprep.subr.bf16.mxu0 0
        %4594 = vmatpush1.bf16.msra.mxu0 %v4570
        %4595 = vmatprep.subr.bf16.mxu0 0
        %4596 = vmatpush1.bf16.msra.mxu0 0
        %4597 = vmatprep.subr.bf16.mxu0 0
        %4598 = vmatpush1.bf16.msra.mxu0 0
        %4599 = vmatprep.subr.bf16.mxu0 0
        %4600 = vmatpush1.bf16.msra.mxu0 0
        %4601 = vmatprep.subr.bf16.mxu0 0
        %4602 = vmatpush1.bf16.msra.mxu0 0
        %4603 = vmatprep.subr.bf16.mxu0 0
        %4604 = vmatpush1.bf16.msra.mxu0 0
        %4605 = vmatprep.subr.bf16.mxu0 0
        %4606 = vmatpush1.bf16.msra.mxu0 0
        %4607 = vmatprep.subr.bf16.mxu0 0
        %4608 = vmatpush1.bf16.msra.mxu0 0
        %4609 = vmatprep.subr.bf16.mxu0 0
        %4610 = vmatpush1.bf16.msra.mxu0 0
        %4611 = vmatprep.mubr.bf16.mxu0 0
        %4612 = vmatmul.mubr.bf16.gmra.mrb[0].mxu0 %v4504
        %v4613 = vpop.f32.mrb[0].mxu0
        %v4614 = vadd.f32 %v4529, %v4613
        %v4615 = vpop.f32.mrb[0].mxu0
        %v4616 = vpop.f32.mrb[0].mxu0
        %v4617 = vadd.f32 %v4529, %v4616
        %v4618 = vpop.f32.mrb[0].mxu0
        %4619 = vmatprep.mubr.bf16.mxu0 0
        %4620 = vmatmul.mubr.bf16.gmra.mrb[0].mxu0 %v4505
        %v4621 = vpop.f32.mrb[0].mxu0
        %v4622 = vadd.f32 %v4529, %v4621
        %v4623 = vpop.f32.mrb[0].mxu0
        %v4624 = vpop.f32.mrb[0].mxu0
        %v4625 = vadd.f32 %v4529, %v4624
        %v4626 = vpop.f32.mrb[0].mxu0
        %4627 = vmatprep.mubr.bf16.mxu0 0
        %4628 = vmatmul.mubr.bf16.gmra.mrb[0].mxu0 %v4506
        %v4629 = vpop.f32.mrb[0].mxu0
        %v4630 = vadd.f32 %v4529, %v4629
        %v4631 = vpop.f32.mrb[0].mxu0
        %v4632 = vpop.f32.mrb[0].mxu0
        %v4633 = vadd.f32 %v4529, %v4632
        %v4634 = vpop.f32.mrb[0].mxu0
        %4635 = vmatprep.mubr.bf16.mxu0 0
        %4636 = vmatmul.mubr.bf16.gmra.mrb[0].mxu0 %v4507
        %v4637 = vpop.f32.mrb[0].mxu0
        %v4638 = vadd.f32 %v4529, %v4637
        %v4639 = vpop.f32.mrb[0].mxu0
        %v4640 = vpop.f32.mrb[0].mxu0
        %v4641 = vadd.f32 %v4529, %v4640
        %v4642 = vpop.f32.mrb[0].mxu0
        %4643 = vdwg.mxu0
        %v4644 = vadd.f32 %v4614, %v772
        %v4645 = vadd.f32 %v4617, %v773
        %v4646 = vadd.f32 %v4622, %v774
        %v4647 = vadd.f32 %v4625, %v775
        %v4648 = vadd.f32 %v4630, %v776
        %v4649 = vadd.f32 %v4633, %v777
        %v4650 = vadd.f32 %v4638, %v778
        %v4651 = vadd.f32 %v4641, %v779
        %4652 = vst [vmem:[%s643] sm:$0xff] %v4644
        %4653 = vst [vmem:[%s643 + $0x8] sm:$0xff] %v4645
        %4654 = vst [vmem:[%s643 + $0x10] sm:$0xff] %v4646
        %4655 = vst [vmem:[%s643 + $0x18] sm:$0xff] %v4647
        %4656 = vst [vmem:[%s643 + $0x20] sm:$0xff] %v4648
        %4657 = vst [vmem:[%s643 + $0x28] sm:$0xff] %v4649
        %4658 = vst [vmem:[%s643 + $0x30] sm:$0xff] %v4650
        %4659 = vst [vmem:[%s643 + $0x38] sm:$0xff] %v4651
        %v4660 = vsub.f32 %v4496, %v1329
        %v4661 = vsub.f32 %v4497, %v1330
        %v4662 = vsub.f32 %v4498, %v1331
        %v4663 = vsub.f32 %v4499, %v1332
        %v4664 = vsub.f32 %v4500, %v1333
        %v4665 = vsub.f32 %v4501, %v1334
        %v4666 = vsub.f32 %v4502, %v1335
        %v4667 = vsub.f32 %v4503, %v1336
        %v4668 = vpack.c.bf16 %v4661, %v4660
        %v4669 = vpack.c.bf16 %v4663, %v4662
        %v4670 = vpack.c.bf16 %v4665, %v4664
        %v4671 = vpack.c.bf16 %v4667, %v4666
        %v4672 = vld [vmem:[%s13] sm:$0xf]
        %v4673 = vld [vmem:[%s13 + $0x4] sm:$0xf]
        %v4674 = vld [vmem:[%s13 + $0x8] sm:$0xf]
        %v4675 = vld [vmem:[%s13 + $0xc] sm:$0xf]
        %v4676 = vld [vmem:[%s13 + $0x10] sm:$0xf]
        %v4677 = vld [vmem:[%s13 + $0x14] sm:$0xf]
        %v4678 = vld [vmem:[%s13 + $0x18] sm:$0xf]
        %v4679 = vld [vmem:[%s13 + $0x1c] sm:$0xf]
        %v4680 = vld [vmem:[%s13 + $0x20] sm:$0xf]
        %v4681 = vld [vmem:[%s13 + $0x24] sm:$0xf]
        %v4682 = vld [vmem:[%s13 + $0x28] sm:$0xf]
        %v4683 = vld [vmem:[%s13 + $0x2c] sm:$0xf]
        %v4684 = vld [vmem:[%s13 + $0x30] sm:$0xf]
        %v4685 = vld [vmem:[%s13 + $0x34] sm:$0xf]
        %v4686 = vld [vmem:[%s13 + $0x38] sm:$0xf]
        %v4687 = vld [vmem:[%s13 + $0x3c] sm:$0xf]
        %v4688 = vld [vmem:[%s14] sm:$0x1]
        %v4690 = vlaneseq
        %v4691 = vshrl.u32 %v4690, 7
        %v4692 = vsub.s32 0, %v4691
        %v4693 = vrot.slane %v4688, %v4692
        %v4711 = vunpack.c.l.b16 %v4672
        %v4712 = vunpack.c.l.b16 %v4673
        %v4713 = vunpack.c.l.b16 %v4674
        %v4714 = vunpack.c.l.b16 %v4675
        %v4715 = vunpack.c.l.b16 %v4676
        %v4716 = vunpack.c.l.b16 %v4677
        %v4717 = vunpack.c.l.b16 %v4678
        %v4718 = vunpack.c.l.b16 %v4679
        %v4719 = vunpack.c.l.b16 %v4680
        %v4720 = vunpack.c.l.b16 %v4681
        %v4721 = vunpack.c.l.b16 %v4682
        %v4722 = vunpack.c.l.b16 %v4683
        %v4723 = vunpack.c.l.b16 %v4684
        %v4724 = vunpack.c.l.b16 %v4685
        %v4725 = vunpack.c.l.b16 %v4686
        %v4726 = vunpack.c.l.b16 %v4687
        %v4727 = vpack.c.b16 %v4712, %v4711
        %v4728 = vpack.c.b16 %v4714, %v4713
        %v4729 = vpack.c.b16 %v4716, %v4715
        %v4730 = vpack.c.b16 %v4718, %v4717
        %v4731 = vpack.c.b16 %v4720, %v4719
        %v4732 = vpack.c.b16 %v4722, %v4721
        %v4733 = vpack.c.b16 %v4724, %v4723
        %v4734 = vpack.c.b16 %v4726, %v4725
        %4743 = vmatprep.subr.bf16.mxu0 0
        %4744 = vmatpush1.bf16.msra.mxu0 %v4727
        %4745 = vmatprep.subr.bf16.mxu0 0
        %4746 = vmatpush1.bf16.msra.mxu0 %v4728
        %4747 = vmatprep.subr.bf16.mxu0 0
        %4748 = vmatpush1.bf16.msra.mxu0 %v4729
        %4749 = vmatprep.subr.bf16.mxu0 0
        %4750 = vmatpush1.bf16.msra.mxu0 %v4730
        %4751 = vmatprep.subr.bf16.mxu0 0
        %4752 = vmatpush1.bf16.msra.mxu0 %v4731
        %4753 = vmatprep.subr.bf16.mxu0 0
        %4754 = vmatpush1.bf16.msra.mxu0 %v4732
        %4755 = vmatprep.subr.bf16.mxu0 0
        %4756 = vmatpush1.bf16.msra.mxu0 %v4733
        %4757 = vmatprep.subr.bf16.mxu0 0
        %4758 = vmatpush1.bf16.msra.mxu0 %v4734
        %4759 = vmatprep.subr.bf16.mxu0 0
        %4760 = vmatpush1.bf16.msra.mxu0 0
        %4761 = vmatprep.subr.bf16.mxu0 0
        %4762 = vmatpush1.bf16.msra.mxu0 0
        %4763 = vmatprep.subr.bf16.mxu0 0
        %4764 = vmatpush1.bf16.msra.mxu0 0
        %4765 = vmatprep.subr.bf16.mxu0 0
        %4766 = vmatpush1.bf16.msra.mxu0 0
        %4767 = vmatprep.subr.bf16.mxu0 0
        %4768 = vmatpush1.bf16.msra.mxu0 0
        %4769 = vmatprep.subr.bf16.mxu0 0
        %4770 = vmatpush1.bf16.msra.mxu0 0
        %4771 = vmatprep.subr.bf16.mxu0 0
        %4772 = vmatpush1.bf16.msra.mxu0 0
        %4773 = vmatprep.subr.bf16.mxu0 0
        %4774 = vmatpush1.bf16.msra.mxu0 0
        %4775 = vmatprep.mubr.bf16.mxu0 0
        %4776 = vmatmul.mubr.bf16.gmra.mrb[0].mxu0 %v4668
        %v4777 = vpop.f32.mrb[0].mxu0
        %v4778 = vadd.f32 %v4693, %v4777
        %v4779 = vpop.f32.mrb[0].mxu0
        %v4780 = vpop.f32.mrb[0].mxu0
        %v4781 = vadd.f32 %v4693, %v4780
        %v4782 = vpop.f32.mrb[0].mxu0
        %4783 = vmatprep.mubr.bf16.mxu0 0
        %4784 = vmatmul.mubr.bf16.gmra.mrb[0].mxu0 %v4669
        %v4785 = vpop.f32.mrb[0].mxu0
        %v4786 = vadd.f32 %v4693, %v4785
        %v4787 = vpop.f32.mrb[0].mxu0
        %v4788 = vpop.f32.mrb[0].mxu0
        %v4789 = vadd.f32 %v4693, %v4788
        %v4790 = vpop.f32.mrb[0].mxu0
        %4791 = vmatprep.mubr.bf16.mxu0 0
        %4792 = vmatmul.mubr.bf16.gmra.mrb[0].mxu0 %v4670
        %v4793 = vpop.f32.mrb[0].mxu0
        %v4794 = vadd.f32 %v4693, %v4793
        %v4795 = vpop.f32.mrb[0].mxu0
        %v4796 = vpop.f32.mrb[0].mxu0
        %v4797 = vadd.f32 %v4693, %v4796
        %v4798 = vpop.f32.mrb[0].mxu0
        %4799 = vmatprep.mubr.bf16.mxu0 0
        %4800 = vmatmul.mubr.bf16.gmra.mrb[0].mxu0 %v4671
        %v4801 = vpop.f32.mrb[0].mxu0
        %v4802 = vadd.f32 %v4693, %v4801
        %v4803 = vpop.f32.mrb[0].mxu0
        %v4804 = vpop.f32.mrb[0].mxu0
        %v4805 = vadd.f32 %v4693, %v4804
        %v4806 = vpop.f32.mrb[0].mxu0
        %4807 = vdwg.mxu0
        %4808 = vst [vmem:[%s602] sm:$0xff] %v4778
        %4809 = vst [vmem:[%s602 + $0x8] sm:$0xff] %v4781
        %4810 = vst [vmem:[%s602 + $0x10] sm:$0xff] %v4786
        %4811 = vst [vmem:[%s602 + $0x18] sm:$0xff] %v4789
        %4812 = vst [vmem:[%s602 + $0x20] sm:$0xff] %v4794
        %4813 = vst [vmem:[%s602 + $0x28] sm:$0xff] %v4797
        %4814 = vst [vmem:[%s602 + $0x30] sm:$0xff] %v4802
        %4815 = vst [vmem:[%s602 + $0x38] sm:$0xff] %v4805
        %p4816 = scmp.lt.s32.totalorder %s31, 3
        %s4817 = scalar_select %p4816, %s31, 3
        %s4818 = smul.addr %s4817, 8
        %s4819 = smul.addr %s4818, 8
        %s4820 = scalar_lea.vmem %s15, %s4819
        %s4821 = sand.u32 %s416, 1
        %s4822 = scalar_lea.sflag [#allocation3], %s4821
        %s4823 = sand.u32 %s416, 1
        %s4824 = smul.addr %s4823, 64
        %s4825 = scalar_lea.vmem [#allocation2], %s4824
        // Predicated region
        $region81: #{inter_frame_attention.3} parent=79 // pred_check
          %p4826 = pneg %p400
        $region82: #{inter_frame_attention.3} parent=79 // pred_check_branch
          %4828 = sbr.rel (%p4826) target = $region84
        $region83: #{inter_frame_attention.3} parent=79 // pred_region
          _
        $region84: #{inter_frame_attention.3} parent=79 // pred_fallthru
          _
        // Predicated region
        $region85: #{inter_frame_attention.3} parent=79 // pred_check
          %p4829 = pneg %p426
        $region86: #{inter_frame_attention.3} parent=79 // pred_check_branch
          %4831 = sbr.rel (%p4829) target = $region88
        $region87: #{inter_frame_attention.3} parent=79 // pred_region
          %s4833 = ssub.s32 1024, 1024
          %4834 = vsyncadd %s4822, %s4833
          %s4835 = smul.addr %s31, 8
          %s4836 = smul.addr %s4835, 128
          %s4837 = scalar_lea.hbm %s16, %s4836
          %s4838 = sshll.u32 %s4825, 4
          %s4839 = int_to_ptr.vmem [resolvable:$true] %s4838
          %4844 = dma.vmem_to_hbm [thread:$0]  %s4839, 1024, %s4837, %s4822, 128, 128, 8
        $region88: #{inter_frame_attention.3} parent=79 // pred_fallthru
          _
      $region80: #{inter_frame_attention.3} parent=5 // pred_fallthru
        _
      %p4845 = scmp.le.s32.totalorder 2, %s26
      // Predicated region
      $region89: #{inter_frame_attention.3} parent=5 // pred_check
        %p4846 = pneg %p4845
      $region90: #{inter_frame_attention.3} parent=5 // pred_check_branch
        %4848 = sbr.rel (%p4846) target = $region92
      $region91: #{inter_frame_attention.3} parent=5 // pred_region
        %s4849 = ssub.s32 %s26, 2
        // Predicated region
        $region93: #{inter_frame_attention.3} parent=91 // pred_check
          %p4850 = pneg %p406
        $region94: #{inter_frame_attention.3} parent=91 // pred_check_branch
          %4852 = sbr.rel (%p4850) target = $region96
        $region95: #{inter_frame_attention.3} parent=91 // pred_region
          %p4853 = scmp.lt.s32.totalorder %s32, 3
          %s4854 = scalar_select %p4853, %s32, 3
          %s4855 = smul.addr %s4854, 8
          %s4856 = smul.addr %s4855, 8
          %s4857 = scalar_lea.vmem %s15, %s4856
        $region96: #{inter_frame_attention.3} parent=91 // pred_fallthru
          _
        // Predicated region
        $region97: #{inter_frame_attention.3} parent=91 // pred_check
          %p4858 = pneg %p432
        $region98: #{inter_frame_attention.3} parent=91 // pred_check_branch
          %4860 = sbr.rel (%p4858) target = $region100
        $region99: #{inter_frame_attention.3} parent=91 // pred_region
          %s4861 = sand.u32 %s417, 1
          %s4862 = scalar_lea.sflag [#allocation3], %s4861
          %s4863 = sand.u32 %s417, 1
          %s4864 = smul.addr %s4863, 64
          %s4865 = scalar_lea.vmem [#allocation2], %s4864
          %4866 = dma.done %s4862, 1024
        $region100: #{inter_frame_attention.3} parent=91 // pred_fallthru
          _
      $region92: #{inter_frame_attention.3} parent=5 // pred_fallthru
        _
    $region6: #{inter_frame_attention.3} parent=1 // loop_footer
      %s30 = sadd.s32 1, %s26
    $region7: #{inter_frame_attention.3} parent=1 // loop_footer_branch
      %25 = sbr.rel target = $region3
    $region8: #{inter_frame_attention.3} parent=1 // loop_exit
      _
    %4867 = vsyncpa [#allocation3], 1
    %s4868 = scalar_lea.sflag [#allocation3], 1
    %4869 = vsyncpa %s4868, 1

</llo_original>
